<compile_context>
chip_gen: v6e
topology: v6e:2x2x1
jax: 0.10.0
libtpu: 0.0.40
codegen_flags: <defaults>
</compile_context>

<pallas_src>
import numpy as np

import jax
import jax.numpy as jnp
from jax.experimental import pallas as pl
from jax.experimental.pallas import tpu as pltpu


# ----------------------------------------------------------------------------
# Constant 0/1 spatial operators (numpy, built once; activations are (C, H*W)
# with flat index p = h*W + w on the lane axis).
# ----------------------------------------------------------------------------
def _shift_mats(H, W):
    """(9, HW, HW): a @ T[s] is the (dy,dx)-shifted, zero-padded tap of a,
    with s = (dy+1)*3 + (dx+1)."""
    HW = H * W
    p = np.arange(HW)
    h, w = p // W, p % W
    mats = []
    for dy in (-1, 0, 1):
        for dx in (-1, 0, 1):
            valid = (h + dy >= 0) & (h + dy < H) & (w + dx >= 0) & (w + dx < W)
            src = p + dy * W + dx
            t = np.zeros((HW, HW), np.float32)
            t[src[valid], p[valid]] = 1.0
            mats.append(t)
    return np.stack(mats)


def _pool_mats(H, W):
    """(4, HW, HW/4): elementwise max over j of (a @ P[j]) is the 2x2/stride-2
    max pool of a."""
    Ho, Wo = H // 2, W // 2
    q = np.arange(Ho * Wo)
    base = (q // Wo) * 2 * W + (q % Wo) * 2
    mats = []
    for off in (0, 1, W, W + 1):
        m = np.zeros((H * W, Ho * Wo), np.float32)
        m[base + off, q] = 1.0
        mats.append(m)
    return np.stack(mats)


def _upsample_mat(Ho, Wo):
    """(Ho*Wo, 4*Ho*Wo): a @ U is the nearest-neighbour 2x upsample of a."""
    H, W = 2 * Ho, 2 * Wo
    p = np.arange(H * W)
    src = (p // W // 2) * Wo + (p % W) // 2
    u = np.zeros((Ho * Wo, H * W), np.float32)
    u[src, p] = 1.0
    return u


# ----------------------------------------------------------------------------
# The fused kernel: whole network for one batch element per grid step.
# ----------------------------------------------------------------------------
def _lanenet_kernel(x_ref, w1_ref, b1_ref, w2_ref, b2_ref,
                    wd1_ref, bd1_ref, wd2_ref, bd2_ref,
                    ta_ref, tb_ref, tc_ref, pa_ref, pb_ref,
                    u1_ref, u2_ref, out_ref):

    def conv3x3(a, w_ref, b_ref, t_ref, relu):
        # a: (Cin, HW); w_ref: (9, Cout, Cin); b_ref: (Cout, 1);
        # t_ref: (9, HW, HW) shift operators.  All work is MXU matmuls.
        acc = None
        for s in range(9):
            tap = jnp.dot(a, t_ref[s], preferred_element_type=jnp.float32)
            part = jnp.dot(w_ref[s], tap, preferred_element_type=jnp.float32)
            acc = part if acc is None else acc + part
        acc = acc + b_ref[...]
        return jnp.maximum(acc, 0.0) if relu else acc

    def maxpool2(a, p_ref):
        # a: (C, HW); p_ref: (4, HW, HW/4)
        m = jnp.dot(a, p_ref[0], preferred_element_type=jnp.float32)
        for j in range(1, 4):
            m = jnp.maximum(
                m, jnp.dot(a, p_ref[j], preferred_element_type=jnp.float32))
        return m

    x = x_ref[0]                                                # (3, 256)

    # Encoder (ReLU + pooling fused, everything stays in VMEM).
    h = conv3x3(x, w1_ref, b1_ref, ta_ref, relu=True)           # (16, 256)
    h = maxpool2(h, pa_ref)                                     # (16, 64)
    h = conv3x3(h, w2_ref, b2_ref, tb_ref, relu=True)           # (32, 64)
    enc = maxpool2(h, pb_ref)                                   # (32, 16)

    # Both decoder heads fused (dec1 Cout-concat, dec2 block-diagonal).
    d = conv3x3(enc, wd1_ref, bd1_ref, tc_ref, relu=True)       # (32, 16)
    d = jnp.dot(d, u1_ref[...], preferred_element_type=jnp.float32)   # (32, 64)
    d = conv3x3(d, wd2_ref, bd2_ref, tb_ref, relu=False)        # (4, 64)
    out_ref[0] = jnp.dot(d, u2_ref[...],
                         preferred_element_type=jnp.float32)    # (4, 256)


# ----------------------------------------------------------------------------
# Parameters (same deterministic synthetic init / structure as before).
# ----------------------------------------------------------------------------
def _conv_init(key, ci, co):
    kw, kb = jax.random.split(key)
    scale = 1.0 / jnp.sqrt(jnp.float32(9 * ci))
    w = jax.random.uniform(kw, (3, 3, ci, co), jnp.float32, -scale, scale)
    b = jax.random.uniform(kb, (co,), jnp.float32, -scale, scale)
    return w, b


def init_params(key, cin=3, c1=16, c2=32, num_classes=2):
    keys = jax.random.split(key, 6)
    return {
        "enc1": _conv_init(keys[0], cin, c1),
        "enc2": _conv_init(keys[1], c1, c2),
        "embedding": {
            "dec1": _conv_init(keys[2], c2, c1),
            "dec2": _conv_init(keys[3], c1, num_classes),
        },
        "segmentation": {
            "dec1": _conv_init(keys[4], c2, c1),
            "dec2": _conv_init(keys[5], c1, num_classes),
        },
    }


def _pack_w(w):
    # (3,3,Cin,Cout) -> (9, Cout, Cin), tap index s = ky*3 + kx.
    _, _, cin, cout = w.shape
    return jnp.transpose(w.reshape(9, cin, cout), (0, 2, 1))


# ----------------------------------------------------------------------------
# Forward pass: NCHW in, (embedding, segmentation) NCHW out — no transposes.
# ----------------------------------------------------------------------------
def lanenet_forward(params, x_nchw):
    N, Cin, H, W = x_nchw.shape
    assert H % 4 == 0 and W % 4 == 0, "H and W must be divisible by 4"
    HW = H * W
    H2, W2, H4, W4 = H // 2, W // 2, H // 4, W // 4

    # NCHW -> (N, C, H*W): free row-major reshape (flat index = h*W + w).
    x = x_nchw.reshape(N, Cin, HW).astype(jnp.float32)

    # --- pack weights into the kernel's tap-major (9, Cout, Cin) layout ---
    pw1, pb1 = _pack_w(params["enc1"][0]), params["enc1"][1].reshape(-1, 1)
    pw2, pb2 = _pack_w(params["enc2"][0]), params["enc2"][1].reshape(-1, 1)

    # dec1 of both heads fused along Cout (channels 0..c1-1 = embedding).
    pwd1 = jnp.concatenate([_pack_w(params["embedding"]["dec1"][0]),
                            _pack_w(params["segmentation"]["dec1"][0])], axis=1)
    pbd1 = jnp.concatenate([params["embedding"]["dec1"][1],
                            params["segmentation"]["dec1"][1]]).reshape(-1, 1)

    # dec2 of both heads as one block-diagonal weight (rows 0..nc-1 = embedding).
    wemb2 = _pack_w(params["embedding"]["dec2"][0])        # (9, nc, c1)
    wseg2 = _pack_w(params["segmentation"]["dec2"][0])     # (9, nc, c1)
    nc, cmid = wemb2.shape[1], wemb2.shape[2]
    pwd2 = jnp.zeros((9, 2 * nc, 2 * cmid), jnp.float32)
    pwd2 = pwd2.at[:, :nc, :cmid].set(wemb2)
    pwd2 = pwd2.at[:, nc:, cmid:].set(wseg2)
    pbd2 = jnp.concatenate([params["embedding"]["dec2"][1],
                            params["segmentation"]["dec2"][1]]).reshape(-1, 1)

    # --- constant spatial operators (shift / pool / upsample as matmuls) ---
    TA = jnp.asarray(_shift_mats(H, W))         # 16x16 taps
    TB = jnp.asarray(_shift_mats(H2, W2))       # 8x8   taps
    TC = jnp.asarray(_shift_mats(H4, W4))       # 4x4   taps
    PA = jnp.asarray(_pool_mats(H, W))          # pool 16 -> 8
    PB = jnp.asarray(_pool_mats(H2, W2))        # pool  8 -> 4
    U1 = jnp.asarray(_upsample_mat(H4, W4))     # up    4 -> 8
    U2 = jnp.asarray(_upsample_mat(H2, W2))     # up    8 -> 16

    consts = (pw1, pb1, pw2, pb2, pwd1, pbd1, pwd2, pbd2,
              TA, TB, TC, PA, PB, U1, U2)

    def _bcast_spec(arr):
        nd = arr.ndim

        def idx(n):
            return (0,) * nd

        return pl.BlockSpec(arr.shape, idx)

    out = pl.pallas_call(
        _lanenet_kernel,
        out_shape=jax.ShapeDtypeStruct((N, 2 * nc, HW), jnp.float32),
        grid=(N,),
        in_specs=[pl.BlockSpec((1, Cin, HW), lambda n: (n, 0, 0))]
                 + [_bcast_spec(c) for c in consts],
        out_specs=pl.BlockSpec((1, 2 * nc, HW), lambda n: (n, 0, 0)),
        compiler_params=pltpu.CompilerParams(
            dimension_semantics=("parallel",)),
    )(x, *consts)

    embedding = out[:, :nc, :].reshape(N, nc, H, W)
    segmentation = out[:, nc:, :].reshape(N, nc, H, W)
    return embedding, segmentation


# ----------------------------------------------------------------------------
# Pure-XLA reference of the same network (for a correctness cross-check).
# ----------------------------------------------------------------------------
def _reference_forward(params, x):
    def conv(h, wb, relu):
        w, b = wb
        out = jax.lax.conv_general_dilated(
            h, w, window_strides=(1, 1), padding="SAME",
            dimension_numbers=("NCHW", "HWIO", "NCHW"),
            precision=jax.lax.Precision.HIGHEST)
        out = out + b.reshape(1, -1, 1, 1)
        return jnp.maximum(out, 0.0) if relu else out

    def pool(h):
        return jax.lax.reduce_window(h, -jnp.inf, jax.lax.max,
                                     (1, 1, 2, 2), (1, 1, 2, 2), "VALID")

    def up(h):
        return jnp.repeat(jnp.repeat(h, 2, axis=2), 2, axis=3)

    h = conv(x, params["enc1"], True)
    h = pool(h)
    h = conv(h, params["enc2"], True)
    enc = pool(h)

    def head(p):
        d = conv(enc, p["dec1"], True)
        d = up(d)
        d = conv(d, p["dec2"], False)
        return up(d)

    return head(params["embedding"]), head(params["segmentation"])


if __name__ == "__main__":
    key = jax.random.PRNGKey(0)
    kx, kp = jax.random.split(key)

    x = jax.random.normal(kx, (2, 3, 16, 16), jnp.float32)  # NCHW like PyTorch
    params = init_params(kp)

    fwd = jax.jit(lanenet_forward)
    embedding, segmentation = fwd(params, x)
    jax.block_until_ready((embedding, segmentation))

    assert embedding.shape == (2, 2, 16, 16), embedding.shape
    assert segmentation.shape == (2, 2, 16, 16), segmentation.shape

    # Numerical cross-check against the pure-XLA reference.
    ref_emb, ref_seg = jax.jit(_reference_forward)(params, x)
    assert jnp.allclose(embedding, ref_emb, atol=1e-3, rtol=1e-3), \
        float(jnp.max(jnp.abs(embedding - ref_emb)))
    assert jnp.allclose(segmentation, ref_seg, atol=1e-3, rtol=1e-3), \
        float(jnp.max(jnp.abs(segmentation - ref_seg)))

    print("KERNEL_OK")
</pallas_src>

<mosaic_0001>
module attributes {stable_mosaic.version = 11 : i64} {
  func.func @_lanenet_kernel(%arg0: i32, %arg1: memref<1x3x256xf32, #tpu.memory_space<vmem>>, %arg2: memref<9x16x3xf32, #tpu.memory_space<vmem>>, %arg3: memref<16x1xf32, #tpu.memory_space<vmem>>, %arg4: memref<9x32x16xf32, #tpu.memory_space<vmem>>, %arg5: memref<32x1xf32, #tpu.memory_space<vmem>>, %arg6: memref<9x32x32xf32, #tpu.memory_space<vmem>>, %arg7: memref<32x1xf32, #tpu.memory_space<vmem>>, %arg8: memref<9x4x32xf32, #tpu.memory_space<vmem>>, %arg9: memref<4x1xf32, #tpu.memory_space<vmem>>, %arg10: memref<9x256x256xf32, #tpu.memory_space<vmem>>, %arg11: memref<9x64x64xf32, #tpu.memory_space<vmem>>, %arg12: memref<9x16x16xf32, #tpu.memory_space<vmem>>, %arg13: memref<4x256x64xf32, #tpu.memory_space<vmem>>, %arg14: memref<4x64x16xf32, #tpu.memory_space<vmem>>, %arg15: memref<16x64xf32, #tpu.memory_space<vmem>>, %arg16: memref<64x256xf32, #tpu.memory_space<vmem>>, %arg17: memref<1x4x256xf32, #tpu.memory_space<vmem>>) attributes {dimension_semantics = [#tpu.dimension_semantics<parallel>], iteration_bounds = array<i64: 2>, scalar_prefetch = 0 : i64, scratch_operands = 0 : i64, tpu.core_type = #tpu.core_type<tc>, window_params = [{transform_indices = @transform_0, window_bounds = array<i64: 1, 3, 256>}, {pipeline_mode = #tpu.pipeline_mode<synchronous>, transform_indices = @transform_1, window_bounds = array<i64: 9, 16, 3>}, {pipeline_mode = #tpu.pipeline_mode<synchronous>, transform_indices = @transform_2, window_bounds = array<i64: 16, 1>}, {pipeline_mode = #tpu.pipeline_mode<synchronous>, transform_indices = @transform_3, window_bounds = array<i64: 9, 32, 16>}, {pipeline_mode = #tpu.pipeline_mode<synchronous>, transform_indices = @transform_4, window_bounds = array<i64: 32, 1>}, {pipeline_mode = #tpu.pipeline_mode<synchronous>, transform_indices = @transform_5, window_bounds = array<i64: 9, 32, 32>}, {pipeline_mode = #tpu.pipeline_mode<synchronous>, transform_indices = @transform_6, window_bounds = array<i64: 32, 1>}, {pipeline_mode = #tpu.pipeline_mode<synchronous>, transform_indices = @transform_7, window_bounds = array<i64: 9, 4, 32>}, {pipeline_mode = #tpu.pipeline_mode<synchronous>, transform_indices = @transform_8, window_bounds = array<i64: 4, 1>}, {pipeline_mode = #tpu.pipeline_mode<synchronous>, transform_indices = @transform_9, window_bounds = array<i64: 9, 256, 256>}, {pipeline_mode = #tpu.pipeline_mode<synchronous>, transform_indices = @transform_10, window_bounds = array<i64: 9, 64, 64>}, {pipeline_mode = #tpu.pipeline_mode<synchronous>, transform_indices = @transform_11, window_bounds = array<i64: 9, 16, 16>}, {pipeline_mode = #tpu.pipeline_mode<synchronous>, transform_indices = @transform_12, window_bounds = array<i64: 4, 256, 64>}, {pipeline_mode = #tpu.pipeline_mode<synchronous>, transform_indices = @transform_13, window_bounds = array<i64: 4, 64, 16>}, {pipeline_mode = #tpu.pipeline_mode<synchronous>, transform_indices = @transform_14, window_bounds = array<i64: 16, 64>}, {pipeline_mode = #tpu.pipeline_mode<synchronous>, transform_indices = @transform_15, window_bounds = array<i64: 64, 256>}, {transform_indices = @transform_16, window_bounds = array<i64: 1, 4, 256>}]} {
    %c0 = arith.constant 0 : index
    %c0_0 = arith.constant 0 : index
    %c0_1 = arith.constant 0 : index
    %0 = vector.load %arg1[%c0, %c0_0, %c0_1] : memref<1x3x256xf32, #tpu.memory_space<vmem>>, vector<1x3x256xf32>
    %1 = vector.shape_cast %0 : vector<1x3x256xf32> to vector<3x256xf32>
    %c0_2 = arith.constant 0 : index
    %c0_3 = arith.constant 0 : index
    %c0_4 = arith.constant 0 : index
    %2 = vector.load %arg10[%c0_2, %c0_3, %c0_4] : memref<9x256x256xf32, #tpu.memory_space<vmem>>, vector<1x256x256xf32>
    %3 = vector.shape_cast %2 : vector<1x256x256xf32> to vector<256x256xf32>
    %cst = arith.constant dense<0.000000e+00> : vector<3x256xf32>
    %4 = tpu.matmul %1, %3, %cst {dimension_numbers = #tpu.dot_dimension_numbers<[1], [0], [0], [1], [0, 0, 1, 1], [], []>} : vector<3x256xf32>, vector<256x256xf32>, vector<3x256xf32> -> vector<3x256xf32>
    %c0_5 = arith.constant 0 : index
    %c0_6 = arith.constant 0 : index
    %c0_7 = arith.constant 0 : index
    %5 = vector.load %arg2[%c0_5, %c0_6, %c0_7] : memref<9x16x3xf32, #tpu.memory_space<vmem>>, vector<1x16x3xf32>
    %6 = vector.shape_cast %5 : vector<1x16x3xf32> to vector<16x3xf32>
    %cst_8 = arith.constant dense<0.000000e+00> : vector<16x256xf32>
    %7 = tpu.matmul %6, %4, %cst_8 {dimension_numbers = #tpu.dot_dimension_numbers<[1], [0], [0], [1], [0, 0, 1, 1], [], []>} : vector<16x3xf32>, vector<3x256xf32>, vector<16x256xf32> -> vector<16x256xf32>
    %c1 = arith.constant 1 : index
    %c0_9 = arith.constant 0 : index
    %c0_10 = arith.constant 0 : index
    %8 = vector.load %arg10[%c1, %c0_9, %c0_10] : memref<9x256x256xf32, #tpu.memory_space<vmem>>, vector<1x256x256xf32>
    %9 = vector.shape_cast %8 : vector<1x256x256xf32> to vector<256x256xf32>
    %cst_11 = arith.constant dense<0.000000e+00> : vector<3x256xf32>
    %10 = tpu.matmul %1, %9, %cst_11 {dimension_numbers = #tpu.dot_dimension_numbers<[1], [0], [0], [1], [0, 0, 1, 1], [], []>} : vector<3x256xf32>, vector<256x256xf32>, vector<3x256xf32> -> vector<3x256xf32>
    %c1_12 = arith.constant 1 : index
    %c0_13 = arith.constant 0 : index
    %c0_14 = arith.constant 0 : index
    %11 = vector.load %arg2[%c1_12, %c0_13, %c0_14] : memref<9x16x3xf32, #tpu.memory_space<vmem>>, vector<1x16x3xf32>
    %12 = vector.shape_cast %11 : vector<1x16x3xf32> to vector<16x3xf32>
    %cst_15 = arith.constant dense<0.000000e+00> : vector<16x256xf32>
    %13 = tpu.matmul %12, %10, %cst_15 {dimension_numbers = #tpu.dot_dimension_numbers<[1], [0], [0], [1], [0, 0, 1, 1], [], []>} : vector<16x3xf32>, vector<3x256xf32>, vector<16x256xf32> -> vector<16x256xf32>
    %14 = arith.addf %7, %13 : vector<16x256xf32>
    %c2 = arith.constant 2 : index
    %c0_16 = arith.constant 0 : index
    %c0_17 = arith.constant 0 : index
    %15 = vector.load %arg10[%c2, %c0_16, %c0_17] : memref<9x256x256xf32, #tpu.memory_space<vmem>>, vector<1x256x256xf32>
    %16 = vector.shape_cast %15 : vector<1x256x256xf32> to vector<256x256xf32>
    %cst_18 = arith.constant dense<0.000000e+00> : vector<3x256xf32>
    %17 = tpu.matmul %1, %16, %cst_18 {dimension_numbers = #tpu.dot_dimension_numbers<[1], [0], [0], [1], [0, 0, 1, 1], [], []>} : vector<3x256xf32>, vector<256x256xf32>, vector<3x256xf32> -> vector<3x256xf32>
    %c2_19 = arith.constant 2 : index
    %c0_20 = arith.constant 0 : index
    %c0_21 = arith.constant 0 : index
    %18 = vector.load %arg2[%c2_19, %c0_20, %c0_21] : memref<9x16x3xf32, #tpu.memory_space<vmem>>, vector<1x16x3xf32>
    %19 = vector.shape_cast %18 : vector<1x16x3xf32> to vector<16x3xf32>
    %cst_22 = arith.constant dense<0.000000e+00> : vector<16x256xf32>
    %20 = tpu.matmul %19, %17, %cst_22 {dimension_numbers = #tpu.dot_dimension_numbers<[1], [0], [0], [1], [0, 0, 1, 1], [], []>} : vector<16x3xf32>, vector<3x256xf32>, vector<16x256xf32> -> vector<16x256xf32>
    %21 = arith.addf %14, %20 : vector<16x256xf32>
    %c3 = arith.constant 3 : index
    %c0_23 = arith.constant 0 : index
    %c0_24 = arith.constant 0 : index
    %22 = vector.load %arg10[%c3, %c0_23, %c0_24] : memref<9x256x256xf32, #tpu.memory_space<vmem>>, vector<1x256x256xf32>
    %23 = vector.shape_cast %22 : vector<1x256x256xf32> to vector<256x256xf32>
    %cst_25 = arith.constant dense<0.000000e+00> : vector<3x256xf32>
    %24 = tpu.matmul %1, %23, %cst_25 {dimension_numbers = #tpu.dot_dimension_numbers<[1], [0], [0], [1], [0, 0, 1, 1], [], []>} : vector<3x256xf32>, vector<256x256xf32>, vector<3x256xf32> -> vector<3x256xf32>
    %c3_26 = arith.constant 3 : index
    %c0_27 = arith.constant 0 : index
    %c0_28 = arith.constant 0 : index
    %25 = vector.load %arg2[%c3_26, %c0_27, %c0_28] : memref<9x16x3xf32, #tpu.memory_space<vmem>>, vector<1x16x3xf32>
    %26 = vector.shape_cast %25 : vector<1x16x3xf32> to vector<16x3xf32>
    %cst_29 = arith.constant dense<0.000000e+00> : vector<16x256xf32>
    %27 = tpu.matmul %26, %24, %cst_29 {dimension_numbers = #tpu.dot_dimension_numbers<[1], [0], [0], [1], [0, 0, 1, 1], [], []>} : vector<16x3xf32>, vector<3x256xf32>, vector<16x256xf32> -> vector<16x256xf32>
    %28 = arith.addf %21, %27 : vector<16x256xf32>
    %c4 = arith.constant 4 : index
    %c0_30 = arith.constant 0 : index
    %c0_31 = arith.constant 0 : index
    %29 = vector.load %arg10[%c4, %c0_30, %c0_31] : memref<9x256x256xf32, #tpu.memory_space<vmem>>, vector<1x256x256xf32>
    %30 = vector.shape_cast %29 : vector<1x256x256xf32> to vector<256x256xf32>
    %cst_32 = arith.constant dense<0.000000e+00> : vector<3x256xf32>
    %31 = tpu.matmul %1, %30, %cst_32 {dimension_numbers = #tpu.dot_dimension_numbers<[1], [0], [0], [1], [0, 0, 1, 1], [], []>} : vector<3x256xf32>, vector<256x256xf32>, vector<3x256xf32> -> vector<3x256xf32>
    %c4_33 = arith.constant 4 : index
    %c0_34 = arith.constant 0 : index
    %c0_35 = arith.constant 0 : index
    %32 = vector.load %arg2[%c4_33, %c0_34, %c0_35] : memref<9x16x3xf32, #tpu.memory_space<vmem>>, vector<1x16x3xf32>
    %33 = vector.shape_cast %32 : vector<1x16x3xf32> to vector<16x3xf32>
    %cst_36 = arith.constant dense<0.000000e+00> : vector<16x256xf32>
    %34 = tpu.matmul %33, %31, %cst_36 {dimension_numbers = #tpu.dot_dimension_numbers<[1], [0], [0], [1], [0, 0, 1, 1], [], []>} : vector<16x3xf32>, vector<3x256xf32>, vector<16x256xf32> -> vector<16x256xf32>
    %35 = arith.addf %28, %34 : vector<16x256xf32>
    %c5 = arith.constant 5 : index
    %c0_37 = arith.constant 0 : index
    %c0_38 = arith.constant 0 : index
    %36 = vector.load %arg10[%c5, %c0_37, %c0_38] : memref<9x256x256xf32, #tpu.memory_space<vmem>>, vector<1x256x256xf32>
    %37 = vector.shape_cast %36 : vector<1x256x256xf32> to vector<256x256xf32>
    %cst_39 = arith.constant dense<0.000000e+00> : vector<3x256xf32>
    %38 = tpu.matmul %1, %37, %cst_39 {dimension_numbers = #tpu.dot_dimension_numbers<[1], [0], [0], [1], [0, 0, 1, 1], [], []>} : vector<3x256xf32>, vector<256x256xf32>, vector<3x256xf32> -> vector<3x256xf32>
    %c5_40 = arith.constant 5 : index
    %c0_41 = arith.constant 0 : index
    %c0_42 = arith.constant 0 : index
    %39 = vector.load %arg2[%c5_40, %c0_41, %c0_42] : memref<9x16x3xf32, #tpu.memory_space<vmem>>, vector<1x16x3xf32>
    %40 = vector.shape_cast %39 : vector<1x16x3xf32> to vector<16x3xf32>
    %cst_43 = arith.constant dense<0.000000e+00> : vector<16x256xf32>
    %41 = tpu.matmul %40, %38, %cst_43 {dimension_numbers = #tpu.dot_dimension_numbers<[1], [0], [0], [1], [0, 0, 1, 1], [], []>} : vector<16x3xf32>, vector<3x256xf32>, vector<16x256xf32> -> vector<16x256xf32>
    %42 = arith.addf %35, %41 : vector<16x256xf32>
    %c6 = arith.constant 6 : index
    %c0_44 = arith.constant 0 : index
    %c0_45 = arith.constant 0 : index
    %43 = vector.load %arg10[%c6, %c0_44, %c0_45] : memref<9x256x256xf32, #tpu.memory_space<vmem>>, vector<1x256x256xf32>
    %44 = vector.shape_cast %43 : vector<1x256x256xf32> to vector<256x256xf32>
    %cst_46 = arith.constant dense<0.000000e+00> : vector<3x256xf32>
    %45 = tpu.matmul %1, %44, %cst_46 {dimension_numbers = #tpu.dot_dimension_numbers<[1], [0], [0], [1], [0, 0, 1, 1], [], []>} : vector<3x256xf32>, vector<256x256xf32>, vector<3x256xf32> -> vector<3x256xf32>
    %c6_47 = arith.constant 6 : index
    %c0_48 = arith.constant 0 : index
    %c0_49 = arith.constant 0 : index
    %46 = vector.load %arg2[%c6_47, %c0_48, %c0_49] : memref<9x16x3xf32, #tpu.memory_space<vmem>>, vector<1x16x3xf32>
    %47 = vector.shape_cast %46 : vector<1x16x3xf32> to vector<16x3xf32>
    %cst_50 = arith.constant dense<0.000000e+00> : vector<16x256xf32>
    %48 = tpu.matmul %47, %45, %cst_50 {dimension_numbers = #tpu.dot_dimension_numbers<[1], [0], [0], [1], [0, 0, 1, 1], [], []>} : vector<16x3xf32>, vector<3x256xf32>, vector<16x256xf32> -> vector<16x256xf32>
    %49 = arith.addf %42, %48 : vector<16x256xf32>
    %c7 = arith.constant 7 : index
    %c0_51 = arith.constant 0 : index
    %c0_52 = arith.constant 0 : index
    %50 = vector.load %arg10[%c7, %c0_51, %c0_52] : memref<9x256x256xf32, #tpu.memory_space<vmem>>, vector<1x256x256xf32>
    %51 = vector.shape_cast %50 : vector<1x256x256xf32> to vector<256x256xf32>
    %cst_53 = arith.constant dense<0.000000e+00> : vector<3x256xf32>
    %52 = tpu.matmul %1, %51, %cst_53 {dimension_numbers = #tpu.dot_dimension_numbers<[1], [0], [0], [1], [0, 0, 1, 1], [], []>} : vector<3x256xf32>, vector<256x256xf32>, vector<3x256xf32> -> vector<3x256xf32>
    %c7_54 = arith.constant 7 : index
    %c0_55 = arith.constant 0 : index
    %c0_56 = arith.constant 0 : index
    %53 = vector.load %arg2[%c7_54, %c0_55, %c0_56] : memref<9x16x3xf32, #tpu.memory_space<vmem>>, vector<1x16x3xf32>
    %54 = vector.shape_cast %53 : vector<1x16x3xf32> to vector<16x3xf32>
    %cst_57 = arith.constant dense<0.000000e+00> : vector<16x256xf32>
    %55 = tpu.matmul %54, %52, %cst_57 {dimension_numbers = #tpu.dot_dimension_numbers<[1], [0], [0], [1], [0, 0, 1, 1], [], []>} : vector<16x3xf32>, vector<3x256xf32>, vector<16x256xf32> -> vector<16x256xf32>
    %56 = arith.addf %49, %55 : vector<16x256xf32>
    %c8 = arith.constant 8 : index
    %c0_58 = arith.constant 0 : index
    %c0_59 = arith.constant 0 : index
    %57 = vector.load %arg10[%c8, %c0_58, %c0_59] : memref<9x256x256xf32, #tpu.memory_space<vmem>>, vector<1x256x256xf32>
    %58 = vector.shape_cast %57 : vector<1x256x256xf32> to vector<256x256xf32>
    %cst_60 = arith.constant dense<0.000000e+00> : vector<3x256xf32>
    %59 = tpu.matmul %1, %58, %cst_60 {dimension_numbers = #tpu.dot_dimension_numbers<[1], [0], [0], [1], [0, 0, 1, 1], [], []>} : vector<3x256xf32>, vector<256x256xf32>, vector<3x256xf32> -> vector<3x256xf32>
    %c8_61 = arith.constant 8 : index
    %c0_62 = arith.constant 0 : index
    %c0_63 = arith.constant 0 : index
    %60 = vector.load %arg2[%c8_61, %c0_62, %c0_63] : memref<9x16x3xf32, #tpu.memory_space<vmem>>, vector<1x16x3xf32>
    %61 = vector.shape_cast %60 : vector<1x16x3xf32> to vector<16x3xf32>
    %cst_64 = arith.constant dense<0.000000e+00> : vector<16x256xf32>
    %62 = tpu.matmul %61, %59, %cst_64 {dimension_numbers = #tpu.dot_dimension_numbers<[1], [0], [0], [1], [0, 0, 1, 1], [], []>} : vector<16x3xf32>, vector<3x256xf32>, vector<16x256xf32> -> vector<16x256xf32>
    %63 = arith.addf %56, %62 : vector<16x256xf32>
    %c0_65 = arith.constant 0 : index
    %c0_66 = arith.constant 0 : index
    %64 = vector.load %arg3[%c0_65, %c0_66] : memref<16x1xf32, #tpu.memory_space<vmem>>, vector<16x1xf32>
    %65 = vector.broadcast %64 : vector<16x1xf32> to vector<16x256xf32>
    %66 = arith.addf %63, %65 : vector<16x256xf32>
    %cst_67 = arith.constant 0.000000e+00 : f32
    %67 = vector.broadcast %cst_67 : f32 to vector<16x256xf32>
    %68 = arith.maximumf %66, %67 : vector<16x256xf32>
    %c0_68 = arith.constant 0 : index
    %c0_69 = arith.constant 0 : index
    %c0_70 = arith.constant 0 : index
    %69 = vector.load %arg13[%c0_68, %c0_69, %c0_70] : memref<4x256x64xf32, #tpu.memory_space<vmem>>, vector<1x256x64xf32>
    %70 = vector.shape_cast %69 : vector<1x256x64xf32> to vector<256x64xf32>
    %cst_71 = arith.constant dense<0.000000e+00> : vector<16x64xf32>
    %71 = tpu.matmul %68, %70, %cst_71 {dimension_numbers = #tpu.dot_dimension_numbers<[1], [0], [0], [1], [0, 0, 1, 1], [], []>} : vector<16x256xf32>, vector<256x64xf32>, vector<16x64xf32> -> vector<16x64xf32>
    %c1_72 = arith.constant 1 : index
    %c0_73 = arith.constant 0 : index
    %c0_74 = arith.constant 0 : index
    %72 = vector.load %arg13[%c1_72, %c0_73, %c0_74] : memref<4x256x64xf32, #tpu.memory_space<vmem>>, vector<1x256x64xf32>
    %73 = vector.shape_cast %72 : vector<1x256x64xf32> to vector<256x64xf32>
    %cst_75 = arith.constant dense<0.000000e+00> : vector<16x64xf32>
    %74 = tpu.matmul %68, %73, %cst_75 {dimension_numbers = #tpu.dot_dimension_numbers<[1], [0], [0], [1], [0, 0, 1, 1], [], []>} : vector<16x256xf32>, vector<256x64xf32>, vector<16x64xf32> -> vector<16x64xf32>
    %75 = arith.maximumf %71, %74 : vector<16x64xf32>
    %c2_76 = arith.constant 2 : index
    %c0_77 = arith.constant 0 : index
    %c0_78 = arith.constant 0 : index
    %76 = vector.load %arg13[%c2_76, %c0_77, %c0_78] : memref<4x256x64xf32, #tpu.memory_space<vmem>>, vector<1x256x64xf32>
    %77 = vector.shape_cast %76 : vector<1x256x64xf32> to vector<256x64xf32>
    %cst_79 = arith.constant dense<0.000000e+00> : vector<16x64xf32>
    %78 = tpu.matmul %68, %77, %cst_79 {dimension_numbers = #tpu.dot_dimension_numbers<[1], [0], [0], [1], [0, 0, 1, 1], [], []>} : vector<16x256xf32>, vector<256x64xf32>, vector<16x64xf32> -> vector<16x64xf32>
    %79 = arith.maximumf %75, %78 : vector<16x64xf32>
    %c3_80 = arith.constant 3 : index
    %c0_81 = arith.constant 0 : index
    %c0_82 = arith.constant 0 : index
    %80 = vector.load %arg13[%c3_80, %c0_81, %c0_82] : memref<4x256x64xf32, #tpu.memory_space<vmem>>, vector<1x256x64xf32>
    %81 = vector.shape_cast %80 : vector<1x256x64xf32> to vector<256x64xf32>
    %cst_83 = arith.constant dense<0.000000e+00> : vector<16x64xf32>
    %82 = tpu.matmul %68, %81, %cst_83 {dimension_numbers = #tpu.dot_dimension_numbers<[1], [0], [0], [1], [0, 0, 1, 1], [], []>} : vector<16x256xf32>, vector<256x64xf32>, vector<16x64xf32> -> vector<16x64xf32>
    %83 = arith.maximumf %79, %82 : vector<16x64xf32>
    %c0_84 = arith.constant 0 : index
    %c0_85 = arith.constant 0 : index
    %c0_86 = arith.constant 0 : index
    %84 = vector.load %arg11[%c0_84, %c0_85, %c0_86] : memref<9x64x64xf32, #tpu.memory_space<vmem>>, vector<1x64x64xf32>
    %85 = vector.shape_cast %84 : vector<1x64x64xf32> to vector<64x64xf32>
    %cst_87 = arith.constant dense<0.000000e+00> : vector<16x64xf32>
    %86 = tpu.matmul %83, %85, %cst_87 {dimension_numbers = #tpu.dot_dimension_numbers<[1], [0], [0], [1], [0, 0, 1, 1], [], []>} : vector<16x64xf32>, vector<64x64xf32>, vector<16x64xf32> -> vector<16x64xf32>
    %c0_88 = arith.constant 0 : index
    %c0_89 = arith.constant 0 : index
    %c0_90 = arith.constant 0 : index
    %87 = vector.load %arg4[%c0_88, %c0_89, %c0_90] : memref<9x32x16xf32, #tpu.memory_space<vmem>>, vector<1x32x16xf32>
    %88 = vector.shape_cast %87 : vector<1x32x16xf32> to vector<32x16xf32>
    %cst_91 = arith.constant dense<0.000000e+00> : vector<32x64xf32>
    %89 = tpu.matmul %88, %86, %cst_91 {dimension_numbers = #tpu.dot_dimension_numbers<[1], [0], [0], [1], [0, 0, 1, 1], [], []>} : vector<32x16xf32>, vector<16x64xf32>, vector<32x64xf32> -> vector<32x64xf32>
    %c1_92 = arith.constant 1 : index
    %c0_93 = arith.constant 0 : index
    %c0_94 = arith.constant 0 : index
    %90 = vector.load %arg11[%c1_92, %c0_93, %c0_94] : memref<9x64x64xf32, #tpu.memory_space<vmem>>, vector<1x64x64xf32>
    %91 = vector.shape_cast %90 : vector<1x64x64xf32> to vector<64x64xf32>
    %cst_95 = arith.constant dense<0.000000e+00> : vector<16x64xf32>
    %92 = tpu.matmul %83, %91, %cst_95 {dimension_numbers = #tpu.dot_dimension_numbers<[1], [0], [0], [1], [0, 0, 1, 1], [], []>} : vector<16x64xf32>, vector<64x64xf32>, vector<16x64xf32> -> vector<16x64xf32>
    %c1_96 = arith.constant 1 : index
    %c0_97 = arith.constant 0 : index
    %c0_98 = arith.constant 0 : index
    %93 = vector.load %arg4[%c1_96, %c0_97, %c0_98] : memref<9x32x16xf32, #tpu.memory_space<vmem>>, vector<1x32x16xf32>
    %94 = vector.shape_cast %93 : vector<1x32x16xf32> to vector<32x16xf32>
    %cst_99 = arith.constant dense<0.000000e+00> : vector<32x64xf32>
    %95 = tpu.matmul %94, %92, %cst_99 {dimension_numbers = #tpu.dot_dimension_numbers<[1], [0], [0], [1], [0, 0, 1, 1], [], []>} : vector<32x16xf32>, vector<16x64xf32>, vector<32x64xf32> -> vector<32x64xf32>
    %96 = arith.addf %89, %95 : vector<32x64xf32>
    %c2_100 = arith.constant 2 : index
    %c0_101 = arith.constant 0 : index
    %c0_102 = arith.constant 0 : index
    %97 = vector.load %arg11[%c2_100, %c0_101, %c0_102] : memref<9x64x64xf32, #tpu.memory_space<vmem>>, vector<1x64x64xf32>
    %98 = vector.shape_cast %97 : vector<1x64x64xf32> to vector<64x64xf32>
    %cst_103 = arith.constant dense<0.000000e+00> : vector<16x64xf32>
    %99 = tpu.matmul %83, %98, %cst_103 {dimension_numbers = #tpu.dot_dimension_numbers<[1], [0], [0], [1], [0, 0, 1, 1], [], []>} : vector<16x64xf32>, vector<64x64xf32>, vector<16x64xf32> -> vector<16x64xf32>
    %c2_104 = arith.constant 2 : index
    %c0_105 = arith.constant 0 : index
    %c0_106 = arith.constant 0 : index
    %100 = vector.load %arg4[%c2_104, %c0_105, %c0_106] : memref<9x32x16xf32, #tpu.memory_space<vmem>>, vector<1x32x16xf32>
    %101 = vector.shape_cast %100 : vector<1x32x16xf32> to vector<32x16xf32>
    %cst_107 = arith.constant dense<0.000000e+00> : vector<32x64xf32>
    %102 = tpu.matmul %101, %99, %cst_107 {dimension_numbers = #tpu.dot_dimension_numbers<[1], [0], [0], [1], [0, 0, 1, 1], [], []>} : vector<32x16xf32>, vector<16x64xf32>, vector<32x64xf32> -> vector<32x64xf32>
    %103 = arith.addf %96, %102 : vector<32x64xf32>
    %c3_108 = arith.constant 3 : index
    %c0_109 = arith.constant 0 : index
    %c0_110 = arith.constant 0 : index
    %104 = vector.load %arg11[%c3_108, %c0_109, %c0_110] : memref<9x64x64xf32, #tpu.memory_space<vmem>>, vector<1x64x64xf32>
    %105 = vector.shape_cast %104 : vector<1x64x64xf32> to vector<64x64xf32>
    %cst_111 = arith.constant dense<0.000000e+00> : vector<16x64xf32>
    %106 = tpu.matmul %83, %105, %cst_111 {dimension_numbers = #tpu.dot_dimension_numbers<[1], [0], [0], [1], [0, 0, 1, 1], [], []>} : vector<16x64xf32>, vector<64x64xf32>, vector<16x64xf32> -> vector<16x64xf32>
    %c3_112 = arith.constant 3 : index
    %c0_113 = arith.constant 0 : index
    %c0_114 = arith.constant 0 : index
    %107 = vector.load %arg4[%c3_112, %c0_113, %c0_114] : memref<9x32x16xf32, #tpu.memory_space<vmem>>, vector<1x32x16xf32>
    %108 = vector.shape_cast %107 : vector<1x32x16xf32> to vector<32x16xf32>
    %cst_115 = arith.constant dense<0.000000e+00> : vector<32x64xf32>
    %109 = tpu.matmul %108, %106, %cst_115 {dimension_numbers = #tpu.dot_dimension_numbers<[1], [0], [0], [1], [0, 0, 1, 1], [], []>} : vector<32x16xf32>, vector<16x64xf32>, vector<32x64xf32> -> vector<32x64xf32>
    %110 = arith.addf %103, %109 : vector<32x64xf32>
    %c4_116 = arith.constant 4 : index
    %c0_117 = arith.constant 0 : index
    %c0_118 = arith.constant 0 : index
    %111 = vector.load %arg11[%c4_116, %c0_117, %c0_118] : memref<9x64x64xf32, #tpu.memory_space<vmem>>, vector<1x64x64xf32>
    %112 = vector.shape_cast %111 : vector<1x64x64xf32> to vector<64x64xf32>
    %cst_119 = arith.constant dense<0.000000e+00> : vector<16x64xf32>
    %113 = tpu.matmul %83, %112, %cst_119 {dimension_numbers = #tpu.dot_dimension_numbers<[1], [0], [0], [1], [0, 0, 1, 1], [], []>} : vector<16x64xf32>, vector<64x64xf32>, vector<16x64xf32> -> vector<16x64xf32>
    %c4_120 = arith.constant 4 : index
    %c0_121 = arith.constant 0 : index
    %c0_122 = arith.constant 0 : index
    %114 = vector.load %arg4[%c4_120, %c0_121, %c0_122] : memref<9x32x16xf32, #tpu.memory_space<vmem>>, vector<1x32x16xf32>
    %115 = vector.shape_cast %114 : vector<1x32x16xf32> to vector<32x16xf32>
    %cst_123 = arith.constant dense<0.000000e+00> : vector<32x64xf32>
    %116 = tpu.matmul %115, %113, %cst_123 {dimension_numbers = #tpu.dot_dimension_numbers<[1], [0], [0], [1], [0, 0, 1, 1], [], []>} : vector<32x16xf32>, vector<16x64xf32>, vector<32x64xf32> -> vector<32x64xf32>
    %117 = arith.addf %110, %116 : vector<32x64xf32>
    %c5_124 = arith.constant 5 : index
    %c0_125 = arith.constant 0 : index
    %c0_126 = arith.constant 0 : index
    %118 = vector.load %arg11[%c5_124, %c0_125, %c0_126] : memref<9x64x64xf32, #tpu.memory_space<vmem>>, vector<1x64x64xf32>
    %119 = vector.shape_cast %118 : vector<1x64x64xf32> to vector<64x64xf32>
    %cst_127 = arith.constant dense<0.000000e+00> : vector<16x64xf32>
    %120 = tpu.matmul %83, %119, %cst_127 {dimension_numbers = #tpu.dot_dimension_numbers<[1], [0], [0], [1], [0, 0, 1, 1], [], []>} : vector<16x64xf32>, vector<64x64xf32>, vector<16x64xf32> -> vector<16x64xf32>
    %c5_128 = arith.constant 5 : index
    %c0_129 = arith.constant 0 : index
    %c0_130 = arith.constant 0 : index
    %121 = vector.load %arg4[%c5_128, %c0_129, %c0_130] : memref<9x32x16xf32, #tpu.memory_space<vmem>>, vector<1x32x16xf32>
    %122 = vector.shape_cast %121 : vector<1x32x16xf32> to vector<32x16xf32>
    %cst_131 = arith.constant dense<0.000000e+00> : vector<32x64xf32>
    %123 = tpu.matmul %122, %120, %cst_131 {dimension_numbers = #tpu.dot_dimension_numbers<[1], [0], [0], [1], [0, 0, 1, 1], [], []>} : vector<32x16xf32>, vector<16x64xf32>, vector<32x64xf32> -> vector<32x64xf32>
    %124 = arith.addf %117, %123 : vector<32x64xf32>
    %c6_132 = arith.constant 6 : index
    %c0_133 = arith.constant 0 : index
    %c0_134 = arith.constant 0 : index
    %125 = vector.load %arg11[%c6_132, %c0_133, %c0_134] : memref<9x64x64xf32, #tpu.memory_space<vmem>>, vector<1x64x64xf32>
    %126 = vector.shape_cast %125 : vector<1x64x64xf32> to vector<64x64xf32>
    %cst_135 = arith.constant dense<0.000000e+00> : vector<16x64xf32>
    %127 = tpu.matmul %83, %126, %cst_135 {dimension_numbers = #tpu.dot_dimension_numbers<[1], [0], [0], [1], [0, 0, 1, 1], [], []>} : vector<16x64xf32>, vector<64x64xf32>, vector<16x64xf32> -> vector<16x64xf32>
    %c6_136 = arith.constant 6 : index
    %c0_137 = arith.constant 0 : index
    %c0_138 = arith.constant 0 : index
    %128 = vector.load %arg4[%c6_136, %c0_137, %c0_138] : memref<9x32x16xf32, #tpu.memory_space<vmem>>, vector<1x32x16xf32>
    %129 = vector.shape_cast %128 : vector<1x32x16xf32> to vector<32x16xf32>
    %cst_139 = arith.constant dense<0.000000e+00> : vector<32x64xf32>
    %130 = tpu.matmul %129, %127, %cst_139 {dimension_numbers = #tpu.dot_dimension_numbers<[1], [0], [0], [1], [0, 0, 1, 1], [], []>} : vector<32x16xf32>, vector<16x64xf32>, vector<32x64xf32> -> vector<32x64xf32>
    %131 = arith.addf %124, %130 : vector<32x64xf32>
    %c7_140 = arith.constant 7 : index
    %c0_141 = arith.constant 0 : index
    %c0_142 = arith.constant 0 : index
    %132 = vector.load %arg11[%c7_140, %c0_141, %c0_142] : memref<9x64x64xf32, #tpu.memory_space<vmem>>, vector<1x64x64xf32>
    %133 = vector.shape_cast %132 : vector<1x64x64xf32> to vector<64x64xf32>
    %cst_143 = arith.constant dense<0.000000e+00> : vector<16x64xf32>
    %134 = tpu.matmul %83, %133, %cst_143 {dimension_numbers = #tpu.dot_dimension_numbers<[1], [0], [0], [1], [0, 0, 1, 1], [], []>} : vector<16x64xf32>, vector<64x64xf32>, vector<16x64xf32> -> vector<16x64xf32>
    %c7_144 = arith.constant 7 : index
    %c0_145 = arith.constant 0 : index
    %c0_146 = arith.constant 0 : index
    %135 = vector.load %arg4[%c7_144, %c0_145, %c0_146] : memref<9x32x16xf32, #tpu.memory_space<vmem>>, vector<1x32x16xf32>
    %136 = vector.shape_cast %135 : vector<1x32x16xf32> to vector<32x16xf32>
    %cst_147 = arith.constant dense<0.000000e+00> : vector<32x64xf32>
    %137 = tpu.matmul %136, %134, %cst_147 {dimension_numbers = #tpu.dot_dimension_numbers<[1], [0], [0], [1], [0, 0, 1, 1], [], []>} : vector<32x16xf32>, vector<16x64xf32>, vector<32x64xf32> -> vector<32x64xf32>
    %138 = arith.addf %131, %137 : vector<32x64xf32>
    %c8_148 = arith.constant 8 : index
    %c0_149 = arith.constant 0 : index
    %c0_150 = arith.constant 0 : index
    %139 = vector.load %arg11[%c8_148, %c0_149, %c0_150] : memref<9x64x64xf32, #tpu.memory_space<vmem>>, vector<1x64x64xf32>
    %140 = vector.shape_cast %139 : vector<1x64x64xf32> to vector<64x64xf32>
    %cst_151 = arith.constant dense<0.000000e+00> : vector<16x64xf32>
    %141 = tpu.matmul %83, %140, %cst_151 {dimension_numbers = #tpu.dot_dimension_numbers<[1], [0], [0], [1], [0, 0, 1, 1], [], []>} : vector<16x64xf32>, vector<64x64xf32>, vector<16x64xf32> -> vector<16x64xf32>
    %c8_152 = arith.constant 8 : index
    %c0_153 = arith.constant 0 : index
    %c0_154 = arith.constant 0 : index
    %142 = vector.load %arg4[%c8_152, %c0_153, %c0_154] : memref<9x32x16xf32, #tpu.memory_space<vmem>>, vector<1x32x16xf32>
    %143 = vector.shape_cast %142 : vector<1x32x16xf32> to vector<32x16xf32>
    %cst_155 = arith.constant dense<0.000000e+00> : vector<32x64xf32>
    %144 = tpu.matmul %143, %141, %cst_155 {dimension_numbers = #tpu.dot_dimension_numbers<[1], [0], [0], [1], [0, 0, 1, 1], [], []>} : vector<32x16xf32>, vector<16x64xf32>, vector<32x64xf32> -> vector<32x64xf32>
    %145 = arith.addf %138, %144 : vector<32x64xf32>
    %c0_156 = arith.constant 0 : index
    %c0_157 = arith.constant 0 : index
    %146 = vector.load %arg5[%c0_156, %c0_157] : memref<32x1xf32, #tpu.memory_space<vmem>>, vector<32x1xf32>
    %147 = vector.broadcast %146 : vector<32x1xf32> to vector<32x64xf32>
    %148 = arith.addf %145, %147 : vector<32x64xf32>
    %cst_158 = arith.constant 0.000000e+00 : f32
    %149 = vector.broadcast %cst_158 : f32 to vector<32x64xf32>
    %150 = arith.maximumf %148, %149 : vector<32x64xf32>
    %c0_159 = arith.constant 0 : index
    %c0_160 = arith.constant 0 : index
    %c0_161 = arith.constant 0 : index
    %151 = vector.load %arg14[%c0_159, %c0_160, %c0_161] : memref<4x64x16xf32, #tpu.memory_space<vmem>>, vector<1x64x16xf32>
    %152 = vector.shape_cast %151 : vector<1x64x16xf32> to vector<64x16xf32>
    %cst_162 = arith.constant dense<0.000000e+00> : vector<32x16xf32>
    %153 = tpu.matmul %150, %152, %cst_162 {dimension_numbers = #tpu.dot_dimension_numbers<[1], [0], [0], [1], [0, 0, 1, 1], [], []>} : vector<32x64xf32>, vector<64x16xf32>, vector<32x16xf32> -> vector<32x16xf32>
    %c1_163 = arith.constant 1 : index
    %c0_164 = arith.constant 0 : index
    %c0_165 = arith.constant 0 : index
    %154 = vector.load %arg14[%c1_163, %c0_164, %c0_165] : memref<4x64x16xf32, #tpu.memory_space<vmem>>, vector<1x64x16xf32>
    %155 = vector.shape_cast %154 : vector<1x64x16xf32> to vector<64x16xf32>
    %cst_166 = arith.constant dense<0.000000e+00> : vector<32x16xf32>
    %156 = tpu.matmul %150, %155, %cst_166 {dimension_numbers = #tpu.dot_dimension_numbers<[1], [0], [0], [1], [0, 0, 1, 1], [], []>} : vector<32x64xf32>, vector<64x16xf32>, vector<32x16xf32> -> vector<32x16xf32>
    %157 = arith.maximumf %153, %156 : vector<32x16xf32>
    %c2_167 = arith.constant 2 : index
    %c0_168 = arith.constant 0 : index
    %c0_169 = arith.constant 0 : index
    %158 = vector.load %arg14[%c2_167, %c0_168, %c0_169] : memref<4x64x16xf32, #tpu.memory_space<vmem>>, vector<1x64x16xf32>
    %159 = vector.shape_cast %158 : vector<1x64x16xf32> to vector<64x16xf32>
    %cst_170 = arith.constant dense<0.000000e+00> : vector<32x16xf32>
    %160 = tpu.matmul %150, %159, %cst_170 {dimension_numbers = #tpu.dot_dimension_numbers<[1], [0], [0], [1], [0, 0, 1, 1], [], []>} : vector<32x64xf32>, vector<64x16xf32>, vector<32x16xf32> -> vector<32x16xf32>
    %161 = arith.maximumf %157, %160 : vector<32x16xf32>
    %c3_171 = arith.constant 3 : index
    %c0_172 = arith.constant 0 : index
    %c0_173 = arith.constant 0 : index
    %162 = vector.load %arg14[%c3_171, %c0_172, %c0_173] : memref<4x64x16xf32, #tpu.memory_space<vmem>>, vector<1x64x16xf32>
    %163 = vector.shape_cast %162 : vector<1x64x16xf32> to vector<64x16xf32>
    %cst_174 = arith.constant dense<0.000000e+00> : vector<32x16xf32>
    %164 = tpu.matmul %150, %163, %cst_174 {dimension_numbers = #tpu.dot_dimension_numbers<[1], [0], [0], [1], [0, 0, 1, 1], [], []>} : vector<32x64xf32>, vector<64x16xf32>, vector<32x16xf32> -> vector<32x16xf32>
    %165 = arith.maximumf %161, %164 : vector<32x16xf32>
    %c0_175 = arith.constant 0 : index
    %c0_176 = arith.constant 0 : index
    %c0_177 = arith.constant 0 : index
    %166 = vector.load %arg12[%c0_175, %c0_176, %c0_177] : memref<9x16x16xf32, #tpu.memory_space<vmem>>, vector<1x16x16xf32>
    %167 = vector.shape_cast %166 : vector<1x16x16xf32> to vector<16x16xf32>
    %cst_178 = arith.constant dense<0.000000e+00> : vector<32x16xf32>
    %168 = tpu.matmul %165, %167, %cst_178 {dimension_numbers = #tpu.dot_dimension_numbers<[1], [0], [0], [1], [0, 0, 1, 1], [], []>} : vector<32x16xf32>, vector<16x16xf32>, vector<32x16xf32> -> vector<32x16xf32>
    %c0_179 = arith.constant 0 : index
    %c0_180 = arith.constant 0 : index
    %c0_181 = arith.constant 0 : index
    %169 = vector.load %arg6[%c0_179, %c0_180, %c0_181] : memref<9x32x32xf32, #tpu.memory_space<vmem>>, vector<1x32x32xf32>
    %170 = vector.shape_cast %169 : vector<1x32x32xf32> to vector<32x32xf32>
    %cst_182 = arith.constant dense<0.000000e+00> : vector<32x16xf32>
    %171 = tpu.matmul %170, %168, %cst_182 {dimension_numbers = #tpu.dot_dimension_numbers<[1], [0], [0], [1], [0, 0, 1, 1], [], []>} : vector<32x32xf32>, vector<32x16xf32>, vector<32x16xf32> -> vector<32x16xf32>
    %c1_183 = arith.constant 1 : index
    %c0_184 = arith.constant 0 : index
    %c0_185 = arith.constant 0 : index
    %172 = vector.load %arg12[%c1_183, %c0_184, %c0_185] : memref<9x16x16xf32, #tpu.memory_space<vmem>>, vector<1x16x16xf32>
    %173 = vector.shape_cast %172 : vector<1x16x16xf32> to vector<16x16xf32>
    %cst_186 = arith.constant dense<0.000000e+00> : vector<32x16xf32>
    %174 = tpu.matmul %165, %173, %cst_186 {dimension_numbers = #tpu.dot_dimension_numbers<[1], [0], [0], [1], [0, 0, 1, 1], [], []>} : vector<32x16xf32>, vector<16x16xf32>, vector<32x16xf32> -> vector<32x16xf32>
    %c1_187 = arith.constant 1 : index
    %c0_188 = arith.constant 0 : index
    %c0_189 = arith.constant 0 : index
    %175 = vector.load %arg6[%c1_187, %c0_188, %c0_189] : memref<9x32x32xf32, #tpu.memory_space<vmem>>, vector<1x32x32xf32>
    %176 = vector.shape_cast %175 : vector<1x32x32xf32> to vector<32x32xf32>
    %cst_190 = arith.constant dense<0.000000e+00> : vector<32x16xf32>
    %177 = tpu.matmul %176, %174, %cst_190 {dimension_numbers = #tpu.dot_dimension_numbers<[1], [0], [0], [1], [0, 0, 1, 1], [], []>} : vector<32x32xf32>, vector<32x16xf32>, vector<32x16xf32> -> vector<32x16xf32>
    %178 = arith.addf %171, %177 : vector<32x16xf32>
    %c2_191 = arith.constant 2 : index
    %c0_192 = arith.constant 0 : index
    %c0_193 = arith.constant 0 : index
    %179 = vector.load %arg12[%c2_191, %c0_192, %c0_193] : memref<9x16x16xf32, #tpu.memory_space<vmem>>, vector<1x16x16xf32>
    %180 = vector.shape_cast %179 : vector<1x16x16xf32> to vector<16x16xf32>
    %cst_194 = arith.constant dense<0.000000e+00> : vector<32x16xf32>
    %181 = tpu.matmul %165, %180, %cst_194 {dimension_numbers = #tpu.dot_dimension_numbers<[1], [0], [0], [1], [0, 0, 1, 1], [], []>} : vector<32x16xf32>, vector<16x16xf32>, vector<32x16xf32> -> vector<32x16xf32>
    %c2_195 = arith.constant 2 : index
    %c0_196 = arith.constant 0 : index
    %c0_197 = arith.constant 0 : index
    %182 = vector.load %arg6[%c2_195, %c0_196, %c0_197] : memref<9x32x32xf32, #tpu.memory_space<vmem>>, vector<1x32x32xf32>
    %183 = vector.shape_cast %182 : vector<1x32x32xf32> to vector<32x32xf32>
    %cst_198 = arith.constant dense<0.000000e+00> : vector<32x16xf32>
    %184 = tpu.matmul %183, %181, %cst_198 {dimension_numbers = #tpu.dot_dimension_numbers<[1], [0], [0], [1], [0, 0, 1, 1], [], []>} : vector<32x32xf32>, vector<32x16xf32>, vector<32x16xf32> -> vector<32x16xf32>
    %185 = arith.addf %178, %184 : vector<32x16xf32>
    %c3_199 = arith.constant 3 : index
    %c0_200 = arith.constant 0 : index
    %c0_201 = arith.constant 0 : index
    %186 = vector.load %arg12[%c3_199, %c0_200, %c0_201] : memref<9x16x16xf32, #tpu.memory_space<vmem>>, vector<1x16x16xf32>
    %187 = vector.shape_cast %186 : vector<1x16x16xf32> to vector<16x16xf32>
    %cst_202 = arith.constant dense<0.000000e+00> : vector<32x16xf32>
    %188 = tpu.matmul %165, %187, %cst_202 {dimension_numbers = #tpu.dot_dimension_numbers<[1], [0], [0], [1], [0, 0, 1, 1], [], []>} : vector<32x16xf32>, vector<16x16xf32>, vector<32x16xf32> -> vector<32x16xf32>
    %c3_203 = arith.constant 3 : index
    %c0_204 = arith.constant 0 : index
    %c0_205 = arith.constant 0 : index
    %189 = vector.load %arg6[%c3_203, %c0_204, %c0_205] : memref<9x32x32xf32, #tpu.memory_space<vmem>>, vector<1x32x32xf32>
    %190 = vector.shape_cast %189 : vector<1x32x32xf32> to vector<32x32xf32>
    %cst_206 = arith.constant dense<0.000000e+00> : vector<32x16xf32>
    %191 = tpu.matmul %190, %188, %cst_206 {dimension_numbers = #tpu.dot_dimension_numbers<[1], [0], [0], [1], [0, 0, 1, 1], [], []>} : vector<32x32xf32>, vector<32x16xf32>, vector<32x16xf32> -> vector<32x16xf32>
    %192 = arith.addf %185, %191 : vector<32x16xf32>
    %c4_207 = arith.constant 4 : index
    %c0_208 = arith.constant 0 : index
    %c0_209 = arith.constant 0 : index
    %193 = vector.load %arg12[%c4_207, %c0_208, %c0_209] : memref<9x16x16xf32, #tpu.memory_space<vmem>>, vector<1x16x16xf32>
    %194 = vector.shape_cast %193 : vector<1x16x16xf32> to vector<16x16xf32>
    %cst_210 = arith.constant dense<0.000000e+00> : vector<32x16xf32>
    %195 = tpu.matmul %165, %194, %cst_210 {dimension_numbers = #tpu.dot_dimension_numbers<[1], [0], [0], [1], [0, 0, 1, 1], [], []>} : vector<32x16xf32>, vector<16x16xf32>, vector<32x16xf32> -> vector<32x16xf32>
    %c4_211 = arith.constant 4 : index
    %c0_212 = arith.constant 0 : index
    %c0_213 = arith.constant 0 : index
    %196 = vector.load %arg6[%c4_211, %c0_212, %c0_213] : memref<9x32x32xf32, #tpu.memory_space<vmem>>, vector<1x32x32xf32>
    %197 = vector.shape_cast %196 : vector<1x32x32xf32> to vector<32x32xf32>
    %cst_214 = arith.constant dense<0.000000e+00> : vector<32x16xf32>
    %198 = tpu.matmul %197, %195, %cst_214 {dimension_numbers = #tpu.dot_dimension_numbers<[1], [0], [0], [1], [0, 0, 1, 1], [], []>} : vector<32x32xf32>, vector<32x16xf32>, vector<32x16xf32> -> vector<32x16xf32>
    %199 = arith.addf %192, %198 : vector<32x16xf32>
    %c5_215 = arith.constant 5 : index
    %c0_216 = arith.constant 0 : index
    %c0_217 = arith.constant 0 : index
    %200 = vector.load %arg12[%c5_215, %c0_216, %c0_217] : memref<9x16x16xf32, #tpu.memory_space<vmem>>, vector<1x16x16xf32>
    %201 = vector.shape_cast %200 : vector<1x16x16xf32> to vector<16x16xf32>
    %cst_218 = arith.constant dense<0.000000e+00> : vector<32x16xf32>
    %202 = tpu.matmul %165, %201, %cst_218 {dimension_numbers = #tpu.dot_dimension_numbers<[1], [0], [0], [1], [0, 0, 1, 1], [], []>} : vector<32x16xf32>, vector<16x16xf32>, vector<32x16xf32> -> vector<32x16xf32>
    %c5_219 = arith.constant 5 : index
    %c0_220 = arith.constant 0 : index
    %c0_221 = arith.constant 0 : index
    %203 = vector.load %arg6[%c5_219, %c0_220, %c0_221] : memref<9x32x32xf32, #tpu.memory_space<vmem>>, vector<1x32x32xf32>
    %204 = vector.shape_cast %203 : vector<1x32x32xf32> to vector<32x32xf32>
    %cst_222 = arith.constant dense<0.000000e+00> : vector<32x16xf32>
    %205 = tpu.matmul %204, %202, %cst_222 {dimension_numbers = #tpu.dot_dimension_numbers<[1], [0], [0], [1], [0, 0, 1, 1], [], []>} : vector<32x32xf32>, vector<32x16xf32>, vector<32x16xf32> -> vector<32x16xf32>
    %206 = arith.addf %199, %205 : vector<32x16xf32>
    %c6_223 = arith.constant 6 : index
    %c0_224 = arith.constant 0 : index
    %c0_225 = arith.constant 0 : index
    %207 = vector.load %arg12[%c6_223, %c0_224, %c0_225] : memref<9x16x16xf32, #tpu.memory_space<vmem>>, vector<1x16x16xf32>
    %208 = vector.shape_cast %207 : vector<1x16x16xf32> to vector<16x16xf32>
    %cst_226 = arith.constant dense<0.000000e+00> : vector<32x16xf32>
    %209 = tpu.matmul %165, %208, %cst_226 {dimension_numbers = #tpu.dot_dimension_numbers<[1], [0], [0], [1], [0, 0, 1, 1], [], []>} : vector<32x16xf32>, vector<16x16xf32>, vector<32x16xf32> -> vector<32x16xf32>
    %c6_227 = arith.constant 6 : index
    %c0_228 = arith.constant 0 : index
    %c0_229 = arith.constant 0 : index
    %210 = vector.load %arg6[%c6_227, %c0_228, %c0_229] : memref<9x32x32xf32, #tpu.memory_space<vmem>>, vector<1x32x32xf32>
    %211 = vector.shape_cast %210 : vector<1x32x32xf32> to vector<32x32xf32>
    %cst_230 = arith.constant dense<0.000000e+00> : vector<32x16xf32>
    %212 = tpu.matmul %211, %209, %cst_230 {dimension_numbers = #tpu.dot_dimension_numbers<[1], [0], [0], [1], [0, 0, 1, 1], [], []>} : vector<32x32xf32>, vector<32x16xf32>, vector<32x16xf32> -> vector<32x16xf32>
    %213 = arith.addf %206, %212 : vector<32x16xf32>
    %c7_231 = arith.constant 7 : index
    %c0_232 = arith.constant 0 : index
    %c0_233 = arith.constant 0 : index
    %214 = vector.load %arg12[%c7_231, %c0_232, %c0_233] : memref<9x16x16xf32, #tpu.memory_space<vmem>>, vector<1x16x16xf32>
    %215 = vector.shape_cast %214 : vector<1x16x16xf32> to vector<16x16xf32>
    %cst_234 = arith.constant dense<0.000000e+00> : vector<32x16xf32>
    %216 = tpu.matmul %165, %215, %cst_234 {dimension_numbers = #tpu.dot_dimension_numbers<[1], [0], [0], [1], [0, 0, 1, 1], [], []>} : vector<32x16xf32>, vector<16x16xf32>, vector<32x16xf32> -> vector<32x16xf32>
    %c7_235 = arith.constant 7 : index
    %c0_236 = arith.constant 0 : index
    %c0_237 = arith.constant 0 : index
    %217 = vector.load %arg6[%c7_235, %c0_236, %c0_237] : memref<9x32x32xf32, #tpu.memory_space<vmem>>, vector<1x32x32xf32>
    %218 = vector.shape_cast %217 : vector<1x32x32xf32> to vector<32x32xf32>
    %cst_238 = arith.constant dense<0.000000e+00> : vector<32x16xf32>
    %219 = tpu.matmul %218, %216, %cst_238 {dimension_numbers = #tpu.dot_dimension_numbers<[1], [0], [0], [1], [0, 0, 1, 1], [], []>} : vector<32x32xf32>, vector<32x16xf32>, vector<32x16xf32> -> vector<32x16xf32>
    %220 = arith.addf %213, %219 : vector<32x16xf32>
    %c8_239 = arith.constant 8 : index
    %c0_240 = arith.constant 0 : index
    %c0_241 = arith.constant 0 : index
    %221 = vector.load %arg12[%c8_239, %c0_240, %c0_241] : memref<9x16x16xf32, #tpu.memory_space<vmem>>, vector<1x16x16xf32>
    %222 = vector.shape_cast %221 : vector<1x16x16xf32> to vector<16x16xf32>
    %cst_242 = arith.constant dense<0.000000e+00> : vector<32x16xf32>
    %223 = tpu.matmul %165, %222, %cst_242 {dimension_numbers = #tpu.dot_dimension_numbers<[1], [0], [0], [1], [0, 0, 1, 1], [], []>} : vector<32x16xf32>, vector<16x16xf32>, vector<32x16xf32> -> vector<32x16xf32>
    %c8_243 = arith.constant 8 : index
    %c0_244 = arith.constant 0 : index
    %c0_245 = arith.constant 0 : index
    %224 = vector.load %arg6[%c8_243, %c0_244, %c0_245] : memref<9x32x32xf32, #tpu.memory_space<vmem>>, vector<1x32x32xf32>
    %225 = vector.shape_cast %224 : vector<1x32x32xf32> to vector<32x32xf32>
    %cst_246 = arith.constant dense<0.000000e+00> : vector<32x16xf32>
    %226 = tpu.matmul %225, %223, %cst_246 {dimension_numbers = #tpu.dot_dimension_numbers<[1], [0], [0], [1], [0, 0, 1, 1], [], []>} : vector<32x32xf32>, vector<32x16xf32>, vector<32x16xf32> -> vector<32x16xf32>
    %227 = arith.addf %220, %226 : vector<32x16xf32>
    %c0_247 = arith.constant 0 : index
    %c0_248 = arith.constant 0 : index
    %228 = vector.load %arg7[%c0_247, %c0_248] : memref<32x1xf32, #tpu.memory_space<vmem>>, vector<32x1xf32>
    %229 = vector.broadcast %228 : vector<32x1xf32> to vector<32x16xf32>
    %230 = arith.addf %227, %229 : vector<32x16xf32>
    %cst_249 = arith.constant 0.000000e+00 : f32
    %231 = vector.broadcast %cst_249 : f32 to vector<32x16xf32>
    %232 = arith.maximumf %230, %231 : vector<32x16xf32>
    %c0_250 = arith.constant 0 : index
    %c0_251 = arith.constant 0 : index
    %233 = vector.load %arg15[%c0_250, %c0_251] : memref<16x64xf32, #tpu.memory_space<vmem>>, vector<16x64xf32>
    %cst_252 = arith.constant dense<0.000000e+00> : vector<32x64xf32>
    %234 = tpu.matmul %232, %233, %cst_252 {dimension_numbers = #tpu.dot_dimension_numbers<[1], [0], [0], [1], [0, 0, 1, 1], [], []>} : vector<32x16xf32>, vector<16x64xf32>, vector<32x64xf32> -> vector<32x64xf32>
    %c0_253 = arith.constant 0 : index
    %c0_254 = arith.constant 0 : index
    %c0_255 = arith.constant 0 : index
    %235 = vector.load %arg11[%c0_253, %c0_254, %c0_255] : memref<9x64x64xf32, #tpu.memory_space<vmem>>, vector<1x64x64xf32>
    %236 = vector.shape_cast %235 : vector<1x64x64xf32> to vector<64x64xf32>
    %cst_256 = arith.constant dense<0.000000e+00> : vector<32x64xf32>
    %237 = tpu.matmul %234, %236, %cst_256 {dimension_numbers = #tpu.dot_dimension_numbers<[1], [0], [0], [1], [0, 0, 1, 1], [], []>} : vector<32x64xf32>, vector<64x64xf32>, vector<32x64xf32> -> vector<32x64xf32>
    %c0_257 = arith.constant 0 : index
    %c0_258 = arith.constant 0 : index
    %c0_259 = arith.constant 0 : index
    %238 = vector.load %arg8[%c0_257, %c0_258, %c0_259] : memref<9x4x32xf32, #tpu.memory_space<vmem>>, vector<1x4x32xf32>
    %239 = vector.shape_cast %238 : vector<1x4x32xf32> to vector<4x32xf32>
    %cst_260 = arith.constant dense<0.000000e+00> : vector<4x64xf32>
    %240 = tpu.matmul %239, %237, %cst_260 {dimension_numbers = #tpu.dot_dimension_numbers<[1], [0], [0], [1], [0, 0, 1, 1], [], []>} : vector<4x32xf32>, vector<32x64xf32>, vector<4x64xf32> -> vector<4x64xf32>
    %c1_261 = arith.constant 1 : index
    %c0_262 = arith.constant 0 : index
    %c0_263 = arith.constant 0 : index
    %241 = vector.load %arg11[%c1_261, %c0_262, %c0_263] : memref<9x64x64xf32, #tpu.memory_space<vmem>>, vector<1x64x64xf32>
    %242 = vector.shape_cast %241 : vector<1x64x64xf32> to vector<64x64xf32>
    %cst_264 = arith.constant dense<0.000000e+00> : vector<32x64xf32>
    %243 = tpu.matmul %234, %242, %cst_264 {dimension_numbers = #tpu.dot_dimension_numbers<[1], [0], [0], [1], [0, 0, 1, 1], [], []>} : vector<32x64xf32>, vector<64x64xf32>, vector<32x64xf32> -> vector<32x64xf32>
    %c1_265 = arith.constant 1 : index
    %c0_266 = arith.constant 0 : index
    %c0_267 = arith.constant 0 : index
    %244 = vector.load %arg8[%c1_265, %c0_266, %c0_267] : memref<9x4x32xf32, #tpu.memory_space<vmem>>, vector<1x4x32xf32>
    %245 = vector.shape_cast %244 : vector<1x4x32xf32> to vector<4x32xf32>
    %cst_268 = arith.constant dense<0.000000e+00> : vector<4x64xf32>
    %246 = tpu.matmul %245, %243, %cst_268 {dimension_numbers = #tpu.dot_dimension_numbers<[1], [0], [0], [1], [0, 0, 1, 1], [], []>} : vector<4x32xf32>, vector<32x64xf32>, vector<4x64xf32> -> vector<4x64xf32>
    %247 = arith.addf %240, %246 : vector<4x64xf32>
    %c2_269 = arith.constant 2 : index
    %c0_270 = arith.constant 0 : index
    %c0_271 = arith.constant 0 : index
    %248 = vector.load %arg11[%c2_269, %c0_270, %c0_271] : memref<9x64x64xf32, #tpu.memory_space<vmem>>, vector<1x64x64xf32>
    %249 = vector.shape_cast %248 : vector<1x64x64xf32> to vector<64x64xf32>
    %cst_272 = arith.constant dense<0.000000e+00> : vector<32x64xf32>
    %250 = tpu.matmul %234, %249, %cst_272 {dimension_numbers = #tpu.dot_dimension_numbers<[1], [0], [0], [1], [0, 0, 1, 1], [], []>} : vector<32x64xf32>, vector<64x64xf32>, vector<32x64xf32> -> vector<32x64xf32>
    %c2_273 = arith.constant 2 : index
    %c0_274 = arith.constant 0 : index
    %c0_275 = arith.constant 0 : index
    %251 = vector.load %arg8[%c2_273, %c0_274, %c0_275] : memref<9x4x32xf32, #tpu.memory_space<vmem>>, vector<1x4x32xf32>
    %252 = vector.shape_cast %251 : vector<1x4x32xf32> to vector<4x32xf32>
    %cst_276 = arith.constant dense<0.000000e+00> : vector<4x64xf32>
    %253 = tpu.matmul %252, %250, %cst_276 {dimension_numbers = #tpu.dot_dimension_numbers<[1], [0], [0], [1], [0, 0, 1, 1], [], []>} : vector<4x32xf32>, vector<32x64xf32>, vector<4x64xf32> -> vector<4x64xf32>
    %254 = arith.addf %247, %253 : vector<4x64xf32>
    %c3_277 = arith.constant 3 : index
    %c0_278 = arith.constant 0 : index
    %c0_279 = arith.constant 0 : index
    %255 = vector.load %arg11[%c3_277, %c0_278, %c0_279] : memref<9x64x64xf32, #tpu.memory_space<vmem>>, vector<1x64x64xf32>
    %256 = vector.shape_cast %255 : vector<1x64x64xf32> to vector<64x64xf32>
    %cst_280 = arith.constant dense<0.000000e+00> : vector<32x64xf32>
    %257 = tpu.matmul %234, %256, %cst_280 {dimension_numbers = #tpu.dot_dimension_numbers<[1], [0], [0], [1], [0, 0, 1, 1], [], []>} : vector<32x64xf32>, vector<64x64xf32>, vector<32x64xf32> -> vector<32x64xf32>
    %c3_281 = arith.constant 3 : index
    %c0_282 = arith.constant 0 : index
    %c0_283 = arith.constant 0 : index
    %258 = vector.load %arg8[%c3_281, %c0_282, %c0_283] : memref<9x4x32xf32, #tpu.memory_space<vmem>>, vector<1x4x32xf32>
    %259 = vector.shape_cast %258 : vector<1x4x32xf32> to vector<4x32xf32>
    %cst_284 = arith.constant dense<0.000000e+00> : vector<4x64xf32>
    %260 = tpu.matmul %259, %257, %cst_284 {dimension_numbers = #tpu.dot_dimension_numbers<[1], [0], [0], [1], [0, 0, 1, 1], [], []>} : vector<4x32xf32>, vector<32x64xf32>, vector<4x64xf32> -> vector<4x64xf32>
    %261 = arith.addf %254, %260 : vector<4x64xf32>
    %c4_285 = arith.constant 4 : index
    %c0_286 = arith.constant 0 : index
    %c0_287 = arith.constant 0 : index
    %262 = vector.load %arg11[%c4_285, %c0_286, %c0_287] : memref<9x64x64xf32, #tpu.memory_space<vmem>>, vector<1x64x64xf32>
    %263 = vector.shape_cast %262 : vector<1x64x64xf32> to vector<64x64xf32>
    %cst_288 = arith.constant dense<0.000000e+00> : vector<32x64xf32>
    %264 = tpu.matmul %234, %263, %cst_288 {dimension_numbers = #tpu.dot_dimension_numbers<[1], [0], [0], [1], [0, 0, 1, 1], [], []>} : vector<32x64xf32>, vector<64x64xf32>, vector<32x64xf32> -> vector<32x64xf32>
    %c4_289 = arith.constant 4 : index
    %c0_290 = arith.constant 0 : index
    %c0_291 = arith.constant 0 : index
    %265 = vector.load %arg8[%c4_289, %c0_290, %c0_291] : memref<9x4x32xf32, #tpu.memory_space<vmem>>, vector<1x4x32xf32>
    %266 = vector.shape_cast %265 : vector<1x4x32xf32> to vector<4x32xf32>
    %cst_292 = arith.constant dense<0.000000e+00> : vector<4x64xf32>
    %267 = tpu.matmul %266, %264, %cst_292 {dimension_numbers = #tpu.dot_dimension_numbers<[1], [0], [0], [1], [0, 0, 1, 1], [], []>} : vector<4x32xf32>, vector<32x64xf32>, vector<4x64xf32> -> vector<4x64xf32>
    %268 = arith.addf %261, %267 : vector<4x64xf32>
    %c5_293 = arith.constant 5 : index
    %c0_294 = arith.constant 0 : index
    %c0_295 = arith.constant 0 : index
    %269 = vector.load %arg11[%c5_293, %c0_294, %c0_295] : memref<9x64x64xf32, #tpu.memory_space<vmem>>, vector<1x64x64xf32>
    %270 = vector.shape_cast %269 : vector<1x64x64xf32> to vector<64x64xf32>
    %cst_296 = arith.constant dense<0.000000e+00> : vector<32x64xf32>
    %271 = tpu.matmul %234, %270, %cst_296 {dimension_numbers = #tpu.dot_dimension_numbers<[1], [0], [0], [1], [0, 0, 1, 1], [], []>} : vector<32x64xf32>, vector<64x64xf32>, vector<32x64xf32> -> vector<32x64xf32>
    %c5_297 = arith.constant 5 : index
    %c0_298 = arith.constant 0 : index
    %c0_299 = arith.constant 0 : index
    %272 = vector.load %arg8[%c5_297, %c0_298, %c0_299] : memref<9x4x32xf32, #tpu.memory_space<vmem>>, vector<1x4x32xf32>
    %273 = vector.shape_cast %272 : vector<1x4x32xf32> to vector<4x32xf32>
    %cst_300 = arith.constant dense<0.000000e+00> : vector<4x64xf32>
    %274 = tpu.matmul %273, %271, %cst_300 {dimension_numbers = #tpu.dot_dimension_numbers<[1], [0], [0], [1], [0, 0, 1, 1], [], []>} : vector<4x32xf32>, vector<32x64xf32>, vector<4x64xf32> -> vector<4x64xf32>
    %275 = arith.addf %268, %274 : vector<4x64xf32>
    %c6_301 = arith.constant 6 : index
    %c0_302 = arith.constant 0 : index
    %c0_303 = arith.constant 0 : index
    %276 = vector.load %arg11[%c6_301, %c0_302, %c0_303] : memref<9x64x64xf32, #tpu.memory_space<vmem>>, vector<1x64x64xf32>
    %277 = vector.shape_cast %276 : vector<1x64x64xf32> to vector<64x64xf32>
    %cst_304 = arith.constant dense<0.000000e+00> : vector<32x64xf32>
    %278 = tpu.matmul %234, %277, %cst_304 {dimension_numbers = #tpu.dot_dimension_numbers<[1], [0], [0], [1], [0, 0, 1, 1], [], []>} : vector<32x64xf32>, vector<64x64xf32>, vector<32x64xf32> -> vector<32x64xf32>
    %c6_305 = arith.constant 6 : index
    %c0_306 = arith.constant 0 : index
    %c0_307 = arith.constant 0 : index
    %279 = vector.load %arg8[%c6_305, %c0_306, %c0_307] : memref<9x4x32xf32, #tpu.memory_space<vmem>>, vector<1x4x32xf32>
    %280 = vector.shape_cast %279 : vector<1x4x32xf32> to vector<4x32xf32>
    %cst_308 = arith.constant dense<0.000000e+00> : vector<4x64xf32>
    %281 = tpu.matmul %280, %278, %cst_308 {dimension_numbers = #tpu.dot_dimension_numbers<[1], [0], [0], [1], [0, 0, 1, 1], [], []>} : vector<4x32xf32>, vector<32x64xf32>, vector<4x64xf32> -> vector<4x64xf32>
    %282 = arith.addf %275, %281 : vector<4x64xf32>
    %c7_309 = arith.constant 7 : index
    %c0_310 = arith.constant 0 : index
    %c0_311 = arith.constant 0 : index
    %283 = vector.load %arg11[%c7_309, %c0_310, %c0_311] : memref<9x64x64xf32, #tpu.memory_space<vmem>>, vector<1x64x64xf32>
    %284 = vector.shape_cast %283 : vector<1x64x64xf32> to vector<64x64xf32>
    %cst_312 = arith.constant dense<0.000000e+00> : vector<32x64xf32>
    %285 = tpu.matmul %234, %284, %cst_312 {dimension_numbers = #tpu.dot_dimension_numbers<[1], [0], [0], [1], [0, 0, 1, 1], [], []>} : vector<32x64xf32>, vector<64x64xf32>, vector<32x64xf32> -> vector<32x64xf32>
    %c7_313 = arith.constant 7 : index
    %c0_314 = arith.constant 0 : index
    %c0_315 = arith.constant 0 : index
    %286 = vector.load %arg8[%c7_313, %c0_314, %c0_315] : memref<9x4x32xf32, #tpu.memory_space<vmem>>, vector<1x4x32xf32>
    %287 = vector.shape_cast %286 : vector<1x4x32xf32> to vector<4x32xf32>
    %cst_316 = arith.constant dense<0.000000e+00> : vector<4x64xf32>
    %288 = tpu.matmul %287, %285, %cst_316 {dimension_numbers = #tpu.dot_dimension_numbers<[1], [0], [0], [1], [0, 0, 1, 1], [], []>} : vector<4x32xf32>, vector<32x64xf32>, vector<4x64xf32> -> vector<4x64xf32>
    %289 = arith.addf %282, %288 : vector<4x64xf32>
    %c8_317 = arith.constant 8 : index
    %c0_318 = arith.constant 0 : index
    %c0_319 = arith.constant 0 : index
    %290 = vector.load %arg11[%c8_317, %c0_318, %c0_319] : memref<9x64x64xf32, #tpu.memory_space<vmem>>, vector<1x64x64xf32>
    %291 = vector.shape_cast %290 : vector<1x64x64xf32> to vector<64x64xf32>
    %cst_320 = arith.constant dense<0.000000e+00> : vector<32x64xf32>
    %292 = tpu.matmul %234, %291, %cst_320 {dimension_numbers = #tpu.dot_dimension_numbers<[1], [0], [0], [1], [0, 0, 1, 1], [], []>} : vector<32x64xf32>, vector<64x64xf32>, vector<32x64xf32> -> vector<32x64xf32>
    %c8_321 = arith.constant 8 : index
    %c0_322 = arith.constant 0 : index
    %c0_323 = arith.constant 0 : index
    %293 = vector.load %arg8[%c8_321, %c0_322, %c0_323] : memref<9x4x32xf32, #tpu.memory_space<vmem>>, vector<1x4x32xf32>
    %294 = vector.shape_cast %293 : vector<1x4x32xf32> to vector<4x32xf32>
    %cst_324 = arith.constant dense<0.000000e+00> : vector<4x64xf32>
    %295 = tpu.matmul %294, %292, %cst_324 {dimension_numbers = #tpu.dot_dimension_numbers<[1], [0], [0], [1], [0, 0, 1, 1], [], []>} : vector<4x32xf32>, vector<32x64xf32>, vector<4x64xf32> -> vector<4x64xf32>
    %296 = arith.addf %289, %295 : vector<4x64xf32>
    %c0_325 = arith.constant 0 : index
    %c0_326 = arith.constant 0 : index
    %297 = vector.load %arg9[%c0_325, %c0_326] : memref<4x1xf32, #tpu.memory_space<vmem>>, vector<4x1xf32>
    %298 = vector.broadcast %297 : vector<4x1xf32> to vector<4x64xf32>
    %299 = arith.addf %296, %298 : vector<4x64xf32>
    %c0_327 = arith.constant 0 : index
    %c0_328 = arith.constant 0 : index
    %300 = vector.load %arg16[%c0_327, %c0_328] : memref<64x256xf32, #tpu.memory_space<vmem>>, vector<64x256xf32>
    %cst_329 = arith.constant dense<0.000000e+00> : vector<4x256xf32>
    %301 = tpu.matmul %299, %300, %cst_329 {dimension_numbers = #tpu.dot_dimension_numbers<[1], [0], [0], [1], [0, 0, 1, 1], [], []>} : vector<4x64xf32>, vector<64x256xf32>, vector<4x256xf32> -> vector<4x256xf32>
    %c0_330 = arith.constant 0 : index
    %c0_331 = arith.constant 0 : index
    %c0_332 = arith.constant 0 : index
    %302 = vector.load %arg17[%c0_330, %c0_331, %c0_332] : memref<1x4x256xf32, #tpu.memory_space<vmem>>, vector<1x4x256xf32>
    %303 = vector.shape_cast %302 : vector<1x4x256xf32> to vector<4x256xf32>
    %304 = vector.shape_cast %301 : vector<4x256xf32> to vector<1x4x256xf32>
    tpu.vector_store %arg17[%c0_330, %c0_331, %c0_332], %304 {strides = array<i32>} : memref<1x4x256xf32, #tpu.memory_space<vmem>>, vector<1x4x256xf32>,
    return
  }
  func.func @transform_0(%arg0: i32) -> (i32, i32, i32) {
    %c0_i32 = arith.constant 0 : i32
    %c0_i32_0 = arith.constant 0 : i32
    %c0_i32_1 = arith.constant 0 : i32
    return %arg0, %c0_i32, %c0_i32_0 : i32, i32, i32
  }
  func.func @transform_1(%arg0: i32) -> (i32, i32, i32) {
    %c0_i32 = arith.constant 0 : i32
    %c0_i32_0 = arith.constant 0 : i32
    %c0_i32_1 = arith.constant 0 : i32
    %c0_i32_2 = arith.constant 0 : i32
    return %c0_i32, %c0_i32_0, %c0_i32_1 : i32, i32, i32
  }
  func.func @transform_2(%arg0: i32) -> (i32, i32) {
    %c0_i32 = arith.constant 0 : i32
    %c0_i32_0 = arith.constant 0 : i32
    %c0_i32_1 = arith.constant 0 : i32
    return %c0_i32, %c0_i32_0 : i32, i32
  }
  func.func @transform_3(%arg0: i32) -> (i32, i32, i32) {
    %c0_i32 = arith.constant 0 : i32
    %c0_i32_0 = arith.constant 0 : i32
    %c0_i32_1 = arith.constant 0 : i32
    %c0_i32_2 = arith.constant 0 : i32
    return %c0_i32, %c0_i32_0, %c0_i32_1 : i32, i32, i32
  }
  func.func @transform_4(%arg0: i32) -> (i32, i32) {
    %c0_i32 = arith.constant 0 : i32
    %c0_i32_0 = arith.constant 0 : i32
    %c0_i32_1 = arith.constant 0 : i32
    return %c0_i32, %c0_i32_0 : i32, i32
  }
  func.func @transform_5(%arg0: i32) -> (i32, i32, i32) {
    %c0_i32 = arith.constant 0 : i32
    %c0_i32_0 = arith.constant 0 : i32
    %c0_i32_1 = arith.constant 0 : i32
    %c0_i32_2 = arith.constant 0 : i32
    return %c0_i32, %c0_i32_0, %c0_i32_1 : i32, i32, i32
  }
  func.func @transform_6(%arg0: i32) -> (i32, i32) {
    %c0_i32 = arith.constant 0 : i32
    %c0_i32_0 = arith.constant 0 : i32
    %c0_i32_1 = arith.constant 0 : i32
    return %c0_i32, %c0_i32_0 : i32, i32
  }
  func.func @transform_7(%arg0: i32) -> (i32, i32, i32) {
    %c0_i32 = arith.constant 0 : i32
    %c0_i32_0 = arith.constant 0 : i32
    %c0_i32_1 = arith.constant 0 : i32
    %c0_i32_2 = arith.constant 0 : i32
    return %c0_i32, %c0_i32_0, %c0_i32_1 : i32, i32, i32
  }
  func.func @transform_8(%arg0: i32) -> (i32, i32) {
    %c0_i32 = arith.constant 0 : i32
    %c0_i32_0 = arith.constant 0 : i32
    %c0_i32_1 = arith.constant 0 : i32
    return %c0_i32, %c0_i32_0 : i32, i32
  }
  func.func @transform_9(%arg0: i32) -> (i32, i32, i32) {
    %c0_i32 = arith.constant 0 : i32
    %c0_i32_0 = arith.constant 0 : i32
    %c0_i32_1 = arith.constant 0 : i32
    %c0_i32_2 = arith.constant 0 : i32
    return %c0_i32, %c0_i32_0, %c0_i32_1 : i32, i32, i32
  }
  func.func @transform_10(%arg0: i32) -> (i32, i32, i32) {
    %c0_i32 = arith.constant 0 : i32
    %c0_i32_0 = arith.constant 0 : i32
    %c0_i32_1 = arith.constant 0 : i32
    %c0_i32_2 = arith.constant 0 : i32
    return %c0_i32, %c0_i32_0, %c0_i32_1 : i32, i32, i32
  }
  func.func @transform_11(%arg0: i32) -> (i32, i32, i32) {
    %c0_i32 = arith.constant 0 : i32
    %c0_i32_0 = arith.constant 0 : i32
    %c0_i32_1 = arith.constant 0 : i32
    %c0_i32_2 = arith.constant 0 : i32
    return %c0_i32, %c0_i32_0, %c0_i32_1 : i32, i32, i32
  }
  func.func @transform_12(%arg0: i32) -> (i32, i32, i32) {
    %c0_i32 = arith.constant 0 : i32
    %c0_i32_0 = arith.constant 0 : i32
    %c0_i32_1 = arith.constant 0 : i32
    %c0_i32_2 = arith.constant 0 : i32
    return %c0_i32, %c0_i32_0, %c0_i32_1 : i32, i32, i32
  }
  func.func @transform_13(%arg0: i32) -> (i32, i32, i32) {
    %c0_i32 = arith.constant 0 : i32
    %c0_i32_0 = arith.constant 0 : i32
    %c0_i32_1 = arith.constant 0 : i32
    %c0_i32_2 = arith.constant 0 : i32
    return %c0_i32, %c0_i32_0, %c0_i32_1 : i32, i32, i32
  }
  func.func @transform_14(%arg0: i32) -> (i32, i32) {
    %c0_i32 = arith.constant 0 : i32
    %c0_i32_0 = arith.constant 0 : i32
    %c0_i32_1 = arith.constant 0 : i32
    return %c0_i32, %c0_i32_0 : i32, i32
  }
  func.func @transform_15(%arg0: i32) -> (i32, i32) {
    %c0_i32 = arith.constant 0 : i32
    %c0_i32_0 = arith.constant 0 : i32
    %c0_i32_1 = arith.constant 0 : i32
    return %c0_i32, %c0_i32_0 : i32, i32
  }
  func.func @transform_16(%arg0: i32) -> (i32, i32, i32) {
    %c0_i32 = arith.constant 0 : i32
    %c0_i32_0 = arith.constant 0 : i32
    %c0_i32_1 = arith.constant 0 : i32
    return %arg0, %c0_i32, %c0_i32_0 : i32, i32, i32
  }
}

</mosaic_0001>

<llo_original>
// kernel: lanenet_forward.1
$region0: #{lanenet_forward.1}
  #allocation0 [shape = 'u32[]', space=smem, size = 0x4, offset = 0x4, fixed_abs, tag = 'smem constant byte address 0x4 - core index']
  #allocation1 [shape = 'u32[144,128]{1,0:T(1,128)}', space=vmem, size = 0x12000, scoped, tag = 'internal scratch']
  %s0 = inlined_call_operand.vmem [shape: f32[2,3,256], index: 0, kind: input, shape index: {}]
  %s1 = inlined_call_operand.vmem [shape: f32[9,16,3], index: 1, kind: input, shape index: {}]
  %s2 = inlined_call_operand.vmem [shape: f32[16,1], index: 2, kind: input, shape index: {}]
  %s3 = inlined_call_operand.vmem [shape: f32[9,32,16], index: 3, kind: input, shape index: {}]
  %s4 = inlined_call_operand.vmem [shape: f32[32,1], index: 4, kind: input, shape index: {}]
  %s5 = inlined_call_operand.vmem [shape: f32[9,32,32], index: 5, kind: input, shape index: {}]
  %s6 = inlined_call_operand.vmem [shape: f32[32,1], index: 6, kind: input, shape index: {}]
  %s7 = inlined_call_operand.vmem [shape: f32[9,4,32], index: 7, kind: input, shape index: {}]
  %s8 = inlined_call_operand.vmem [shape: f32[4,1], index: 8, kind: input, shape index: {}]
  %s9 = inlined_call_operand.hbm [shape: f32[9,256,256], index: 9, kind: input, shape index: {}]
  %s10 = inlined_call_operand.hbm [shape: f32[9,64,64], index: 10, kind: input, shape index: {}]
  %s11 = inlined_call_operand.hbm [shape: f32[9,16,16], index: 11, kind: input, shape index: {}]
  %s12 = inlined_call_operand.hbm [shape: f32[4,256,64], index: 12, kind: input, shape index: {}]
  %s13 = inlined_call_operand.hbm [shape: f32[4,64,16], index: 13, kind: input, shape index: {}]
  %s14 = inlined_call_operand.hbm [shape: f32[16,64], index: 14, kind: input, shape index: {}]
  %s15 = inlined_call_operand.hbm [shape: f32[64,256], index: 15, kind: input, shape index: {}]
  %s16 = inlined_call_operand.vmem [shape: f32[2,4,256], index: 16, kind: output, shape index: {}]
  %s17 = sld [smem:[#allocation0]]
  $region125: #{lanenet_forward.1} parent=0
    _
  %s19 = ssub.s32 1, %s17
  %s20 = scalar_select 0, %s19, %s17
  $region1: #{lanenet_forward.1} parent=0
    #allocation2 [shape = 'u8[2359296]{0}', space=vmem, size = 0x240000, scoped, tag = 'input window, operand 9, single buffered']
    #allocation3 [shape = 's32[2]{0}', space=sflag, size = 0x8, scoped, tag = 'scoped memory for lanenet_forward.1']
    #allocation4 [shape = 'u8[294912]{0}', space=vmem, size = 0x48000, scoped, tag = 'input window, operand 10, single buffered']
    #allocation5 [shape = 's32[1]{0}', space=sflag, size = 0x4, scoped, tag = 'scoped memory for lanenet_forward.1']
    #allocation6 [shape = 'u8[73728]{0}', space=vmem, size = 0x12000, scoped, tag = 'input window, operand 11, single buffered']
    #allocation7 [shape = 'u8[524288]{0}', space=vmem, size = 0x80000, scoped, tag = 'input window, operand 12, single buffered']
    #allocation8 [shape = 's32[1]{0}', space=sflag, size = 0x4, scoped, tag = 'scoped memory for lanenet_forward.1']
    #allocation9 [shape = 'u8[131072]{0}', space=vmem, size = 0x20000, scoped, tag = 'input window, operand 13, single buffered']
    #allocation10 [shape = 'u8[8192]{0}', space=vmem, size = 0x2000, scoped, tag = 'input window, operand 14, single buffered']
    #allocation11 [shape = 's32[1]{0}', space=sflag, size = 0x4, scoped, tag = 'scoped memory for lanenet_forward.1']
    #allocation12 [shape = 'u8[65536]{0}', space=vmem, size = 0x10000, scoped, tag = 'input window, operand 15, single buffered']
    %21 = vsyncpa [#allocation3], 0
    %22 = vsyncpa [#allocation5], 0
    %23 = vsyncpa [#allocation8], 0
    %24 = vsyncpa [#allocation11], 0
    loop: start=0, step=1, limit=4
    $region2: #{lanenet_forward.1} parent=1 // loop_pre_header
      _
    $region3: #{lanenet_forward.1} parent=1 // loop_header
      %s26 = sphi 0, %s30
      %p27 = scmp.ge.s32.totalorder %s26, 4
      %s36 = sphi 0, %s38
      %s39 = sphi 0, %s36
      %s40 = sphi 0, %s39
      %s56 = sphi 0, %s40
      %s60 = sphi 0, %s60
      %s62 = sphi 0, %s60
      %s63 = sphi 0, %s62
      %s77 = sphi 0, %s63
      %s81 = sphi 0, %s81
      %s83 = sphi 0, %s81
      %s84 = sphi 0, %s83
      %s98 = sphi 0, %s84
      %s102 = sphi 0, %s102
      %s104 = sphi 0, %s102
      %s105 = sphi 0, %s104
      %s119 = sphi 0, %s105
      %s123 = sphi 0, %s123
      %s125 = sphi 0, %s123
      %s126 = sphi 0, %s125
      %s140 = sphi 0, %s126
      %s144 = sphi 0, %s144
      %s146 = sphi 0, %s144
      %s147 = sphi 0, %s146
      %s161 = sphi 0, %s147
      %s165 = sphi 0, %s165
      %s167 = sphi 0, %s165
      %s168 = sphi 0, %s167
      %s182 = sphi 0, %s168
      %s186 = sphi 0, %s186
      %s188 = sphi 0, %s186
      %s189 = sphi 0, %s188
      %s203 = sphi 0, %s189
      %s207 = sphi 0, %s207
      %s209 = sphi 0, %s207
      %s210 = sphi 0, %s209
      %s224 = sphi 0, %s210
      %s228 = sphi 0, %s228
      %s230 = sphi 0, %s228
      %s231 = sphi 0, %s230
      %s245 = sphi 0, %s231
      %s249 = sphi 0, %s249
      %s251 = sphi 0, %s249
      %s252 = sphi 0, %s251
      %s266 = sphi 0, %s252
      %s270 = sphi 0, %s270
      %s272 = sphi 0, %s270
      %s273 = sphi 0, %s272
      %s287 = sphi 0, %s273
      %s291 = sphi 0, %s291
      %s293 = sphi 0, %s291
      %s294 = sphi 0, %s293
      %s308 = sphi 0, %s294
      %s312 = sphi 0, %s312
      %s314 = sphi 0, %s312
      %s315 = sphi 0, %s314
      %s329 = sphi 0, %s315
      %s333 = sphi 0, %s333
      %s335 = sphi 0, %s333
      %s336 = sphi 0, %s335
      %s350 = sphi 0, %s336
      %s354 = sphi 0, %s354
      %s356 = sphi 0, %s354
      %s357 = sphi 0, %s356
      %s371 = sphi 0, %s357
      %s377 = sphi 0, %s379
      %s380 = sphi 0, %s377
      %s381 = sphi 0, %s380
      %s397 = sphi 0, %s381
    $region4: #{lanenet_forward.1} parent=1 // loop_header_branch
      %29 = sbr.rel (%p27) target = $region8
    $region5: #{lanenet_forward.1} parent=1 // loop_body
      %s31 = ssub.s32 %s26, 1
      %s32 = ssub.s32 %s26, 2
      %s33 = sadd.s32 %s26, 1
      %s34 = ssub.s32 %s26, %s33
      %p35 = scmp.eq.s32.totalorder %s34, 0
      %s37 = sadd.s32 %s36, 1
      %s38 = scalar_select %p35, %s36, %s37
      %p41 = pneg %p35
      %p42 = scmp.eq.s32.totalorder %s26, 1
      %p43 = por %p41, %p42
      %p44 = scmp.ne.s32.totalorder %s36, %s39
      %p45 = scmp.eq.s32.totalorder %s26, 0
      %p46 = por %p44, %p45
      %p47 = scmp.ne.s32.totalorder %s36, %s39
      %p48 = scmp.eq.s32.totalorder %s31, 1
      %p49 = por %p47, %p48
      %p50 = scmp.ne.s32.totalorder %s39, %s40
      %p51 = scmp.eq.s32.totalorder %s31, 0
      %p52 = por %p50, %p51
      %p53 = scmp.ne.s32.totalorder %s39, %s40
      %p54 = scmp.eq.s32.totalorder %s32, 1
      %p55 = por %p53, %p54
      %p57 = scmp.ne.s32.totalorder %s40, %s56
      %p58 = scmp.eq.s32.totalorder %s32, 0
      %p59 = por %p57, %p58
      %s61 = sadd.s32 %s60, 1
      %p64 = scmp.eq.s32.totalorder %s26, 1
      %p65 = scmp.ne.s32.totalorder %s60, %s62
      %p66 = scmp.eq.s32.totalorder %s26, 0
      %p67 = por %p65, %p66
      %p68 = scmp.ne.s32.totalorder %s60, %s62
      %p69 = scmp.eq.s32.totalorder %s31, 1
      %p70 = por %p68, %p69
      %p71 = scmp.ne.s32.totalorder %s62, %s63
      %p72 = scmp.eq.s32.totalorder %s31, 0
      %p73 = por %p71, %p72
      %p74 = scmp.ne.s32.totalorder %s62, %s63
      %p75 = scmp.eq.s32.totalorder %s32, 1
      %p76 = por %p74, %p75
      %p78 = scmp.ne.s32.totalorder %s63, %s77
      %p79 = scmp.eq.s32.totalorder %s32, 0
      %p80 = por %p78, %p79
      %s82 = sadd.s32 %s81, 1
      %p85 = scmp.eq.s32.totalorder %s26, 1
      %p86 = scmp.ne.s32.totalorder %s81, %s83
      %p87 = scmp.eq.s32.totalorder %s26, 0
      %p88 = por %p86, %p87
      %p89 = scmp.ne.s32.totalorder %s81, %s83
      %p90 = scmp.eq.s32.totalorder %s31, 1
      %p91 = por %p89, %p90
      %p92 = scmp.ne.s32.totalorder %s83, %s84
      %p93 = scmp.eq.s32.totalorder %s31, 0
      %p94 = por %p92, %p93
      %p95 = scmp.ne.s32.totalorder %s83, %s84
      %p96 = scmp.eq.s32.totalorder %s32, 1
      %p97 = por %p95, %p96
      %p99 = scmp.ne.s32.totalorder %s84, %s98
      %p100 = scmp.eq.s32.totalorder %s32, 0
      %p101 = por %p99, %p100
      %s103 = sadd.s32 %s102, 1
      %p106 = scmp.eq.s32.totalorder %s26, 1
      %p107 = scmp.ne.s32.totalorder %s102, %s104
      %p108 = scmp.eq.s32.totalorder %s26, 0
      %p109 = por %p107, %p108
      %p110 = scmp.ne.s32.totalorder %s102, %s104
      %p111 = scmp.eq.s32.totalorder %s31, 1
      %p112 = por %p110, %p111
      %p113 = scmp.ne.s32.totalorder %s104, %s105
      %p114 = scmp.eq.s32.totalorder %s31, 0
      %p115 = por %p113, %p114
      %p116 = scmp.ne.s32.totalorder %s104, %s105
      %p117 = scmp.eq.s32.totalorder %s32, 1
      %p118 = por %p116, %p117
      %p120 = scmp.ne.s32.totalorder %s105, %s119
      %p121 = scmp.eq.s32.totalorder %s32, 0
      %p122 = por %p120, %p121
      %s124 = sadd.s32 %s123, 1
      %p127 = scmp.eq.s32.totalorder %s26, 1
      %p128 = scmp.ne.s32.totalorder %s123, %s125
      %p129 = scmp.eq.s32.totalorder %s26, 0
      %p130 = por %p128, %p129
      %p131 = scmp.ne.s32.totalorder %s123, %s125
      %p132 = scmp.eq.s32.totalorder %s31, 1
      %p133 = por %p131, %p132
      %p134 = scmp.ne.s32.totalorder %s125, %s126
      %p135 = scmp.eq.s32.totalorder %s31, 0
      %p136 = por %p134, %p135
      %p137 = scmp.ne.s32.totalorder %s125, %s126
      %p138 = scmp.eq.s32.totalorder %s32, 1
      %p139 = por %p137, %p138
      %p141 = scmp.ne.s32.totalorder %s126, %s140
      %p142 = scmp.eq.s32.totalorder %s32, 0
      %p143 = por %p141, %p142
      %s145 = sadd.s32 %s144, 1
      %p148 = scmp.eq.s32.totalorder %s26, 1
      %p149 = scmp.ne.s32.totalorder %s144, %s146
      %p150 = scmp.eq.s32.totalorder %s26, 0
      %p151 = por %p149, %p150
      %p152 = scmp.ne.s32.totalorder %s144, %s146
      %p153 = scmp.eq.s32.totalorder %s31, 1
      %p154 = por %p152, %p153
      %p155 = scmp.ne.s32.totalorder %s146, %s147
      %p156 = scmp.eq.s32.totalorder %s31, 0
      %p157 = por %p155, %p156
      %p158 = scmp.ne.s32.totalorder %s146, %s147
      %p159 = scmp.eq.s32.totalorder %s32, 1
      %p160 = por %p158, %p159
      %p162 = scmp.ne.s32.totalorder %s147, %s161
      %p163 = scmp.eq.s32.totalorder %s32, 0
      %p164 = por %p162, %p163
      %s166 = sadd.s32 %s165, 1
      %p169 = scmp.eq.s32.totalorder %s26, 1
      %p170 = scmp.ne.s32.totalorder %s165, %s167
      %p171 = scmp.eq.s32.totalorder %s26, 0
      %p172 = por %p170, %p171
      %p173 = scmp.ne.s32.totalorder %s165, %s167
      %p174 = scmp.eq.s32.totalorder %s31, 1
      %p175 = por %p173, %p174
      %p176 = scmp.ne.s32.totalorder %s167, %s168
      %p177 = scmp.eq.s32.totalorder %s31, 0
      %p178 = por %p176, %p177
      %p179 = scmp.ne.s32.totalorder %s167, %s168
      %p180 = scmp.eq.s32.totalorder %s32, 1
      %p181 = por %p179, %p180
      %p183 = scmp.ne.s32.totalorder %s168, %s182
      %p184 = scmp.eq.s32.totalorder %s32, 0
      %p185 = por %p183, %p184
      %s187 = sadd.s32 %s186, 1
      %p190 = scmp.eq.s32.totalorder %s26, 1
      %p191 = scmp.ne.s32.totalorder %s186, %s188
      %p192 = scmp.eq.s32.totalorder %s26, 0
      %p193 = por %p191, %p192
      %p194 = scmp.ne.s32.totalorder %s186, %s188
      %p195 = scmp.eq.s32.totalorder %s31, 1
      %p196 = por %p194, %p195
      %p197 = scmp.ne.s32.totalorder %s188, %s189
      %p198 = scmp.eq.s32.totalorder %s31, 0
      %p199 = por %p197, %p198
      %p200 = scmp.ne.s32.totalorder %s188, %s189
      %p201 = scmp.eq.s32.totalorder %s32, 1
      %p202 = por %p200, %p201
      %p204 = scmp.ne.s32.totalorder %s189, %s203
      %p205 = scmp.eq.s32.totalorder %s32, 0
      %p206 = por %p204, %p205
      %s208 = sadd.s32 %s207, 1
      %p211 = scmp.eq.s32.totalorder %s26, 1
      %p212 = scmp.ne.s32.totalorder %s207, %s209
      %p213 = scmp.eq.s32.totalorder %s26, 0
      %p214 = por %p212, %p213
      %p215 = scmp.ne.s32.totalorder %s207, %s209
      %p216 = scmp.eq.s32.totalorder %s31, 1
      %p217 = por %p215, %p216
      %p218 = scmp.ne.s32.totalorder %s209, %s210
      %p219 = scmp.eq.s32.totalorder %s31, 0
      %p220 = por %p218, %p219
      %p221 = scmp.ne.s32.totalorder %s209, %s210
      %p222 = scmp.eq.s32.totalorder %s32, 1
      %p223 = por %p221, %p222
      %p225 = scmp.ne.s32.totalorder %s210, %s224
      %p226 = scmp.eq.s32.totalorder %s32, 0
      %p227 = por %p225, %p226
      %s229 = sadd.s32 %s228, 1
      %p232 = scmp.eq.s32.totalorder %s26, 1
      %p233 = scmp.ne.s32.totalorder %s228, %s230
      %p234 = scmp.eq.s32.totalorder %s26, 0
      %p235 = por %p233, %p234
      %p236 = scmp.ne.s32.totalorder %s228, %s230
      %p237 = scmp.eq.s32.totalorder %s31, 1
      %p238 = por %p236, %p237
      %p239 = scmp.ne.s32.totalorder %s230, %s231
      %p240 = scmp.eq.s32.totalorder %s31, 0
      %p241 = por %p239, %p240
      %p242 = scmp.ne.s32.totalorder %s230, %s231
      %p243 = scmp.eq.s32.totalorder %s32, 1
      %p244 = por %p242, %p243
      %p246 = scmp.ne.s32.totalorder %s231, %s245
      %p247 = scmp.eq.s32.totalorder %s32, 0
      %p248 = por %p246, %p247
      %s250 = sadd.s32 %s249, 1
      %p253 = scmp.eq.s32.totalorder %s26, 1
      %p254 = scmp.ne.s32.totalorder %s249, %s251
      %p255 = scmp.eq.s32.totalorder %s26, 0
      %p256 = por %p254, %p255
      %p257 = scmp.ne.s32.totalorder %s249, %s251
      %p258 = scmp.eq.s32.totalorder %s31, 1
      %p259 = por %p257, %p258
      %p260 = scmp.ne.s32.totalorder %s251, %s252
      %p261 = scmp.eq.s32.totalorder %s31, 0
      %p262 = por %p260, %p261
      %p263 = scmp.ne.s32.totalorder %s251, %s252
      %p264 = scmp.eq.s32.totalorder %s32, 1
      %p265 = por %p263, %p264
      %p267 = scmp.ne.s32.totalorder %s252, %s266
      %p268 = scmp.eq.s32.totalorder %s32, 0
      %p269 = por %p267, %p268
      %s271 = sadd.s32 %s270, 1
      %p274 = scmp.eq.s32.totalorder %s26, 1
      %p275 = scmp.ne.s32.totalorder %s270, %s272
      %p276 = scmp.eq.s32.totalorder %s26, 0
      %p277 = por %p275, %p276
      %p278 = scmp.ne.s32.totalorder %s270, %s272
      %p279 = scmp.eq.s32.totalorder %s31, 1
      %p280 = por %p278, %p279
      %p281 = scmp.ne.s32.totalorder %s272, %s273
      %p282 = scmp.eq.s32.totalorder %s31, 0
      %p283 = por %p281, %p282
      %p284 = scmp.ne.s32.totalorder %s272, %s273
      %p285 = scmp.eq.s32.totalorder %s32, 1
      %p286 = por %p284, %p285
      %p288 = scmp.ne.s32.totalorder %s273, %s287
      %p289 = scmp.eq.s32.totalorder %s32, 0
      %p290 = por %p288, %p289
      %s292 = sadd.s32 %s291, 1
      %p295 = scmp.eq.s32.totalorder %s26, 1
      %p296 = scmp.ne.s32.totalorder %s291, %s293
      %p297 = scmp.eq.s32.totalorder %s26, 0
      %p298 = por %p296, %p297
      %p299 = scmp.ne.s32.totalorder %s291, %s293
      %p300 = scmp.eq.s32.totalorder %s31, 1
      %p301 = por %p299, %p300
      %p302 = scmp.ne.s32.totalorder %s293, %s294
      %p303 = scmp.eq.s32.totalorder %s31, 0
      %p304 = por %p302, %p303
      %p305 = scmp.ne.s32.totalorder %s293, %s294
      %p306 = scmp.eq.s32.totalorder %s32, 1
      %p307 = por %p305, %p306
      %p309 = scmp.ne.s32.totalorder %s294, %s308
      %p310 = scmp.eq.s32.totalorder %s32, 0
      %p311 = por %p309, %p310
      %s313 = sadd.s32 %s312, 1
      %p316 = scmp.eq.s32.totalorder %s26, 1
      %p317 = scmp.ne.s32.totalorder %s312, %s314
      %p318 = scmp.eq.s32.totalorder %s26, 0
      %p319 = por %p317, %p318
      %p320 = scmp.ne.s32.totalorder %s312, %s314
      %p321 = scmp.eq.s32.totalorder %s31, 1
      %p322 = por %p320, %p321
      %p323 = scmp.ne.s32.totalorder %s314, %s315
      %p324 = scmp.eq.s32.totalorder %s31, 0
      %p325 = por %p323, %p324
      %p326 = scmp.ne.s32.totalorder %s314, %s315
      %p327 = scmp.eq.s32.totalorder %s32, 1
      %p328 = por %p326, %p327
      %p330 = scmp.ne.s32.totalorder %s315, %s329
      %p331 = scmp.eq.s32.totalorder %s32, 0
      %p332 = por %p330, %p331
      %s334 = sadd.s32 %s333, 1
      %p337 = scmp.eq.s32.totalorder %s26, 1
      %p338 = scmp.ne.s32.totalorder %s333, %s335
      %p339 = scmp.eq.s32.totalorder %s26, 0
      %p340 = por %p338, %p339
      %p341 = scmp.ne.s32.totalorder %s333, %s335
      %p342 = scmp.eq.s32.totalorder %s31, 1
      %p343 = por %p341, %p342
      %p344 = scmp.ne.s32.totalorder %s335, %s336
      %p345 = scmp.eq.s32.totalorder %s31, 0
      %p346 = por %p344, %p345
      %p347 = scmp.ne.s32.totalorder %s335, %s336
      %p348 = scmp.eq.s32.totalorder %s32, 1
      %p349 = por %p347, %p348
      %p351 = scmp.ne.s32.totalorder %s336, %s350
      %p352 = scmp.eq.s32.totalorder %s32, 0
      %p353 = por %p351, %p352
      %s355 = sadd.s32 %s354, 1
      %p358 = scmp.eq.s32.totalorder %s26, 1
      %p359 = scmp.ne.s32.totalorder %s354, %s356
      %p360 = scmp.eq.s32.totalorder %s26, 0
      %p361 = por %p359, %p360
      %p362 = scmp.ne.s32.totalorder %s354, %s356
      %p363 = scmp.eq.s32.totalorder %s31, 1
      %p364 = por %p362, %p363
      %p365 = scmp.ne.s32.totalorder %s356, %s357
      %p366 = scmp.eq.s32.totalorder %s31, 0
      %p367 = por %p365, %p366
      %p368 = scmp.ne.s32.totalorder %s356, %s357
      %p369 = scmp.eq.s32.totalorder %s32, 1
      %p370 = por %p368, %p369
      %p372 = scmp.ne.s32.totalorder %s357, %s371
      %p373 = scmp.eq.s32.totalorder %s32, 0
      %p374 = por %p372, %p373
      %s375 = ssub.s32 %s26, %s33
      %p376 = scmp.eq.s32.totalorder %s375, 0
      %s378 = sadd.s32 %s377, 1
      %s379 = scalar_select %p376, %s377, %s378
      %p382 = pneg %p376
      %p383 = scmp.eq.s32.totalorder %s26, 1
      %p384 = por %p382, %p383
      %p385 = scmp.ne.s32.totalorder %s377, %s380
      %p386 = scmp.eq.s32.totalorder %s26, 0
      %p387 = por %p385, %p386
      %p388 = scmp.ne.s32.totalorder %s377, %s380
      %p389 = scmp.eq.s32.totalorder %s31, 1
      %p390 = por %p388, %p389
      %p391 = scmp.ne.s32.totalorder %s380, %s381
      %p392 = scmp.eq.s32.totalorder %s31, 0
      %p393 = por %p391, %p392
      %p394 = scmp.ne.s32.totalorder %s380, %s381
      %p395 = scmp.eq.s32.totalorder %s32, 1
      %p396 = por %p394, %p395
      %p398 = scmp.ne.s32.totalorder %s381, %s397
      %p399 = scmp.eq.s32.totalorder %s32, 0
      %p400 = por %p398, %p399
      %p401 = scmp.le.s32.totalorder 1, %s26
      %p402 = scmp.lt.s32.totalorder %s26, 3
      %p403 = pnand %p401, %p402
      %p404 = pneg %p403
      // Predicated region
      $region9: #{lanenet_forward.1} parent=5 // pred_check
        _
      $region10: #{lanenet_forward.1} parent=5 // pred_check_branch
        %406 = sbr.rel (%p403) target = $region12
      $region11: #{lanenet_forward.1} parent=5 // pred_region
        %s407 = ssub.s32 %s26, 1
        // Predicated region
        $region13: #{lanenet_forward.1} parent=11 // pred_check
          %p408 = pneg %p73
        $region14: #{lanenet_forward.1} parent=11 // pred_check_branch
          %410 = sbr.rel (%p408) target = $region16
        $region15: #{lanenet_forward.1} parent=11 // pred_region
          _
        $region16: #{lanenet_forward.1} parent=11 // pred_fallthru
          _
        // Predicated region
        $region17: #{lanenet_forward.1} parent=11 // pred_check
          %p411 = pneg %p94
        $region18: #{lanenet_forward.1} parent=11 // pred_check_branch
          %413 = sbr.rel (%p411) target = $region20
        $region19: #{lanenet_forward.1} parent=11 // pred_region
          _
        $region20: #{lanenet_forward.1} parent=11 // pred_fallthru
          _
        // Predicated region
        $region21: #{lanenet_forward.1} parent=11 // pred_check
          %p414 = pneg %p115
        $region22: #{lanenet_forward.1} parent=11 // pred_check_branch
          %416 = sbr.rel (%p414) target = $region24
        $region23: #{lanenet_forward.1} parent=11 // pred_region
          _
        $region24: #{lanenet_forward.1} parent=11 // pred_fallthru
          _
        // Predicated region
        $region25: #{lanenet_forward.1} parent=11 // pred_check
          %p417 = pneg %p136
        $region26: #{lanenet_forward.1} parent=11 // pred_check_branch
          %419 = sbr.rel (%p417) target = $region28
        $region27: #{lanenet_forward.1} parent=11 // pred_region
          _
        $region28: #{lanenet_forward.1} parent=11 // pred_fallthru
          _
        // Predicated region
        $region29: #{lanenet_forward.1} parent=11 // pred_check
          %p420 = pneg %p157
        $region30: #{lanenet_forward.1} parent=11 // pred_check_branch
          %422 = sbr.rel (%p420) target = $region32
        $region31: #{lanenet_forward.1} parent=11 // pred_region
          _
        $region32: #{lanenet_forward.1} parent=11 // pred_fallthru
          _
        // Predicated region
        $region33: #{lanenet_forward.1} parent=11 // pred_check
          %p423 = pneg %p178
        $region34: #{lanenet_forward.1} parent=11 // pred_check_branch
          %425 = sbr.rel (%p423) target = $region36
        $region35: #{lanenet_forward.1} parent=11 // pred_region
          _
        $region36: #{lanenet_forward.1} parent=11 // pred_fallthru
          _
        // Predicated region
        $region37: #{lanenet_forward.1} parent=11 // pred_check
          %p426 = pneg %p199
        $region38: #{lanenet_forward.1} parent=11 // pred_check_branch
          %428 = sbr.rel (%p426) target = $region40
        $region39: #{lanenet_forward.1} parent=11 // pred_region
          _
        $region40: #{lanenet_forward.1} parent=11 // pred_fallthru
          _
        // Predicated region
        $region41: #{lanenet_forward.1} parent=11 // pred_check
          %p429 = pneg %p220
        $region42: #{lanenet_forward.1} parent=11 // pred_check_branch
          %431 = sbr.rel (%p429) target = $region44
        $region43: #{lanenet_forward.1} parent=11 // pred_region
          _
        $region44: #{lanenet_forward.1} parent=11 // pred_fallthru
          _
        // Predicated region
        $region45: #{lanenet_forward.1} parent=11 // pred_check
          %p432 = pneg %p241
        $region46: #{lanenet_forward.1} parent=11 // pred_check_branch
          %434 = sbr.rel (%p432) target = $region48
        $region47: #{lanenet_forward.1} parent=11 // pred_region
          %s436 = ssub.s32 73728, 73728
          %437 = vsyncadd [#allocation3], %s436
          %s438 = sshll.u32 [#allocation2], 4
          %s439 = int_to_ptr.vmem [resolvable:$true] %s438
          %444 = dma.hbm_to_vmem [thread:$0]  %s9, 73728, %s439, [#allocation3], 256, 256, 16
        $region48: #{lanenet_forward.1} parent=11 // pred_fallthru
          _
        // Predicated region
        $region49: #{lanenet_forward.1} parent=11 // pred_check
          %p445 = pneg %p262
        $region50: #{lanenet_forward.1} parent=11 // pred_check_branch
          %447 = sbr.rel (%p445) target = $region52
        $region51: #{lanenet_forward.1} parent=11 // pred_region
          %s449 = ssub.s32 9216, 9216
          %450 = vsyncadd [#allocation5], %s449
          %s451 = sshll.u32 [#allocation4], 4
          %s452 = int_to_ptr.vmem [resolvable:$true] %s451
          %457 = dma.hbm_to_vmem [thread:$0]  %s10, 9216, %s452, [#allocation5], 128, 128, 8
        $region52: #{lanenet_forward.1} parent=11 // pred_fallthru
          _
        // Predicated region
        $region53: #{lanenet_forward.1} parent=11 // pred_check
          %p458 = pneg %p283
        $region54: #{lanenet_forward.1} parent=11 // pred_check_branch
          %460 = sbr.rel (%p458) target = $region56
        $region55: #{lanenet_forward.1} parent=11 // pred_region
          %s462 = ssub.s32 2304, 2304
          %463 = vsyncadd [#allocation5], %s462
          %s464 = sshll.u32 [#allocation6], 4
          %s465 = int_to_ptr.vmem [resolvable:$true] %s464
          %470 = dma.hbm_to_vmem [thread:$0]  %s11, 2304, %s465, [#allocation5], 128, 128, 8
        $region56: #{lanenet_forward.1} parent=11 // pred_fallthru
          _
        // Predicated region
        $region57: #{lanenet_forward.1} parent=11 // pred_check
          %p471 = pneg %p304
        $region58: #{lanenet_forward.1} parent=11 // pred_check_branch
          %473 = sbr.rel (%p471) target = $region60
        $region59: #{lanenet_forward.1} parent=11 // pred_region
          %s475 = ssub.s32 16384, 16384
          %476 = vsyncadd [#allocation8], %s475
          %s477 = sshll.u32 [#allocation7], 4
          %s478 = int_to_ptr.vmem [resolvable:$true] %s477
          %483 = dma.hbm_to_vmem [thread:$0]  %s12, 16384, %s478, [#allocation8], 128, 128, 8
        $region60: #{lanenet_forward.1} parent=11 // pred_fallthru
          _
        // Predicated region
        $region61: #{lanenet_forward.1} parent=11 // pred_check
          %p484 = pneg %p325
        $region62: #{lanenet_forward.1} parent=11 // pred_check_branch
          %486 = sbr.rel (%p484) target = $region64
        $region63: #{lanenet_forward.1} parent=11 // pred_region
          %s488 = ssub.s32 4096, 4096
          %489 = vsyncadd [#allocation8], %s488
          %s490 = sshll.u32 [#allocation9], 4
          %s491 = int_to_ptr.vmem [resolvable:$true] %s490
          %496 = dma.hbm_to_vmem [thread:$0]  %s13, 4096, %s491, [#allocation8], 128, 128, 8
        $region64: #{lanenet_forward.1} parent=11 // pred_fallthru
          _
        // Predicated region
        $region65: #{lanenet_forward.1} parent=11 // pred_check
          %p497 = pneg %p346
        $region66: #{lanenet_forward.1} parent=11 // pred_check_branch
          %499 = sbr.rel (%p497) target = $region68
        $region67: #{lanenet_forward.1} parent=11 // pred_region
          %s501 = ssub.s32 256, 256
          %502 = vsyncadd [#allocation11], %s501
          %s503 = sshll.u32 [#allocation10], 4
          %s504 = int_to_ptr.vmem [resolvable:$true] %s503
          %509 = dma.hbm_to_vmem [thread:$0]  %s14, 256, %s504, [#allocation11], 128, 128, 8
        $region68: #{lanenet_forward.1} parent=11 // pred_fallthru
          _
        // Predicated region
        $region69: #{lanenet_forward.1} parent=11 // pred_check
          %p510 = pneg %p367
        $region70: #{lanenet_forward.1} parent=11 // pred_check_branch
          %512 = sbr.rel (%p510) target = $region72
        $region71: #{lanenet_forward.1} parent=11 // pred_region
          %s514 = ssub.s32 2048, 2048
          %515 = vsyncadd [#allocation11], %s514
          %s516 = sshll.u32 [#allocation12], 4
          %s517 = int_to_ptr.vmem [resolvable:$true] %s516
          %522 = dma.hbm_to_vmem [thread:$0]  %s15, 2048, %s517, [#allocation11], 256, 256, 16
        $region72: #{lanenet_forward.1} parent=11 // pred_fallthru
          _
      $region12: #{lanenet_forward.1} parent=5 // pred_fallthru
        _
      %p523 = scmp.lt.s32.totalorder %s26, 2
      // Predicated region
      $region73: #{lanenet_forward.1} parent=5 // pred_check
        %p524 = pneg %p523
      $region74: #{lanenet_forward.1} parent=5 // pred_check_branch
        %526 = sbr.rel (%p524) target = $region76
      $region75: #{lanenet_forward.1} parent=5 // pred_region
        // Predicated region
        $region77: #{lanenet_forward.1} parent=75 // pred_check
          %p527 = pneg %p46
        $region78: #{lanenet_forward.1} parent=75 // pred_check_branch
          %529 = sbr.rel (%p527) target = $region80
        $region79: #{lanenet_forward.1} parent=75 // pred_region
          %p530 = scmp.lt.s32.totalorder %s26, 1
          %s531 = scalar_select %p530, %s26, 1
          %s532 = smul.addr %s531, 2
          %s533 = smul.addr %s532, 4
          %s534 = scalar_lea.vmem %s0, %s533
        $region80: #{lanenet_forward.1} parent=75 // pred_fallthru
          _
      $region76: #{lanenet_forward.1} parent=5 // pred_fallthru
        _
      %p535 = scmp.le.s32.totalorder 1, %s26
      %p536 = scmp.lt.s32.totalorder %s26, 3
      %p537 = pnand %p535, %p536
      %p538 = pneg %p537
      // Predicated region
      $region81: #{lanenet_forward.1} parent=5 // pred_check
        _
      $region82: #{lanenet_forward.1} parent=5 // pred_check_branch
        %540 = sbr.rel (%p537) target = $region84
      $region83: #{lanenet_forward.1} parent=5 // pred_region
        %s541 = ssub.s32 %s26, 1
        // Predicated region
        $region85: #{lanenet_forward.1} parent=83 // pred_check
          %p542 = pneg %p241
        $region86: #{lanenet_forward.1} parent=83 // pred_check_branch
          %544 = sbr.rel (%p542) target = $region88
        $region87: #{lanenet_forward.1} parent=83 // pred_region
          %545 = dma.done [#allocation3], 73728
        $region88: #{lanenet_forward.1} parent=83 // pred_fallthru
          _
        // Predicated region
        $region89: #{lanenet_forward.1} parent=83 // pred_check
          %p546 = pneg %p262
        $region90: #{lanenet_forward.1} parent=83 // pred_check_branch
          %548 = sbr.rel (%p546) target = $region92
        $region91: #{lanenet_forward.1} parent=83 // pred_region
          %549 = dma.done [#allocation5], 9216
        $region92: #{lanenet_forward.1} parent=83 // pred_fallthru
          _
        // Predicated region
        $region93: #{lanenet_forward.1} parent=83 // pred_check
          %p550 = pneg %p283
        $region94: #{lanenet_forward.1} parent=83 // pred_check_branch
          %552 = sbr.rel (%p550) target = $region96
        $region95: #{lanenet_forward.1} parent=83 // pred_region
          %553 = dma.done [#allocation5], 2304
        $region96: #{lanenet_forward.1} parent=83 // pred_fallthru
          _
        // Predicated region
        $region97: #{lanenet_forward.1} parent=83 // pred_check
          %p554 = pneg %p304
        $region98: #{lanenet_forward.1} parent=83 // pred_check_branch
          %556 = sbr.rel (%p554) target = $region100
        $region99: #{lanenet_forward.1} parent=83 // pred_region
          %557 = dma.done [#allocation8], 16384
        $region100: #{lanenet_forward.1} parent=83 // pred_fallthru
          _
        // Predicated region
        $region101: #{lanenet_forward.1} parent=83 // pred_check
          %p558 = pneg %p325
        $region102: #{lanenet_forward.1} parent=83 // pred_check_branch
          %560 = sbr.rel (%p558) target = $region104
        $region103: #{lanenet_forward.1} parent=83 // pred_region
          %561 = dma.done [#allocation8], 4096
        $region104: #{lanenet_forward.1} parent=83 // pred_fallthru
          _
        // Predicated region
        $region105: #{lanenet_forward.1} parent=83 // pred_check
          %p562 = pneg %p346
        $region106: #{lanenet_forward.1} parent=83 // pred_check_branch
          %564 = sbr.rel (%p562) target = $region108
        $region107: #{lanenet_forward.1} parent=83 // pred_region
          %565 = dma.done [#allocation11], 256
        $region108: #{lanenet_forward.1} parent=83 // pred_fallthru
          _
        // Predicated region
        $region109: #{lanenet_forward.1} parent=83 // pred_check
          %p566 = pneg %p367
        $region110: #{lanenet_forward.1} parent=83 // pred_check_branch
          %568 = sbr.rel (%p566) target = $region112
        $region111: #{lanenet_forward.1} parent=83 // pred_region
          %569 = dma.done [#allocation11], 2048
        $region112: #{lanenet_forward.1} parent=83 // pred_fallthru
          _
        %p570 = scmp.lt.s32.totalorder %s31, 1
        %s571 = scalar_select %p570, %s31, 1
        %s572 = smul.addr %s571, 2
        %s573 = smul.addr %s572, 4
        %s574 = scalar_lea.vmem %s0, %s573
        %p575 = pneg %p52
        %p576 = pneg %p49
        %p577 = pneg %p73
        %p578 = pneg %p70
        %p579 = pneg %p94
        %p580 = pneg %p91
        %p581 = pneg %p115
        %p582 = pneg %p112
        %p583 = pneg %p136
        %p584 = pneg %p133
        %p585 = pneg %p157
        %p586 = pneg %p154
        %p587 = pneg %p178
        %p588 = pneg %p175
        %p589 = pneg %p199
        %p590 = pneg %p196
        %p591 = pneg %p220
        %p592 = pneg %p217
        %p593 = pneg %p241
        %p594 = pneg %p238
        %p595 = pneg %p262
        %p596 = pneg %p259
        %p597 = pneg %p283
        %p598 = pneg %p280
        %p599 = pneg %p304
        %p600 = pneg %p301
        %p601 = pneg %p325
        %p602 = pneg %p322
        %p603 = pneg %p346
        %p604 = pneg %p343
        %p605 = pneg %p367
        %p606 = pneg %p364
        %p607 = pneg %p393
        %p608 = pneg %p390
        %p609 = scmp.lt.s32.totalorder %s31, 1
        %s610 = scalar_select %p609, %s31, 1
        %s611 = smul.addr %s610, 2
        %s612 = smul.addr %s611, 4
        %s613 = scalar_lea.vmem %s16, %s612
        %p614 = scmp.lt.s32.totalorder %s31, 1
        %s615 = scalar_select %p614, %s31, 1
        %s616 = smul.addr %s615, 2
        %s617 = smul.addr %s616, 4
        %s618 = scalar_lea.vmem %s0, %s617
        %p619 = scmp.lt.s32.totalorder %s31, 1
        %s620 = scalar_select %p619, %s31, 1
        %s621 = smul.addr %s620, 2
        %s622 = smul.addr %s621, 4
        %s623 = scalar_lea.vmem %s16, %s622
        %v624 = vld [vmem:[%s618] sm:$0x77]
        %v625 = vld [vmem:[#allocation2] sm:$0xff]
        %v626 = vld [vmem:[#allocation2 + $0x8] sm:$0xff]
        %v627 = vld [vmem:[#allocation2 + $0x10] sm:$0xff]
        %v628 = vld [vmem:[#allocation2 + $0x18] sm:$0xff]
        %v629 = vld [vmem:[#allocation2 + $0x20] sm:$0xff]
        %v630 = vld [vmem:[#allocation2 + $0x28] sm:$0xff]
        %v631 = vld [vmem:[#allocation2 + $0x30] sm:$0xff]
        %v632 = vld [vmem:[#allocation2 + $0x38] sm:$0xff]
        %v633 = vld [vmem:[#allocation2 + $0x40] sm:$0xff]
        %v634 = vld [vmem:[#allocation2 + $0x48] sm:$0xff]
        %v635 = vld [vmem:[#allocation2 + $0x50] sm:$0xff]
        %v636 = vld [vmem:[#allocation2 + $0x58] sm:$0xff]
        %v637 = vld [vmem:[#allocation2 + $0x60] sm:$0xff]
        %v638 = vld [vmem:[#allocation2 + $0x68] sm:$0xff]
        %v639 = vld [vmem:[#allocation2 + $0x70] sm:$0xff]
        %v640 = vld [vmem:[#allocation2 + $0x78] sm:$0xff]
        %v641 = vld [vmem:[#allocation2 + $0x80] sm:$0xff]
        %v642 = vld [vmem:[#allocation2 + $0x88] sm:$0xff]
        %v643 = vld [vmem:[#allocation2 + $0x90] sm:$0xff]
        %v644 = vld [vmem:[#allocation2 + $0x98] sm:$0xff]
        %v645 = vld [vmem:[#allocation2 + $0xa0] sm:$0xff]
        %v646 = vld [vmem:[#allocation2 + $0xa8] sm:$0xff]
        %v647 = vld [vmem:[#allocation2 + $0xb0] sm:$0xff]
        %v648 = vld [vmem:[#allocation2 + $0xb8] sm:$0xff]
        %v649 = vld [vmem:[#allocation2 + $0xc0] sm:$0xff]
        %v650 = vld [vmem:[#allocation2 + $0xc8] sm:$0xff]
        %v651 = vld [vmem:[#allocation2 + $0xd0] sm:$0xff]
        %v652 = vld [vmem:[#allocation2 + $0xd8] sm:$0xff]
        %v653 = vld [vmem:[#allocation2 + $0xe0] sm:$0xff]
        %v654 = vld [vmem:[#allocation2 + $0xe8] sm:$0xff]
        %v655 = vld [vmem:[#allocation2 + $0xf0] sm:$0xff]
        %v656 = vld [vmem:[#allocation2 + $0xf8] sm:$0xff]
        %v657 = vld [vmem:[#allocation2 + $0x100] sm:$0xff]
        %v658 = vld [vmem:[#allocation2 + $0x108] sm:$0xff]
        %v659 = vld [vmem:[#allocation2 + $0x110] sm:$0xff]
        %v660 = vld [vmem:[#allocation2 + $0x118] sm:$0xff]
        %v661 = vld [vmem:[#allocation2 + $0x120] sm:$0xff]
        %v662 = vld [vmem:[#allocation2 + $0x128] sm:$0xff]
        %v663 = vld [vmem:[#allocation2 + $0x130] sm:$0xff]
        %v664 = vld [vmem:[#allocation2 + $0x138] sm:$0xff]
        %v665 = vld [vmem:[#allocation2 + $0x140] sm:$0xff]
        %v666 = vld [vmem:[#allocation2 + $0x148] sm:$0xff]
        %v667 = vld [vmem:[#allocation2 + $0x150] sm:$0xff]
        %v668 = vld [vmem:[#allocation2 + $0x158] sm:$0xff]
        %v669 = vld [vmem:[#allocation2 + $0x160] sm:$0xff]
        %v670 = vld [vmem:[#allocation2 + $0x168] sm:$0xff]
        %v671 = vld [vmem:[#allocation2 + $0x170] sm:$0xff]
        %v672 = vld [vmem:[#allocation2 + $0x178] sm:$0xff]
        %v673 = vld [vmem:[#allocation2 + $0x180] sm:$0xff]
        %v674 = vld [vmem:[#allocation2 + $0x188] sm:$0xff]
        %v675 = vld [vmem:[#allocation2 + $0x190] sm:$0xff]
        %v676 = vld [vmem:[#allocation2 + $0x198] sm:$0xff]
        %v677 = vld [vmem:[#allocation2 + $0x1a0] sm:$0xff]
        %v678 = vld [vmem:[#allocation2 + $0x1a8] sm:$0xff]
        %v679 = vld [vmem:[#allocation2 + $0x1b0] sm:$0xff]
        %v680 = vld [vmem:[#allocation2 + $0x1b8] sm:$0xff]
        %v681 = vld [vmem:[#allocation2 + $0x1c0] sm:$0xff]
        %v682 = vld [vmem:[#allocation2 + $0x1c8] sm:$0xff]
        %v683 = vld [vmem:[#allocation2 + $0x1d0] sm:$0xff]
        %v684 = vld [vmem:[#allocation2 + $0x1d8] sm:$0xff]
        %v685 = vld [vmem:[#allocation2 + $0x1e0] sm:$0xff]
        %v686 = vld [vmem:[#allocation2 + $0x1e8] sm:$0xff]
        %v687 = vld [vmem:[#allocation2 + $0x1f0] sm:$0xff]
        %v688 = vld [vmem:[#allocation2 + $0x1f8] sm:$0xff]
        %v690 = vcombine.high %v624, %v624
        %692 = vmatprep.subr.mxu0 %v656
        %693 = vmatpush1.msra.mxu0 %v655
        %694 = vmatprep.subr.mxu0 %v654
        %695 = vmatpush1.msra.mxu0 %v653
        %696 = vmatprep.subr.mxu0 %v652
        %697 = vmatpush1.msra.mxu0 %v651
        %698 = vmatprep.subr.mxu0 %v650
        %699 = vmatpush1.msra.mxu0 %v649
        %700 = vmatprep.subr.mxu0 %v648
        %701 = vmatpush1.msra.mxu0 %v647
        %702 = vmatprep.subr.mxu0 %v646
        %703 = vmatpush1.msra.mxu0 %v645
        %704 = vmatprep.subr.mxu0 %v644
        %705 = vmatpush1.msra.mxu0 %v643
        %706 = vmatprep.subr.mxu0 %v642
        %707 = vmatpush1.msra.mxu0 %v641
        %708 = vmatprep.subr.mxu0 %v640
        %709 = vmatpush1.msra.mxu0 %v639
        %710 = vmatprep.subr.mxu0 %v638
        %711 = vmatpush1.msra.mxu0 %v637
        %712 = vmatprep.subr.mxu0 %v636
        %713 = vmatpush1.msra.mxu0 %v635
        %714 = vmatprep.subr.mxu0 %v634
        %715 = vmatpush1.msra.mxu0 %v633
        %716 = vmatprep.subr.mxu0 %v632
        %717 = vmatpush1.msra.mxu0 %v631
        %718 = vmatprep.subr.mxu0 %v630
        %719 = vmatpush1.msra.mxu0 %v629
        %720 = vmatprep.subr.mxu0 %v628
        %721 = vmatpush1.msra.mxu0 %v627
        %722 = vmatprep.subr.mxu0 %v626
        %723 = vmatpush1.msra.mxu0 %v625
        %724 = vmatprep.subr.mxu0 %v688
        %725 = vmatpush2.msra.mxu0 %v687
        %726 = vmatprep.subr.mxu0 %v686
        %727 = vmatpush2.msra.mxu0 %v685
        %728 = vmatprep.subr.mxu0 %v684
        %729 = vmatpush2.msra.mxu0 %v683
        %730 = vmatprep.subr.mxu0 %v682
        %731 = vmatpush2.msra.mxu0 %v681
        %732 = vmatprep.subr.mxu0 %v680
        %733 = vmatpush2.msra.mxu0 %v679
        %734 = vmatprep.subr.mxu0 %v678
        %735 = vmatpush2.msra.mxu0 %v677
        %736 = vmatprep.subr.mxu0 %v676
        %737 = vmatpush2.msra.mxu0 %v675
        %738 = vmatprep.subr.mxu0 %v674
        %739 = vmatpush2.msra.mxu0 %v673
        %740 = vmatprep.subr.mxu0 %v672
        %741 = vmatpush2.msra.mxu0 %v671
        %742 = vmatprep.subr.mxu0 %v670
        %743 = vmatpush2.msra.mxu0 %v669
        %744 = vmatprep.subr.mxu0 %v668
        %745 = vmatpush2.msra.mxu0 %v667
        %746 = vmatprep.subr.mxu0 %v666
        %747 = vmatpush2.msra.mxu0 %v665
        %748 = vmatprep.subr.mxu0 %v664
        %749 = vmatpush2.msra.mxu0 %v663
        %750 = vmatprep.subr.mxu0 %v662
        %751 = vmatpush2.msra.mxu0 %v661
        %752 = vmatprep.subr.mxu0 %v660
        %753 = vmatpush2.msra.mxu0 %v659
        %754 = vmatprep.subr.mxu0 %v658
        %755 = vmatpush2.msra.mxu0 %v657
        %756 = vmatprep.mubr.f32.mxu0 %v690
        %757 = vmatmul.mubr.f32.gmra.mxu0 %v624
        %v758 = vpop.f32.mrf.mxu0
        %v759 = vadd.f32 0.0, %v758
        %v760 = vpop.f32.mrf.mxu0
        %v761 = vadd.f32 0.0, %v760
        %762 = vdwg.mxu0
        %v763 = vld [vmem:[%s1] sm:$0xff]
        %v764 = vld [vmem:[%s1 + $0x8] sm:$0xff]
        %s765 = scalar_lea.vmem [#allocation2], 512
        %v766 = vld [vmem:[%s765] sm:$0xff]
        %v767 = vld [vmem:[%s765 + $0x8] sm:$0xff]
        %v768 = vld [vmem:[%s765 + $0x10] sm:$0xff]
        %v769 = vld [vmem:[%s765 + $0x18] sm:$0xff]
        %v770 = vld [vmem:[%s765 + $0x20] sm:$0xff]
        %v771 = vld [vmem:[%s765 + $0x28] sm:$0xff]
        %v772 = vld [vmem:[%s765 + $0x30] sm:$0xff]
        %v773 = vld [vmem:[%s765 + $0x38] sm:$0xff]
        %v774 = vld [vmem:[%s765 + $0x40] sm:$0xff]
        %v775 = vld [vmem:[%s765 + $0x48] sm:$0xff]
        %v776 = vld [vmem:[%s765 + $0x50] sm:$0xff]
        %v777 = vld [vmem:[%s765 + $0x58] sm:$0xff]
        %v778 = vld [vmem:[%s765 + $0x60] sm:$0xff]
        %v779 = vld [vmem:[%s765 + $0x68] sm:$0xff]
        %v780 = vld [vmem:[%s765 + $0x70] sm:$0xff]
        %v781 = vld [vmem:[%s765 + $0x78] sm:$0xff]
        %v782 = vld [vmem:[%s765 + $0x80] sm:$0xff]
        %v783 = vld [vmem:[%s765 + $0x88] sm:$0xff]
        %v784 = vld [vmem:[%s765 + $0x90] sm:$0xff]
        %v785 = vld [vmem:[%s765 + $0x98] sm:$0xff]
        %v786 = vld [vmem:[%s765 + $0xa0] sm:$0xff]
        %v787 = vld [vmem:[%s765 + $0xa8] sm:$0xff]
        %v788 = vld [vmem:[%s765 + $0xb0] sm:$0xff]
        %v789 = vld [vmem:[%s765 + $0xb8] sm:$0xff]
        %v790 = vld [vmem:[%s765 + $0xc0] sm:$0xff]
        %v791 = vld [vmem:[%s765 + $0xc8] sm:$0xff]
        %v792 = vld [vmem:[%s765 + $0xd0] sm:$0xff]
        %v793 = vld [vmem:[%s765 + $0xd8] sm:$0xff]
        %v794 = vld [vmem:[%s765 + $0xe0] sm:$0xff]
        %v795 = vld [vmem:[%s765 + $0xe8] sm:$0xff]
        %v796 = vld [vmem:[%s765 + $0xf0] sm:$0xff]
        %v797 = vld [vmem:[%s765 + $0xf8] sm:$0xff]
        %v798 = vld [vmem:[%s765 + $0x100] sm:$0xff]
        %v799 = vld [vmem:[%s765 + $0x108] sm:$0xff]
        %v800 = vld [vmem:[%s765 + $0x110] sm:$0xff]
        %v801 = vld [vmem:[%s765 + $0x118] sm:$0xff]
        %v802 = vld [vmem:[%s765 + $0x120] sm:$0xff]
        %v803 = vld [vmem:[%s765 + $0x128] sm:$0xff]
        %v804 = vld [vmem:[%s765 + $0x130] sm:$0xff]
        %v805 = vld [vmem:[%s765 + $0x138] sm:$0xff]
        %v806 = vld [vmem:[%s765 + $0x140] sm:$0xff]
        %v807 = vld [vmem:[%s765 + $0x148] sm:$0xff]
        %v808 = vld [vmem:[%s765 + $0x150] sm:$0xff]
        %v809 = vld [vmem:[%s765 + $0x158] sm:$0xff]
        %v810 = vld [vmem:[%s765 + $0x160] sm:$0xff]
        %v811 = vld [vmem:[%s765 + $0x168] sm:$0xff]
        %v812 = vld [vmem:[%s765 + $0x170] sm:$0xff]
        %v813 = vld [vmem:[%s765 + $0x178] sm:$0xff]
        %v814 = vld [vmem:[%s765 + $0x180] sm:$0xff]
        %v815 = vld [vmem:[%s765 + $0x188] sm:$0xff]
        %v816 = vld [vmem:[%s765 + $0x190] sm:$0xff]
        %v817 = vld [vmem:[%s765 + $0x198] sm:$0xff]
        %v818 = vld [vmem:[%s765 + $0x1a0] sm:$0xff]
        %v819 = vld [vmem:[%s765 + $0x1a8] sm:$0xff]
        %v820 = vld [vmem:[%s765 + $0x1b0] sm:$0xff]
        %v821 = vld [vmem:[%s765 + $0x1b8] sm:$0xff]
        %v822 = vld [vmem:[%s765 + $0x1c0] sm:$0xff]
        %v823 = vld [vmem:[%s765 + $0x1c8] sm:$0xff]
        %v824 = vld [vmem:[%s765 + $0x1d0] sm:$0xff]
        %v825 = vld [vmem:[%s765 + $0x1d8] sm:$0xff]
        %v826 = vld [vmem:[%s765 + $0x1e0] sm:$0xff]
        %v827 = vld [vmem:[%s765 + $0x1e8] sm:$0xff]
        %v828 = vld [vmem:[%s765 + $0x1f0] sm:$0xff]
        %v829 = vld [vmem:[%s765 + $0x1f8] sm:$0xff]
        %830 = vmatprep.subr.mxu0 %v797
        %831 = vmatpush1.msra.mxu0 %v796
        %832 = vmatprep.subr.mxu0 %v795
        %833 = vmatpush1.msra.mxu0 %v794
        %834 = vmatprep.subr.mxu0 %v793
        %835 = vmatpush1.msra.mxu0 %v792
        %836 = vmatprep.subr.mxu0 %v791
        %837 = vmatpush1.msra.mxu0 %v790
        %838 = vmatprep.subr.mxu0 %v789
        %839 = vmatpush1.msra.mxu0 %v788
        %840 = vmatprep.subr.mxu0 %v787
        %841 = vmatpush1.msra.mxu0 %v786
        %842 = vmatprep.subr.mxu0 %v785
        %843 = vmatpush1.msra.mxu0 %v784
        %844 = vmatprep.subr.mxu0 %v783
        %845 = vmatpush1.msra.mxu0 %v782
        %846 = vmatprep.subr.mxu0 %v781
        %847 = vmatpush1.msra.mxu0 %v780
        %848 = vmatprep.subr.mxu0 %v779
        %849 = vmatpush1.msra.mxu0 %v778
        %850 = vmatprep.subr.mxu0 %v777
        %851 = vmatpush1.msra.mxu0 %v776
        %852 = vmatprep.subr.mxu0 %v775
        %853 = vmatpush1.msra.mxu0 %v774
        %854 = vmatprep.subr.mxu0 %v773
        %855 = vmatpush1.msra.mxu0 %v772
        %856 = vmatprep.subr.mxu0 %v771
        %857 = vmatpush1.msra.mxu0 %v770
        %858 = vmatprep.subr.mxu0 %v769
        %859 = vmatpush1.msra.mxu0 %v768
        %860 = vmatprep.subr.mxu0 %v767
        %861 = vmatpush1.msra.mxu0 %v766
        %862 = vmatprep.subr.mxu0 %v829
        %863 = vmatpush2.msra.mxu0 %v828
        %864 = vmatprep.subr.mxu0 %v827
        %865 = vmatpush2.msra.mxu0 %v826
        %866 = vmatprep.subr.mxu0 %v825
        %867 = vmatpush2.msra.mxu0 %v824
        %868 = vmatprep.subr.mxu0 %v823
        %869 = vmatpush2.msra.mxu0 %v822
        %870 = vmatprep.subr.mxu0 %v821
        %871 = vmatpush2.msra.mxu0 %v820
        %872 = vmatprep.subr.mxu0 %v819
        %873 = vmatpush2.msra.mxu0 %v818
        %874 = vmatprep.subr.mxu0 %v817
        %875 = vmatpush2.msra.mxu0 %v816
        %876 = vmatprep.subr.mxu0 %v815
        %877 = vmatpush2.msra.mxu0 %v814
        %878 = vmatprep.subr.mxu0 %v813
        %879 = vmatpush2.msra.mxu0 %v812
        %880 = vmatprep.subr.mxu0 %v811
        %881 = vmatpush2.msra.mxu0 %v810
        %882 = vmatprep.subr.mxu0 %v809
        %883 = vmatpush2.msra.mxu0 %v808
        %884 = vmatprep.subr.mxu0 %v807
        %885 = vmatpush2.msra.mxu0 %v806
        %886 = vmatprep.subr.mxu0 %v805
        %887 = vmatpush2.msra.mxu0 %v804
        %888 = vmatprep.subr.mxu0 %v803
        %889 = vmatpush2.msra.mxu0 %v802
        %890 = vmatprep.subr.mxu0 %v801
        %891 = vmatpush2.msra.mxu0 %v800
        %892 = vmatprep.subr.mxu0 %v799
        %893 = vmatpush2.msra.mxu0 %v798
        %894 = vmatprep.mubr.f32.mxu0 %v690
        %895 = vmatmul.mubr.f32.gmra.mxu0 %v624
        %v896 = vpop.f32.mrf.mxu0
        %v897 = vadd.f32 0.0, %v896
        %v898 = vpop.f32.mrf.mxu0
        %v899 = vadd.f32 0.0, %v898
        %900 = vdwg.mxu0
        %s901 = scalar_lea.vmem %s1, 16
        %v902 = vld [vmem:[%s901] sm:$0xff]
        %v903 = vld [vmem:[%s901 + $0x8] sm:$0xff]
        %vm904 = vcmask 23552
        %v906 = vsel %vm904, %v902, 0
        %v909 = vsel %vm904, %v903, 0
        %vm911 = vcmask 1042432
        %v913 = vsel %vm911, %v897, 0
        %v916 = vsel %vm911, %v899, 0
        %918 = vmatprep.subr.mxu0 0.0
        %919 = vmatpush1.msra.mxu0 0.0
        %920 = vmatprep.subr.mxu0 0.0
        %921 = vmatpush1.msra.mxu0 0.0
        %922 = vmatprep.subr.mxu0 0.0
        %923 = vmatpush1.msra.mxu0 0.0
        %924 = vmatprep.subr.mxu0 0.0
        %925 = vmatpush1.msra.mxu0 0.0
        %926 = vmatprep.subr.mxu0 0.0
        %927 = vmatpush1.msra.mxu0 0.0
        %928 = vmatprep.subr.mxu0 0.0
        %929 = vmatpush1.msra.mxu0 0.0
        %930 = vmatprep.subr.mxu0 0.0
        %931 = vmatpush1.msra.mxu0 0.0
        %932 = vmatprep.subr.mxu0 0.0
        %933 = vmatpush1.msra.mxu0 0.0
        %934 = vmatprep.subr.mxu0 0.0
        %935 = vmatpush1.msra.mxu0 0.0
        %936 = vmatprep.subr.mxu0 0.0
        %937 = vmatpush1.msra.mxu0 0.0
        %938 = vmatprep.subr.mxu0 0.0
        %939 = vmatpush1.msra.mxu0 0.0
        %940 = vmatprep.subr.mxu0 0.0
        %941 = vmatpush1.msra.mxu0 0.0
        %942 = vmatprep.subr.mxu0 0.0
        %943 = vmatpush1.msra.mxu0 0.0
        %944 = vmatprep.subr.mxu0 0.0
        %945 = vmatpush1.msra.mxu0 0.0
        %946 = vmatprep.subr.mxu0 0.0
        %947 = vmatpush1.msra.mxu0 0.0
        %948 = vmatprep.subr.mxu0 %v916
        %949 = vmatpush1.msra.mxu0 %v913
        %950 = vmatprep.subr.mxu0 0.0
        %951 = vmatpush2.msra.mxu0 0.0
        %952 = vmatprep.subr.mxu0 0.0
        %953 = vmatpush2.msra.mxu0 0.0
        %954 = vmatprep.subr.mxu0 0.0
        %955 = vmatpush2.msra.mxu0 0.0
        %956 = vmatprep.subr.mxu0 0.0
        %957 = vmatpush2.msra.mxu0 0.0
        %958 = vmatprep.subr.mxu0 0.0
        %959 = vmatpush2.msra.mxu0 0.0
        %960 = vmatprep.subr.mxu0 0.0
        %961 = vmatpush2.msra.mxu0 0.0
        %962 = vmatprep.subr.mxu0 0.0
        %963 = vmatpush2.msra.mxu0 0.0
        %964 = vmatprep.subr.mxu0 0.0
        %965 = vmatpush2.msra.mxu0 0.0
        %966 = vmatprep.subr.mxu0 0.0
        %967 = vmatpush2.msra.mxu0 0.0
        %968 = vmatprep.subr.mxu0 0.0
        %969 = vmatpush2.msra.mxu0 0.0
        %970 = vmatprep.subr.mxu0 0.0
        %971 = vmatpush2.msra.mxu0 0.0
        %972 = vmatprep.subr.mxu0 0.0
        %973 = vmatpush2.msra.mxu0 0.0
        %974 = vmatprep.subr.mxu0 0.0
        %975 = vmatpush2.msra.mxu0 0.0
        %976 = vmatprep.subr.mxu0 0.0
        %977 = vmatpush2.msra.mxu0 0.0
        %978 = vmatprep.subr.mxu0 0.0
        %979 = vmatpush2.msra.mxu0 0.0
        %980 = vmatprep.subr.mxu0 0.0
        %981 = vmatpush2.msra.mxu0 0.0
        %982 = vmatprep.mubr.f32.mxu0 0.0
        %983 = vmatmul.mubr.f32.gmra.mxu0 %v906
        %v984 = vpop.f32.mrf.mxu0
        %v985 = vadd.f32 0.0, %v984
        %v986 = vpop.f32.mrf.mxu0
        %v987 = vadd.f32 0.0, %v986
        %988 = vmatprep.mubr.f32.mxu0 0.0
        %989 = vmatmul.mubr.f32.gmra.mxu0 %v909
        %v990 = vpop.f32.mrf.mxu0
        %v991 = vadd.f32 0.0, %v990
        %v992 = vpop.f32.mrf.mxu0
        %v993 = vadd.f32 0.0, %v992
        %994 = vdwg.mxu0
        %v996 = vsel %vm904, %v763, 0
        %v999 = vsel %vm904, %v764, 0
        %v1002 = vsel %vm911, %v759, 0
        %v1005 = vsel %vm911, %v761, 0
        %1007 = vmatprep.subr.mxu0 0.0
        %1008 = vmatpush1.msra.mxu0 0.0
        %1009 = vmatprep.subr.mxu0 0.0
        %1010 = vmatpush1.msra.mxu0 0.0
        %1011 = vmatprep.subr.mxu0 0.0
        %1012 = vmatpush1.msra.mxu0 0.0
        %1013 = vmatprep.subr.mxu0 0.0
        %1014 = vmatpush1.msra.mxu0 0.0
        %1015 = vmatprep.subr.mxu0 0.0
        %1016 = vmatpush1.msra.mxu0 0.0
        %1017 = vmatprep.subr.mxu0 0.0
        %1018 = vmatpush1.msra.mxu0 0.0
        %1019 = vmatprep.subr.mxu0 0.0
        %1020 = vmatpush1.msra.mxu0 0.0
        %1021 = vmatprep.subr.mxu0 0.0
        %1022 = vmatpush1.msra.mxu0 0.0
        %1023 = vmatprep.subr.mxu0 0.0
        %1024 = vmatpush1.msra.mxu0 0.0
        %1025 = vmatprep.subr.mxu0 0.0
        %1026 = vmatpush1.msra.mxu0 0.0
        %1027 = vmatprep.subr.mxu0 0.0
        %1028 = vmatpush1.msra.mxu0 0.0
        %1029 = vmatprep.subr.mxu0 0.0
        %1030 = vmatpush1.msra.mxu0 0.0
        %1031 = vmatprep.subr.mxu0 0.0
        %1032 = vmatpush1.msra.mxu0 0.0
        %1033 = vmatprep.subr.mxu0 0.0
        %1034 = vmatpush1.msra.mxu0 0.0
        %1035 = vmatprep.subr.mxu0 0.0
        %1036 = vmatpush1.msra.mxu0 0.0
        %1037 = vmatprep.subr.mxu0 %v1005
        %1038 = vmatpush1.msra.mxu0 %v1002
        %1039 = vmatprep.subr.mxu0 0.0
        %1040 = vmatpush2.msra.mxu0 0.0
        %1041 = vmatprep.subr.mxu0 0.0
        %1042 = vmatpush2.msra.mxu0 0.0
        %1043 = vmatprep.subr.mxu0 0.0
        %1044 = vmatpush2.msra.mxu0 0.0
        %1045 = vmatprep.subr.mxu0 0.0
        %1046 = vmatpush2.msra.mxu0 0.0
        %1047 = vmatprep.subr.mxu0 0.0
        %1048 = vmatpush2.msra.mxu0 0.0
        %1049 = vmatprep.subr.mxu0 0.0
        %1050 = vmatpush2.msra.mxu0 0.0
        %1051 = vmatprep.subr.mxu0 0.0
        %1052 = vmatpush2.msra.mxu0 0.0
        %1053 = vmatprep.subr.mxu0 0.0
        %1054 = vmatpush2.msra.mxu0 0.0
        %1055 = vmatprep.subr.mxu0 0.0
        %1056 = vmatpush2.msra.mxu0 0.0
        %1057 = vmatprep.subr.mxu0 0.0
        %1058 = vmatpush2.msra.mxu0 0.0
        %1059 = vmatprep.subr.mxu0 0.0
        %1060 = vmatpush2.msra.mxu0 0.0
        %1061 = vmatprep.subr.mxu0 0.0
        %1062 = vmatpush2.msra.mxu0 0.0
        %1063 = vmatprep.subr.mxu0 0.0
        %1064 = vmatpush2.msra.mxu0 0.0
        %1065 = vmatprep.subr.mxu0 0.0
        %1066 = vmatpush2.msra.mxu0 0.0
        %1067 = vmatprep.subr.mxu0 0.0
        %1068 = vmatpush2.msra.mxu0 0.0
        %1069 = vmatprep.subr.mxu0 0.0
        %1070 = vmatpush2.msra.mxu0 0.0
        %1071 = vmatprep.mubr.f32.mxu0 0.0
        %1072 = vmatmul.mubr.f32.gmra.mxu0 %v996
        %v1073 = vpop.f32.mrf.mxu0
        %v1074 = vadd.f32 %v985, %v1073
        %v1075 = vpop.f32.mrf.mxu0
        %v1076 = vadd.f32 %v987, %v1075
        %1077 = vmatprep.mubr.f32.mxu0 0.0
        %1078 = vmatmul.mubr.f32.gmra.mxu0 %v999
        %v1079 = vpop.f32.mrf.mxu0
        %v1080 = vadd.f32 %v991, %v1079
        %v1081 = vpop.f32.mrf.mxu0
        %v1082 = vadd.f32 %v993, %v1081
        %1083 = vdwg.mxu0
        %s1084 = scalar_lea.vmem [#allocation2], 1024
        %v1085 = vld [vmem:[%s1084] sm:$0xff]
        %v1086 = vld [vmem:[%s1084 + $0x8] sm:$0xff]
        %v1087 = vld [vmem:[%s1084 + $0x10] sm:$0xff]
        %v1088 = vld [vmem:[%s1084 + $0x18] sm:$0xff]
        %v1089 = vld [vmem:[%s1084 + $0x20] sm:$0xff]
        %v1090 = vld [vmem:[%s1084 + $0x28] sm:$0xff]
        %v1091 = vld [vmem:[%s1084 + $0x30] sm:$0xff]
        %v1092 = vld [vmem:[%s1084 + $0x38] sm:$0xff]
        %v1093 = vld [vmem:[%s1084 + $0x40] sm:$0xff]
        %v1094 = vld [vmem:[%s1084 + $0x48] sm:$0xff]
        %v1095 = vld [vmem:[%s1084 + $0x50] sm:$0xff]
        %v1096 = vld [vmem:[%s1084 + $0x58] sm:$0xff]
        %v1097 = vld [vmem:[%s1084 + $0x60] sm:$0xff]
        %v1098 = vld [vmem:[%s1084 + $0x68] sm:$0xff]
        %v1099 = vld [vmem:[%s1084 + $0x70] sm:$0xff]
        %v1100 = vld [vmem:[%s1084 + $0x78] sm:$0xff]
        %v1101 = vld [vmem:[%s1084 + $0x80] sm:$0xff]
        %v1102 = vld [vmem:[%s1084 + $0x88] sm:$0xff]
        %v1103 = vld [vmem:[%s1084 + $0x90] sm:$0xff]
        %v1104 = vld [vmem:[%s1084 + $0x98] sm:$0xff]
        %v1105 = vld [vmem:[%s1084 + $0xa0] sm:$0xff]
        %v1106 = vld [vmem:[%s1084 + $0xa8] sm:$0xff]
        %v1107 = vld [vmem:[%s1084 + $0xb0] sm:$0xff]
        %v1108 = vld [vmem:[%s1084 + $0xb8] sm:$0xff]
        %v1109 = vld [vmem:[%s1084 + $0xc0] sm:$0xff]
        %v1110 = vld [vmem:[%s1084 + $0xc8] sm:$0xff]
        %v1111 = vld [vmem:[%s1084 + $0xd0] sm:$0xff]
        %v1112 = vld [vmem:[%s1084 + $0xd8] sm:$0xff]
        %v1113 = vld [vmem:[%s1084 + $0xe0] sm:$0xff]
        %v1114 = vld [vmem:[%s1084 + $0xe8] sm:$0xff]
        %v1115 = vld [vmem:[%s1084 + $0xf0] sm:$0xff]
        %v1116 = vld [vmem:[%s1084 + $0xf8] sm:$0xff]
        %v1117 = vld [vmem:[%s1084 + $0x100] sm:$0xff]
        %v1118 = vld [vmem:[%s1084 + $0x108] sm:$0xff]
        %v1119 = vld [vmem:[%s1084 + $0x110] sm:$0xff]
        %v1120 = vld [vmem:[%s1084 + $0x118] sm:$0xff]
        %v1121 = vld [vmem:[%s1084 + $0x120] sm:$0xff]
        %v1122 = vld [vmem:[%s1084 + $0x128] sm:$0xff]
        %v1123 = vld [vmem:[%s1084 + $0x130] sm:$0xff]
        %v1124 = vld [vmem:[%s1084 + $0x138] sm:$0xff]
        %v1125 = vld [vmem:[%s1084 + $0x140] sm:$0xff]
        %v1126 = vld [vmem:[%s1084 + $0x148] sm:$0xff]
        %v1127 = vld [vmem:[%s1084 + $0x150] sm:$0xff]
        %v1128 = vld [vmem:[%s1084 + $0x158] sm:$0xff]
        %v1129 = vld [vmem:[%s1084 + $0x160] sm:$0xff]
        %v1130 = vld [vmem:[%s1084 + $0x168] sm:$0xff]
        %v1131 = vld [vmem:[%s1084 + $0x170] sm:$0xff]
        %v1132 = vld [vmem:[%s1084 + $0x178] sm:$0xff]
        %v1133 = vld [vmem:[%s1084 + $0x180] sm:$0xff]
        %v1134 = vld [vmem:[%s1084 + $0x188] sm:$0xff]
        %v1135 = vld [vmem:[%s1084 + $0x190] sm:$0xff]
        %v1136 = vld [vmem:[%s1084 + $0x198] sm:$0xff]
        %v1137 = vld [vmem:[%s1084 + $0x1a0] sm:$0xff]
        %v1138 = vld [vmem:[%s1084 + $0x1a8] sm:$0xff]
        %v1139 = vld [vmem:[%s1084 + $0x1b0] sm:$0xff]
        %v1140 = vld [vmem:[%s1084 + $0x1b8] sm:$0xff]
        %v1141 = vld [vmem:[%s1084 + $0x1c0] sm:$0xff]
        %v1142 = vld [vmem:[%s1084 + $0x1c8] sm:$0xff]
        %v1143 = vld [vmem:[%s1084 + $0x1d0] sm:$0xff]
        %v1144 = vld [vmem:[%s1084 + $0x1d8] sm:$0xff]
        %v1145 = vld [vmem:[%s1084 + $0x1e0] sm:$0xff]
        %v1146 = vld [vmem:[%s1084 + $0x1e8] sm:$0xff]
        %v1147 = vld [vmem:[%s1084 + $0x1f0] sm:$0xff]
        %v1148 = vld [vmem:[%s1084 + $0x1f8] sm:$0xff]
        %1149 = vmatprep.subr.mxu0 %v1116
        %1150 = vmatpush1.msra.mxu0 %v1115
        %1151 = vmatprep.subr.mxu0 %v1114
        %1152 = vmatpush1.msra.mxu0 %v1113
        %1153 = vmatprep.subr.mxu0 %v1112
        %1154 = vmatpush1.msra.mxu0 %v1111
        %1155 = vmatprep.subr.mxu0 %v1110
        %1156 = vmatpush1.msra.mxu0 %v1109
        %1157 = vmatprep.subr.mxu0 %v1108
        %1158 = vmatpush1.msra.mxu0 %v1107
        %1159 = vmatprep.subr.mxu0 %v1106
        %1160 = vmatpush1.msra.mxu0 %v1105
        %1161 = vmatprep.subr.mxu0 %v1104
        %1162 = vmatpush1.msra.mxu0 %v1103
        %1163 = vmatprep.subr.mxu0 %v1102
        %1164 = vmatpush1.msra.mxu0 %v1101
        %1165 = vmatprep.subr.mxu0 %v1100
        %1166 = vmatpush1.msra.mxu0 %v1099
        %1167 = vmatprep.subr.mxu0 %v1098
        %1168 = vmatpush1.msra.mxu0 %v1097
        %1169 = vmatprep.subr.mxu0 %v1096
        %1170 = vmatpush1.msra.mxu0 %v1095
        %1171 = vmatprep.subr.mxu0 %v1094
        %1172 = vmatpush1.msra.mxu0 %v1093
        %1173 = vmatprep.subr.mxu0 %v1092
        %1174 = vmatpush1.msra.mxu0 %v1091
        %1175 = vmatprep.subr.mxu0 %v1090
        %1176 = vmatpush1.msra.mxu0 %v1089
        %1177 = vmatprep.subr.mxu0 %v1088
        %1178 = vmatpush1.msra.mxu0 %v1087
        %1179 = vmatprep.subr.mxu0 %v1086
        %1180 = vmatpush1.msra.mxu0 %v1085
        %1181 = vmatprep.subr.mxu0 %v1148
        %1182 = vmatpush2.msra.mxu0 %v1147
        %1183 = vmatprep.subr.mxu0 %v1146
        %1184 = vmatpush2.msra.mxu0 %v1145
        %1185 = vmatprep.subr.mxu0 %v1144
        %1186 = vmatpush2.msra.mxu0 %v1143
        %1187 = vmatprep.subr.mxu0 %v1142
        %1188 = vmatpush2.msra.mxu0 %v1141
        %1189 = vmatprep.subr.mxu0 %v1140
        %1190 = vmatpush2.msra.mxu0 %v1139
        %1191 = vmatprep.subr.mxu0 %v1138
        %1192 = vmatpush2.msra.mxu0 %v1137
        %1193 = vmatprep.subr.mxu0 %v1136
        %1194 = vmatpush2.msra.mxu0 %v1135
        %1195 = vmatprep.subr.mxu0 %v1134
        %1196 = vmatpush2.msra.mxu0 %v1133
        %1197 = vmatprep.subr.mxu0 %v1132
        %1198 = vmatpush2.msra.mxu0 %v1131
        %1199 = vmatprep.subr.mxu0 %v1130
        %1200 = vmatpush2.msra.mxu0 %v1129
        %1201 = vmatprep.subr.mxu0 %v1128
        %1202 = vmatpush2.msra.mxu0 %v1127
        %1203 = vmatprep.subr.mxu0 %v1126
        %1204 = vmatpush2.msra.mxu0 %v1125
        %1205 = vmatprep.subr.mxu0 %v1124
        %1206 = vmatpush2.msra.mxu0 %v1123
        %1207 = vmatprep.subr.mxu0 %v1122
        %1208 = vmatpush2.msra.mxu0 %v1121
        %1209 = vmatprep.subr.mxu0 %v1120
        %1210 = vmatpush2.msra.mxu0 %v1119
        %1211 = vmatprep.subr.mxu0 %v1118
        %1212 = vmatpush2.msra.mxu0 %v1117
        %1213 = vmatprep.mubr.f32.mxu0 %v690
        %1214 = vmatmul.mubr.f32.gmra.mxu0 %v624
        %v1215 = vpop.f32.mrf.mxu0
        %v1216 = vadd.f32 0.0, %v1215
        %v1217 = vpop.f32.mrf.mxu0
        %v1218 = vadd.f32 0.0, %v1217
        %1219 = vdwg.mxu0
        %s1220 = scalar_lea.vmem %s1, 32
        %v1221 = vld [vmem:[%s1220] sm:$0xff]
        %v1222 = vld [vmem:[%s1220 + $0x8] sm:$0xff]
        %v1224 = vsel %vm904, %v1221, 0
        %v1227 = vsel %vm904, %v1222, 0
        %v1230 = vsel %vm911, %v1216, 0
        %v1233 = vsel %vm911, %v1218, 0
        %1235 = vmatprep.subr.mxu0 0.0
        %1236 = vmatpush1.msra.mxu0 0.0
        %1237 = vmatprep.subr.mxu0 0.0
        %1238 = vmatpush1.msra.mxu0 0.0
        %1239 = vmatprep.subr.mxu0 0.0
        %1240 = vmatpush1.msra.mxu0 0.0
        %1241 = vmatprep.subr.mxu0 0.0
        %1242 = vmatpush1.msra.mxu0 0.0
        %1243 = vmatprep.subr.mxu0 0.0
        %1244 = vmatpush1.msra.mxu0 0.0
        %1245 = vmatprep.subr.mxu0 0.0
        %1246 = vmatpush1.msra.mxu0 0.0
        %1247 = vmatprep.subr.mxu0 0.0
        %1248 = vmatpush1.msra.mxu0 0.0
        %1249 = vmatprep.subr.mxu0 0.0
        %1250 = vmatpush1.msra.mxu0 0.0
        %1251 = vmatprep.subr.mxu0 0.0
        %1252 = vmatpush1.msra.mxu0 0.0
        %1253 = vmatprep.subr.mxu0 0.0
        %1254 = vmatpush1.msra.mxu0 0.0
        %1255 = vmatprep.subr.mxu0 0.0
        %1256 = vmatpush1.msra.mxu0 0.0
        %1257 = vmatprep.subr.mxu0 0.0
        %1258 = vmatpush1.msra.mxu0 0.0
        %1259 = vmatprep.subr.mxu0 0.0
        %1260 = vmatpush1.msra.mxu0 0.0
        %1261 = vmatprep.subr.mxu0 0.0
        %1262 = vmatpush1.msra.mxu0 0.0
        %1263 = vmatprep.subr.mxu0 0.0
        %1264 = vmatpush1.msra.mxu0 0.0
        %1265 = vmatprep.subr.mxu0 %v1233
        %1266 = vmatpush1.msra.mxu0 %v1230
        %1267 = vmatprep.subr.mxu0 0.0
        %1268 = vmatpush2.msra.mxu0 0.0
        %1269 = vmatprep.subr.mxu0 0.0
        %1270 = vmatpush2.msra.mxu0 0.0
        %1271 = vmatprep.subr.mxu0 0.0
        %1272 = vmatpush2.msra.mxu0 0.0
        %1273 = vmatprep.subr.mxu0 0.0
        %1274 = vmatpush2.msra.mxu0 0.0
        %1275 = vmatprep.subr.mxu0 0.0
        %1276 = vmatpush2.msra.mxu0 0.0
        %1277 = vmatprep.subr.mxu0 0.0
        %1278 = vmatpush2.msra.mxu0 0.0
        %1279 = vmatprep.subr.mxu0 0.0
        %1280 = vmatpush2.msra.mxu0 0.0
        %1281 = vmatprep.subr.mxu0 0.0
        %1282 = vmatpush2.msra.mxu0 0.0
        %1283 = vmatprep.subr.mxu0 0.0
        %1284 = vmatpush2.msra.mxu0 0.0
        %1285 = vmatprep.subr.mxu0 0.0
        %1286 = vmatpush2.msra.mxu0 0.0
        %1287 = vmatprep.subr.mxu0 0.0
        %1288 = vmatpush2.msra.mxu0 0.0
        %1289 = vmatprep.subr.mxu0 0.0
        %1290 = vmatpush2.msra.mxu0 0.0
        %1291 = vmatprep.subr.mxu0 0.0
        %1292 = vmatpush2.msra.mxu0 0.0
        %1293 = vmatprep.subr.mxu0 0.0
        %1294 = vmatpush2.msra.mxu0 0.0
        %1295 = vmatprep.subr.mxu0 0.0
        %1296 = vmatpush2.msra.mxu0 0.0
        %1297 = vmatprep.subr.mxu0 0.0
        %1298 = vmatpush2.msra.mxu0 0.0
        %1299 = vmatprep.mubr.f32.mxu0 0.0
        %1300 = vmatmul.mubr.f32.gmra.mxu0 %v1224
        %v1301 = vpop.f32.mrf.mxu0
        %v1302 = vadd.f32 0.0, %v1301
        %v1303 = vpop.f32.mrf.mxu0
        %v1304 = vadd.f32 0.0, %v1303
        %1305 = vmatprep.mubr.f32.mxu0 0.0
        %1306 = vmatmul.mubr.f32.gmra.mxu0 %v1227
        %v1307 = vpop.f32.mrf.mxu0
        %v1308 = vadd.f32 0.0, %v1307
        %v1309 = vpop.f32.mrf.mxu0
        %v1310 = vadd.f32 0.0, %v1309
        %1311 = vdwg.mxu0
        %v1312 = vadd.f32 %v1074, %v1302
        %v1313 = vadd.f32 %v1076, %v1304
        %v1314 = vadd.f32 %v1080, %v1308
        %v1315 = vadd.f32 %v1082, %v1310
        %s1316 = scalar_lea.vmem [#allocation2], 1536
        %v1317 = vld [vmem:[%s1316] sm:$0xff]
        %v1318 = vld [vmem:[%s1316 + $0x8] sm:$0xff]
        %v1319 = vld [vmem:[%s1316 + $0x10] sm:$0xff]
        %v1320 = vld [vmem:[%s1316 + $0x18] sm:$0xff]
        %v1321 = vld [vmem:[%s1316 + $0x20] sm:$0xff]
        %v1322 = vld [vmem:[%s1316 + $0x28] sm:$0xff]
        %v1323 = vld [vmem:[%s1316 + $0x30] sm:$0xff]
        %v1324 = vld [vmem:[%s1316 + $0x38] sm:$0xff]
        %v1325 = vld [vmem:[%s1316 + $0x40] sm:$0xff]
        %v1326 = vld [vmem:[%s1316 + $0x48] sm:$0xff]
        %v1327 = vld [vmem:[%s1316 + $0x50] sm:$0xff]
        %v1328 = vld [vmem:[%s1316 + $0x58] sm:$0xff]
        %v1329 = vld [vmem:[%s1316 + $0x60] sm:$0xff]
        %v1330 = vld [vmem:[%s1316 + $0x68] sm:$0xff]
        %v1331 = vld [vmem:[%s1316 + $0x70] sm:$0xff]
        %v1332 = vld [vmem:[%s1316 + $0x78] sm:$0xff]
        %v1333 = vld [vmem:[%s1316 + $0x80] sm:$0xff]
        %v1334 = vld [vmem:[%s1316 + $0x88] sm:$0xff]
        %v1335 = vld [vmem:[%s1316 + $0x90] sm:$0xff]
        %v1336 = vld [vmem:[%s1316 + $0x98] sm:$0xff]
        %v1337 = vld [vmem:[%s1316 + $0xa0] sm:$0xff]
        %v1338 = vld [vmem:[%s1316 + $0xa8] sm:$0xff]
        %v1339 = vld [vmem:[%s1316 + $0xb0] sm:$0xff]
        %v1340 = vld [vmem:[%s1316 + $0xb8] sm:$0xff]
        %v1341 = vld [vmem:[%s1316 + $0xc0] sm:$0xff]
        %v1342 = vld [vmem:[%s1316 + $0xc8] sm:$0xff]
        %v1343 = vld [vmem:[%s1316 + $0xd0] sm:$0xff]
        %v1344 = vld [vmem:[%s1316 + $0xd8] sm:$0xff]
        %v1345 = vld [vmem:[%s1316 + $0xe0] sm:$0xff]
        %v1346 = vld [vmem:[%s1316 + $0xe8] sm:$0xff]
        %v1347 = vld [vmem:[%s1316 + $0xf0] sm:$0xff]
        %v1348 = vld [vmem:[%s1316 + $0xf8] sm:$0xff]
        %v1349 = vld [vmem:[%s1316 + $0x100] sm:$0xff]
        %v1350 = vld [vmem:[%s1316 + $0x108] sm:$0xff]
        %v1351 = vld [vmem:[%s1316 + $0x110] sm:$0xff]
        %v1352 = vld [vmem:[%s1316 + $0x118] sm:$0xff]
        %v1353 = vld [vmem:[%s1316 + $0x120] sm:$0xff]
        %v1354 = vld [vmem:[%s1316 + $0x128] sm:$0xff]
        %v1355 = vld [vmem:[%s1316 + $0x130] sm:$0xff]
        %v1356 = vld [vmem:[%s1316 + $0x138] sm:$0xff]
        %v1357 = vld [vmem:[%s1316 + $0x140] sm:$0xff]
        %v1358 = vld [vmem:[%s1316 + $0x148] sm:$0xff]
        %v1359 = vld [vmem:[%s1316 + $0x150] sm:$0xff]
        %v1360 = vld [vmem:[%s1316 + $0x158] sm:$0xff]
        %v1361 = vld [vmem:[%s1316 + $0x160] sm:$0xff]
        %v1362 = vld [vmem:[%s1316 + $0x168] sm:$0xff]
        %v1363 = vld [vmem:[%s1316 + $0x170] sm:$0xff]
        %v1364 = vld [vmem:[%s1316 + $0x178] sm:$0xff]
        %v1365 = vld [vmem:[%s1316 + $0x180] sm:$0xff]
        %v1366 = vld [vmem:[%s1316 + $0x188] sm:$0xff]
        %v1367 = vld [vmem:[%s1316 + $0x190] sm:$0xff]
        %v1368 = vld [vmem:[%s1316 + $0x198] sm:$0xff]
        %v1369 = vld [vmem:[%s1316 + $0x1a0] sm:$0xff]
        %v1370 = vld [vmem:[%s1316 + $0x1a8] sm:$0xff]
        %v1371 = vld [vmem:[%s1316 + $0x1b0] sm:$0xff]
        %v1372 = vld [vmem:[%s1316 + $0x1b8] sm:$0xff]
        %v1373 = vld [vmem:[%s1316 + $0x1c0] sm:$0xff]
        %v1374 = vld [vmem:[%s1316 + $0x1c8] sm:$0xff]
        %v1375 = vld [vmem:[%s1316 + $0x1d0] sm:$0xff]
        %v1376 = vld [vmem:[%s1316 + $0x1d8] sm:$0xff]
        %v1377 = vld [vmem:[%s1316 + $0x1e0] sm:$0xff]
        %v1378 = vld [vmem:[%s1316 + $0x1e8] sm:$0xff]
        %v1379 = vld [vmem:[%s1316 + $0x1f0] sm:$0xff]
        %v1380 = vld [vmem:[%s1316 + $0x1f8] sm:$0xff]
        %1381 = vmatprep.subr.mxu0 %v1348
        %1382 = vmatpush1.msra.mxu0 %v1347
        %1383 = vmatprep.subr.mxu0 %v1346
        %1384 = vmatpush1.msra.mxu0 %v1345
        %1385 = vmatprep.subr.mxu0 %v1344
        %1386 = vmatpush1.msra.mxu0 %v1343
        %1387 = vmatprep.subr.mxu0 %v1342
        %1388 = vmatpush1.msra.mxu0 %v1341
        %1389 = vmatprep.subr.mxu0 %v1340
        %1390 = vmatpush1.msra.mxu0 %v1339
        %1391 = vmatprep.subr.mxu0 %v1338
        %1392 = vmatpush1.msra.mxu0 %v1337
        %1393 = vmatprep.subr.mxu0 %v1336
        %1394 = vmatpush1.msra.mxu0 %v1335
        %1395 = vmatprep.subr.mxu0 %v1334
        %1396 = vmatpush1.msra.mxu0 %v1333
        %1397 = vmatprep.subr.mxu0 %v1332
        %1398 = vmatpush1.msra.mxu0 %v1331
        %1399 = vmatprep.subr.mxu0 %v1330
        %1400 = vmatpush1.msra.mxu0 %v1329
        %1401 = vmatprep.subr.mxu0 %v1328
        %1402 = vmatpush1.msra.mxu0 %v1327
        %1403 = vmatprep.subr.mxu0 %v1326
        %1404 = vmatpush1.msra.mxu0 %v1325
        %1405 = vmatprep.subr.mxu0 %v1324
        %1406 = vmatpush1.msra.mxu0 %v1323
        %1407 = vmatprep.subr.mxu0 %v1322
        %1408 = vmatpush1.msra.mxu0 %v1321
        %1409 = vmatprep.subr.mxu0 %v1320
        %1410 = vmatpush1.msra.mxu0 %v1319
        %1411 = vmatprep.subr.mxu0 %v1318
        %1412 = vmatpush1.msra.mxu0 %v1317
        %1413 = vmatprep.subr.mxu0 %v1380
        %1414 = vmatpush2.msra.mxu0 %v1379
        %1415 = vmatprep.subr.mxu0 %v1378
        %1416 = vmatpush2.msra.mxu0 %v1377
        %1417 = vmatprep.subr.mxu0 %v1376
        %1418 = vmatpush2.msra.mxu0 %v1375
        %1419 = vmatprep.subr.mxu0 %v1374
        %1420 = vmatpush2.msra.mxu0 %v1373
        %1421 = vmatprep.subr.mxu0 %v1372
        %1422 = vmatpush2.msra.mxu0 %v1371
        %1423 = vmatprep.subr.mxu0 %v1370
        %1424 = vmatpush2.msra.mxu0 %v1369
        %1425 = vmatprep.subr.mxu0 %v1368
        %1426 = vmatpush2.msra.mxu0 %v1367
        %1427 = vmatprep.subr.mxu0 %v1366
        %1428 = vmatpush2.msra.mxu0 %v1365
        %1429 = vmatprep.subr.mxu0 %v1364
        %1430 = vmatpush2.msra.mxu0 %v1363
        %1431 = vmatprep.subr.mxu0 %v1362
        %1432 = vmatpush2.msra.mxu0 %v1361
        %1433 = vmatprep.subr.mxu0 %v1360
        %1434 = vmatpush2.msra.mxu0 %v1359
        %1435 = vmatprep.subr.mxu0 %v1358
        %1436 = vmatpush2.msra.mxu0 %v1357
        %1437 = vmatprep.subr.mxu0 %v1356
        %1438 = vmatpush2.msra.mxu0 %v1355
        %1439 = vmatprep.subr.mxu0 %v1354
        %1440 = vmatpush2.msra.mxu0 %v1353
        %1441 = vmatprep.subr.mxu0 %v1352
        %1442 = vmatpush2.msra.mxu0 %v1351
        %1443 = vmatprep.subr.mxu0 %v1350
        %1444 = vmatpush2.msra.mxu0 %v1349
        %1445 = vmatprep.mubr.f32.mxu0 %v690
        %1446 = vmatmul.mubr.f32.gmra.mxu0 %v624
        %v1447 = vpop.f32.mrf.mxu0
        %v1448 = vadd.f32 0.0, %v1447
        %v1449 = vpop.f32.mrf.mxu0
        %v1450 = vadd.f32 0.0, %v1449
        %1451 = vdwg.mxu0
        %s1452 = scalar_lea.vmem %s1, 48
        %v1453 = vld [vmem:[%s1452] sm:$0xff]
        %v1454 = vld [vmem:[%s1452 + $0x8] sm:$0xff]
        %v1456 = vsel %vm904, %v1453, 0
        %v1459 = vsel %vm904, %v1454, 0
        %v1462 = vsel %vm911, %v1448, 0
        %v1465 = vsel %vm911, %v1450, 0
        %1467 = vmatprep.subr.mxu0 0.0
        %1468 = vmatpush1.msra.mxu0 0.0
        %1469 = vmatprep.subr.mxu0 0.0
        %1470 = vmatpush1.msra.mxu0 0.0
        %1471 = vmatprep.subr.mxu0 0.0
        %1472 = vmatpush1.msra.mxu0 0.0
        %1473 = vmatprep.subr.mxu0 0.0
        %1474 = vmatpush1.msra.mxu0 0.0
        %1475 = vmatprep.subr.mxu0 0.0
        %1476 = vmatpush1.msra.mxu0 0.0
        %1477 = vmatprep.subr.mxu0 0.0
        %1478 = vmatpush1.msra.mxu0 0.0
        %1479 = vmatprep.subr.mxu0 0.0
        %1480 = vmatpush1.msra.mxu0 0.0
        %1481 = vmatprep.subr.mxu0 0.0
        %1482 = vmatpush1.msra.mxu0 0.0
        %1483 = vmatprep.subr.mxu0 0.0
        %1484 = vmatpush1.msra.mxu0 0.0
        %1485 = vmatprep.subr.mxu0 0.0
        %1486 = vmatpush1.msra.mxu0 0.0
        %1487 = vmatprep.subr.mxu0 0.0
        %1488 = vmatpush1.msra.mxu0 0.0
        %1489 = vmatprep.subr.mxu0 0.0
        %1490 = vmatpush1.msra.mxu0 0.0
        %1491 = vmatprep.subr.mxu0 0.0
        %1492 = vmatpush1.msra.mxu0 0.0
        %1493 = vmatprep.subr.mxu0 0.0
        %1494 = vmatpush1.msra.mxu0 0.0
        %1495 = vmatprep.subr.mxu0 0.0
        %1496 = vmatpush1.msra.mxu0 0.0
        %1497 = vmatprep.subr.mxu0 %v1465
        %1498 = vmatpush1.msra.mxu0 %v1462
        %1499 = vmatprep.subr.mxu0 0.0
        %1500 = vmatpush2.msra.mxu0 0.0
        %1501 = vmatprep.subr.mxu0 0.0
        %1502 = vmatpush2.msra.mxu0 0.0
        %1503 = vmatprep.subr.mxu0 0.0
        %1504 = vmatpush2.msra.mxu0 0.0
        %1505 = vmatprep.subr.mxu0 0.0
        %1506 = vmatpush2.msra.mxu0 0.0
        %1507 = vmatprep.subr.mxu0 0.0
        %1508 = vmatpush2.msra.mxu0 0.0
        %1509 = vmatprep.subr.mxu0 0.0
        %1510 = vmatpush2.msra.mxu0 0.0
        %1511 = vmatprep.subr.mxu0 0.0
        %1512 = vmatpush2.msra.mxu0 0.0
        %1513 = vmatprep.subr.mxu0 0.0
        %1514 = vmatpush2.msra.mxu0 0.0
        %1515 = vmatprep.subr.mxu0 0.0
        %1516 = vmatpush2.msra.mxu0 0.0
        %1517 = vmatprep.subr.mxu0 0.0
        %1518 = vmatpush2.msra.mxu0 0.0
        %1519 = vmatprep.subr.mxu0 0.0
        %1520 = vmatpush2.msra.mxu0 0.0
        %1521 = vmatprep.subr.mxu0 0.0
        %1522 = vmatpush2.msra.mxu0 0.0
        %1523 = vmatprep.subr.mxu0 0.0
        %1524 = vmatpush2.msra.mxu0 0.0
        %1525 = vmatprep.subr.mxu0 0.0
        %1526 = vmatpush2.msra.mxu0 0.0
        %1527 = vmatprep.subr.mxu0 0.0
        %1528 = vmatpush2.msra.mxu0 0.0
        %1529 = vmatprep.subr.mxu0 0.0
        %1530 = vmatpush2.msra.mxu0 0.0
        %1531 = vmatprep.mubr.f32.mxu0 0.0
        %1532 = vmatmul.mubr.f32.gmra.mxu0 %v1456
        %v1533 = vpop.f32.mrf.mxu0
        %v1534 = vadd.f32 0.0, %v1533
        %v1535 = vpop.f32.mrf.mxu0
        %v1536 = vadd.f32 0.0, %v1535
        %1537 = vmatprep.mubr.f32.mxu0 0.0
        %1538 = vmatmul.mubr.f32.gmra.mxu0 %v1459
        %v1539 = vpop.f32.mrf.mxu0
        %v1540 = vadd.f32 0.0, %v1539
        %v1541 = vpop.f32.mrf.mxu0
        %v1542 = vadd.f32 0.0, %v1541
        %1543 = vdwg.mxu0
        %v1544 = vadd.f32 %v1312, %v1534
        %v1545 = vadd.f32 %v1313, %v1536
        %v1546 = vadd.f32 %v1314, %v1540
        %v1547 = vadd.f32 %v1315, %v1542
        %s1548 = scalar_lea.vmem [#allocation2], 2048
        %v1549 = vld [vmem:[%s1548] sm:$0xff]
        %v1550 = vld [vmem:[%s1548 + $0x8] sm:$0xff]
        %v1551 = vld [vmem:[%s1548 + $0x10] sm:$0xff]
        %v1552 = vld [vmem:[%s1548 + $0x18] sm:$0xff]
        %v1553 = vld [vmem:[%s1548 + $0x20] sm:$0xff]
        %v1554 = vld [vmem:[%s1548 + $0x28] sm:$0xff]
        %v1555 = vld [vmem:[%s1548 + $0x30] sm:$0xff]
        %v1556 = vld [vmem:[%s1548 + $0x38] sm:$0xff]
        %v1557 = vld [vmem:[%s1548 + $0x40] sm:$0xff]
        %v1558 = vld [vmem:[%s1548 + $0x48] sm:$0xff]
        %v1559 = vld [vmem:[%s1548 + $0x50] sm:$0xff]
        %v1560 = vld [vmem:[%s1548 + $0x58] sm:$0xff]
        %v1561 = vld [vmem:[%s1548 + $0x60] sm:$0xff]
        %v1562 = vld [vmem:[%s1548 + $0x68] sm:$0xff]
        %v1563 = vld [vmem:[%s1548 + $0x70] sm:$0xff]
        %v1564 = vld [vmem:[%s1548 + $0x78] sm:$0xff]
        %v1565 = vld [vmem:[%s1548 + $0x80] sm:$0xff]
        %v1566 = vld [vmem:[%s1548 + $0x88] sm:$0xff]
        %v1567 = vld [vmem:[%s1548 + $0x90] sm:$0xff]
        %v1568 = vld [vmem:[%s1548 + $0x98] sm:$0xff]
        %v1569 = vld [vmem:[%s1548 + $0xa0] sm:$0xff]
        %v1570 = vld [vmem:[%s1548 + $0xa8] sm:$0xff]
        %v1571 = vld [vmem:[%s1548 + $0xb0] sm:$0xff]
        %v1572 = vld [vmem:[%s1548 + $0xb8] sm:$0xff]
        %v1573 = vld [vmem:[%s1548 + $0xc0] sm:$0xff]
        %v1574 = vld [vmem:[%s1548 + $0xc8] sm:$0xff]
        %v1575 = vld [vmem:[%s1548 + $0xd0] sm:$0xff]
        %v1576 = vld [vmem:[%s1548 + $0xd8] sm:$0xff]
        %v1577 = vld [vmem:[%s1548 + $0xe0] sm:$0xff]
        %v1578 = vld [vmem:[%s1548 + $0xe8] sm:$0xff]
        %v1579 = vld [vmem:[%s1548 + $0xf0] sm:$0xff]
        %v1580 = vld [vmem:[%s1548 + $0xf8] sm:$0xff]
        %v1581 = vld [vmem:[%s1548 + $0x100] sm:$0xff]
        %v1582 = vld [vmem:[%s1548 + $0x108] sm:$0xff]
        %v1583 = vld [vmem:[%s1548 + $0x110] sm:$0xff]
        %v1584 = vld [vmem:[%s1548 + $0x118] sm:$0xff]
        %v1585 = vld [vmem:[%s1548 + $0x120] sm:$0xff]
        %v1586 = vld [vmem:[%s1548 + $0x128] sm:$0xff]
        %v1587 = vld [vmem:[%s1548 + $0x130] sm:$0xff]
        %v1588 = vld [vmem:[%s1548 + $0x138] sm:$0xff]
        %v1589 = vld [vmem:[%s1548 + $0x140] sm:$0xff]
        %v1590 = vld [vmem:[%s1548 + $0x148] sm:$0xff]
        %v1591 = vld [vmem:[%s1548 + $0x150] sm:$0xff]
        %v1592 = vld [vmem:[%s1548 + $0x158] sm:$0xff]
        %v1593 = vld [vmem:[%s1548 + $0x160] sm:$0xff]
        %v1594 = vld [vmem:[%s1548 + $0x168] sm:$0xff]
        %v1595 = vld [vmem:[%s1548 + $0x170] sm:$0xff]
        %v1596 = vld [vmem:[%s1548 + $0x178] sm:$0xff]
        %v1597 = vld [vmem:[%s1548 + $0x180] sm:$0xff]
        %v1598 = vld [vmem:[%s1548 + $0x188] sm:$0xff]
        %v1599 = vld [vmem:[%s1548 + $0x190] sm:$0xff]
        %v1600 = vld [vmem:[%s1548 + $0x198] sm:$0xff]
        %v1601 = vld [vmem:[%s1548 + $0x1a0] sm:$0xff]
        %v1602 = vld [vmem:[%s1548 + $0x1a8] sm:$0xff]
        %v1603 = vld [vmem:[%s1548 + $0x1b0] sm:$0xff]
        %v1604 = vld [vmem:[%s1548 + $0x1b8] sm:$0xff]
        %v1605 = vld [vmem:[%s1548 + $0x1c0] sm:$0xff]
        %v1606 = vld [vmem:[%s1548 + $0x1c8] sm:$0xff]
        %v1607 = vld [vmem:[%s1548 + $0x1d0] sm:$0xff]
        %v1608 = vld [vmem:[%s1548 + $0x1d8] sm:$0xff]
        %v1609 = vld [vmem:[%s1548 + $0x1e0] sm:$0xff]
        %v1610 = vld [vmem:[%s1548 + $0x1e8] sm:$0xff]
        %v1611 = vld [vmem:[%s1548 + $0x1f0] sm:$0xff]
        %v1612 = vld [vmem:[%s1548 + $0x1f8] sm:$0xff]
        %1613 = vmatprep.subr.mxu0 %v1580
        %1614 = vmatpush1.msra.mxu0 %v1579
        %1615 = vmatprep.subr.mxu0 %v1578
        %1616 = vmatpush1.msra.mxu0 %v1577
        %1617 = vmatprep.subr.mxu0 %v1576
        %1618 = vmatpush1.msra.mxu0 %v1575
        %1619 = vmatprep.subr.mxu0 %v1574
        %1620 = vmatpush1.msra.mxu0 %v1573
        %1621 = vmatprep.subr.mxu0 %v1572
        %1622 = vmatpush1.msra.mxu0 %v1571
        %1623 = vmatprep.subr.mxu0 %v1570
        %1624 = vmatpush1.msra.mxu0 %v1569
        %1625 = vmatprep.subr.mxu0 %v1568
        %1626 = vmatpush1.msra.mxu0 %v1567
        %1627 = vmatprep.subr.mxu0 %v1566
        %1628 = vmatpush1.msra.mxu0 %v1565
        %1629 = vmatprep.subr.mxu0 %v1564
        %1630 = vmatpush1.msra.mxu0 %v1563
        %1631 = vmatprep.subr.mxu0 %v1562
        %1632 = vmatpush1.msra.mxu0 %v1561
        %1633 = vmatprep.subr.mxu0 %v1560
        %1634 = vmatpush1.msra.mxu0 %v1559
        %1635 = vmatprep.subr.mxu0 %v1558
        %1636 = vmatpush1.msra.mxu0 %v1557
        %1637 = vmatprep.subr.mxu0 %v1556
        %1638 = vmatpush1.msra.mxu0 %v1555
        %1639 = vmatprep.subr.mxu0 %v1554
        %1640 = vmatpush1.msra.mxu0 %v1553
        %1641 = vmatprep.subr.mxu0 %v1552
        %1642 = vmatpush1.msra.mxu0 %v1551
        %1643 = vmatprep.subr.mxu0 %v1550
        %1644 = vmatpush1.msra.mxu0 %v1549
        %1645 = vmatprep.subr.mxu0 %v1612
        %1646 = vmatpush2.msra.mxu0 %v1611
        %1647 = vmatprep.subr.mxu0 %v1610
        %1648 = vmatpush2.msra.mxu0 %v1609
        %1649 = vmatprep.subr.mxu0 %v1608
        %1650 = vmatpush2.msra.mxu0 %v1607
        %1651 = vmatprep.subr.mxu0 %v1606
        %1652 = vmatpush2.msra.mxu0 %v1605
        %1653 = vmatprep.subr.mxu0 %v1604
        %1654 = vmatpush2.msra.mxu0 %v1603
        %1655 = vmatprep.subr.mxu0 %v1602
        %1656 = vmatpush2.msra.mxu0 %v1601
        %1657 = vmatprep.subr.mxu0 %v1600
        %1658 = vmatpush2.msra.mxu0 %v1599
        %1659 = vmatprep.subr.mxu0 %v1598
        %1660 = vmatpush2.msra.mxu0 %v1597
        %1661 = vmatprep.subr.mxu0 %v1596
        %1662 = vmatpush2.msra.mxu0 %v1595
        %1663 = vmatprep.subr.mxu0 %v1594
        %1664 = vmatpush2.msra.mxu0 %v1593
        %1665 = vmatprep.subr.mxu0 %v1592
        %1666 = vmatpush2.msra.mxu0 %v1591
        %1667 = vmatprep.subr.mxu0 %v1590
        %1668 = vmatpush2.msra.mxu0 %v1589
        %1669 = vmatprep.subr.mxu0 %v1588
        %1670 = vmatpush2.msra.mxu0 %v1587
        %1671 = vmatprep.subr.mxu0 %v1586
        %1672 = vmatpush2.msra.mxu0 %v1585
        %1673 = vmatprep.subr.mxu0 %v1584
        %1674 = vmatpush2.msra.mxu0 %v1583
        %1675 = vmatprep.subr.mxu0 %v1582
        %1676 = vmatpush2.msra.mxu0 %v1581
        %1677 = vmatprep.mubr.f32.mxu0 %v690
        %1678 = vmatmul.mubr.f32.gmra.mxu0 %v624
        %v1679 = vpop.f32.mrf.mxu0
        %v1680 = vadd.f32 0.0, %v1679
        %v1681 = vpop.f32.mrf.mxu0
        %v1682 = vadd.f32 0.0, %v1681
        %1683 = vdwg.mxu0
        %s1684 = scalar_lea.vmem %s1, 64
        %v1685 = vld [vmem:[%s1684] sm:$0xff]
        %v1686 = vld [vmem:[%s1684 + $0x8] sm:$0xff]
        %v1688 = vsel %vm904, %v1685, 0
        %v1691 = vsel %vm904, %v1686, 0
        %v1694 = vsel %vm911, %v1680, 0
        %v1697 = vsel %vm911, %v1682, 0
        %1699 = vmatprep.subr.mxu0 0.0
        %1700 = vmatpush1.msra.mxu0 0.0
        %1701 = vmatprep.subr.mxu0 0.0
        %1702 = vmatpush1.msra.mxu0 0.0
        %1703 = vmatprep.subr.mxu0 0.0
        %1704 = vmatpush1.msra.mxu0 0.0
        %1705 = vmatprep.subr.mxu0 0.0
        %1706 = vmatpush1.msra.mxu0 0.0
        %1707 = vmatprep.subr.mxu0 0.0
        %1708 = vmatpush1.msra.mxu0 0.0
        %1709 = vmatprep.subr.mxu0 0.0
        %1710 = vmatpush1.msra.mxu0 0.0
        %1711 = vmatprep.subr.mxu0 0.0
        %1712 = vmatpush1.msra.mxu0 0.0
        %1713 = vmatprep.subr.mxu0 0.0
        %1714 = vmatpush1.msra.mxu0 0.0
        %1715 = vmatprep.subr.mxu0 0.0
        %1716 = vmatpush1.msra.mxu0 0.0
        %1717 = vmatprep.subr.mxu0 0.0
        %1718 = vmatpush1.msra.mxu0 0.0
        %1719 = vmatprep.subr.mxu0 0.0
        %1720 = vmatpush1.msra.mxu0 0.0
        %1721 = vmatprep.subr.mxu0 0.0
        %1722 = vmatpush1.msra.mxu0 0.0
        %1723 = vmatprep.subr.mxu0 0.0
        %1724 = vmatpush1.msra.mxu0 0.0
        %1725 = vmatprep.subr.mxu0 0.0
        %1726 = vmatpush1.msra.mxu0 0.0
        %1727 = vmatprep.subr.mxu0 0.0
        %1728 = vmatpush1.msra.mxu0 0.0
        %1729 = vmatprep.subr.mxu0 %v1697
        %1730 = vmatpush1.msra.mxu0 %v1694
        %1731 = vmatprep.subr.mxu0 0.0
        %1732 = vmatpush2.msra.mxu0 0.0
        %1733 = vmatprep.subr.mxu0 0.0
        %1734 = vmatpush2.msra.mxu0 0.0
        %1735 = vmatprep.subr.mxu0 0.0
        %1736 = vmatpush2.msra.mxu0 0.0
        %1737 = vmatprep.subr.mxu0 0.0
        %1738 = vmatpush2.msra.mxu0 0.0
        %1739 = vmatprep.subr.mxu0 0.0
        %1740 = vmatpush2.msra.mxu0 0.0
        %1741 = vmatprep.subr.mxu0 0.0
        %1742 = vmatpush2.msra.mxu0 0.0
        %1743 = vmatprep.subr.mxu0 0.0
        %1744 = vmatpush2.msra.mxu0 0.0
        %1745 = vmatprep.subr.mxu0 0.0
        %1746 = vmatpush2.msra.mxu0 0.0
        %1747 = vmatprep.subr.mxu0 0.0
        %1748 = vmatpush2.msra.mxu0 0.0
        %1749 = vmatprep.subr.mxu0 0.0
        %1750 = vmatpush2.msra.mxu0 0.0
        %1751 = vmatprep.subr.mxu0 0.0
        %1752 = vmatpush2.msra.mxu0 0.0
        %1753 = vmatprep.subr.mxu0 0.0
        %1754 = vmatpush2.msra.mxu0 0.0
        %1755 = vmatprep.subr.mxu0 0.0
        %1756 = vmatpush2.msra.mxu0 0.0
        %1757 = vmatprep.subr.mxu0 0.0
        %1758 = vmatpush2.msra.mxu0 0.0
        %1759 = vmatprep.subr.mxu0 0.0
        %1760 = vmatpush2.msra.mxu0 0.0
        %1761 = vmatprep.subr.mxu0 0.0
        %1762 = vmatpush2.msra.mxu0 0.0
        %1763 = vmatprep.mubr.f32.mxu0 0.0
        %1764 = vmatmul.mubr.f32.gmra.mxu0 %v1688
        %v1765 = vpop.f32.mrf.mxu0
        %v1766 = vadd.f32 0.0, %v1765
        %v1767 = vpop.f32.mrf.mxu0
        %v1768 = vadd.f32 0.0, %v1767
        %1769 = vmatprep.mubr.f32.mxu0 0.0
        %1770 = vmatmul.mubr.f32.gmra.mxu0 %v1691
        %v1771 = vpop.f32.mrf.mxu0
        %v1772 = vadd.f32 0.0, %v1771
        %v1773 = vpop.f32.mrf.mxu0
        %v1774 = vadd.f32 0.0, %v1773
        %1775 = vdwg.mxu0
        %v1776 = vadd.f32 %v1544, %v1766
        %v1777 = vadd.f32 %v1545, %v1768
        %v1778 = vadd.f32 %v1546, %v1772
        %v1779 = vadd.f32 %v1547, %v1774
        %s1780 = scalar_lea.vmem [#allocation2], 2560
        %v1781 = vld [vmem:[%s1780] sm:$0xff]
        %v1782 = vld [vmem:[%s1780 + $0x8] sm:$0xff]
        %v1783 = vld [vmem:[%s1780 + $0x10] sm:$0xff]
        %v1784 = vld [vmem:[%s1780 + $0x18] sm:$0xff]
        %v1785 = vld [vmem:[%s1780 + $0x20] sm:$0xff]
        %v1786 = vld [vmem:[%s1780 + $0x28] sm:$0xff]
        %v1787 = vld [vmem:[%s1780 + $0x30] sm:$0xff]
        %v1788 = vld [vmem:[%s1780 + $0x38] sm:$0xff]
        %v1789 = vld [vmem:[%s1780 + $0x40] sm:$0xff]
        %v1790 = vld [vmem:[%s1780 + $0x48] sm:$0xff]
        %v1791 = vld [vmem:[%s1780 + $0x50] sm:$0xff]
        %v1792 = vld [vmem:[%s1780 + $0x58] sm:$0xff]
        %v1793 = vld [vmem:[%s1780 + $0x60] sm:$0xff]
        %v1794 = vld [vmem:[%s1780 + $0x68] sm:$0xff]
        %v1795 = vld [vmem:[%s1780 + $0x70] sm:$0xff]
        %v1796 = vld [vmem:[%s1780 + $0x78] sm:$0xff]
        %v1797 = vld [vmem:[%s1780 + $0x80] sm:$0xff]
        %v1798 = vld [vmem:[%s1780 + $0x88] sm:$0xff]
        %v1799 = vld [vmem:[%s1780 + $0x90] sm:$0xff]
        %v1800 = vld [vmem:[%s1780 + $0x98] sm:$0xff]
        %v1801 = vld [vmem:[%s1780 + $0xa0] sm:$0xff]
        %v1802 = vld [vmem:[%s1780 + $0xa8] sm:$0xff]
        %v1803 = vld [vmem:[%s1780 + $0xb0] sm:$0xff]
        %v1804 = vld [vmem:[%s1780 + $0xb8] sm:$0xff]
        %v1805 = vld [vmem:[%s1780 + $0xc0] sm:$0xff]
        %v1806 = vld [vmem:[%s1780 + $0xc8] sm:$0xff]
        %v1807 = vld [vmem:[%s1780 + $0xd0] sm:$0xff]
        %v1808 = vld [vmem:[%s1780 + $0xd8] sm:$0xff]
        %v1809 = vld [vmem:[%s1780 + $0xe0] sm:$0xff]
        %v1810 = vld [vmem:[%s1780 + $0xe8] sm:$0xff]
        %v1811 = vld [vmem:[%s1780 + $0xf0] sm:$0xff]
        %v1812 = vld [vmem:[%s1780 + $0xf8] sm:$0xff]
        %v1813 = vld [vmem:[%s1780 + $0x100] sm:$0xff]
        %v1814 = vld [vmem:[%s1780 + $0x108] sm:$0xff]
        %v1815 = vld [vmem:[%s1780 + $0x110] sm:$0xff]
        %v1816 = vld [vmem:[%s1780 + $0x118] sm:$0xff]
        %v1817 = vld [vmem:[%s1780 + $0x120] sm:$0xff]
        %v1818 = vld [vmem:[%s1780 + $0x128] sm:$0xff]
        %v1819 = vld [vmem:[%s1780 + $0x130] sm:$0xff]
        %v1820 = vld [vmem:[%s1780 + $0x138] sm:$0xff]
        %v1821 = vld [vmem:[%s1780 + $0x140] sm:$0xff]
        %v1822 = vld [vmem:[%s1780 + $0x148] sm:$0xff]
        %v1823 = vld [vmem:[%s1780 + $0x150] sm:$0xff]
        %v1824 = vld [vmem:[%s1780 + $0x158] sm:$0xff]
        %v1825 = vld [vmem:[%s1780 + $0x160] sm:$0xff]
        %v1826 = vld [vmem:[%s1780 + $0x168] sm:$0xff]
        %v1827 = vld [vmem:[%s1780 + $0x170] sm:$0xff]
        %v1828 = vld [vmem:[%s1780 + $0x178] sm:$0xff]
        %v1829 = vld [vmem:[%s1780 + $0x180] sm:$0xff]
        %v1830 = vld [vmem:[%s1780 + $0x188] sm:$0xff]
        %v1831 = vld [vmem:[%s1780 + $0x190] sm:$0xff]
        %v1832 = vld [vmem:[%s1780 + $0x198] sm:$0xff]
        %v1833 = vld [vmem:[%s1780 + $0x1a0] sm:$0xff]
        %v1834 = vld [vmem:[%s1780 + $0x1a8] sm:$0xff]
        %v1835 = vld [vmem:[%s1780 + $0x1b0] sm:$0xff]
        %v1836 = vld [vmem:[%s1780 + $0x1b8] sm:$0xff]
        %v1837 = vld [vmem:[%s1780 + $0x1c0] sm:$0xff]
        %v1838 = vld [vmem:[%s1780 + $0x1c8] sm:$0xff]
        %v1839 = vld [vmem:[%s1780 + $0x1d0] sm:$0xff]
        %v1840 = vld [vmem:[%s1780 + $0x1d8] sm:$0xff]
        %v1841 = vld [vmem:[%s1780 + $0x1e0] sm:$0xff]
        %v1842 = vld [vmem:[%s1780 + $0x1e8] sm:$0xff]
        %v1843 = vld [vmem:[%s1780 + $0x1f0] sm:$0xff]
        %v1844 = vld [vmem:[%s1780 + $0x1f8] sm:$0xff]
        %1845 = vmatprep.subr.mxu0 %v1812
        %1846 = vmatpush1.msra.mxu0 %v1811
        %1847 = vmatprep.subr.mxu0 %v1810
        %1848 = vmatpush1.msra.mxu0 %v1809
        %1849 = vmatprep.subr.mxu0 %v1808
        %1850 = vmatpush1.msra.mxu0 %v1807
        %1851 = vmatprep.subr.mxu0 %v1806
        %1852 = vmatpush1.msra.mxu0 %v1805
        %1853 = vmatprep.subr.mxu0 %v1804
        %1854 = vmatpush1.msra.mxu0 %v1803
        %1855 = vmatprep.subr.mxu0 %v1802
        %1856 = vmatpush1.msra.mxu0 %v1801
        %1857 = vmatprep.subr.mxu0 %v1800
        %1858 = vmatpush1.msra.mxu0 %v1799
        %1859 = vmatprep.subr.mxu0 %v1798
        %1860 = vmatpush1.msra.mxu0 %v1797
        %1861 = vmatprep.subr.mxu0 %v1796
        %1862 = vmatpush1.msra.mxu0 %v1795
        %1863 = vmatprep.subr.mxu0 %v1794
        %1864 = vmatpush1.msra.mxu0 %v1793
        %1865 = vmatprep.subr.mxu0 %v1792
        %1866 = vmatpush1.msra.mxu0 %v1791
        %1867 = vmatprep.subr.mxu0 %v1790
        %1868 = vmatpush1.msra.mxu0 %v1789
        %1869 = vmatprep.subr.mxu0 %v1788
        %1870 = vmatpush1.msra.mxu0 %v1787
        %1871 = vmatprep.subr.mxu0 %v1786
        %1872 = vmatpush1.msra.mxu0 %v1785
        %1873 = vmatprep.subr.mxu0 %v1784
        %1874 = vmatpush1.msra.mxu0 %v1783
        %1875 = vmatprep.subr.mxu0 %v1782
        %1876 = vmatpush1.msra.mxu0 %v1781
        %1877 = vmatprep.subr.mxu0 %v1844
        %1878 = vmatpush2.msra.mxu0 %v1843
        %1879 = vmatprep.subr.mxu0 %v1842
        %1880 = vmatpush2.msra.mxu0 %v1841
        %1881 = vmatprep.subr.mxu0 %v1840
        %1882 = vmatpush2.msra.mxu0 %v1839
        %1883 = vmatprep.subr.mxu0 %v1838
        %1884 = vmatpush2.msra.mxu0 %v1837
        %1885 = vmatprep.subr.mxu0 %v1836
        %1886 = vmatpush2.msra.mxu0 %v1835
        %1887 = vmatprep.subr.mxu0 %v1834
        %1888 = vmatpush2.msra.mxu0 %v1833
        %1889 = vmatprep.subr.mxu0 %v1832
        %1890 = vmatpush2.msra.mxu0 %v1831
        %1891 = vmatprep.subr.mxu0 %v1830
        %1892 = vmatpush2.msra.mxu0 %v1829
        %1893 = vmatprep.subr.mxu0 %v1828
        %1894 = vmatpush2.msra.mxu0 %v1827
        %1895 = vmatprep.subr.mxu0 %v1826
        %1896 = vmatpush2.msra.mxu0 %v1825
        %1897 = vmatprep.subr.mxu0 %v1824
        %1898 = vmatpush2.msra.mxu0 %v1823
        %1899 = vmatprep.subr.mxu0 %v1822
        %1900 = vmatpush2.msra.mxu0 %v1821
        %1901 = vmatprep.subr.mxu0 %v1820
        %1902 = vmatpush2.msra.mxu0 %v1819
        %1903 = vmatprep.subr.mxu0 %v1818
        %1904 = vmatpush2.msra.mxu0 %v1817
        %1905 = vmatprep.subr.mxu0 %v1816
        %1906 = vmatpush2.msra.mxu0 %v1815
        %1907 = vmatprep.subr.mxu0 %v1814
        %1908 = vmatpush2.msra.mxu0 %v1813
        %1909 = vmatprep.mubr.f32.mxu0 %v690
        %1910 = vmatmul.mubr.f32.gmra.mxu0 %v624
        %v1911 = vpop.f32.mrf.mxu0
        %v1912 = vadd.f32 0.0, %v1911
        %v1913 = vpop.f32.mrf.mxu0
        %v1914 = vadd.f32 0.0, %v1913
        %1915 = vdwg.mxu0
        %s1916 = scalar_lea.vmem %s1, 80
        %v1917 = vld [vmem:[%s1916] sm:$0xff]
        %v1918 = vld [vmem:[%s1916 + $0x8] sm:$0xff]
        %v1920 = vsel %vm904, %v1917, 0
        %v1923 = vsel %vm904, %v1918, 0
        %v1926 = vsel %vm911, %v1912, 0
        %v1929 = vsel %vm911, %v1914, 0
        %1931 = vmatprep.subr.mxu0 0.0
        %1932 = vmatpush1.msra.mxu0 0.0
        %1933 = vmatprep.subr.mxu0 0.0
        %1934 = vmatpush1.msra.mxu0 0.0
        %1935 = vmatprep.subr.mxu0 0.0
        %1936 = vmatpush1.msra.mxu0 0.0
        %1937 = vmatprep.subr.mxu0 0.0
        %1938 = vmatpush1.msra.mxu0 0.0
        %1939 = vmatprep.subr.mxu0 0.0
        %1940 = vmatpush1.msra.mxu0 0.0
        %1941 = vmatprep.subr.mxu0 0.0
        %1942 = vmatpush1.msra.mxu0 0.0
        %1943 = vmatprep.subr.mxu0 0.0
        %1944 = vmatpush1.msra.mxu0 0.0
        %1945 = vmatprep.subr.mxu0 0.0
        %1946 = vmatpush1.msra.mxu0 0.0
        %1947 = vmatprep.subr.mxu0 0.0
        %1948 = vmatpush1.msra.mxu0 0.0
        %1949 = vmatprep.subr.mxu0 0.0
        %1950 = vmatpush1.msra.mxu0 0.0
        %1951 = vmatprep.subr.mxu0 0.0
        %1952 = vmatpush1.msra.mxu0 0.0
        %1953 = vmatprep.subr.mxu0 0.0
        %1954 = vmatpush1.msra.mxu0 0.0
        %1955 = vmatprep.subr.mxu0 0.0
        %1956 = vmatpush1.msra.mxu0 0.0
        %1957 = vmatprep.subr.mxu0 0.0
        %1958 = vmatpush1.msra.mxu0 0.0
        %1959 = vmatprep.subr.mxu0 0.0
        %1960 = vmatpush1.msra.mxu0 0.0
        %1961 = vmatprep.subr.mxu0 %v1929
        %1962 = vmatpush1.msra.mxu0 %v1926
        %1963 = vmatprep.subr.mxu0 0.0
        %1964 = vmatpush2.msra.mxu0 0.0
        %1965 = vmatprep.subr.mxu0 0.0
        %1966 = vmatpush2.msra.mxu0 0.0
        %1967 = vmatprep.subr.mxu0 0.0
        %1968 = vmatpush2.msra.mxu0 0.0
        %1969 = vmatprep.subr.mxu0 0.0
        %1970 = vmatpush2.msra.mxu0 0.0
        %1971 = vmatprep.subr.mxu0 0.0
        %1972 = vmatpush2.msra.mxu0 0.0
        %1973 = vmatprep.subr.mxu0 0.0
        %1974 = vmatpush2.msra.mxu0 0.0
        %1975 = vmatprep.subr.mxu0 0.0
        %1976 = vmatpush2.msra.mxu0 0.0
        %1977 = vmatprep.subr.mxu0 0.0
        %1978 = vmatpush2.msra.mxu0 0.0
        %1979 = vmatprep.subr.mxu0 0.0
        %1980 = vmatpush2.msra.mxu0 0.0
        %1981 = vmatprep.subr.mxu0 0.0
        %1982 = vmatpush2.msra.mxu0 0.0
        %1983 = vmatprep.subr.mxu0 0.0
        %1984 = vmatpush2.msra.mxu0 0.0
        %1985 = vmatprep.subr.mxu0 0.0
        %1986 = vmatpush2.msra.mxu0 0.0
        %1987 = vmatprep.subr.mxu0 0.0
        %1988 = vmatpush2.msra.mxu0 0.0
        %1989 = vmatprep.subr.mxu0 0.0
        %1990 = vmatpush2.msra.mxu0 0.0
        %1991 = vmatprep.subr.mxu0 0.0
        %1992 = vmatpush2.msra.mxu0 0.0
        %1993 = vmatprep.subr.mxu0 0.0
        %1994 = vmatpush2.msra.mxu0 0.0
        %1995 = vmatprep.mubr.f32.mxu0 0.0
        %1996 = vmatmul.mubr.f32.gmra.mxu0 %v1920
        %v1997 = vpop.f32.mrf.mxu0
        %v1998 = vadd.f32 0.0, %v1997
        %v1999 = vpop.f32.mrf.mxu0
        %v2000 = vadd.f32 0.0, %v1999
        %2001 = vmatprep.mubr.f32.mxu0 0.0
        %2002 = vmatmul.mubr.f32.gmra.mxu0 %v1923
        %v2003 = vpop.f32.mrf.mxu0
        %v2004 = vadd.f32 0.0, %v2003
        %v2005 = vpop.f32.mrf.mxu0
        %v2006 = vadd.f32 0.0, %v2005
        %2007 = vdwg.mxu0
        %v2008 = vadd.f32 %v1776, %v1998
        %v2009 = vadd.f32 %v1777, %v2000
        %v2010 = vadd.f32 %v1778, %v2004
        %v2011 = vadd.f32 %v1779, %v2006
        %s2012 = scalar_lea.vmem [#allocation2], 3072
        %v2013 = vld [vmem:[%s2012] sm:$0xff]
        %v2014 = vld [vmem:[%s2012 + $0x8] sm:$0xff]
        %v2015 = vld [vmem:[%s2012 + $0x10] sm:$0xff]
        %v2016 = vld [vmem:[%s2012 + $0x18] sm:$0xff]
        %v2017 = vld [vmem:[%s2012 + $0x20] sm:$0xff]
        %v2018 = vld [vmem:[%s2012 + $0x28] sm:$0xff]
        %v2019 = vld [vmem:[%s2012 + $0x30] sm:$0xff]
        %v2020 = vld [vmem:[%s2012 + $0x38] sm:$0xff]
        %v2021 = vld [vmem:[%s2012 + $0x40] sm:$0xff]
        %v2022 = vld [vmem:[%s2012 + $0x48] sm:$0xff]
        %v2023 = vld [vmem:[%s2012 + $0x50] sm:$0xff]
        %v2024 = vld [vmem:[%s2012 + $0x58] sm:$0xff]
        %v2025 = vld [vmem:[%s2012 + $0x60] sm:$0xff]
        %v2026 = vld [vmem:[%s2012 + $0x68] sm:$0xff]
        %v2027 = vld [vmem:[%s2012 + $0x70] sm:$0xff]
        %v2028 = vld [vmem:[%s2012 + $0x78] sm:$0xff]
        %v2029 = vld [vmem:[%s2012 + $0x80] sm:$0xff]
        %v2030 = vld [vmem:[%s2012 + $0x88] sm:$0xff]
        %v2031 = vld [vmem:[%s2012 + $0x90] sm:$0xff]
        %v2032 = vld [vmem:[%s2012 + $0x98] sm:$0xff]
        %v2033 = vld [vmem:[%s2012 + $0xa0] sm:$0xff]
        %v2034 = vld [vmem:[%s2012 + $0xa8] sm:$0xff]
        %v2035 = vld [vmem:[%s2012 + $0xb0] sm:$0xff]
        %v2036 = vld [vmem:[%s2012 + $0xb8] sm:$0xff]
        %v2037 = vld [vmem:[%s2012 + $0xc0] sm:$0xff]
        %v2038 = vld [vmem:[%s2012 + $0xc8] sm:$0xff]
        %v2039 = vld [vmem:[%s2012 + $0xd0] sm:$0xff]
        %v2040 = vld [vmem:[%s2012 + $0xd8] sm:$0xff]
        %v2041 = vld [vmem:[%s2012 + $0xe0] sm:$0xff]
        %v2042 = vld [vmem:[%s2012 + $0xe8] sm:$0xff]
        %v2043 = vld [vmem:[%s2012 + $0xf0] sm:$0xff]
        %v2044 = vld [vmem:[%s2012 + $0xf8] sm:$0xff]
        %v2045 = vld [vmem:[%s2012 + $0x100] sm:$0xff]
        %v2046 = vld [vmem:[%s2012 + $0x108] sm:$0xff]
        %v2047 = vld [vmem:[%s2012 + $0x110] sm:$0xff]
        %v2048 = vld [vmem:[%s2012 + $0x118] sm:$0xff]
        %v2049 = vld [vmem:[%s2012 + $0x120] sm:$0xff]
        %v2050 = vld [vmem:[%s2012 + $0x128] sm:$0xff]
        %v2051 = vld [vmem:[%s2012 + $0x130] sm:$0xff]
        %v2052 = vld [vmem:[%s2012 + $0x138] sm:$0xff]
        %v2053 = vld [vmem:[%s2012 + $0x140] sm:$0xff]
        %v2054 = vld [vmem:[%s2012 + $0x148] sm:$0xff]
        %v2055 = vld [vmem:[%s2012 + $0x150] sm:$0xff]
        %v2056 = vld [vmem:[%s2012 + $0x158] sm:$0xff]
        %v2057 = vld [vmem:[%s2012 + $0x160] sm:$0xff]
        %v2058 = vld [vmem:[%s2012 + $0x168] sm:$0xff]
        %v2059 = vld [vmem:[%s2012 + $0x170] sm:$0xff]
        %v2060 = vld [vmem:[%s2012 + $0x178] sm:$0xff]
        %v2061 = vld [vmem:[%s2012 + $0x180] sm:$0xff]
        %v2062 = vld [vmem:[%s2012 + $0x188] sm:$0xff]
        %v2063 = vld [vmem:[%s2012 + $0x190] sm:$0xff]
        %v2064 = vld [vmem:[%s2012 + $0x198] sm:$0xff]
        %v2065 = vld [vmem:[%s2012 + $0x1a0] sm:$0xff]
        %v2066 = vld [vmem:[%s2012 + $0x1a8] sm:$0xff]
        %v2067 = vld [vmem:[%s2012 + $0x1b0] sm:$0xff]
        %v2068 = vld [vmem:[%s2012 + $0x1b8] sm:$0xff]
        %v2069 = vld [vmem:[%s2012 + $0x1c0] sm:$0xff]
        %v2070 = vld [vmem:[%s2012 + $0x1c8] sm:$0xff]
        %v2071 = vld [vmem:[%s2012 + $0x1d0] sm:$0xff]
        %v2072 = vld [vmem:[%s2012 + $0x1d8] sm:$0xff]
        %v2073 = vld [vmem:[%s2012 + $0x1e0] sm:$0xff]
        %v2074 = vld [vmem:[%s2012 + $0x1e8] sm:$0xff]
        %v2075 = vld [vmem:[%s2012 + $0x1f0] sm:$0xff]
        %v2076 = vld [vmem:[%s2012 + $0x1f8] sm:$0xff]
        %2077 = vmatprep.subr.mxu0 %v2044
        %2078 = vmatpush1.msra.mxu0 %v2043
        %2079 = vmatprep.subr.mxu0 %v2042
        %2080 = vmatpush1.msra.mxu0 %v2041
        %2081 = vmatprep.subr.mxu0 %v2040
        %2082 = vmatpush1.msra.mxu0 %v2039
        %2083 = vmatprep.subr.mxu0 %v2038
        %2084 = vmatpush1.msra.mxu0 %v2037
        %2085 = vmatprep.subr.mxu0 %v2036
        %2086 = vmatpush1.msra.mxu0 %v2035
        %2087 = vmatprep.subr.mxu0 %v2034
        %2088 = vmatpush1.msra.mxu0 %v2033
        %2089 = vmatprep.subr.mxu0 %v2032
        %2090 = vmatpush1.msra.mxu0 %v2031
        %2091 = vmatprep.subr.mxu0 %v2030
        %2092 = vmatpush1.msra.mxu0 %v2029
        %2093 = vmatprep.subr.mxu0 %v2028
        %2094 = vmatpush1.msra.mxu0 %v2027
        %2095 = vmatprep.subr.mxu0 %v2026
        %2096 = vmatpush1.msra.mxu0 %v2025
        %2097 = vmatprep.subr.mxu0 %v2024
        %2098 = vmatpush1.msra.mxu0 %v2023
        %2099 = vmatprep.subr.mxu0 %v2022
        %2100 = vmatpush1.msra.mxu0 %v2021
        %2101 = vmatprep.subr.mxu0 %v2020
        %2102 = vmatpush1.msra.mxu0 %v2019
        %2103 = vmatprep.subr.mxu0 %v2018
        %2104 = vmatpush1.msra.mxu0 %v2017
        %2105 = vmatprep.subr.mxu0 %v2016
        %2106 = vmatpush1.msra.mxu0 %v2015
        %2107 = vmatprep.subr.mxu0 %v2014
        %2108 = vmatpush1.msra.mxu0 %v2013
        %2109 = vmatprep.subr.mxu0 %v2076
        %2110 = vmatpush2.msra.mxu0 %v2075
        %2111 = vmatprep.subr.mxu0 %v2074
        %2112 = vmatpush2.msra.mxu0 %v2073
        %2113 = vmatprep.subr.mxu0 %v2072
        %2114 = vmatpush2.msra.mxu0 %v2071
        %2115 = vmatprep.subr.mxu0 %v2070
        %2116 = vmatpush2.msra.mxu0 %v2069
        %2117 = vmatprep.subr.mxu0 %v2068
        %2118 = vmatpush2.msra.mxu0 %v2067
        %2119 = vmatprep.subr.mxu0 %v2066
        %2120 = vmatpush2.msra.mxu0 %v2065
        %2121 = vmatprep.subr.mxu0 %v2064
        %2122 = vmatpush2.msra.mxu0 %v2063
        %2123 = vmatprep.subr.mxu0 %v2062
        %2124 = vmatpush2.msra.mxu0 %v2061
        %2125 = vmatprep.subr.mxu0 %v2060
        %2126 = vmatpush2.msra.mxu0 %v2059
        %2127 = vmatprep.subr.mxu0 %v2058
        %2128 = vmatpush2.msra.mxu0 %v2057
        %2129 = vmatprep.subr.mxu0 %v2056
        %2130 = vmatpush2.msra.mxu0 %v2055
        %2131 = vmatprep.subr.mxu0 %v2054
        %2132 = vmatpush2.msra.mxu0 %v2053
        %2133 = vmatprep.subr.mxu0 %v2052
        %2134 = vmatpush2.msra.mxu0 %v2051
        %2135 = vmatprep.subr.mxu0 %v2050
        %2136 = vmatpush2.msra.mxu0 %v2049
        %2137 = vmatprep.subr.mxu0 %v2048
        %2138 = vmatpush2.msra.mxu0 %v2047
        %2139 = vmatprep.subr.mxu0 %v2046
        %2140 = vmatpush2.msra.mxu0 %v2045
        %2141 = vmatprep.mubr.f32.mxu0 %v690
        %2142 = vmatmul.mubr.f32.gmra.mxu0 %v624
        %v2143 = vpop.f32.mrf.mxu0
        %v2144 = vadd.f32 0.0, %v2143
        %v2145 = vpop.f32.mrf.mxu0
        %v2146 = vadd.f32 0.0, %v2145
        %2147 = vdwg.mxu0
        %s2148 = scalar_lea.vmem %s1, 96
        %v2149 = vld [vmem:[%s2148] sm:$0xff]
        %v2150 = vld [vmem:[%s2148 + $0x8] sm:$0xff]
        %v2152 = vsel %vm904, %v2149, 0
        %v2155 = vsel %vm904, %v2150, 0
        %v2158 = vsel %vm911, %v2144, 0
        %v2161 = vsel %vm911, %v2146, 0
        %2163 = vmatprep.subr.mxu0 0.0
        %2164 = vmatpush1.msra.mxu0 0.0
        %2165 = vmatprep.subr.mxu0 0.0
        %2166 = vmatpush1.msra.mxu0 0.0
        %2167 = vmatprep.subr.mxu0 0.0
        %2168 = vmatpush1.msra.mxu0 0.0
        %2169 = vmatprep.subr.mxu0 0.0
        %2170 = vmatpush1.msra.mxu0 0.0
        %2171 = vmatprep.subr.mxu0 0.0
        %2172 = vmatpush1.msra.mxu0 0.0
        %2173 = vmatprep.subr.mxu0 0.0
        %2174 = vmatpush1.msra.mxu0 0.0
        %2175 = vmatprep.subr.mxu0 0.0
        %2176 = vmatpush1.msra.mxu0 0.0
        %2177 = vmatprep.subr.mxu0 0.0
        %2178 = vmatpush1.msra.mxu0 0.0
        %2179 = vmatprep.subr.mxu0 0.0
        %2180 = vmatpush1.msra.mxu0 0.0
        %2181 = vmatprep.subr.mxu0 0.0
        %2182 = vmatpush1.msra.mxu0 0.0
        %2183 = vmatprep.subr.mxu0 0.0
        %2184 = vmatpush1.msra.mxu0 0.0
        %2185 = vmatprep.subr.mxu0 0.0
        %2186 = vmatpush1.msra.mxu0 0.0
        %2187 = vmatprep.subr.mxu0 0.0
        %2188 = vmatpush1.msra.mxu0 0.0
        %2189 = vmatprep.subr.mxu0 0.0
        %2190 = vmatpush1.msra.mxu0 0.0
        %2191 = vmatprep.subr.mxu0 0.0
        %2192 = vmatpush1.msra.mxu0 0.0
        %2193 = vmatprep.subr.mxu0 %v2161
        %2194 = vmatpush1.msra.mxu0 %v2158
        %2195 = vmatprep.subr.mxu0 0.0
        %2196 = vmatpush2.msra.mxu0 0.0
        %2197 = vmatprep.subr.mxu0 0.0
        %2198 = vmatpush2.msra.mxu0 0.0
        %2199 = vmatprep.subr.mxu0 0.0
        %2200 = vmatpush2.msra.mxu0 0.0
        %2201 = vmatprep.subr.mxu0 0.0
        %2202 = vmatpush2.msra.mxu0 0.0
        %2203 = vmatprep.subr.mxu0 0.0
        %2204 = vmatpush2.msra.mxu0 0.0
        %2205 = vmatprep.subr.mxu0 0.0
        %2206 = vmatpush2.msra.mxu0 0.0
        %2207 = vmatprep.subr.mxu0 0.0
        %2208 = vmatpush2.msra.mxu0 0.0
        %2209 = vmatprep.subr.mxu0 0.0
        %2210 = vmatpush2.msra.mxu0 0.0
        %2211 = vmatprep.subr.mxu0 0.0
        %2212 = vmatpush2.msra.mxu0 0.0
        %2213 = vmatprep.subr.mxu0 0.0
        %2214 = vmatpush2.msra.mxu0 0.0
        %2215 = vmatprep.subr.mxu0 0.0
        %2216 = vmatpush2.msra.mxu0 0.0
        %2217 = vmatprep.subr.mxu0 0.0
        %2218 = vmatpush2.msra.mxu0 0.0
        %2219 = vmatprep.subr.mxu0 0.0
        %2220 = vmatpush2.msra.mxu0 0.0
        %2221 = vmatprep.subr.mxu0 0.0
        %2222 = vmatpush2.msra.mxu0 0.0
        %2223 = vmatprep.subr.mxu0 0.0
        %2224 = vmatpush2.msra.mxu0 0.0
        %2225 = vmatprep.subr.mxu0 0.0
        %2226 = vmatpush2.msra.mxu0 0.0
        %2227 = vmatprep.mubr.f32.mxu0 0.0
        %2228 = vmatmul.mubr.f32.gmra.mxu0 %v2152
        %v2229 = vpop.f32.mrf.mxu0
        %v2230 = vadd.f32 0.0, %v2229
        %v2231 = vpop.f32.mrf.mxu0
        %v2232 = vadd.f32 0.0, %v2231
        %2233 = vmatprep.mubr.f32.mxu0 0.0
        %2234 = vmatmul.mubr.f32.gmra.mxu0 %v2155
        %v2235 = vpop.f32.mrf.mxu0
        %v2236 = vadd.f32 0.0, %v2235
        %v2237 = vpop.f32.mrf.mxu0
        %v2238 = vadd.f32 0.0, %v2237
        %2239 = vdwg.mxu0
        %v2240 = vadd.f32 %v2008, %v2230
        %v2241 = vadd.f32 %v2009, %v2232
        %v2242 = vadd.f32 %v2010, %v2236
        %v2243 = vadd.f32 %v2011, %v2238
        %s2244 = scalar_lea.vmem [#allocation2], 3584
        %v2245 = vld [vmem:[%s2244] sm:$0xff]
        %v2246 = vld [vmem:[%s2244 + $0x8] sm:$0xff]
        %v2247 = vld [vmem:[%s2244 + $0x10] sm:$0xff]
        %v2248 = vld [vmem:[%s2244 + $0x18] sm:$0xff]
        %v2249 = vld [vmem:[%s2244 + $0x20] sm:$0xff]
        %v2250 = vld [vmem:[%s2244 + $0x28] sm:$0xff]
        %v2251 = vld [vmem:[%s2244 + $0x30] sm:$0xff]
        %v2252 = vld [vmem:[%s2244 + $0x38] sm:$0xff]
        %v2253 = vld [vmem:[%s2244 + $0x40] sm:$0xff]
        %v2254 = vld [vmem:[%s2244 + $0x48] sm:$0xff]
        %v2255 = vld [vmem:[%s2244 + $0x50] sm:$0xff]
        %v2256 = vld [vmem:[%s2244 + $0x58] sm:$0xff]
        %v2257 = vld [vmem:[%s2244 + $0x60] sm:$0xff]
        %v2258 = vld [vmem:[%s2244 + $0x68] sm:$0xff]
        %v2259 = vld [vmem:[%s2244 + $0x70] sm:$0xff]
        %v2260 = vld [vmem:[%s2244 + $0x78] sm:$0xff]
        %v2261 = vld [vmem:[%s2244 + $0x80] sm:$0xff]
        %v2262 = vld [vmem:[%s2244 + $0x88] sm:$0xff]
        %v2263 = vld [vmem:[%s2244 + $0x90] sm:$0xff]
        %v2264 = vld [vmem:[%s2244 + $0x98] sm:$0xff]
        %v2265 = vld [vmem:[%s2244 + $0xa0] sm:$0xff]
        %v2266 = vld [vmem:[%s2244 + $0xa8] sm:$0xff]
        %v2267 = vld [vmem:[%s2244 + $0xb0] sm:$0xff]
        %v2268 = vld [vmem:[%s2244 + $0xb8] sm:$0xff]
        %v2269 = vld [vmem:[%s2244 + $0xc0] sm:$0xff]
        %v2270 = vld [vmem:[%s2244 + $0xc8] sm:$0xff]
        %v2271 = vld [vmem:[%s2244 + $0xd0] sm:$0xff]
        %v2272 = vld [vmem:[%s2244 + $0xd8] sm:$0xff]
        %v2273 = vld [vmem:[%s2244 + $0xe0] sm:$0xff]
        %v2274 = vld [vmem:[%s2244 + $0xe8] sm:$0xff]
        %v2275 = vld [vmem:[%s2244 + $0xf0] sm:$0xff]
        %v2276 = vld [vmem:[%s2244 + $0xf8] sm:$0xff]
        %v2277 = vld [vmem:[%s2244 + $0x100] sm:$0xff]
        %v2278 = vld [vmem:[%s2244 + $0x108] sm:$0xff]
        %v2279 = vld [vmem:[%s2244 + $0x110] sm:$0xff]
        %v2280 = vld [vmem:[%s2244 + $0x118] sm:$0xff]
        %v2281 = vld [vmem:[%s2244 + $0x120] sm:$0xff]
        %v2282 = vld [vmem:[%s2244 + $0x128] sm:$0xff]
        %v2283 = vld [vmem:[%s2244 + $0x130] sm:$0xff]
        %v2284 = vld [vmem:[%s2244 + $0x138] sm:$0xff]
        %v2285 = vld [vmem:[%s2244 + $0x140] sm:$0xff]
        %v2286 = vld [vmem:[%s2244 + $0x148] sm:$0xff]
        %v2287 = vld [vmem:[%s2244 + $0x150] sm:$0xff]
        %v2288 = vld [vmem:[%s2244 + $0x158] sm:$0xff]
        %v2289 = vld [vmem:[%s2244 + $0x160] sm:$0xff]
        %v2290 = vld [vmem:[%s2244 + $0x168] sm:$0xff]
        %v2291 = vld [vmem:[%s2244 + $0x170] sm:$0xff]
        %v2292 = vld [vmem:[%s2244 + $0x178] sm:$0xff]
        %v2293 = vld [vmem:[%s2244 + $0x180] sm:$0xff]
        %v2294 = vld [vmem:[%s2244 + $0x188] sm:$0xff]
        %v2295 = vld [vmem:[%s2244 + $0x190] sm:$0xff]
        %v2296 = vld [vmem:[%s2244 + $0x198] sm:$0xff]
        %v2297 = vld [vmem:[%s2244 + $0x1a0] sm:$0xff]
        %v2298 = vld [vmem:[%s2244 + $0x1a8] sm:$0xff]
        %v2299 = vld [vmem:[%s2244 + $0x1b0] sm:$0xff]
        %v2300 = vld [vmem:[%s2244 + $0x1b8] sm:$0xff]
        %v2301 = vld [vmem:[%s2244 + $0x1c0] sm:$0xff]
        %v2302 = vld [vmem:[%s2244 + $0x1c8] sm:$0xff]
        %v2303 = vld [vmem:[%s2244 + $0x1d0] sm:$0xff]
        %v2304 = vld [vmem:[%s2244 + $0x1d8] sm:$0xff]
        %v2305 = vld [vmem:[%s2244 + $0x1e0] sm:$0xff]
        %v2306 = vld [vmem:[%s2244 + $0x1e8] sm:$0xff]
        %v2307 = vld [vmem:[%s2244 + $0x1f0] sm:$0xff]
        %v2308 = vld [vmem:[%s2244 + $0x1f8] sm:$0xff]
        %2309 = vmatprep.subr.mxu0 %v2276
        %2310 = vmatpush1.msra.mxu0 %v2275
        %2311 = vmatprep.subr.mxu0 %v2274
        %2312 = vmatpush1.msra.mxu0 %v2273
        %2313 = vmatprep.subr.mxu0 %v2272
        %2314 = vmatpush1.msra.mxu0 %v2271
        %2315 = vmatprep.subr.mxu0 %v2270
        %2316 = vmatpush1.msra.mxu0 %v2269
        %2317 = vmatprep.subr.mxu0 %v2268
        %2318 = vmatpush1.msra.mxu0 %v2267
        %2319 = vmatprep.subr.mxu0 %v2266
        %2320 = vmatpush1.msra.mxu0 %v2265
        %2321 = vmatprep.subr.mxu0 %v2264
        %2322 = vmatpush1.msra.mxu0 %v2263
        %2323 = vmatprep.subr.mxu0 %v2262
        %2324 = vmatpush1.msra.mxu0 %v2261
        %2325 = vmatprep.subr.mxu0 %v2260
        %2326 = vmatpush1.msra.mxu0 %v2259
        %2327 = vmatprep.subr.mxu0 %v2258
        %2328 = vmatpush1.msra.mxu0 %v2257
        %2329 = vmatprep.subr.mxu0 %v2256
        %2330 = vmatpush1.msra.mxu0 %v2255
        %2331 = vmatprep.subr.mxu0 %v2254
        %2332 = vmatpush1.msra.mxu0 %v2253
        %2333 = vmatprep.subr.mxu0 %v2252
        %2334 = vmatpush1.msra.mxu0 %v2251
        %2335 = vmatprep.subr.mxu0 %v2250
        %2336 = vmatpush1.msra.mxu0 %v2249
        %2337 = vmatprep.subr.mxu0 %v2248
        %2338 = vmatpush1.msra.mxu0 %v2247
        %2339 = vmatprep.subr.mxu0 %v2246
        %2340 = vmatpush1.msra.mxu0 %v2245
        %2341 = vmatprep.subr.mxu0 %v2308
        %2342 = vmatpush2.msra.mxu0 %v2307
        %2343 = vmatprep.subr.mxu0 %v2306
        %2344 = vmatpush2.msra.mxu0 %v2305
        %2345 = vmatprep.subr.mxu0 %v2304
        %2346 = vmatpush2.msra.mxu0 %v2303
        %2347 = vmatprep.subr.mxu0 %v2302
        %2348 = vmatpush2.msra.mxu0 %v2301
        %2349 = vmatprep.subr.mxu0 %v2300
        %2350 = vmatpush2.msra.mxu0 %v2299
        %2351 = vmatprep.subr.mxu0 %v2298
        %2352 = vmatpush2.msra.mxu0 %v2297
        %2353 = vmatprep.subr.mxu0 %v2296
        %2354 = vmatpush2.msra.mxu0 %v2295
        %2355 = vmatprep.subr.mxu0 %v2294
        %2356 = vmatpush2.msra.mxu0 %v2293
        %2357 = vmatprep.subr.mxu0 %v2292
        %2358 = vmatpush2.msra.mxu0 %v2291
        %2359 = vmatprep.subr.mxu0 %v2290
        %2360 = vmatpush2.msra.mxu0 %v2289
        %2361 = vmatprep.subr.mxu0 %v2288
        %2362 = vmatpush2.msra.mxu0 %v2287
        %2363 = vmatprep.subr.mxu0 %v2286
        %2364 = vmatpush2.msra.mxu0 %v2285
        %2365 = vmatprep.subr.mxu0 %v2284
        %2366 = vmatpush2.msra.mxu0 %v2283
        %2367 = vmatprep.subr.mxu0 %v2282
        %2368 = vmatpush2.msra.mxu0 %v2281
        %2369 = vmatprep.subr.mxu0 %v2280
        %2370 = vmatpush2.msra.mxu0 %v2279
        %2371 = vmatprep.subr.mxu0 %v2278
        %2372 = vmatpush2.msra.mxu0 %v2277
        %2373 = vmatprep.mubr.f32.mxu0 %v690
        %2374 = vmatmul.mubr.f32.gmra.mxu0 %v624
        %v2375 = vpop.f32.mrf.mxu0
        %v2376 = vadd.f32 0.0, %v2375
        %v2377 = vpop.f32.mrf.mxu0
        %v2378 = vadd.f32 0.0, %v2377
        %2379 = vdwg.mxu0
        %s2380 = scalar_lea.vmem %s1, 112
        %v2381 = vld [vmem:[%s2380] sm:$0xff]
        %v2382 = vld [vmem:[%s2380 + $0x8] sm:$0xff]
        %v2384 = vsel %vm904, %v2381, 0
        %v2387 = vsel %vm904, %v2382, 0
        %v2390 = vsel %vm911, %v2376, 0
        %v2393 = vsel %vm911, %v2378, 0
        %2395 = vmatprep.subr.mxu0 0.0
        %2396 = vmatpush1.msra.mxu0 0.0
        %2397 = vmatprep.subr.mxu0 0.0
        %2398 = vmatpush1.msra.mxu0 0.0
        %2399 = vmatprep.subr.mxu0 0.0
        %2400 = vmatpush1.msra.mxu0 0.0
        %2401 = vmatprep.subr.mxu0 0.0
        %2402 = vmatpush1.msra.mxu0 0.0
        %2403 = vmatprep.subr.mxu0 0.0
        %2404 = vmatpush1.msra.mxu0 0.0
        %2405 = vmatprep.subr.mxu0 0.0
        %2406 = vmatpush1.msra.mxu0 0.0
        %2407 = vmatprep.subr.mxu0 0.0
        %2408 = vmatpush1.msra.mxu0 0.0
        %2409 = vmatprep.subr.mxu0 0.0
        %2410 = vmatpush1.msra.mxu0 0.0
        %2411 = vmatprep.subr.mxu0 0.0
        %2412 = vmatpush1.msra.mxu0 0.0
        %2413 = vmatprep.subr.mxu0 0.0
        %2414 = vmatpush1.msra.mxu0 0.0
        %2415 = vmatprep.subr.mxu0 0.0
        %2416 = vmatpush1.msra.mxu0 0.0
        %2417 = vmatprep.subr.mxu0 0.0
        %2418 = vmatpush1.msra.mxu0 0.0
        %2419 = vmatprep.subr.mxu0 0.0
        %2420 = vmatpush1.msra.mxu0 0.0
        %2421 = vmatprep.subr.mxu0 0.0
        %2422 = vmatpush1.msra.mxu0 0.0
        %2423 = vmatprep.subr.mxu0 0.0
        %2424 = vmatpush1.msra.mxu0 0.0
        %2425 = vmatprep.subr.mxu0 %v2393
        %2426 = vmatpush1.msra.mxu0 %v2390
        %2427 = vmatprep.subr.mxu0 0.0
        %2428 = vmatpush2.msra.mxu0 0.0
        %2429 = vmatprep.subr.mxu0 0.0
        %2430 = vmatpush2.msra.mxu0 0.0
        %2431 = vmatprep.subr.mxu0 0.0
        %2432 = vmatpush2.msra.mxu0 0.0
        %2433 = vmatprep.subr.mxu0 0.0
        %2434 = vmatpush2.msra.mxu0 0.0
        %2435 = vmatprep.subr.mxu0 0.0
        %2436 = vmatpush2.msra.mxu0 0.0
        %2437 = vmatprep.subr.mxu0 0.0
        %2438 = vmatpush2.msra.mxu0 0.0
        %2439 = vmatprep.subr.mxu0 0.0
        %2440 = vmatpush2.msra.mxu0 0.0
        %2441 = vmatprep.subr.mxu0 0.0
        %2442 = vmatpush2.msra.mxu0 0.0
        %2443 = vmatprep.subr.mxu0 0.0
        %2444 = vmatpush2.msra.mxu0 0.0
        %2445 = vmatprep.subr.mxu0 0.0
        %2446 = vmatpush2.msra.mxu0 0.0
        %2447 = vmatprep.subr.mxu0 0.0
        %2448 = vmatpush2.msra.mxu0 0.0
        %2449 = vmatprep.subr.mxu0 0.0
        %2450 = vmatpush2.msra.mxu0 0.0
        %2451 = vmatprep.subr.mxu0 0.0
        %2452 = vmatpush2.msra.mxu0 0.0
        %2453 = vmatprep.subr.mxu0 0.0
        %2454 = vmatpush2.msra.mxu0 0.0
        %2455 = vmatprep.subr.mxu0 0.0
        %2456 = vmatpush2.msra.mxu0 0.0
        %2457 = vmatprep.subr.mxu0 0.0
        %2458 = vmatpush2.msra.mxu0 0.0
        %2459 = vmatprep.mubr.f32.mxu0 0.0
        %2460 = vmatmul.mubr.f32.gmra.mxu0 %v2384
        %v2461 = vpop.f32.mrf.mxu0
        %v2462 = vadd.f32 0.0, %v2461
        %v2463 = vpop.f32.mrf.mxu0
        %v2464 = vadd.f32 0.0, %v2463
        %2465 = vmatprep.mubr.f32.mxu0 0.0
        %2466 = vmatmul.mubr.f32.gmra.mxu0 %v2387
        %v2467 = vpop.f32.mrf.mxu0
        %v2468 = vadd.f32 0.0, %v2467
        %v2469 = vpop.f32.mrf.mxu0
        %v2470 = vadd.f32 0.0, %v2469
        %2471 = vdwg.mxu0
        %v2472 = vadd.f32 %v2240, %v2462
        %v2473 = vadd.f32 %v2241, %v2464
        %v2474 = vadd.f32 %v2242, %v2468
        %v2475 = vadd.f32 %v2243, %v2470
        %s2476 = scalar_lea.vmem [#allocation2], 4096
        %v2477 = vld [vmem:[%s2476] sm:$0xff]
        %v2478 = vld [vmem:[%s2476 + $0x8] sm:$0xff]
        %v2479 = vld [vmem:[%s2476 + $0x10] sm:$0xff]
        %v2480 = vld [vmem:[%s2476 + $0x18] sm:$0xff]
        %v2481 = vld [vmem:[%s2476 + $0x20] sm:$0xff]
        %v2482 = vld [vmem:[%s2476 + $0x28] sm:$0xff]
        %v2483 = vld [vmem:[%s2476 + $0x30] sm:$0xff]
        %v2484 = vld [vmem:[%s2476 + $0x38] sm:$0xff]
        %v2485 = vld [vmem:[%s2476 + $0x40] sm:$0xff]
        %v2486 = vld [vmem:[%s2476 + $0x48] sm:$0xff]
        %v2487 = vld [vmem:[%s2476 + $0x50] sm:$0xff]
        %v2488 = vld [vmem:[%s2476 + $0x58] sm:$0xff]
        %v2489 = vld [vmem:[%s2476 + $0x60] sm:$0xff]
        %v2490 = vld [vmem:[%s2476 + $0x68] sm:$0xff]
        %v2491 = vld [vmem:[%s2476 + $0x70] sm:$0xff]
        %v2492 = vld [vmem:[%s2476 + $0x78] sm:$0xff]
        %v2493 = vld [vmem:[%s2476 + $0x80] sm:$0xff]
        %v2494 = vld [vmem:[%s2476 + $0x88] sm:$0xff]
        %v2495 = vld [vmem:[%s2476 + $0x90] sm:$0xff]
        %v2496 = vld [vmem:[%s2476 + $0x98] sm:$0xff]
        %v2497 = vld [vmem:[%s2476 + $0xa0] sm:$0xff]
        %v2498 = vld [vmem:[%s2476 + $0xa8] sm:$0xff]
        %v2499 = vld [vmem:[%s2476 + $0xb0] sm:$0xff]
        %v2500 = vld [vmem:[%s2476 + $0xb8] sm:$0xff]
        %v2501 = vld [vmem:[%s2476 + $0xc0] sm:$0xff]
        %v2502 = vld [vmem:[%s2476 + $0xc8] sm:$0xff]
        %v2503 = vld [vmem:[%s2476 + $0xd0] sm:$0xff]
        %v2504 = vld [vmem:[%s2476 + $0xd8] sm:$0xff]
        %v2505 = vld [vmem:[%s2476 + $0xe0] sm:$0xff]
        %v2506 = vld [vmem:[%s2476 + $0xe8] sm:$0xff]
        %v2507 = vld [vmem:[%s2476 + $0xf0] sm:$0xff]
        %v2508 = vld [vmem:[%s2476 + $0xf8] sm:$0xff]
        %v2509 = vld [vmem:[%s2476 + $0x100] sm:$0xff]
        %v2510 = vld [vmem:[%s2476 + $0x108] sm:$0xff]
        %v2511 = vld [vmem:[%s2476 + $0x110] sm:$0xff]
        %v2512 = vld [vmem:[%s2476 + $0x118] sm:$0xff]
        %v2513 = vld [vmem:[%s2476 + $0x120] sm:$0xff]
        %v2514 = vld [vmem:[%s2476 + $0x128] sm:$0xff]
        %v2515 = vld [vmem:[%s2476 + $0x130] sm:$0xff]
        %v2516 = vld [vmem:[%s2476 + $0x138] sm:$0xff]
        %v2517 = vld [vmem:[%s2476 + $0x140] sm:$0xff]
        %v2518 = vld [vmem:[%s2476 + $0x148] sm:$0xff]
        %v2519 = vld [vmem:[%s2476 + $0x150] sm:$0xff]
        %v2520 = vld [vmem:[%s2476 + $0x158] sm:$0xff]
        %v2521 = vld [vmem:[%s2476 + $0x160] sm:$0xff]
        %v2522 = vld [vmem:[%s2476 + $0x168] sm:$0xff]
        %v2523 = vld [vmem:[%s2476 + $0x170] sm:$0xff]
        %v2524 = vld [vmem:[%s2476 + $0x178] sm:$0xff]
        %v2525 = vld [vmem:[%s2476 + $0x180] sm:$0xff]
        %v2526 = vld [vmem:[%s2476 + $0x188] sm:$0xff]
        %v2527 = vld [vmem:[%s2476 + $0x190] sm:$0xff]
        %v2528 = vld [vmem:[%s2476 + $0x198] sm:$0xff]
        %v2529 = vld [vmem:[%s2476 + $0x1a0] sm:$0xff]
        %v2530 = vld [vmem:[%s2476 + $0x1a8] sm:$0xff]
        %v2531 = vld [vmem:[%s2476 + $0x1b0] sm:$0xff]
        %v2532 = vld [vmem:[%s2476 + $0x1b8] sm:$0xff]
        %v2533 = vld [vmem:[%s2476 + $0x1c0] sm:$0xff]
        %v2534 = vld [vmem:[%s2476 + $0x1c8] sm:$0xff]
        %v2535 = vld [vmem:[%s2476 + $0x1d0] sm:$0xff]
        %v2536 = vld [vmem:[%s2476 + $0x1d8] sm:$0xff]
        %v2537 = vld [vmem:[%s2476 + $0x1e0] sm:$0xff]
        %v2538 = vld [vmem:[%s2476 + $0x1e8] sm:$0xff]
        %v2539 = vld [vmem:[%s2476 + $0x1f0] sm:$0xff]
        %v2540 = vld [vmem:[%s2476 + $0x1f8] sm:$0xff]
        %2541 = vmatprep.subr.mxu0 %v2508
        %2542 = vmatpush1.msra.mxu0 %v2507
        %2543 = vmatprep.subr.mxu0 %v2506
        %2544 = vmatpush1.msra.mxu0 %v2505
        %2545 = vmatprep.subr.mxu0 %v2504
        %2546 = vmatpush1.msra.mxu0 %v2503
        %2547 = vmatprep.subr.mxu0 %v2502
        %2548 = vmatpush1.msra.mxu0 %v2501
        %2549 = vmatprep.subr.mxu0 %v2500
        %2550 = vmatpush1.msra.mxu0 %v2499
        %2551 = vmatprep.subr.mxu0 %v2498
        %2552 = vmatpush1.msra.mxu0 %v2497
        %2553 = vmatprep.subr.mxu0 %v2496
        %2554 = vmatpush1.msra.mxu0 %v2495
        %2555 = vmatprep.subr.mxu0 %v2494
        %2556 = vmatpush1.msra.mxu0 %v2493
        %2557 = vmatprep.subr.mxu0 %v2492
        %2558 = vmatpush1.msra.mxu0 %v2491
        %2559 = vmatprep.subr.mxu0 %v2490
        %2560 = vmatpush1.msra.mxu0 %v2489
        %2561 = vmatprep.subr.mxu0 %v2488
        %2562 = vmatpush1.msra.mxu0 %v2487
        %2563 = vmatprep.subr.mxu0 %v2486
        %2564 = vmatpush1.msra.mxu0 %v2485
        %2565 = vmatprep.subr.mxu0 %v2484
        %2566 = vmatpush1.msra.mxu0 %v2483
        %2567 = vmatprep.subr.mxu0 %v2482
        %2568 = vmatpush1.msra.mxu0 %v2481
        %2569 = vmatprep.subr.mxu0 %v2480
        %2570 = vmatpush1.msra.mxu0 %v2479
        %2571 = vmatprep.subr.mxu0 %v2478
        %2572 = vmatpush1.msra.mxu0 %v2477
        %2573 = vmatprep.subr.mxu0 %v2540
        %2574 = vmatpush2.msra.mxu0 %v2539
        %2575 = vmatprep.subr.mxu0 %v2538
        %2576 = vmatpush2.msra.mxu0 %v2537
        %2577 = vmatprep.subr.mxu0 %v2536
        %2578 = vmatpush2.msra.mxu0 %v2535
        %2579 = vmatprep.subr.mxu0 %v2534
        %2580 = vmatpush2.msra.mxu0 %v2533
        %2581 = vmatprep.subr.mxu0 %v2532
        %2582 = vmatpush2.msra.mxu0 %v2531
        %2583 = vmatprep.subr.mxu0 %v2530
        %2584 = vmatpush2.msra.mxu0 %v2529
        %2585 = vmatprep.subr.mxu0 %v2528
        %2586 = vmatpush2.msra.mxu0 %v2527
        %2587 = vmatprep.subr.mxu0 %v2526
        %2588 = vmatpush2.msra.mxu0 %v2525
        %2589 = vmatprep.subr.mxu0 %v2524
        %2590 = vmatpush2.msra.mxu0 %v2523
        %2591 = vmatprep.subr.mxu0 %v2522
        %2592 = vmatpush2.msra.mxu0 %v2521
        %2593 = vmatprep.subr.mxu0 %v2520
        %2594 = vmatpush2.msra.mxu0 %v2519
        %2595 = vmatprep.subr.mxu0 %v2518
        %2596 = vmatpush2.msra.mxu0 %v2517
        %2597 = vmatprep.subr.mxu0 %v2516
        %2598 = vmatpush2.msra.mxu0 %v2515
        %2599 = vmatprep.subr.mxu0 %v2514
        %2600 = vmatpush2.msra.mxu0 %v2513
        %2601 = vmatprep.subr.mxu0 %v2512
        %2602 = vmatpush2.msra.mxu0 %v2511
        %2603 = vmatprep.subr.mxu0 %v2510
        %2604 = vmatpush2.msra.mxu0 %v2509
        %2605 = vmatprep.mubr.f32.mxu0 %v690
        %2606 = vmatmul.mubr.f32.gmra.mxu0 %v624
        %v2607 = vpop.f32.mrf.mxu0
        %v2608 = vadd.f32 0.0, %v2607
        %v2609 = vpop.f32.mrf.mxu0
        %v2610 = vadd.f32 0.0, %v2609
        %2611 = vdwg.mxu0
        %s2612 = scalar_lea.vmem %s1, 128
        %v2613 = vld [vmem:[%s2612] sm:$0xff]
        %v2614 = vld [vmem:[%s2612 + $0x8] sm:$0xff]
        %v2616 = vsel %vm904, %v2613, 0
        %v2619 = vsel %vm904, %v2614, 0
        %v2622 = vsel %vm911, %v2608, 0
        %v2625 = vsel %vm911, %v2610, 0
        %2627 = vmatprep.subr.mxu0 0.0
        %2628 = vmatpush1.msra.mxu0 0.0
        %2629 = vmatprep.subr.mxu0 0.0
        %2630 = vmatpush1.msra.mxu0 0.0
        %2631 = vmatprep.subr.mxu0 0.0
        %2632 = vmatpush1.msra.mxu0 0.0
        %2633 = vmatprep.subr.mxu0 0.0
        %2634 = vmatpush1.msra.mxu0 0.0
        %2635 = vmatprep.subr.mxu0 0.0
        %2636 = vmatpush1.msra.mxu0 0.0
        %2637 = vmatprep.subr.mxu0 0.0
        %2638 = vmatpush1.msra.mxu0 0.0
        %2639 = vmatprep.subr.mxu0 0.0
        %2640 = vmatpush1.msra.mxu0 0.0
        %2641 = vmatprep.subr.mxu0 0.0
        %2642 = vmatpush1.msra.mxu0 0.0
        %2643 = vmatprep.subr.mxu0 0.0
        %2644 = vmatpush1.msra.mxu0 0.0
        %2645 = vmatprep.subr.mxu0 0.0
        %2646 = vmatpush1.msra.mxu0 0.0
        %2647 = vmatprep.subr.mxu0 0.0
        %2648 = vmatpush1.msra.mxu0 0.0
        %2649 = vmatprep.subr.mxu0 0.0
        %2650 = vmatpush1.msra.mxu0 0.0
        %2651 = vmatprep.subr.mxu0 0.0
        %2652 = vmatpush1.msra.mxu0 0.0
        %2653 = vmatprep.subr.mxu0 0.0
        %2654 = vmatpush1.msra.mxu0 0.0
        %2655 = vmatprep.subr.mxu0 0.0
        %2656 = vmatpush1.msra.mxu0 0.0
        %2657 = vmatprep.subr.mxu0 %v2625
        %2658 = vmatpush1.msra.mxu0 %v2622
        %2659 = vmatprep.subr.mxu0 0.0
        %2660 = vmatpush2.msra.mxu0 0.0
        %2661 = vmatprep.subr.mxu0 0.0
        %2662 = vmatpush2.msra.mxu0 0.0
        %2663 = vmatprep.subr.mxu0 0.0
        %2664 = vmatpush2.msra.mxu0 0.0
        %2665 = vmatprep.subr.mxu0 0.0
        %2666 = vmatpush2.msra.mxu0 0.0
        %2667 = vmatprep.subr.mxu0 0.0
        %2668 = vmatpush2.msra.mxu0 0.0
        %2669 = vmatprep.subr.mxu0 0.0
        %2670 = vmatpush2.msra.mxu0 0.0
        %2671 = vmatprep.subr.mxu0 0.0
        %2672 = vmatpush2.msra.mxu0 0.0
        %2673 = vmatprep.subr.mxu0 0.0
        %2674 = vmatpush2.msra.mxu0 0.0
        %2675 = vmatprep.subr.mxu0 0.0
        %2676 = vmatpush2.msra.mxu0 0.0
        %2677 = vmatprep.subr.mxu0 0.0
        %2678 = vmatpush2.msra.mxu0 0.0
        %2679 = vmatprep.subr.mxu0 0.0
        %2680 = vmatpush2.msra.mxu0 0.0
        %2681 = vmatprep.subr.mxu0 0.0
        %2682 = vmatpush2.msra.mxu0 0.0
        %2683 = vmatprep.subr.mxu0 0.0
        %2684 = vmatpush2.msra.mxu0 0.0
        %2685 = vmatprep.subr.mxu0 0.0
        %2686 = vmatpush2.msra.mxu0 0.0
        %2687 = vmatprep.subr.mxu0 0.0
        %2688 = vmatpush2.msra.mxu0 0.0
        %2689 = vmatprep.subr.mxu0 0.0
        %2690 = vmatpush2.msra.mxu0 0.0
        %2691 = vmatprep.mubr.f32.mxu0 0.0
        %2692 = vmatmul.mubr.f32.gmra.mxu0 %v2616
        %v2693 = vpop.f32.mrf.mxu0
        %v2694 = vadd.f32 0.0, %v2693
        %v2695 = vpop.f32.mrf.mxu0
        %v2696 = vadd.f32 0.0, %v2695
        %2697 = vmatprep.mubr.f32.mxu0 0.0
        %2698 = vmatmul.mubr.f32.gmra.mxu0 %v2619
        %v2699 = vpop.f32.mrf.mxu0
        %v2700 = vadd.f32 0.0, %v2699
        %v2701 = vpop.f32.mrf.mxu0
        %v2702 = vadd.f32 0.0, %v2701
        %2703 = vdwg.mxu0
        %v2704 = vadd.f32 %v2472, %v2694
        %v2705 = vadd.f32 %v2473, %v2696
        %v2706 = vadd.f32 %v2474, %v2700
        %v2707 = vadd.f32 %v2475, %v2702
        %v2708 = vld [vmem:[%s2] sm:$0xff]
        %v2709 = vld [vmem:[%s2 + $0x8] sm:$0xff]
        %2711 = vset.pattern.permute.xlu0 0
        %2712 = vperm.xlu0 %2711, %v2708
        %v2713 = vpop.permute.xlu0 %2712
        %2716 = vset.pattern.permute.xlu0 0
        %2717 = vperm.xlu0 %2716, %v2709
        %v2718 = vpop.permute.xlu0 %2717
        %v2720 = vadd.f32 %v2704, %v2713
        %v2721 = vadd.f32 %v2705, %v2713
        %v2722 = vadd.f32 %v2706, %v2718
        %v2723 = vadd.f32 %v2707, %v2718
        %v2724 = vmax.f32 %v2720, 0.0
        %v2725 = vmax.f32 %v2721, 0.0
        %v2726 = vmax.f32 %v2722, 0.0
        %v2727 = vmax.f32 %v2723, 0.0
        %v2728 = vld [vmem:[#allocation7] sm:$0xff]
        %v2729 = vld [vmem:[#allocation7 + $0x8] sm:$0xff]
        %v2730 = vld [vmem:[#allocation7 + $0x10] sm:$0xff]
        %v2731 = vld [vmem:[#allocation7 + $0x18] sm:$0xff]
        %v2732 = vld [vmem:[#allocation7 + $0x20] sm:$0xff]
        %v2733 = vld [vmem:[#allocation7 + $0x28] sm:$0xff]
        %v2734 = vld [vmem:[#allocation7 + $0x30] sm:$0xff]
        %v2735 = vld [vmem:[#allocation7 + $0x38] sm:$0xff]
        %v2736 = vld [vmem:[#allocation7 + $0x40] sm:$0xff]
        %v2737 = vld [vmem:[#allocation7 + $0x48] sm:$0xff]
        %v2738 = vld [vmem:[#allocation7 + $0x50] sm:$0xff]
        %v2739 = vld [vmem:[#allocation7 + $0x58] sm:$0xff]
        %v2740 = vld [vmem:[#allocation7 + $0x60] sm:$0xff]
        %v2741 = vld [vmem:[#allocation7 + $0x68] sm:$0xff]
        %v2742 = vld [vmem:[#allocation7 + $0x70] sm:$0xff]
        %v2743 = vld [vmem:[#allocation7 + $0x78] sm:$0xff]
        %v2744 = vld [vmem:[#allocation7 + $0x80] sm:$0xff]
        %v2745 = vld [vmem:[#allocation7 + $0x88] sm:$0xff]
        %v2746 = vld [vmem:[#allocation7 + $0x90] sm:$0xff]
        %v2747 = vld [vmem:[#allocation7 + $0x98] sm:$0xff]
        %v2748 = vld [vmem:[#allocation7 + $0xa0] sm:$0xff]
        %v2749 = vld [vmem:[#allocation7 + $0xa8] sm:$0xff]
        %v2750 = vld [vmem:[#allocation7 + $0xb0] sm:$0xff]
        %v2751 = vld [vmem:[#allocation7 + $0xb8] sm:$0xff]
        %v2752 = vld [vmem:[#allocation7 + $0xc0] sm:$0xff]
        %v2753 = vld [vmem:[#allocation7 + $0xc8] sm:$0xff]
        %v2754 = vld [vmem:[#allocation7 + $0xd0] sm:$0xff]
        %v2755 = vld [vmem:[#allocation7 + $0xd8] sm:$0xff]
        %v2756 = vld [vmem:[#allocation7 + $0xe0] sm:$0xff]
        %v2757 = vld [vmem:[#allocation7 + $0xe8] sm:$0xff]
        %v2758 = vld [vmem:[#allocation7 + $0xf0] sm:$0xff]
        %v2759 = vld [vmem:[#allocation7 + $0xf8] sm:$0xff]
        %2760 = vmatprep.subr.mxu0 0.0
        %2761 = vmatpush1.msra.mxu0 %v2743
        %2762 = vmatprep.subr.mxu0 0.0
        %2763 = vmatpush1.msra.mxu0 %v2742
        %2764 = vmatprep.subr.mxu0 0.0
        %2765 = vmatpush1.msra.mxu0 %v2741
        %2766 = vmatprep.subr.mxu0 0.0
        %2767 = vmatpush1.msra.mxu0 %v2740
        %2768 = vmatprep.subr.mxu0 0.0
        %2769 = vmatpush1.msra.mxu0 %v2739
        %2770 = vmatprep.subr.mxu0 0.0
        %2771 = vmatpush1.msra.mxu0 %v2738
        %2772 = vmatprep.subr.mxu0 0.0
        %2773 = vmatpush1.msra.mxu0 %v2737
        %2774 = vmatprep.subr.mxu0 0.0
        %2775 = vmatpush1.msra.mxu0 %v2736
        %2776 = vmatprep.subr.mxu0 0.0
        %2777 = vmatpush1.msra.mxu0 %v2735
        %2778 = vmatprep.subr.mxu0 0.0
        %2779 = vmatpush1.msra.mxu0 %v2734
        %2780 = vmatprep.subr.mxu0 0.0
        %2781 = vmatpush1.msra.mxu0 %v2733
        %2782 = vmatprep.subr.mxu0 0.0
        %2783 = vmatpush1.msra.mxu0 %v2732
        %2784 = vmatprep.subr.mxu0 0.0
        %2785 = vmatpush1.msra.mxu0 %v2731
        %2786 = vmatprep.subr.mxu0 0.0
        %2787 = vmatpush1.msra.mxu0 %v2730
        %2788 = vmatprep.subr.mxu0 0.0
        %2789 = vmatpush1.msra.mxu0 %v2729
        %2790 = vmatprep.subr.mxu0 0.0
        %2791 = vmatpush1.msra.mxu0 %v2728
        %2792 = vmatprep.subr.mxu0 0.0
        %2793 = vmatpush2.msra.mxu0 %v2759
        %2794 = vmatprep.subr.mxu0 0.0
        %2795 = vmatpush2.msra.mxu0 %v2758
        %2796 = vmatprep.subr.mxu0 0.0
        %2797 = vmatpush2.msra.mxu0 %v2757
        %2798 = vmatprep.subr.mxu0 0.0
        %2799 = vmatpush2.msra.mxu0 %v2756
        %2800 = vmatprep.subr.mxu0 0.0
        %2801 = vmatpush2.msra.mxu0 %v2755
        %2802 = vmatprep.subr.mxu0 0.0
        %2803 = vmatpush2.msra.mxu0 %v2754
        %2804 = vmatprep.subr.mxu0 0.0
        %2805 = vmatpush2.msra.mxu0 %v2753
        %2806 = vmatprep.subr.mxu0 0.0
        %2807 = vmatpush2.msra.mxu0 %v2752
        %2808 = vmatprep.subr.mxu0 0.0
        %2809 = vmatpush2.msra.mxu0 %v2751
        %2810 = vmatprep.subr.mxu0 0.0
        %2811 = vmatpush2.msra.mxu0 %v2750
        %2812 = vmatprep.subr.mxu0 0.0
        %2813 = vmatpush2.msra.mxu0 %v2749
        %2814 = vmatprep.subr.mxu0 0.0
        %2815 = vmatpush2.msra.mxu0 %v2748
        %2816 = vmatprep.subr.mxu0 0.0
        %2817 = vmatpush2.msra.mxu0 %v2747
        %2818 = vmatprep.subr.mxu0 0.0
        %2819 = vmatpush2.msra.mxu0 %v2746
        %2820 = vmatprep.subr.mxu0 0.0
        %2821 = vmatpush2.msra.mxu0 %v2745
        %2822 = vmatprep.subr.mxu0 0.0
        %2823 = vmatpush2.msra.mxu0 %v2744
        %2824 = vmatprep.mubr.f32.mxu0 %v2725
        %2825 = vmatmul.mubr.f32.gmra.mxu0 %v2724
        %v2826 = vpop.f32.mrf.mxu0
        %v2827 = vadd.f32 0.0, %v2826
        %v2828 = vpop.f32.mrf.mxu0
        %2829 = vmatprep.mubr.f32.mxu0 %v2727
        %2830 = vmatmul.mubr.f32.gmra.mxu0 %v2726
        %v2831 = vpop.f32.mrf.mxu0
        %v2832 = vadd.f32 0.0, %v2831
        %v2833 = vpop.f32.mrf.mxu0
        %2834 = vdwg.mxu0
        %s2835 = scalar_lea.vmem [#allocation7], 256
        %v2836 = vld [vmem:[%s2835] sm:$0xff]
        %v2837 = vld [vmem:[%s2835 + $0x8] sm:$0xff]
        %v2838 = vld [vmem:[%s2835 + $0x10] sm:$0xff]
        %v2839 = vld [vmem:[%s2835 + $0x18] sm:$0xff]
        %v2840 = vld [vmem:[%s2835 + $0x20] sm:$0xff]
        %v2841 = vld [vmem:[%s2835 + $0x28] sm:$0xff]
        %v2842 = vld [vmem:[%s2835 + $0x30] sm:$0xff]
        %v2843 = vld [vmem:[%s2835 + $0x38] sm:$0xff]
        %v2844 = vld [vmem:[%s2835 + $0x40] sm:$0xff]
        %v2845 = vld [vmem:[%s2835 + $0x48] sm:$0xff]
        %v2846 = vld [vmem:[%s2835 + $0x50] sm:$0xff]
        %v2847 = vld [vmem:[%s2835 + $0x58] sm:$0xff]
        %v2848 = vld [vmem:[%s2835 + $0x60] sm:$0xff]
        %v2849 = vld [vmem:[%s2835 + $0x68] sm:$0xff]
        %v2850 = vld [vmem:[%s2835 + $0x70] sm:$0xff]
        %v2851 = vld [vmem:[%s2835 + $0x78] sm:$0xff]
        %v2852 = vld [vmem:[%s2835 + $0x80] sm:$0xff]
        %v2853 = vld [vmem:[%s2835 + $0x88] sm:$0xff]
        %v2854 = vld [vmem:[%s2835 + $0x90] sm:$0xff]
        %v2855 = vld [vmem:[%s2835 + $0x98] sm:$0xff]
        %v2856 = vld [vmem:[%s2835 + $0xa0] sm:$0xff]
        %v2857 = vld [vmem:[%s2835 + $0xa8] sm:$0xff]
        %v2858 = vld [vmem:[%s2835 + $0xb0] sm:$0xff]
        %v2859 = vld [vmem:[%s2835 + $0xb8] sm:$0xff]
        %v2860 = vld [vmem:[%s2835 + $0xc0] sm:$0xff]
        %v2861 = vld [vmem:[%s2835 + $0xc8] sm:$0xff]
        %v2862 = vld [vmem:[%s2835 + $0xd0] sm:$0xff]
        %v2863 = vld [vmem:[%s2835 + $0xd8] sm:$0xff]
        %v2864 = vld [vmem:[%s2835 + $0xe0] sm:$0xff]
        %v2865 = vld [vmem:[%s2835 + $0xe8] sm:$0xff]
        %v2866 = vld [vmem:[%s2835 + $0xf0] sm:$0xff]
        %v2867 = vld [vmem:[%s2835 + $0xf8] sm:$0xff]
        %2868 = vmatprep.subr.mxu0 0.0
        %2869 = vmatpush1.msra.mxu0 %v2851
        %2870 = vmatprep.subr.mxu0 0.0
        %2871 = vmatpush1.msra.mxu0 %v2850
        %2872 = vmatprep.subr.mxu0 0.0
        %2873 = vmatpush1.msra.mxu0 %v2849
        %2874 = vmatprep.subr.mxu0 0.0
        %2875 = vmatpush1.msra.mxu0 %v2848
        %2876 = vmatprep.subr.mxu0 0.0
        %2877 = vmatpush1.msra.mxu0 %v2847
        %2878 = vmatprep.subr.mxu0 0.0
        %2879 = vmatpush1.msra.mxu0 %v2846
        %2880 = vmatprep.subr.mxu0 0.0
        %2881 = vmatpush1.msra.mxu0 %v2845
        %2882 = vmatprep.subr.mxu0 0.0
        %2883 = vmatpush1.msra.mxu0 %v2844
        %2884 = vmatprep.subr.mxu0 0.0
        %2885 = vmatpush1.msra.mxu0 %v2843
        %2886 = vmatprep.subr.mxu0 0.0
        %2887 = vmatpush1.msra.mxu0 %v2842
        %2888 = vmatprep.subr.mxu0 0.0
        %2889 = vmatpush1.msra.mxu0 %v2841
        %2890 = vmatprep.subr.mxu0 0.0
        %2891 = vmatpush1.msra.mxu0 %v2840
        %2892 = vmatprep.subr.mxu0 0.0
        %2893 = vmatpush1.msra.mxu0 %v2839
        %2894 = vmatprep.subr.mxu0 0.0
        %2895 = vmatpush1.msra.mxu0 %v2838
        %2896 = vmatprep.subr.mxu0 0.0
        %2897 = vmatpush1.msra.mxu0 %v2837
        %2898 = vmatprep.subr.mxu0 0.0
        %2899 = vmatpush1.msra.mxu0 %v2836
        %2900 = vmatprep.subr.mxu0 0.0
        %2901 = vmatpush2.msra.mxu0 %v2867
        %2902 = vmatprep.subr.mxu0 0.0
        %2903 = vmatpush2.msra.mxu0 %v2866
        %2904 = vmatprep.subr.mxu0 0.0
        %2905 = vmatpush2.msra.mxu0 %v2865
        %2906 = vmatprep.subr.mxu0 0.0
        %2907 = vmatpush2.msra.mxu0 %v2864
        %2908 = vmatprep.subr.mxu0 0.0
        %2909 = vmatpush2.msra.mxu0 %v2863
        %2910 = vmatprep.subr.mxu0 0.0
        %2911 = vmatpush2.msra.mxu0 %v2862
        %2912 = vmatprep.subr.mxu0 0.0
        %2913 = vmatpush2.msra.mxu0 %v2861
        %2914 = vmatprep.subr.mxu0 0.0
        %2915 = vmatpush2.msra.mxu0 %v2860
        %2916 = vmatprep.subr.mxu0 0.0
        %2917 = vmatpush2.msra.mxu0 %v2859
        %2918 = vmatprep.subr.mxu0 0.0
        %2919 = vmatpush2.msra.mxu0 %v2858
        %2920 = vmatprep.subr.mxu0 0.0
        %2921 = vmatpush2.msra.mxu0 %v2857
        %2922 = vmatprep.subr.mxu0 0.0
        %2923 = vmatpush2.msra.mxu0 %v2856
        %2924 = vmatprep.subr.mxu0 0.0
        %2925 = vmatpush2.msra.mxu0 %v2855
        %2926 = vmatprep.subr.mxu0 0.0
        %2927 = vmatpush2.msra.mxu0 %v2854
        %2928 = vmatprep.subr.mxu0 0.0
        %2929 = vmatpush2.msra.mxu0 %v2853
        %2930 = vmatprep.subr.mxu0 0.0
        %2931 = vmatpush2.msra.mxu0 %v2852
        %2932 = vmatprep.mubr.f32.mxu0 %v2725
        %2933 = vmatmul.mubr.f32.gmra.mxu0 %v2724
        %v2934 = vpop.f32.mrf.mxu0
        %v2935 = vadd.f32 0.0, %v2934
        %v2936 = vpop.f32.mrf.mxu0
        %2937 = vmatprep.mubr.f32.mxu0 %v2727
        %2938 = vmatmul.mubr.f32.gmra.mxu0 %v2726
        %v2939 = vpop.f32.mrf.mxu0
        %v2940 = vadd.f32 0.0, %v2939
        %v2941 = vpop.f32.mrf.mxu0
        %2942 = vdwg.mxu0
        %v2943 = vmax.f32 %v2827, %v2935
        %v2944 = vmax.f32 %v2832, %v2940
        %s2945 = scalar_lea.vmem [#allocation7], 512
        %v2946 = vld [vmem:[%s2945] sm:$0xff]
        %v2947 = vld [vmem:[%s2945 + $0x8] sm:$0xff]
        %v2948 = vld [vmem:[%s2945 + $0x10] sm:$0xff]
        %v2949 = vld [vmem:[%s2945 + $0x18] sm:$0xff]
        %v2950 = vld [vmem:[%s2945 + $0x20] sm:$0xff]
        %v2951 = vld [vmem:[%s2945 + $0x28] sm:$0xff]
        %v2952 = vld [vmem:[%s2945 + $0x30] sm:$0xff]
        %v2953 = vld [vmem:[%s2945 + $0x38] sm:$0xff]
        %v2954 = vld [vmem:[%s2945 + $0x40] sm:$0xff]
        %v2955 = vld [vmem:[%s2945 + $0x48] sm:$0xff]
        %v2956 = vld [vmem:[%s2945 + $0x50] sm:$0xff]
        %v2957 = vld [vmem:[%s2945 + $0x58] sm:$0xff]
        %v2958 = vld [vmem:[%s2945 + $0x60] sm:$0xff]
        %v2959 = vld [vmem:[%s2945 + $0x68] sm:$0xff]
        %v2960 = vld [vmem:[%s2945 + $0x70] sm:$0xff]
        %v2961 = vld [vmem:[%s2945 + $0x78] sm:$0xff]
        %v2962 = vld [vmem:[%s2945 + $0x80] sm:$0xff]
        %v2963 = vld [vmem:[%s2945 + $0x88] sm:$0xff]
        %v2964 = vld [vmem:[%s2945 + $0x90] sm:$0xff]
        %v2965 = vld [vmem:[%s2945 + $0x98] sm:$0xff]
        %v2966 = vld [vmem:[%s2945 + $0xa0] sm:$0xff]
        %v2967 = vld [vmem:[%s2945 + $0xa8] sm:$0xff]
        %v2968 = vld [vmem:[%s2945 + $0xb0] sm:$0xff]
        %v2969 = vld [vmem:[%s2945 + $0xb8] sm:$0xff]
        %v2970 = vld [vmem:[%s2945 + $0xc0] sm:$0xff]
        %v2971 = vld [vmem:[%s2945 + $0xc8] sm:$0xff]
        %v2972 = vld [vmem:[%s2945 + $0xd0] sm:$0xff]
        %v2973 = vld [vmem:[%s2945 + $0xd8] sm:$0xff]
        %v2974 = vld [vmem:[%s2945 + $0xe0] sm:$0xff]
        %v2975 = vld [vmem:[%s2945 + $0xe8] sm:$0xff]
        %v2976 = vld [vmem:[%s2945 + $0xf0] sm:$0xff]
        %v2977 = vld [vmem:[%s2945 + $0xf8] sm:$0xff]
        %2978 = vmatprep.subr.mxu0 0.0
        %2979 = vmatpush1.msra.mxu0 %v2961
        %2980 = vmatprep.subr.mxu0 0.0
        %2981 = vmatpush1.msra.mxu0 %v2960
        %2982 = vmatprep.subr.mxu0 0.0
        %2983 = vmatpush1.msra.mxu0 %v2959
        %2984 = vmatprep.subr.mxu0 0.0
        %2985 = vmatpush1.msra.mxu0 %v2958
        %2986 = vmatprep.subr.mxu0 0.0
        %2987 = vmatpush1.msra.mxu0 %v2957
        %2988 = vmatprep.subr.mxu0 0.0
        %2989 = vmatpush1.msra.mxu0 %v2956
        %2990 = vmatprep.subr.mxu0 0.0
        %2991 = vmatpush1.msra.mxu0 %v2955
        %2992 = vmatprep.subr.mxu0 0.0
        %2993 = vmatpush1.msra.mxu0 %v2954
        %2994 = vmatprep.subr.mxu0 0.0
        %2995 = vmatpush1.msra.mxu0 %v2953
        %2996 = vmatprep.subr.mxu0 0.0
        %2997 = vmatpush1.msra.mxu0 %v2952
        %2998 = vmatprep.subr.mxu0 0.0
        %2999 = vmatpush1.msra.mxu0 %v2951
        %3000 = vmatprep.subr.mxu0 0.0
        %3001 = vmatpush1.msra.mxu0 %v2950
        %3002 = vmatprep.subr.mxu0 0.0
        %3003 = vmatpush1.msra.mxu0 %v2949
        %3004 = vmatprep.subr.mxu0 0.0
        %3005 = vmatpush1.msra.mxu0 %v2948
        %3006 = vmatprep.subr.mxu0 0.0
        %3007 = vmatpush1.msra.mxu0 %v2947
        %3008 = vmatprep.subr.mxu0 0.0
        %3009 = vmatpush1.msra.mxu0 %v2946
        %3010 = vmatprep.subr.mxu0 0.0
        %3011 = vmatpush2.msra.mxu0 %v2977
        %3012 = vmatprep.subr.mxu0 0.0
        %3013 = vmatpush2.msra.mxu0 %v2976
        %3014 = vmatprep.subr.mxu0 0.0
        %3015 = vmatpush2.msra.mxu0 %v2975
        %3016 = vmatprep.subr.mxu0 0.0
        %3017 = vmatpush2.msra.mxu0 %v2974
        %3018 = vmatprep.subr.mxu0 0.0
        %3019 = vmatpush2.msra.mxu0 %v2973
        %3020 = vmatprep.subr.mxu0 0.0
        %3021 = vmatpush2.msra.mxu0 %v2972
        %3022 = vmatprep.subr.mxu0 0.0
        %3023 = vmatpush2.msra.mxu0 %v2971
        %3024 = vmatprep.subr.mxu0 0.0
        %3025 = vmatpush2.msra.mxu0 %v2970
        %3026 = vmatprep.subr.mxu0 0.0
        %3027 = vmatpush2.msra.mxu0 %v2969
        %3028 = vmatprep.subr.mxu0 0.0
        %3029 = vmatpush2.msra.mxu0 %v2968
        %3030 = vmatprep.subr.mxu0 0.0
        %3031 = vmatpush2.msra.mxu0 %v2967
        %3032 = vmatprep.subr.mxu0 0.0
        %3033 = vmatpush2.msra.mxu0 %v2966
        %3034 = vmatprep.subr.mxu0 0.0
        %3035 = vmatpush2.msra.mxu0 %v2965
        %3036 = vmatprep.subr.mxu0 0.0
        %3037 = vmatpush2.msra.mxu0 %v2964
        %3038 = vmatprep.subr.mxu0 0.0
        %3039 = vmatpush2.msra.mxu0 %v2963
        %3040 = vmatprep.subr.mxu0 0.0
        %3041 = vmatpush2.msra.mxu0 %v2962
        %3042 = vmatprep.mubr.f32.mxu0 %v2725
        %3043 = vmatmul.mubr.f32.gmra.mxu0 %v2724
        %v3044 = vpop.f32.mrf.mxu0
        %v3045 = vadd.f32 0.0, %v3044
        %v3046 = vpop.f32.mrf.mxu0
        %3047 = vmatprep.mubr.f32.mxu0 %v2727
        %3048 = vmatmul.mubr.f32.gmra.mxu0 %v2726
        %v3049 = vpop.f32.mrf.mxu0
        %v3050 = vadd.f32 0.0, %v3049
        %v3051 = vpop.f32.mrf.mxu0
        %3052 = vdwg.mxu0
        %v3053 = vmax.f32 %v2943, %v3045
        %v3054 = vmax.f32 %v2944, %v3050
        %s3055 = scalar_lea.vmem [#allocation7], 768
        %v3056 = vld [vmem:[%s3055] sm:$0xff]
        %v3057 = vld [vmem:[%s3055 + $0x8] sm:$0xff]
        %v3058 = vld [vmem:[%s3055 + $0x10] sm:$0xff]
        %v3059 = vld [vmem:[%s3055 + $0x18] sm:$0xff]
        %v3060 = vld [vmem:[%s3055 + $0x20] sm:$0xff]
        %v3061 = vld [vmem:[%s3055 + $0x28] sm:$0xff]
        %v3062 = vld [vmem:[%s3055 + $0x30] sm:$0xff]
        %v3063 = vld [vmem:[%s3055 + $0x38] sm:$0xff]
        %v3064 = vld [vmem:[%s3055 + $0x40] sm:$0xff]
        %v3065 = vld [vmem:[%s3055 + $0x48] sm:$0xff]
        %v3066 = vld [vmem:[%s3055 + $0x50] sm:$0xff]
        %v3067 = vld [vmem:[%s3055 + $0x58] sm:$0xff]
        %v3068 = vld [vmem:[%s3055 + $0x60] sm:$0xff]
        %v3069 = vld [vmem:[%s3055 + $0x68] sm:$0xff]
        %v3070 = vld [vmem:[%s3055 + $0x70] sm:$0xff]
        %v3071 = vld [vmem:[%s3055 + $0x78] sm:$0xff]
        %v3072 = vld [vmem:[%s3055 + $0x80] sm:$0xff]
        %v3073 = vld [vmem:[%s3055 + $0x88] sm:$0xff]
        %v3074 = vld [vmem:[%s3055 + $0x90] sm:$0xff]
        %v3075 = vld [vmem:[%s3055 + $0x98] sm:$0xff]
        %v3076 = vld [vmem:[%s3055 + $0xa0] sm:$0xff]
        %v3077 = vld [vmem:[%s3055 + $0xa8] sm:$0xff]
        %v3078 = vld [vmem:[%s3055 + $0xb0] sm:$0xff]
        %v3079 = vld [vmem:[%s3055 + $0xb8] sm:$0xff]
        %v3080 = vld [vmem:[%s3055 + $0xc0] sm:$0xff]
        %v3081 = vld [vmem:[%s3055 + $0xc8] sm:$0xff]
        %v3082 = vld [vmem:[%s3055 + $0xd0] sm:$0xff]
        %v3083 = vld [vmem:[%s3055 + $0xd8] sm:$0xff]
        %v3084 = vld [vmem:[%s3055 + $0xe0] sm:$0xff]
        %v3085 = vld [vmem:[%s3055 + $0xe8] sm:$0xff]
        %v3086 = vld [vmem:[%s3055 + $0xf0] sm:$0xff]
        %v3087 = vld [vmem:[%s3055 + $0xf8] sm:$0xff]
        %3088 = vmatprep.subr.mxu0 0.0
        %3089 = vmatpush1.msra.mxu0 %v3071
        %3090 = vmatprep.subr.mxu0 0.0
        %3091 = vmatpush1.msra.mxu0 %v3070
        %3092 = vmatprep.subr.mxu0 0.0
        %3093 = vmatpush1.msra.mxu0 %v3069
        %3094 = vmatprep.subr.mxu0 0.0
        %3095 = vmatpush1.msra.mxu0 %v3068
        %3096 = vmatprep.subr.mxu0 0.0
        %3097 = vmatpush1.msra.mxu0 %v3067
        %3098 = vmatprep.subr.mxu0 0.0
        %3099 = vmatpush1.msra.mxu0 %v3066
        %3100 = vmatprep.subr.mxu0 0.0
        %3101 = vmatpush1.msra.mxu0 %v3065
        %3102 = vmatprep.subr.mxu0 0.0
        %3103 = vmatpush1.msra.mxu0 %v3064
        %3104 = vmatprep.subr.mxu0 0.0
        %3105 = vmatpush1.msra.mxu0 %v3063
        %3106 = vmatprep.subr.mxu0 0.0
        %3107 = vmatpush1.msra.mxu0 %v3062
        %3108 = vmatprep.subr.mxu0 0.0
        %3109 = vmatpush1.msra.mxu0 %v3061
        %3110 = vmatprep.subr.mxu0 0.0
        %3111 = vmatpush1.msra.mxu0 %v3060
        %3112 = vmatprep.subr.mxu0 0.0
        %3113 = vmatpush1.msra.mxu0 %v3059
        %3114 = vmatprep.subr.mxu0 0.0
        %3115 = vmatpush1.msra.mxu0 %v3058
        %3116 = vmatprep.subr.mxu0 0.0
        %3117 = vmatpush1.msra.mxu0 %v3057
        %3118 = vmatprep.subr.mxu0 0.0
        %3119 = vmatpush1.msra.mxu0 %v3056
        %3120 = vmatprep.subr.mxu0 0.0
        %3121 = vmatpush2.msra.mxu0 %v3087
        %3122 = vmatprep.subr.mxu0 0.0
        %3123 = vmatpush2.msra.mxu0 %v3086
        %3124 = vmatprep.subr.mxu0 0.0
        %3125 = vmatpush2.msra.mxu0 %v3085
        %3126 = vmatprep.subr.mxu0 0.0
        %3127 = vmatpush2.msra.mxu0 %v3084
        %3128 = vmatprep.subr.mxu0 0.0
        %3129 = vmatpush2.msra.mxu0 %v3083
        %3130 = vmatprep.subr.mxu0 0.0
        %3131 = vmatpush2.msra.mxu0 %v3082
        %3132 = vmatprep.subr.mxu0 0.0
        %3133 = vmatpush2.msra.mxu0 %v3081
        %3134 = vmatprep.subr.mxu0 0.0
        %3135 = vmatpush2.msra.mxu0 %v3080
        %3136 = vmatprep.subr.mxu0 0.0
        %3137 = vmatpush2.msra.mxu0 %v3079
        %3138 = vmatprep.subr.mxu0 0.0
        %3139 = vmatpush2.msra.mxu0 %v3078
        %3140 = vmatprep.subr.mxu0 0.0
        %3141 = vmatpush2.msra.mxu0 %v3077
        %3142 = vmatprep.subr.mxu0 0.0
        %3143 = vmatpush2.msra.mxu0 %v3076
        %3144 = vmatprep.subr.mxu0 0.0
        %3145 = vmatpush2.msra.mxu0 %v3075
        %3146 = vmatprep.subr.mxu0 0.0
        %3147 = vmatpush2.msra.mxu0 %v3074
        %3148 = vmatprep.subr.mxu0 0.0
        %3149 = vmatpush2.msra.mxu0 %v3073
        %3150 = vmatprep.subr.mxu0 0.0
        %3151 = vmatpush2.msra.mxu0 %v3072
        %3152 = vmatprep.mubr.f32.mxu0 %v2725
        %3153 = vmatmul.mubr.f32.gmra.mxu0 %v2724
        %v3154 = vpop.f32.mrf.mxu0
        %v3155 = vadd.f32 0.0, %v3154
        %v3156 = vpop.f32.mrf.mxu0
        %3157 = vmatprep.mubr.f32.mxu0 %v2727
        %3158 = vmatmul.mubr.f32.gmra.mxu0 %v2726
        %v3159 = vpop.f32.mrf.mxu0
        %v3160 = vadd.f32 0.0, %v3159
        %v3161 = vpop.f32.mrf.mxu0
        %3162 = vdwg.mxu0
        %v3163 = vmax.f32 %v3053, %v3155
        %v3164 = vmax.f32 %v3054, %v3160
        %v3165 = vld [vmem:[#allocation4] sm:$0xff]
        %v3166 = vld [vmem:[#allocation4 + $0x8] sm:$0xff]
        %v3167 = vld [vmem:[#allocation4 + $0x10] sm:$0xff]
        %v3168 = vld [vmem:[#allocation4 + $0x18] sm:$0xff]
        %v3169 = vld [vmem:[#allocation4 + $0x20] sm:$0xff]
        %v3170 = vld [vmem:[#allocation4 + $0x28] sm:$0xff]
        %v3171 = vld [vmem:[#allocation4 + $0x30] sm:$0xff]
        %v3172 = vld [vmem:[#allocation4 + $0x38] sm:$0xff]
        %vm3173 = vcmask 523264
        %v3175 = vsel %vm3173, %v3163, 0
        %v3178 = vsel %vm3173, %v3164, 0
        %3180 = vmatprep.subr.mxu0 0.0
        %3181 = vmatpush1.msra.mxu0 0.0
        %3182 = vmatprep.subr.mxu0 0.0
        %3183 = vmatpush1.msra.mxu0 0.0
        %3184 = vmatprep.subr.mxu0 0.0
        %3185 = vmatpush1.msra.mxu0 0.0
        %3186 = vmatprep.subr.mxu0 0.0
        %3187 = vmatpush1.msra.mxu0 0.0
        %3188 = vmatprep.subr.mxu0 0.0
        %3189 = vmatpush1.msra.mxu0 0.0
        %3190 = vmatprep.subr.mxu0 0.0
        %3191 = vmatpush1.msra.mxu0 0.0
        %3192 = vmatprep.subr.mxu0 0.0
        %3193 = vmatpush1.msra.mxu0 0.0
        %3194 = vmatprep.subr.mxu0 0.0
        %3195 = vmatpush1.msra.mxu0 0.0
        %3196 = vmatprep.subr.mxu0 0.0
        %3197 = vmatpush1.msra.mxu0 %v3172
        %3198 = vmatprep.subr.mxu0 0.0
        %3199 = vmatpush1.msra.mxu0 %v3171
        %3200 = vmatprep.subr.mxu0 0.0
        %3201 = vmatpush1.msra.mxu0 %v3170
        %3202 = vmatprep.subr.mxu0 0.0
        %3203 = vmatpush1.msra.mxu0 %v3169
        %3204 = vmatprep.subr.mxu0 0.0
        %3205 = vmatpush1.msra.mxu0 %v3168
        %3206 = vmatprep.subr.mxu0 0.0
        %3207 = vmatpush1.msra.mxu0 %v3167
        %3208 = vmatprep.subr.mxu0 0.0
        %3209 = vmatpush1.msra.mxu0 %v3166
        %3210 = vmatprep.subr.mxu0 0.0
        %3211 = vmatpush1.msra.mxu0 %v3165
        %3212 = vmatprep.subr.mxu0 0.0
        %3213 = vmatpush2.msra.mxu0 0.0
        %3214 = vmatprep.subr.mxu0 0.0
        %3215 = vmatpush2.msra.mxu0 0.0
        %3216 = vmatprep.subr.mxu0 0.0
        %3217 = vmatpush2.msra.mxu0 0.0
        %3218 = vmatprep.subr.mxu0 0.0
        %3219 = vmatpush2.msra.mxu0 0.0
        %3220 = vmatprep.subr.mxu0 0.0
        %3221 = vmatpush2.msra.mxu0 0.0
        %3222 = vmatprep.subr.mxu0 0.0
        %3223 = vmatpush2.msra.mxu0 0.0
        %3224 = vmatprep.subr.mxu0 0.0
        %3225 = vmatpush2.msra.mxu0 0.0
        %3226 = vmatprep.subr.mxu0 0.0
        %3227 = vmatpush2.msra.mxu0 0.0
        %3228 = vmatprep.subr.mxu0 0.0
        %3229 = vmatpush2.msra.mxu0 0.0
        %3230 = vmatprep.subr.mxu0 0.0
        %3231 = vmatpush2.msra.mxu0 0.0
        %3232 = vmatprep.subr.mxu0 0.0
        %3233 = vmatpush2.msra.mxu0 0.0
        %3234 = vmatprep.subr.mxu0 0.0
        %3235 = vmatpush2.msra.mxu0 0.0
        %3236 = vmatprep.subr.mxu0 0.0
        %3237 = vmatpush2.msra.mxu0 0.0
        %3238 = vmatprep.subr.mxu0 0.0
        %3239 = vmatpush2.msra.mxu0 0.0
        %3240 = vmatprep.subr.mxu0 0.0
        %3241 = vmatpush2.msra.mxu0 0.0
        %3242 = vmatprep.subr.mxu0 0.0
        %3243 = vmatpush2.msra.mxu0 0.0
        %3244 = vmatprep.mubr.f32.mxu0 0.0
        %3245 = vmatmul.mubr.f32.gmra.mxu0 %v3175
        %v3246 = vpop.f32.mrf.mxu0
        %v3247 = vadd.f32 0.0, %v3246
        %v3248 = vpop.f32.mrf.mxu0
        %3249 = vmatprep.mubr.f32.mxu0 0.0
        %3250 = vmatmul.mubr.f32.gmra.mxu0 %v3178
        %v3251 = vpop.f32.mrf.mxu0
        %v3252 = vadd.f32 0.0, %v3251
        %v3253 = vpop.f32.mrf.mxu0
        %3254 = vdwg.mxu0
        %v3255 = vld [vmem:[%s3] sm:$0xff]
        %v3256 = vld [vmem:[%s3 + $0x8] sm:$0xff]
        %v3257 = vld [vmem:[%s3 + $0x10] sm:$0xff]
        %v3258 = vld [vmem:[%s3 + $0x18] sm:$0xff]
        %s3259 = scalar_lea.vmem [#allocation4], 64
        %v3260 = vld [vmem:[%s3259] sm:$0xff]
        %v3261 = vld [vmem:[%s3259 + $0x8] sm:$0xff]
        %v3262 = vld [vmem:[%s3259 + $0x10] sm:$0xff]
        %v3263 = vld [vmem:[%s3259 + $0x18] sm:$0xff]
        %v3264 = vld [vmem:[%s3259 + $0x20] sm:$0xff]
        %v3265 = vld [vmem:[%s3259 + $0x28] sm:$0xff]
        %v3266 = vld [vmem:[%s3259 + $0x30] sm:$0xff]
        %v3267 = vld [vmem:[%s3259 + $0x38] sm:$0xff]
        %3268 = vmatprep.subr.mxu0 0.0
        %3269 = vmatpush1.msra.mxu0 0.0
        %3270 = vmatprep.subr.mxu0 0.0
        %3271 = vmatpush1.msra.mxu0 0.0
        %3272 = vmatprep.subr.mxu0 0.0
        %3273 = vmatpush1.msra.mxu0 0.0
        %3274 = vmatprep.subr.mxu0 0.0
        %3275 = vmatpush1.msra.mxu0 0.0
        %3276 = vmatprep.subr.mxu0 0.0
        %3277 = vmatpush1.msra.mxu0 0.0
        %3278 = vmatprep.subr.mxu0 0.0
        %3279 = vmatpush1.msra.mxu0 0.0
        %3280 = vmatprep.subr.mxu0 0.0
        %3281 = vmatpush1.msra.mxu0 0.0
        %3282 = vmatprep.subr.mxu0 0.0
        %3283 = vmatpush1.msra.mxu0 0.0
        %3284 = vmatprep.subr.mxu0 0.0
        %3285 = vmatpush1.msra.mxu0 %v3267
        %3286 = vmatprep.subr.mxu0 0.0
        %3287 = vmatpush1.msra.mxu0 %v3266
        %3288 = vmatprep.subr.mxu0 0.0
        %3289 = vmatpush1.msra.mxu0 %v3265
        %3290 = vmatprep.subr.mxu0 0.0
        %3291 = vmatpush1.msra.mxu0 %v3264
        %3292 = vmatprep.subr.mxu0 0.0
        %3293 = vmatpush1.msra.mxu0 %v3263
        %3294 = vmatprep.subr.mxu0 0.0
        %3295 = vmatpush1.msra.mxu0 %v3262
        %3296 = vmatprep.subr.mxu0 0.0
        %3297 = vmatpush1.msra.mxu0 %v3261
        %3298 = vmatprep.subr.mxu0 0.0
        %3299 = vmatpush1.msra.mxu0 %v3260
        %3300 = vmatprep.subr.mxu0 0.0
        %3301 = vmatpush2.msra.mxu0 0.0
        %3302 = vmatprep.subr.mxu0 0.0
        %3303 = vmatpush2.msra.mxu0 0.0
        %3304 = vmatprep.subr.mxu0 0.0
        %3305 = vmatpush2.msra.mxu0 0.0
        %3306 = vmatprep.subr.mxu0 0.0
        %3307 = vmatpush2.msra.mxu0 0.0
        %3308 = vmatprep.subr.mxu0 0.0
        %3309 = vmatpush2.msra.mxu0 0.0
        %3310 = vmatprep.subr.mxu0 0.0
        %3311 = vmatpush2.msra.mxu0 0.0
        %3312 = vmatprep.subr.mxu0 0.0
        %3313 = vmatpush2.msra.mxu0 0.0
        %3314 = vmatprep.subr.mxu0 0.0
        %3315 = vmatpush2.msra.mxu0 0.0
        %3316 = vmatprep.subr.mxu0 0.0
        %3317 = vmatpush2.msra.mxu0 0.0
        %3318 = vmatprep.subr.mxu0 0.0
        %3319 = vmatpush2.msra.mxu0 0.0
        %3320 = vmatprep.subr.mxu0 0.0
        %3321 = vmatpush2.msra.mxu0 0.0
        %3322 = vmatprep.subr.mxu0 0.0
        %3323 = vmatpush2.msra.mxu0 0.0
        %3324 = vmatprep.subr.mxu0 0.0
        %3325 = vmatpush2.msra.mxu0 0.0
        %3326 = vmatprep.subr.mxu0 0.0
        %3327 = vmatpush2.msra.mxu0 0.0
        %3328 = vmatprep.subr.mxu0 0.0
        %3329 = vmatpush2.msra.mxu0 0.0
        %3330 = vmatprep.subr.mxu0 0.0
        %3331 = vmatpush2.msra.mxu0 0.0
        %3332 = vmatprep.mubr.f32.mxu0 0.0
        %3333 = vmatmul.mubr.f32.gmra.mxu0 %v3175
        %v3334 = vpop.f32.mrf.mxu0
        %v3335 = vadd.f32 0.0, %v3334
        %v3336 = vpop.f32.mrf.mxu0
        %3337 = vmatprep.mubr.f32.mxu0 0.0
        %3338 = vmatmul.mubr.f32.gmra.mxu0 %v3178
        %v3339 = vpop.f32.mrf.mxu0
        %v3340 = vadd.f32 0.0, %v3339
        %v3341 = vpop.f32.mrf.mxu0
        %3342 = vdwg.mxu0
        %s3343 = scalar_lea.vmem %s3, 32
        %v3344 = vld [vmem:[%s3343] sm:$0xff]
        %v3345 = vld [vmem:[%s3343 + $0x8] sm:$0xff]
        %v3346 = vld [vmem:[%s3343 + $0x10] sm:$0xff]
        %v3347 = vld [vmem:[%s3343 + $0x18] sm:$0xff]
        %vm3348 = vcmask 130048
        %v3350 = vsel %vm3348, %v3344, 0
        %v3353 = vsel %vm3348, %v3345, 0
        %v3356 = vsel %vm3348, %v3346, 0
        %v3359 = vsel %vm3348, %v3347, 0
        %3361 = vmatprep.subr.mxu0 0.0
        %3362 = vmatpush1.msra.mxu0 0.0
        %3363 = vmatprep.subr.mxu0 0.0
        %3364 = vmatpush1.msra.mxu0 0.0
        %3365 = vmatprep.subr.mxu0 0.0
        %3366 = vmatpush1.msra.mxu0 0.0
        %3367 = vmatprep.subr.mxu0 0.0
        %3368 = vmatpush1.msra.mxu0 0.0
        %3369 = vmatprep.subr.mxu0 0.0
        %3370 = vmatpush1.msra.mxu0 0.0
        %3371 = vmatprep.subr.mxu0 0.0
        %3372 = vmatpush1.msra.mxu0 0.0
        %3373 = vmatprep.subr.mxu0 0.0
        %3374 = vmatpush1.msra.mxu0 0.0
        %3375 = vmatprep.subr.mxu0 0.0
        %3376 = vmatpush1.msra.mxu0 0.0
        %3377 = vmatprep.subr.mxu0 0.0
        %3378 = vmatpush1.msra.mxu0 0.0
        %3379 = vmatprep.subr.mxu0 0.0
        %3380 = vmatpush1.msra.mxu0 0.0
        %3381 = vmatprep.subr.mxu0 0.0
        %3382 = vmatpush1.msra.mxu0 0.0
        %3383 = vmatprep.subr.mxu0 0.0
        %3384 = vmatpush1.msra.mxu0 0.0
        %3385 = vmatprep.subr.mxu0 0.0
        %3386 = vmatpush1.msra.mxu0 0.0
        %3387 = vmatprep.subr.mxu0 0.0
        %3388 = vmatpush1.msra.mxu0 0.0
        %3389 = vmatprep.subr.mxu0 0.0
        %3390 = vmatpush1.msra.mxu0 %v3340
        %3391 = vmatprep.subr.mxu0 0.0
        %3392 = vmatpush1.msra.mxu0 %v3335
        %3393 = vmatprep.subr.mxu0 0.0
        %3394 = vmatpush2.msra.mxu0 0.0
        %3395 = vmatprep.subr.mxu0 0.0
        %3396 = vmatpush2.msra.mxu0 0.0
        %3397 = vmatprep.subr.mxu0 0.0
        %3398 = vmatpush2.msra.mxu0 0.0
        %3399 = vmatprep.subr.mxu0 0.0
        %3400 = vmatpush2.msra.mxu0 0.0
        %3401 = vmatprep.subr.mxu0 0.0
        %3402 = vmatpush2.msra.mxu0 0.0
        %3403 = vmatprep.subr.mxu0 0.0
        %3404 = vmatpush2.msra.mxu0 0.0
        %3405 = vmatprep.subr.mxu0 0.0
        %3406 = vmatpush2.msra.mxu0 0.0
        %3407 = vmatprep.subr.mxu0 0.0
        %3408 = vmatpush2.msra.mxu0 0.0
        %3409 = vmatprep.subr.mxu0 0.0
        %3410 = vmatpush2.msra.mxu0 0.0
        %3411 = vmatprep.subr.mxu0 0.0
        %3412 = vmatpush2.msra.mxu0 0.0
        %3413 = vmatprep.subr.mxu0 0.0
        %3414 = vmatpush2.msra.mxu0 0.0
        %3415 = vmatprep.subr.mxu0 0.0
        %3416 = vmatpush2.msra.mxu0 0.0
        %3417 = vmatprep.subr.mxu0 0.0
        %3418 = vmatpush2.msra.mxu0 0.0
        %3419 = vmatprep.subr.mxu0 0.0
        %3420 = vmatpush2.msra.mxu0 0.0
        %3421 = vmatprep.subr.mxu0 0.0
        %3422 = vmatpush2.msra.mxu0 0.0
        %3423 = vmatprep.subr.mxu0 0.0
        %3424 = vmatpush2.msra.mxu0 0.0
        %3425 = vmatprep.mubr.f32.mxu0 0.0
        %3426 = vmatmul.mubr.f32.gmra.mxu0 %v3350
        %v3427 = vpop.f32.mrf.mxu0
        %v3428 = vadd.f32 0.0, %v3427
        %v3429 = vpop.f32.mrf.mxu0
        %3430 = vmatprep.mubr.f32.mxu0 0.0
        %3431 = vmatmul.mubr.f32.gmra.mxu0 %v3353
        %v3432 = vpop.f32.mrf.mxu0
        %v3433 = vadd.f32 0.0, %v3432
        %v3434 = vpop.f32.mrf.mxu0
        %3435 = vmatprep.mubr.f32.mxu0 0.0
        %3436 = vmatmul.mubr.f32.gmra.mxu0 %v3356
        %v3437 = vpop.f32.mrf.mxu0
        %v3438 = vadd.f32 0.0, %v3437
        %v3439 = vpop.f32.mrf.mxu0
        %3440 = vmatprep.mubr.f32.mxu0 0.0
        %3441 = vmatmul.mubr.f32.gmra.mxu0 %v3359
        %v3442 = vpop.f32.mrf.mxu0
        %v3443 = vadd.f32 0.0, %v3442
        %v3444 = vpop.f32.mrf.mxu0
        %3445 = vdwg.mxu0
        %v3447 = vsel %vm3348, %v3255, 0
        %v3450 = vsel %vm3348, %v3256, 0
        %v3453 = vsel %vm3348, %v3257, 0
        %v3456 = vsel %vm3348, %v3258, 0
        %3458 = vmatprep.subr.mxu0 0.0
        %3459 = vmatpush1.msra.mxu0 0.0
        %3460 = vmatprep.subr.mxu0 0.0
        %3461 = vmatpush1.msra.mxu0 0.0
        %3462 = vmatprep.subr.mxu0 0.0
        %3463 = vmatpush1.msra.mxu0 0.0
        %3464 = vmatprep.subr.mxu0 0.0
        %3465 = vmatpush1.msra.mxu0 0.0
        %3466 = vmatprep.subr.mxu0 0.0
        %3467 = vmatpush1.msra.mxu0 0.0
        %3468 = vmatprep.subr.mxu0 0.0
        %3469 = vmatpush1.msra.mxu0 0.0
        %3470 = vmatprep.subr.mxu0 0.0
        %3471 = vmatpush1.msra.mxu0 0.0
        %3472 = vmatprep.subr.mxu0 0.0
        %3473 = vmatpush1.msra.mxu0 0.0
        %3474 = vmatprep.subr.mxu0 0.0
        %3475 = vmatpush1.msra.mxu0 0.0
        %3476 = vmatprep.subr.mxu0 0.0
        %3477 = vmatpush1.msra.mxu0 0.0
        %3478 = vmatprep.subr.mxu0 0.0
        %3479 = vmatpush1.msra.mxu0 0.0
        %3480 = vmatprep.subr.mxu0 0.0
        %3481 = vmatpush1.msra.mxu0 0.0
        %3482 = vmatprep.subr.mxu0 0.0
        %3483 = vmatpush1.msra.mxu0 0.0
        %3484 = vmatprep.subr.mxu0 0.0
        %3485 = vmatpush1.msra.mxu0 0.0
        %3486 = vmatprep.subr.mxu0 0.0
        %3487 = vmatpush1.msra.mxu0 %v3252
        %3488 = vmatprep.subr.mxu0 0.0
        %3489 = vmatpush1.msra.mxu0 %v3247
        %3490 = vmatprep.subr.mxu0 0.0
        %3491 = vmatpush2.msra.mxu0 0.0
        %3492 = vmatprep.subr.mxu0 0.0
        %3493 = vmatpush2.msra.mxu0 0.0
        %3494 = vmatprep.subr.mxu0 0.0
        %3495 = vmatpush2.msra.mxu0 0.0
        %3496 = vmatprep.subr.mxu0 0.0
        %3497 = vmatpush2.msra.mxu0 0.0
        %3498 = vmatprep.subr.mxu0 0.0
        %3499 = vmatpush2.msra.mxu0 0.0
        %3500 = vmatprep.subr.mxu0 0.0
        %3501 = vmatpush2.msra.mxu0 0.0
        %3502 = vmatprep.subr.mxu0 0.0
        %3503 = vmatpush2.msra.mxu0 0.0
        %3504 = vmatprep.subr.mxu0 0.0
        %3505 = vmatpush2.msra.mxu0 0.0
        %3506 = vmatprep.subr.mxu0 0.0
        %3507 = vmatpush2.msra.mxu0 0.0
        %3508 = vmatprep.subr.mxu0 0.0
        %3509 = vmatpush2.msra.mxu0 0.0
        %3510 = vmatprep.subr.mxu0 0.0
        %3511 = vmatpush2.msra.mxu0 0.0
        %3512 = vmatprep.subr.mxu0 0.0
        %3513 = vmatpush2.msra.mxu0 0.0
        %3514 = vmatprep.subr.mxu0 0.0
        %3515 = vmatpush2.msra.mxu0 0.0
        %3516 = vmatprep.subr.mxu0 0.0
        %3517 = vmatpush2.msra.mxu0 0.0
        %3518 = vmatprep.subr.mxu0 0.0
        %3519 = vmatpush2.msra.mxu0 0.0
        %3520 = vmatprep.subr.mxu0 0.0
        %3521 = vmatpush2.msra.mxu0 0.0
        %3522 = vmatprep.mubr.f32.mxu0 0.0
        %3523 = vmatmul.mubr.f32.gmra.mxu0 %v3447
        %v3524 = vpop.f32.mrf.mxu0
        %v3525 = vadd.f32 %v3428, %v3524
        %v3526 = vpop.f32.mrf.mxu0
        %3527 = vmatprep.mubr.f32.mxu0 0.0
        %3528 = vmatmul.mubr.f32.gmra.mxu0 %v3450
        %v3529 = vpop.f32.mrf.mxu0
        %v3530 = vadd.f32 %v3433, %v3529
        %v3531 = vpop.f32.mrf.mxu0
        %3532 = vmatprep.mubr.f32.mxu0 0.0
        %3533 = vmatmul.mubr.f32.gmra.mxu0 %v3453
        %v3534 = vpop.f32.mrf.mxu0
        %v3535 = vadd.f32 %v3438, %v3534
        %v3536 = vpop.f32.mrf.mxu0
        %3537 = vmatprep.mubr.f32.mxu0 0.0
        %3538 = vmatmul.mubr.f32.gmra.mxu0 %v3456
        %v3539 = vpop.f32.mrf.mxu0
        %v3540 = vadd.f32 %v3443, %v3539
        %v3541 = vpop.f32.mrf.mxu0
        %3542 = vdwg.mxu0
        %s3543 = scalar_lea.vmem [#allocation4], 128
        %v3544 = vld [vmem:[%s3543] sm:$0xff]
        %v3545 = vld [vmem:[%s3543 + $0x8] sm:$0xff]
        %v3546 = vld [vmem:[%s3543 + $0x10] sm:$0xff]
        %v3547 = vld [vmem:[%s3543 + $0x18] sm:$0xff]
        %v3548 = vld [vmem:[%s3543 + $0x20] sm:$0xff]
        %v3549 = vld [vmem:[%s3543 + $0x28] sm:$0xff]
        %v3550 = vld [vmem:[%s3543 + $0x30] sm:$0xff]
        %v3551 = vld [vmem:[%s3543 + $0x38] sm:$0xff]
        %3552 = vmatprep.subr.mxu0 0.0
        %3553 = vmatpush1.msra.mxu0 0.0
        %3554 = vmatprep.subr.mxu0 0.0
        %3555 = vmatpush1.msra.mxu0 0.0
        %3556 = vmatprep.subr.mxu0 0.0
        %3557 = vmatpush1.msra.mxu0 0.0
        %3558 = vmatprep.subr.mxu0 0.0
        %3559 = vmatpush1.msra.mxu0 0.0
        %3560 = vmatprep.subr.mxu0 0.0
        %3561 = vmatpush1.msra.mxu0 0.0
        %3562 = vmatprep.subr.mxu0 0.0
        %3563 = vmatpush1.msra.mxu0 0.0
        %3564 = vmatprep.subr.mxu0 0.0
        %3565 = vmatpush1.msra.mxu0 0.0
        %3566 = vmatprep.subr.mxu0 0.0
        %3567 = vmatpush1.msra.mxu0 0.0
        %3568 = vmatprep.subr.mxu0 0.0
        %3569 = vmatpush1.msra.mxu0 %v3551
        %3570 = vmatprep.subr.mxu0 0.0
        %3571 = vmatpush1.msra.mxu0 %v3550
        %3572 = vmatprep.subr.mxu0 0.0
        %3573 = vmatpush1.msra.mxu0 %v3549
        %3574 = vmatprep.subr.mxu0 0.0
        %3575 = vmatpush1.msra.mxu0 %v3548
        %3576 = vmatprep.subr.mxu0 0.0
        %3577 = vmatpush1.msra.mxu0 %v3547
        %3578 = vmatprep.subr.mxu0 0.0
        %3579 = vmatpush1.msra.mxu0 %v3546
        %3580 = vmatprep.subr.mxu0 0.0
        %3581 = vmatpush1.msra.mxu0 %v3545
        %3582 = vmatprep.subr.mxu0 0.0
        %3583 = vmatpush1.msra.mxu0 %v3544
        %3584 = vmatprep.subr.mxu0 0.0
        %3585 = vmatpush2.msra.mxu0 0.0
        %3586 = vmatprep.subr.mxu0 0.0
        %3587 = vmatpush2.msra.mxu0 0.0
        %3588 = vmatprep.subr.mxu0 0.0
        %3589 = vmatpush2.msra.mxu0 0.0
        %3590 = vmatprep.subr.mxu0 0.0
        %3591 = vmatpush2.msra.mxu0 0.0
        %3592 = vmatprep.subr.mxu0 0.0
        %3593 = vmatpush2.msra.mxu0 0.0
        %3594 = vmatprep.subr.mxu0 0.0
        %3595 = vmatpush2.msra.mxu0 0.0
        %3596 = vmatprep.subr.mxu0 0.0
        %3597 = vmatpush2.msra.mxu0 0.0
        %3598 = vmatprep.subr.mxu0 0.0
        %3599 = vmatpush2.msra.mxu0 0.0
        %3600 = vmatprep.subr.mxu0 0.0
        %3601 = vmatpush2.msra.mxu0 0.0
        %3602 = vmatprep.subr.mxu0 0.0
        %3603 = vmatpush2.msra.mxu0 0.0
        %3604 = vmatprep.subr.mxu0 0.0
        %3605 = vmatpush2.msra.mxu0 0.0
        %3606 = vmatprep.subr.mxu0 0.0
        %3607 = vmatpush2.msra.mxu0 0.0
        %3608 = vmatprep.subr.mxu0 0.0
        %3609 = vmatpush2.msra.mxu0 0.0
        %3610 = vmatprep.subr.mxu0 0.0
        %3611 = vmatpush2.msra.mxu0 0.0
        %3612 = vmatprep.subr.mxu0 0.0
        %3613 = vmatpush2.msra.mxu0 0.0
        %3614 = vmatprep.subr.mxu0 0.0
        %3615 = vmatpush2.msra.mxu0 0.0
        %3616 = vmatprep.mubr.f32.mxu0 0.0
        %3617 = vmatmul.mubr.f32.gmra.mxu0 %v3175
        %v3618 = vpop.f32.mrf.mxu0
        %v3619 = vadd.f32 0.0, %v3618
        %v3620 = vpop.f32.mrf.mxu0
        %3621 = vmatprep.mubr.f32.mxu0 0.0
        %3622 = vmatmul.mubr.f32.gmra.mxu0 %v3178
        %v3623 = vpop.f32.mrf.mxu0
        %v3624 = vadd.f32 0.0, %v3623
        %v3625 = vpop.f32.mrf.mxu0
        %3626 = vdwg.mxu0
        %s3627 = scalar_lea.vmem %s3, 64
        %v3628 = vld [vmem:[%s3627] sm:$0xff]
        %v3629 = vld [vmem:[%s3627 + $0x8] sm:$0xff]
        %v3630 = vld [vmem:[%s3627 + $0x10] sm:$0xff]
        %v3631 = vld [vmem:[%s3627 + $0x18] sm:$0xff]
        %v3633 = vsel %vm3348, %v3628, 0
        %v3636 = vsel %vm3348, %v3629, 0
        %v3639 = vsel %vm3348, %v3630, 0
        %v3642 = vsel %vm3348, %v3631, 0
        %3644 = vmatprep.subr.mxu0 0.0
        %3645 = vmatpush1.msra.mxu0 0.0
        %3646 = vmatprep.subr.mxu0 0.0
        %3647 = vmatpush1.msra.mxu0 0.0
        %3648 = vmatprep.subr.mxu0 0.0
        %3649 = vmatpush1.msra.mxu0 0.0
        %3650 = vmatprep.subr.mxu0 0.0
        %3651 = vmatpush1.msra.mxu0 0.0
        %3652 = vmatprep.subr.mxu0 0.0
        %3653 = vmatpush1.msra.mxu0 0.0
        %3654 = vmatprep.subr.mxu0 0.0
        %3655 = vmatpush1.msra.mxu0 0.0
        %3656 = vmatprep.subr.mxu0 0.0
        %3657 = vmatpush1.msra.mxu0 0.0
        %3658 = vmatprep.subr.mxu0 0.0
        %3659 = vmatpush1.msra.mxu0 0.0
        %3660 = vmatprep.subr.mxu0 0.0
        %3661 = vmatpush1.msra.mxu0 0.0
        %3662 = vmatprep.subr.mxu0 0.0
        %3663 = vmatpush1.msra.mxu0 0.0
        %3664 = vmatprep.subr.mxu0 0.0
        %3665 = vmatpush1.msra.mxu0 0.0
        %3666 = vmatprep.subr.mxu0 0.0
        %3667 = vmatpush1.msra.mxu0 0.0
        %3668 = vmatprep.subr.mxu0 0.0
        %3669 = vmatpush1.msra.mxu0 0.0
        %3670 = vmatprep.subr.mxu0 0.0
        %3671 = vmatpush1.msra.mxu0 0.0
        %3672 = vmatprep.subr.mxu0 0.0
        %3673 = vmatpush1.msra.mxu0 %v3624
        %3674 = vmatprep.subr.mxu0 0.0
        %3675 = vmatpush1.msra.mxu0 %v3619
        %3676 = vmatprep.subr.mxu0 0.0
        %3677 = vmatpush2.msra.mxu0 0.0
        %3678 = vmatprep.subr.mxu0 0.0
        %3679 = vmatpush2.msra.mxu0 0.0
        %3680 = vmatprep.subr.mxu0 0.0
        %3681 = vmatpush2.msra.mxu0 0.0
        %3682 = vmatprep.subr.mxu0 0.0
        %3683 = vmatpush2.msra.mxu0 0.0
        %3684 = vmatprep.subr.mxu0 0.0
        %3685 = vmatpush2.msra.mxu0 0.0
        %3686 = vmatprep.subr.mxu0 0.0
        %3687 = vmatpush2.msra.mxu0 0.0
        %3688 = vmatprep.subr.mxu0 0.0
        %3689 = vmatpush2.msra.mxu0 0.0
        %3690 = vmatprep.subr.mxu0 0.0
        %3691 = vmatpush2.msra.mxu0 0.0
        %3692 = vmatprep.subr.mxu0 0.0
        %3693 = vmatpush2.msra.mxu0 0.0
        %3694 = vmatprep.subr.mxu0 0.0
        %3695 = vmatpush2.msra.mxu0 0.0
        %3696 = vmatprep.subr.mxu0 0.0
        %3697 = vmatpush2.msra.mxu0 0.0
        %3698 = vmatprep.subr.mxu0 0.0
        %3699 = vmatpush2.msra.mxu0 0.0
        %3700 = vmatprep.subr.mxu0 0.0
        %3701 = vmatpush2.msra.mxu0 0.0
        %3702 = vmatprep.subr.mxu0 0.0
        %3703 = vmatpush2.msra.mxu0 0.0
        %3704 = vmatprep.subr.mxu0 0.0
        %3705 = vmatpush2.msra.mxu0 0.0
        %3706 = vmatprep.subr.mxu0 0.0
        %3707 = vmatpush2.msra.mxu0 0.0
        %3708 = vmatprep.mubr.f32.mxu0 0.0
        %3709 = vmatmul.mubr.f32.gmra.mxu0 %v3633
        %v3710 = vpop.f32.mrf.mxu0
        %v3711 = vadd.f32 0.0, %v3710
        %v3712 = vpop.f32.mrf.mxu0
        %3713 = vmatprep.mubr.f32.mxu0 0.0
        %3714 = vmatmul.mubr.f32.gmra.mxu0 %v3636
        %v3715 = vpop.f32.mrf.mxu0
        %v3716 = vadd.f32 0.0, %v3715
        %v3717 = vpop.f32.mrf.mxu0
        %3718 = vmatprep.mubr.f32.mxu0 0.0
        %3719 = vmatmul.mubr.f32.gmra.mxu0 %v3639
        %v3720 = vpop.f32.mrf.mxu0
        %v3721 = vadd.f32 0.0, %v3720
        %v3722 = vpop.f32.mrf.mxu0
        %3723 = vmatprep.mubr.f32.mxu0 0.0
        %3724 = vmatmul.mubr.f32.gmra.mxu0 %v3642
        %v3725 = vpop.f32.mrf.mxu0
        %v3726 = vadd.f32 0.0, %v3725
        %v3727 = vpop.f32.mrf.mxu0
        %3728 = vdwg.mxu0
        %v3729 = vadd.f32 %v3525, %v3711
        %v3730 = vadd.f32 %v3530, %v3716
        %v3731 = vadd.f32 %v3535, %v3721
        %v3732 = vadd.f32 %v3540, %v3726
        %s3733 = scalar_lea.vmem [#allocation4], 192
        %v3734 = vld [vmem:[%s3733] sm:$0xff]
        %v3735 = vld [vmem:[%s3733 + $0x8] sm:$0xff]
        %v3736 = vld [vmem:[%s3733 + $0x10] sm:$0xff]
        %v3737 = vld [vmem:[%s3733 + $0x18] sm:$0xff]
        %v3738 = vld [vmem:[%s3733 + $0x20] sm:$0xff]
        %v3739 = vld [vmem:[%s3733 + $0x28] sm:$0xff]
        %v3740 = vld [vmem:[%s3733 + $0x30] sm:$0xff]
        %v3741 = vld [vmem:[%s3733 + $0x38] sm:$0xff]
        %3742 = vmatprep.subr.mxu0 0.0
        %3743 = vmatpush1.msra.mxu0 0.0
        %3744 = vmatprep.subr.mxu0 0.0
        %3745 = vmatpush1.msra.mxu0 0.0
        %3746 = vmatprep.subr.mxu0 0.0
        %3747 = vmatpush1.msra.mxu0 0.0
        %3748 = vmatprep.subr.mxu0 0.0
        %3749 = vmatpush1.msra.mxu0 0.0
        %3750 = vmatprep.subr.mxu0 0.0
        %3751 = vmatpush1.msra.mxu0 0.0
        %3752 = vmatprep.subr.mxu0 0.0
        %3753 = vmatpush1.msra.mxu0 0.0
        %3754 = vmatprep.subr.mxu0 0.0
        %3755 = vmatpush1.msra.mxu0 0.0
        %3756 = vmatprep.subr.mxu0 0.0
        %3757 = vmatpush1.msra.mxu0 0.0
        %3758 = vmatprep.subr.mxu0 0.0
        %3759 = vmatpush1.msra.mxu0 %v3741
        %3760 = vmatprep.subr.mxu0 0.0
        %3761 = vmatpush1.msra.mxu0 %v3740
        %3762 = vmatprep.subr.mxu0 0.0
        %3763 = vmatpush1.msra.mxu0 %v3739
        %3764 = vmatprep.subr.mxu0 0.0
        %3765 = vmatpush1.msra.mxu0 %v3738
        %3766 = vmatprep.subr.mxu0 0.0
        %3767 = vmatpush1.msra.mxu0 %v3737
        %3768 = vmatprep.subr.mxu0 0.0
        %3769 = vmatpush1.msra.mxu0 %v3736
        %3770 = vmatprep.subr.mxu0 0.0
        %3771 = vmatpush1.msra.mxu0 %v3735
        %3772 = vmatprep.subr.mxu0 0.0
        %3773 = vmatpush1.msra.mxu0 %v3734
        %3774 = vmatprep.subr.mxu0 0.0
        %3775 = vmatpush2.msra.mxu0 0.0
        %3776 = vmatprep.subr.mxu0 0.0
        %3777 = vmatpush2.msra.mxu0 0.0
        %3778 = vmatprep.subr.mxu0 0.0
        %3779 = vmatpush2.msra.mxu0 0.0
        %3780 = vmatprep.subr.mxu0 0.0
        %3781 = vmatpush2.msra.mxu0 0.0
        %3782 = vmatprep.subr.mxu0 0.0
        %3783 = vmatpush2.msra.mxu0 0.0
        %3784 = vmatprep.subr.mxu0 0.0
        %3785 = vmatpush2.msra.mxu0 0.0
        %3786 = vmatprep.subr.mxu0 0.0
        %3787 = vmatpush2.msra.mxu0 0.0
        %3788 = vmatprep.subr.mxu0 0.0
        %3789 = vmatpush2.msra.mxu0 0.0
        %3790 = vmatprep.subr.mxu0 0.0
        %3791 = vmatpush2.msra.mxu0 0.0
        %3792 = vmatprep.subr.mxu0 0.0
        %3793 = vmatpush2.msra.mxu0 0.0
        %3794 = vmatprep.subr.mxu0 0.0
        %3795 = vmatpush2.msra.mxu0 0.0
        %3796 = vmatprep.subr.mxu0 0.0
        %3797 = vmatpush2.msra.mxu0 0.0
        %3798 = vmatprep.subr.mxu0 0.0
        %3799 = vmatpush2.msra.mxu0 0.0
        %3800 = vmatprep.subr.mxu0 0.0
        %3801 = vmatpush2.msra.mxu0 0.0
        %3802 = vmatprep.subr.mxu0 0.0
        %3803 = vmatpush2.msra.mxu0 0.0
        %3804 = vmatprep.subr.mxu0 0.0
        %3805 = vmatpush2.msra.mxu0 0.0
        %3806 = vmatprep.mubr.f32.mxu0 0.0
        %3807 = vmatmul.mubr.f32.gmra.mxu0 %v3175
        %v3808 = vpop.f32.mrf.mxu0
        %v3809 = vadd.f32 0.0, %v3808
        %v3810 = vpop.f32.mrf.mxu0
        %3811 = vmatprep.mubr.f32.mxu0 0.0
        %3812 = vmatmul.mubr.f32.gmra.mxu0 %v3178
        %v3813 = vpop.f32.mrf.mxu0
        %v3814 = vadd.f32 0.0, %v3813
        %v3815 = vpop.f32.mrf.mxu0
        %3816 = vdwg.mxu0
        %s3817 = scalar_lea.vmem %s3, 96
        %v3818 = vld [vmem:[%s3817] sm:$0xff]
        %v3819 = vld [vmem:[%s3817 + $0x8] sm:$0xff]
        %v3820 = vld [vmem:[%s3817 + $0x10] sm:$0xff]
        %v3821 = vld [vmem:[%s3817 + $0x18] sm:$0xff]
        %v3823 = vsel %vm3348, %v3818, 0
        %v3826 = vsel %vm3348, %v3819, 0
        %v3829 = vsel %vm3348, %v3820, 0
        %v3832 = vsel %vm3348, %v3821, 0
        %3834 = vmatprep.subr.mxu0 0.0
        %3835 = vmatpush1.msra.mxu0 0.0
        %3836 = vmatprep.subr.mxu0 0.0
        %3837 = vmatpush1.msra.mxu0 0.0
        %3838 = vmatprep.subr.mxu0 0.0
        %3839 = vmatpush1.msra.mxu0 0.0
        %3840 = vmatprep.subr.mxu0 0.0
        %3841 = vmatpush1.msra.mxu0 0.0
        %3842 = vmatprep.subr.mxu0 0.0
        %3843 = vmatpush1.msra.mxu0 0.0
        %3844 = vmatprep.subr.mxu0 0.0
        %3845 = vmatpush1.msra.mxu0 0.0
        %3846 = vmatprep.subr.mxu0 0.0
        %3847 = vmatpush1.msra.mxu0 0.0
        %3848 = vmatprep.subr.mxu0 0.0
        %3849 = vmatpush1.msra.mxu0 0.0
        %3850 = vmatprep.subr.mxu0 0.0
        %3851 = vmatpush1.msra.mxu0 0.0
        %3852 = vmatprep.subr.mxu0 0.0
        %3853 = vmatpush1.msra.mxu0 0.0
        %3854 = vmatprep.subr.mxu0 0.0
        %3855 = vmatpush1.msra.mxu0 0.0
        %3856 = vmatprep.subr.mxu0 0.0
        %3857 = vmatpush1.msra.mxu0 0.0
        %3858 = vmatprep.subr.mxu0 0.0
        %3859 = vmatpush1.msra.mxu0 0.0
        %3860 = vmatprep.subr.mxu0 0.0
        %3861 = vmatpush1.msra.mxu0 0.0
        %3862 = vmatprep.subr.mxu0 0.0
        %3863 = vmatpush1.msra.mxu0 %v3814
        %3864 = vmatprep.subr.mxu0 0.0
        %3865 = vmatpush1.msra.mxu0 %v3809
        %3866 = vmatprep.subr.mxu0 0.0
        %3867 = vmatpush2.msra.mxu0 0.0
        %3868 = vmatprep.subr.mxu0 0.0
        %3869 = vmatpush2.msra.mxu0 0.0
        %3870 = vmatprep.subr.mxu0 0.0
        %3871 = vmatpush2.msra.mxu0 0.0
        %3872 = vmatprep.subr.mxu0 0.0
        %3873 = vmatpush2.msra.mxu0 0.0
        %3874 = vmatprep.subr.mxu0 0.0
        %3875 = vmatpush2.msra.mxu0 0.0
        %3876 = vmatprep.subr.mxu0 0.0
        %3877 = vmatpush2.msra.mxu0 0.0
        %3878 = vmatprep.subr.mxu0 0.0
        %3879 = vmatpush2.msra.mxu0 0.0
        %3880 = vmatprep.subr.mxu0 0.0
        %3881 = vmatpush2.msra.mxu0 0.0
        %3882 = vmatprep.subr.mxu0 0.0
        %3883 = vmatpush2.msra.mxu0 0.0
        %3884 = vmatprep.subr.mxu0 0.0
        %3885 = vmatpush2.msra.mxu0 0.0
        %3886 = vmatprep.subr.mxu0 0.0
        %3887 = vmatpush2.msra.mxu0 0.0
        %3888 = vmatprep.subr.mxu0 0.0
        %3889 = vmatpush2.msra.mxu0 0.0
        %3890 = vmatprep.subr.mxu0 0.0
        %3891 = vmatpush2.msra.mxu0 0.0
        %3892 = vmatprep.subr.mxu0 0.0
        %3893 = vmatpush2.msra.mxu0 0.0
        %3894 = vmatprep.subr.mxu0 0.0
        %3895 = vmatpush2.msra.mxu0 0.0
        %3896 = vmatprep.subr.mxu0 0.0
        %3897 = vmatpush2.msra.mxu0 0.0
        %3898 = vmatprep.mubr.f32.mxu0 0.0
        %3899 = vmatmul.mubr.f32.gmra.mxu0 %v3823
        %v3900 = vpop.f32.mrf.mxu0
        %v3901 = vadd.f32 0.0, %v3900
        %v3902 = vpop.f32.mrf.mxu0
        %3903 = vmatprep.mubr.f32.mxu0 0.0
        %3904 = vmatmul.mubr.f32.gmra.mxu0 %v3826
        %v3905 = vpop.f32.mrf.mxu0
        %v3906 = vadd.f32 0.0, %v3905
        %v3907 = vpop.f32.mrf.mxu0
        %3908 = vmatprep.mubr.f32.mxu0 0.0
        %3909 = vmatmul.mubr.f32.gmra.mxu0 %v3829
        %v3910 = vpop.f32.mrf.mxu0
        %v3911 = vadd.f32 0.0, %v3910
        %v3912 = vpop.f32.mrf.mxu0
        %3913 = vmatprep.mubr.f32.mxu0 0.0
        %3914 = vmatmul.mubr.f32.gmra.mxu0 %v3832
        %v3915 = vpop.f32.mrf.mxu0
        %v3916 = vadd.f32 0.0, %v3915
        %v3917 = vpop.f32.mrf.mxu0
        %3918 = vdwg.mxu0
        %v3919 = vadd.f32 %v3729, %v3901
        %v3920 = vadd.f32 %v3730, %v3906
        %v3921 = vadd.f32 %v3731, %v3911
        %v3922 = vadd.f32 %v3732, %v3916
        %s3923 = scalar_lea.vmem [#allocation4], 256
        %v3924 = vld [vmem:[%s3923] sm:$0xff]
        %v3925 = vld [vmem:[%s3923 + $0x8] sm:$0xff]
        %v3926 = vld [vmem:[%s3923 + $0x10] sm:$0xff]
        %v3927 = vld [vmem:[%s3923 + $0x18] sm:$0xff]
        %v3928 = vld [vmem:[%s3923 + $0x20] sm:$0xff]
        %v3929 = vld [vmem:[%s3923 + $0x28] sm:$0xff]
        %v3930 = vld [vmem:[%s3923 + $0x30] sm:$0xff]
        %v3931 = vld [vmem:[%s3923 + $0x38] sm:$0xff]
        %3932 = vmatprep.subr.mxu0 0.0
        %3933 = vmatpush1.msra.mxu0 0.0
        %3934 = vmatprep.subr.mxu0 0.0
        %3935 = vmatpush1.msra.mxu0 0.0
        %3936 = vmatprep.subr.mxu0 0.0
        %3937 = vmatpush1.msra.mxu0 0.0
        %3938 = vmatprep.subr.mxu0 0.0
        %3939 = vmatpush1.msra.mxu0 0.0
        %3940 = vmatprep.subr.mxu0 0.0
        %3941 = vmatpush1.msra.mxu0 0.0
        %3942 = vmatprep.subr.mxu0 0.0
        %3943 = vmatpush1.msra.mxu0 0.0
        %3944 = vmatprep.subr.mxu0 0.0
        %3945 = vmatpush1.msra.mxu0 0.0
        %3946 = vmatprep.subr.mxu0 0.0
        %3947 = vmatpush1.msra.mxu0 0.0
        %3948 = vmatprep.subr.mxu0 0.0
        %3949 = vmatpush1.msra.mxu0 %v3931
        %3950 = vmatprep.subr.mxu0 0.0
        %3951 = vmatpush1.msra.mxu0 %v3930
        %3952 = vmatprep.subr.mxu0 0.0
        %3953 = vmatpush1.msra.mxu0 %v3929
        %3954 = vmatprep.subr.mxu0 0.0
        %3955 = vmatpush1.msra.mxu0 %v3928
        %3956 = vmatprep.subr.mxu0 0.0
        %3957 = vmatpush1.msra.mxu0 %v3927
        %3958 = vmatprep.subr.mxu0 0.0
        %3959 = vmatpush1.msra.mxu0 %v3926
        %3960 = vmatprep.subr.mxu0 0.0
        %3961 = vmatpush1.msra.mxu0 %v3925
        %3962 = vmatprep.subr.mxu0 0.0
        %3963 = vmatpush1.msra.mxu0 %v3924
        %3964 = vmatprep.subr.mxu0 0.0
        %3965 = vmatpush2.msra.mxu0 0.0
        %3966 = vmatprep.subr.mxu0 0.0
        %3967 = vmatpush2.msra.mxu0 0.0
        %3968 = vmatprep.subr.mxu0 0.0
        %3969 = vmatpush2.msra.mxu0 0.0
        %3970 = vmatprep.subr.mxu0 0.0
        %3971 = vmatpush2.msra.mxu0 0.0
        %3972 = vmatprep.subr.mxu0 0.0
        %3973 = vmatpush2.msra.mxu0 0.0
        %3974 = vmatprep.subr.mxu0 0.0
        %3975 = vmatpush2.msra.mxu0 0.0
        %3976 = vmatprep.subr.mxu0 0.0
        %3977 = vmatpush2.msra.mxu0 0.0
        %3978 = vmatprep.subr.mxu0 0.0
        %3979 = vmatpush2.msra.mxu0 0.0
        %3980 = vmatprep.subr.mxu0 0.0
        %3981 = vmatpush2.msra.mxu0 0.0
        %3982 = vmatprep.subr.mxu0 0.0
        %3983 = vmatpush2.msra.mxu0 0.0
        %3984 = vmatprep.subr.mxu0 0.0
        %3985 = vmatpush2.msra.mxu0 0.0
        %3986 = vmatprep.subr.mxu0 0.0
        %3987 = vmatpush2.msra.mxu0 0.0
        %3988 = vmatprep.subr.mxu0 0.0
        %3989 = vmatpush2.msra.mxu0 0.0
        %3990 = vmatprep.subr.mxu0 0.0
        %3991 = vmatpush2.msra.mxu0 0.0
        %3992 = vmatprep.subr.mxu0 0.0
        %3993 = vmatpush2.msra.mxu0 0.0
        %3994 = vmatprep.subr.mxu0 0.0
        %3995 = vmatpush2.msra.mxu0 0.0
        %3996 = vmatprep.mubr.f32.mxu0 0.0
        %3997 = vmatmul.mubr.f32.gmra.mxu0 %v3175
        %v3998 = vpop.f32.mrf.mxu0
        %v3999 = vadd.f32 0.0, %v3998
        %v4000 = vpop.f32.mrf.mxu0
        %4001 = vmatprep.mubr.f32.mxu0 0.0
        %4002 = vmatmul.mubr.f32.gmra.mxu0 %v3178
        %v4003 = vpop.f32.mrf.mxu0
        %v4004 = vadd.f32 0.0, %v4003
        %v4005 = vpop.f32.mrf.mxu0
        %4006 = vdwg.mxu0
        %s4007 = scalar_lea.vmem %s3, 128
        %v4008 = vld [vmem:[%s4007] sm:$0xff]
        %v4009 = vld [vmem:[%s4007 + $0x8] sm:$0xff]
        %v4010 = vld [vmem:[%s4007 + $0x10] sm:$0xff]
        %v4011 = vld [vmem:[%s4007 + $0x18] sm:$0xff]
        %v4013 = vsel %vm3348, %v4008, 0
        %v4016 = vsel %vm3348, %v4009, 0
        %v4019 = vsel %vm3348, %v4010, 0
        %v4022 = vsel %vm3348, %v4011, 0
        %4024 = vmatprep.subr.mxu0 0.0
        %4025 = vmatpush1.msra.mxu0 0.0
        %4026 = vmatprep.subr.mxu0 0.0
        %4027 = vmatpush1.msra.mxu0 0.0
        %4028 = vmatprep.subr.mxu0 0.0
        %4029 = vmatpush1.msra.mxu0 0.0
        %4030 = vmatprep.subr.mxu0 0.0
        %4031 = vmatpush1.msra.mxu0 0.0
        %4032 = vmatprep.subr.mxu0 0.0
        %4033 = vmatpush1.msra.mxu0 0.0
        %4034 = vmatprep.subr.mxu0 0.0
        %4035 = vmatpush1.msra.mxu0 0.0
        %4036 = vmatprep.subr.mxu0 0.0
        %4037 = vmatpush1.msra.mxu0 0.0
        %4038 = vmatprep.subr.mxu0 0.0
        %4039 = vmatpush1.msra.mxu0 0.0
        %4040 = vmatprep.subr.mxu0 0.0
        %4041 = vmatpush1.msra.mxu0 0.0
        %4042 = vmatprep.subr.mxu0 0.0
        %4043 = vmatpush1.msra.mxu0 0.0
        %4044 = vmatprep.subr.mxu0 0.0
        %4045 = vmatpush1.msra.mxu0 0.0
        %4046 = vmatprep.subr.mxu0 0.0
        %4047 = vmatpush1.msra.mxu0 0.0
        %4048 = vmatprep.subr.mxu0 0.0
        %4049 = vmatpush1.msra.mxu0 0.0
        %4050 = vmatprep.subr.mxu0 0.0
        %4051 = vmatpush1.msra.mxu0 0.0
        %4052 = vmatprep.subr.mxu0 0.0
        %4053 = vmatpush1.msra.mxu0 %v4004
        %4054 = vmatprep.subr.mxu0 0.0
        %4055 = vmatpush1.msra.mxu0 %v3999
        %4056 = vmatprep.subr.mxu0 0.0
        %4057 = vmatpush2.msra.mxu0 0.0
        %4058 = vmatprep.subr.mxu0 0.0
        %4059 = vmatpush2.msra.mxu0 0.0
        %4060 = vmatprep.subr.mxu0 0.0
        %4061 = vmatpush2.msra.mxu0 0.0
        %4062 = vmatprep.subr.mxu0 0.0
        %4063 = vmatpush2.msra.mxu0 0.0
        %4064 = vmatprep.subr.mxu0 0.0
        %4065 = vmatpush2.msra.mxu0 0.0
        %4066 = vmatprep.subr.mxu0 0.0
        %4067 = vmatpush2.msra.mxu0 0.0
        %4068 = vmatprep.subr.mxu0 0.0
        %4069 = vmatpush2.msra.mxu0 0.0
        %4070 = vmatprep.subr.mxu0 0.0
        %4071 = vmatpush2.msra.mxu0 0.0
        %4072 = vmatprep.subr.mxu0 0.0
        %4073 = vmatpush2.msra.mxu0 0.0
        %4074 = vmatprep.subr.mxu0 0.0
        %4075 = vmatpush2.msra.mxu0 0.0
        %4076 = vmatprep.subr.mxu0 0.0
        %4077 = vmatpush2.msra.mxu0 0.0
        %4078 = vmatprep.subr.mxu0 0.0
        %4079 = vmatpush2.msra.mxu0 0.0
        %4080 = vmatprep.subr.mxu0 0.0
        %4081 = vmatpush2.msra.mxu0 0.0
        %4082 = vmatprep.subr.mxu0 0.0
        %4083 = vmatpush2.msra.mxu0 0.0
        %4084 = vmatprep.subr.mxu0 0.0
        %4085 = vmatpush2.msra.mxu0 0.0
        %4086 = vmatprep.subr.mxu0 0.0
        %4087 = vmatpush2.msra.mxu0 0.0
        %4088 = vmatprep.mubr.f32.mxu0 0.0
        %4089 = vmatmul.mubr.f32.gmra.mxu0 %v4013
        %v4090 = vpop.f32.mrf.mxu0
        %v4091 = vadd.f32 0.0, %v4090
        %v4092 = vpop.f32.mrf.mxu0
        %4093 = vmatprep.mubr.f32.mxu0 0.0
        %4094 = vmatmul.mubr.f32.gmra.mxu0 %v4016
        %v4095 = vpop.f32.mrf.mxu0
        %v4096 = vadd.f32 0.0, %v4095
        %v4097 = vpop.f32.mrf.mxu0
        %4098 = vmatprep.mubr.f32.mxu0 0.0
        %4099 = vmatmul.mubr.f32.gmra.mxu0 %v4019
        %v4100 = vpop.f32.mrf.mxu0
        %v4101 = vadd.f32 0.0, %v4100
        %v4102 = vpop.f32.mrf.mxu0
        %4103 = vmatprep.mubr.f32.mxu0 0.0
        %4104 = vmatmul.mubr.f32.gmra.mxu0 %v4022
        %v4105 = vpop.f32.mrf.mxu0
        %v4106 = vadd.f32 0.0, %v4105
        %v4107 = vpop.f32.mrf.mxu0
        %4108 = vdwg.mxu0
        %v4109 = vadd.f32 %v3919, %v4091
        %v4110 = vadd.f32 %v3920, %v4096
        %v4111 = vadd.f32 %v3921, %v4101
        %v4112 = vadd.f32 %v3922, %v4106
        %s4113 = scalar_lea.vmem [#allocation4], 320
        %v4114 = vld [vmem:[%s4113] sm:$0xff]
        %v4115 = vld [vmem:[%s4113 + $0x8] sm:$0xff]
        %v4116 = vld [vmem:[%s4113 + $0x10] sm:$0xff]
        %v4117 = vld [vmem:[%s4113 + $0x18] sm:$0xff]
        %v4118 = vld [vmem:[%s4113 + $0x20] sm:$0xff]
        %v4119 = vld [vmem:[%s4113 + $0x28] sm:$0xff]
        %v4120 = vld [vmem:[%s4113 + $0x30] sm:$0xff]
        %v4121 = vld [vmem:[%s4113 + $0x38] sm:$0xff]
        %4122 = vmatprep.subr.mxu0 0.0
        %4123 = vmatpush1.msra.mxu0 0.0
        %4124 = vmatprep.subr.mxu0 0.0
        %4125 = vmatpush1.msra.mxu0 0.0
        %4126 = vmatprep.subr.mxu0 0.0
        %4127 = vmatpush1.msra.mxu0 0.0
        %4128 = vmatprep.subr.mxu0 0.0
        %4129 = vmatpush1.msra.mxu0 0.0
        %4130 = vmatprep.subr.mxu0 0.0
        %4131 = vmatpush1.msra.mxu0 0.0
        %4132 = vmatprep.subr.mxu0 0.0
        %4133 = vmatpush1.msra.mxu0 0.0
        %4134 = vmatprep.subr.mxu0 0.0
        %4135 = vmatpush1.msra.mxu0 0.0
        %4136 = vmatprep.subr.mxu0 0.0
        %4137 = vmatpush1.msra.mxu0 0.0
        %4138 = vmatprep.subr.mxu0 0.0
        %4139 = vmatpush1.msra.mxu0 %v4121
        %4140 = vmatprep.subr.mxu0 0.0
        %4141 = vmatpush1.msra.mxu0 %v4120
        %4142 = vmatprep.subr.mxu0 0.0
        %4143 = vmatpush1.msra.mxu0 %v4119
        %4144 = vmatprep.subr.mxu0 0.0
        %4145 = vmatpush1.msra.mxu0 %v4118
        %4146 = vmatprep.subr.mxu0 0.0
        %4147 = vmatpush1.msra.mxu0 %v4117
        %4148 = vmatprep.subr.mxu0 0.0
        %4149 = vmatpush1.msra.mxu0 %v4116
        %4150 = vmatprep.subr.mxu0 0.0
        %4151 = vmatpush1.msra.mxu0 %v4115
        %4152 = vmatprep.subr.mxu0 0.0
        %4153 = vmatpush1.msra.mxu0 %v4114
        %4154 = vmatprep.subr.mxu0 0.0
        %4155 = vmatpush2.msra.mxu0 0.0
        %4156 = vmatprep.subr.mxu0 0.0
        %4157 = vmatpush2.msra.mxu0 0.0
        %4158 = vmatprep.subr.mxu0 0.0
        %4159 = vmatpush2.msra.mxu0 0.0
        %4160 = vmatprep.subr.mxu0 0.0
        %4161 = vmatpush2.msra.mxu0 0.0
        %4162 = vmatprep.subr.mxu0 0.0
        %4163 = vmatpush2.msra.mxu0 0.0
        %4164 = vmatprep.subr.mxu0 0.0
        %4165 = vmatpush2.msra.mxu0 0.0
        %4166 = vmatprep.subr.mxu0 0.0
        %4167 = vmatpush2.msra.mxu0 0.0
        %4168 = vmatprep.subr.mxu0 0.0
        %4169 = vmatpush2.msra.mxu0 0.0
        %4170 = vmatprep.subr.mxu0 0.0
        %4171 = vmatpush2.msra.mxu0 0.0
        %4172 = vmatprep.subr.mxu0 0.0
        %4173 = vmatpush2.msra.mxu0 0.0
        %4174 = vmatprep.subr.mxu0 0.0
        %4175 = vmatpush2.msra.mxu0 0.0
        %4176 = vmatprep.subr.mxu0 0.0
        %4177 = vmatpush2.msra.mxu0 0.0
        %4178 = vmatprep.subr.mxu0 0.0
        %4179 = vmatpush2.msra.mxu0 0.0
        %4180 = vmatprep.subr.mxu0 0.0
        %4181 = vmatpush2.msra.mxu0 0.0
        %4182 = vmatprep.subr.mxu0 0.0
        %4183 = vmatpush2.msra.mxu0 0.0
        %4184 = vmatprep.subr.mxu0 0.0
        %4185 = vmatpush2.msra.mxu0 0.0
        %4186 = vmatprep.mubr.f32.mxu0 0.0
        %4187 = vmatmul.mubr.f32.gmra.mxu0 %v3175
        %v4188 = vpop.f32.mrf.mxu0
        %v4189 = vadd.f32 0.0, %v4188
        %v4190 = vpop.f32.mrf.mxu0
        %4191 = vmatprep.mubr.f32.mxu0 0.0
        %4192 = vmatmul.mubr.f32.gmra.mxu0 %v3178
        %v4193 = vpop.f32.mrf.mxu0
        %v4194 = vadd.f32 0.0, %v4193
        %v4195 = vpop.f32.mrf.mxu0
        %4196 = vdwg.mxu0
        %s4197 = scalar_lea.vmem %s3, 160
        %v4198 = vld [vmem:[%s4197] sm:$0xff]
        %v4199 = vld [vmem:[%s4197 + $0x8] sm:$0xff]
        %v4200 = vld [vmem:[%s4197 + $0x10] sm:$0xff]
        %v4201 = vld [vmem:[%s4197 + $0x18] sm:$0xff]
        %v4203 = vsel %vm3348, %v4198, 0
        %v4206 = vsel %vm3348, %v4199, 0
        %v4209 = vsel %vm3348, %v4200, 0
        %v4212 = vsel %vm3348, %v4201, 0
        %4214 = vmatprep.subr.mxu0 0.0
        %4215 = vmatpush1.msra.mxu0 0.0
        %4216 = vmatprep.subr.mxu0 0.0
        %4217 = vmatpush1.msra.mxu0 0.0
        %4218 = vmatprep.subr.mxu0 0.0
        %4219 = vmatpush1.msra.mxu0 0.0
        %4220 = vmatprep.subr.mxu0 0.0
        %4221 = vmatpush1.msra.mxu0 0.0
        %4222 = vmatprep.subr.mxu0 0.0
        %4223 = vmatpush1.msra.mxu0 0.0
        %4224 = vmatprep.subr.mxu0 0.0
        %4225 = vmatpush1.msra.mxu0 0.0
        %4226 = vmatprep.subr.mxu0 0.0
        %4227 = vmatpush1.msra.mxu0 0.0
        %4228 = vmatprep.subr.mxu0 0.0
        %4229 = vmatpush1.msra.mxu0 0.0
        %4230 = vmatprep.subr.mxu0 0.0
        %4231 = vmatpush1.msra.mxu0 0.0
        %4232 = vmatprep.subr.mxu0 0.0
        %4233 = vmatpush1.msra.mxu0 0.0
        %4234 = vmatprep.subr.mxu0 0.0
        %4235 = vmatpush1.msra.mxu0 0.0
        %4236 = vmatprep.subr.mxu0 0.0
        %4237 = vmatpush1.msra.mxu0 0.0
        %4238 = vmatprep.subr.mxu0 0.0
        %4239 = vmatpush1.msra.mxu0 0.0
        %4240 = vmatprep.subr.mxu0 0.0
        %4241 = vmatpush1.msra.mxu0 0.0
        %4242 = vmatprep.subr.mxu0 0.0
        %4243 = vmatpush1.msra.mxu0 %v4194
        %4244 = vmatprep.subr.mxu0 0.0
        %4245 = vmatpush1.msra.mxu0 %v4189
        %4246 = vmatprep.subr.mxu0 0.0
        %4247 = vmatpush2.msra.mxu0 0.0
        %4248 = vmatprep.subr.mxu0 0.0
        %4249 = vmatpush2.msra.mxu0 0.0
        %4250 = vmatprep.subr.mxu0 0.0
        %4251 = vmatpush2.msra.mxu0 0.0
        %4252 = vmatprep.subr.mxu0 0.0
        %4253 = vmatpush2.msra.mxu0 0.0
        %4254 = vmatprep.subr.mxu0 0.0
        %4255 = vmatpush2.msra.mxu0 0.0
        %4256 = vmatprep.subr.mxu0 0.0
        %4257 = vmatpush2.msra.mxu0 0.0
        %4258 = vmatprep.subr.mxu0 0.0
        %4259 = vmatpush2.msra.mxu0 0.0
        %4260 = vmatprep.subr.mxu0 0.0
        %4261 = vmatpush2.msra.mxu0 0.0
        %4262 = vmatprep.subr.mxu0 0.0
        %4263 = vmatpush2.msra.mxu0 0.0
        %4264 = vmatprep.subr.mxu0 0.0
        %4265 = vmatpush2.msra.mxu0 0.0
        %4266 = vmatprep.subr.mxu0 0.0
        %4267 = vmatpush2.msra.mxu0 0.0
        %4268 = vmatprep.subr.mxu0 0.0
        %4269 = vmatpush2.msra.mxu0 0.0
        %4270 = vmatprep.subr.mxu0 0.0
        %4271 = vmatpush2.msra.mxu0 0.0
        %4272 = vmatprep.subr.mxu0 0.0
        %4273 = vmatpush2.msra.mxu0 0.0
        %4274 = vmatprep.subr.mxu0 0.0
        %4275 = vmatpush2.msra.mxu0 0.0
        %4276 = vmatprep.subr.mxu0 0.0
        %4277 = vmatpush2.msra.mxu0 0.0
        %4278 = vmatprep.mubr.f32.mxu0 0.0
        %4279 = vmatmul.mubr.f32.gmra.mxu0 %v4203
        %v4280 = vpop.f32.mrf.mxu0
        %v4281 = vadd.f32 0.0, %v4280
        %v4282 = vpop.f32.mrf.mxu0
        %4283 = vmatprep.mubr.f32.mxu0 0.0
        %4284 = vmatmul.mubr.f32.gmra.mxu0 %v4206
        %v4285 = vpop.f32.mrf.mxu0
        %v4286 = vadd.f32 0.0, %v4285
        %v4287 = vpop.f32.mrf.mxu0
        %4288 = vmatprep.mubr.f32.mxu0 0.0
        %4289 = vmatmul.mubr.f32.gmra.mxu0 %v4209
        %v4290 = vpop.f32.mrf.mxu0
        %v4291 = vadd.f32 0.0, %v4290
        %v4292 = vpop.f32.mrf.mxu0
        %4293 = vmatprep.mubr.f32.mxu0 0.0
        %4294 = vmatmul.mubr.f32.gmra.mxu0 %v4212
        %v4295 = vpop.f32.mrf.mxu0
        %v4296 = vadd.f32 0.0, %v4295
        %v4297 = vpop.f32.mrf.mxu0
        %4298 = vdwg.mxu0
        %v4299 = vadd.f32 %v4109, %v4281
        %v4300 = vadd.f32 %v4110, %v4286
        %v4301 = vadd.f32 %v4111, %v4291
        %v4302 = vadd.f32 %v4112, %v4296
        %s4303 = scalar_lea.vmem [#allocation4], 384
        %v4304 = vld [vmem:[%s4303] sm:$0xff]
        %v4305 = vld [vmem:[%s4303 + $0x8] sm:$0xff]
        %v4306 = vld [vmem:[%s4303 + $0x10] sm:$0xff]
        %v4307 = vld [vmem:[%s4303 + $0x18] sm:$0xff]
        %v4308 = vld [vmem:[%s4303 + $0x20] sm:$0xff]
        %v4309 = vld [vmem:[%s4303 + $0x28] sm:$0xff]
        %v4310 = vld [vmem:[%s4303 + $0x30] sm:$0xff]
        %v4311 = vld [vmem:[%s4303 + $0x38] sm:$0xff]
        %4312 = vmatprep.subr.mxu0 0.0
        %4313 = vmatpush1.msra.mxu0 0.0
        %4314 = vmatprep.subr.mxu0 0.0
        %4315 = vmatpush1.msra.mxu0 0.0
        %4316 = vmatprep.subr.mxu0 0.0
        %4317 = vmatpush1.msra.mxu0 0.0
        %4318 = vmatprep.subr.mxu0 0.0
        %4319 = vmatpush1.msra.mxu0 0.0
        %4320 = vmatprep.subr.mxu0 0.0
        %4321 = vmatpush1.msra.mxu0 0.0
        %4322 = vmatprep.subr.mxu0 0.0
        %4323 = vmatpush1.msra.mxu0 0.0
        %4324 = vmatprep.subr.mxu0 0.0
        %4325 = vmatpush1.msra.mxu0 0.0
        %4326 = vmatprep.subr.mxu0 0.0
        %4327 = vmatpush1.msra.mxu0 0.0
        %4328 = vmatprep.subr.mxu0 0.0
        %4329 = vmatpush1.msra.mxu0 %v4311
        %4330 = vmatprep.subr.mxu0 0.0
        %4331 = vmatpush1.msra.mxu0 %v4310
        %4332 = vmatprep.subr.mxu0 0.0
        %4333 = vmatpush1.msra.mxu0 %v4309
        %4334 = vmatprep.subr.mxu0 0.0
        %4335 = vmatpush1.msra.mxu0 %v4308
        %4336 = vmatprep.subr.mxu0 0.0
        %4337 = vmatpush1.msra.mxu0 %v4307
        %4338 = vmatprep.subr.mxu0 0.0
        %4339 = vmatpush1.msra.mxu0 %v4306
        %4340 = vmatprep.subr.mxu0 0.0
        %4341 = vmatpush1.msra.mxu0 %v4305
        %4342 = vmatprep.subr.mxu0 0.0
        %4343 = vmatpush1.msra.mxu0 %v4304
        %4344 = vmatprep.subr.mxu0 0.0
        %4345 = vmatpush2.msra.mxu0 0.0
        %4346 = vmatprep.subr.mxu0 0.0
        %4347 = vmatpush2.msra.mxu0 0.0
        %4348 = vmatprep.subr.mxu0 0.0
        %4349 = vmatpush2.msra.mxu0 0.0
        %4350 = vmatprep.subr.mxu0 0.0
        %4351 = vmatpush2.msra.mxu0 0.0
        %4352 = vmatprep.subr.mxu0 0.0
        %4353 = vmatpush2.msra.mxu0 0.0
        %4354 = vmatprep.subr.mxu0 0.0
        %4355 = vmatpush2.msra.mxu0 0.0
        %4356 = vmatprep.subr.mxu0 0.0
        %4357 = vmatpush2.msra.mxu0 0.0
        %4358 = vmatprep.subr.mxu0 0.0
        %4359 = vmatpush2.msra.mxu0 0.0
        %4360 = vmatprep.subr.mxu0 0.0
        %4361 = vmatpush2.msra.mxu0 0.0
        %4362 = vmatprep.subr.mxu0 0.0
        %4363 = vmatpush2.msra.mxu0 0.0
        %4364 = vmatprep.subr.mxu0 0.0
        %4365 = vmatpush2.msra.mxu0 0.0
        %4366 = vmatprep.subr.mxu0 0.0
        %4367 = vmatpush2.msra.mxu0 0.0
        %4368 = vmatprep.subr.mxu0 0.0
        %4369 = vmatpush2.msra.mxu0 0.0
        %4370 = vmatprep.subr.mxu0 0.0
        %4371 = vmatpush2.msra.mxu0 0.0
        %4372 = vmatprep.subr.mxu0 0.0
        %4373 = vmatpush2.msra.mxu0 0.0
        %4374 = vmatprep.subr.mxu0 0.0
        %4375 = vmatpush2.msra.mxu0 0.0
        %4376 = vmatprep.mubr.f32.mxu0 0.0
        %4377 = vmatmul.mubr.f32.gmra.mxu0 %v3175
        %v4378 = vpop.f32.mrf.mxu0
        %v4379 = vadd.f32 0.0, %v4378
        %v4380 = vpop.f32.mrf.mxu0
        %4381 = vmatprep.mubr.f32.mxu0 0.0
        %4382 = vmatmul.mubr.f32.gmra.mxu0 %v3178
        %v4383 = vpop.f32.mrf.mxu0
        %v4384 = vadd.f32 0.0, %v4383
        %v4385 = vpop.f32.mrf.mxu0
        %4386 = vdwg.mxu0
        %s4387 = scalar_lea.vmem %s3, 192
        %v4388 = vld [vmem:[%s4387] sm:$0xff]
        %v4389 = vld [vmem:[%s4387 + $0x8] sm:$0xff]
        %v4390 = vld [vmem:[%s4387 + $0x10] sm:$0xff]
        %v4391 = vld [vmem:[%s4387 + $0x18] sm:$0xff]
        %v4393 = vsel %vm3348, %v4388, 0
        %v4396 = vsel %vm3348, %v4389, 0
        %v4399 = vsel %vm3348, %v4390, 0
        %v4402 = vsel %vm3348, %v4391, 0
        %4404 = vmatprep.subr.mxu0 0.0
        %4405 = vmatpush1.msra.mxu0 0.0
        %4406 = vmatprep.subr.mxu0 0.0
        %4407 = vmatpush1.msra.mxu0 0.0
        %4408 = vmatprep.subr.mxu0 0.0
        %4409 = vmatpush1.msra.mxu0 0.0
        %4410 = vmatprep.subr.mxu0 0.0
        %4411 = vmatpush1.msra.mxu0 0.0
        %4412 = vmatprep.subr.mxu0 0.0
        %4413 = vmatpush1.msra.mxu0 0.0
        %4414 = vmatprep.subr.mxu0 0.0
        %4415 = vmatpush1.msra.mxu0 0.0
        %4416 = vmatprep.subr.mxu0 0.0
        %4417 = vmatpush1.msra.mxu0 0.0
        %4418 = vmatprep.subr.mxu0 0.0
        %4419 = vmatpush1.msra.mxu0 0.0
        %4420 = vmatprep.subr.mxu0 0.0
        %4421 = vmatpush1.msra.mxu0 0.0
        %4422 = vmatprep.subr.mxu0 0.0
        %4423 = vmatpush1.msra.mxu0 0.0
        %4424 = vmatprep.subr.mxu0 0.0
        %4425 = vmatpush1.msra.mxu0 0.0
        %4426 = vmatprep.subr.mxu0 0.0
        %4427 = vmatpush1.msra.mxu0 0.0
        %4428 = vmatprep.subr.mxu0 0.0
        %4429 = vmatpush1.msra.mxu0 0.0
        %4430 = vmatprep.subr.mxu0 0.0
        %4431 = vmatpush1.msra.mxu0 0.0
        %4432 = vmatprep.subr.mxu0 0.0
        %4433 = vmatpush1.msra.mxu0 %v4384
        %4434 = vmatprep.subr.mxu0 0.0
        %4435 = vmatpush1.msra.mxu0 %v4379
        %4436 = vmatprep.subr.mxu0 0.0
        %4437 = vmatpush2.msra.mxu0 0.0
        %4438 = vmatprep.subr.mxu0 0.0
        %4439 = vmatpush2.msra.mxu0 0.0
        %4440 = vmatprep.subr.mxu0 0.0
        %4441 = vmatpush2.msra.mxu0 0.0
        %4442 = vmatprep.subr.mxu0 0.0
        %4443 = vmatpush2.msra.mxu0 0.0
        %4444 = vmatprep.subr.mxu0 0.0
        %4445 = vmatpush2.msra.mxu0 0.0
        %4446 = vmatprep.subr.mxu0 0.0
        %4447 = vmatpush2.msra.mxu0 0.0
        %4448 = vmatprep.subr.mxu0 0.0
        %4449 = vmatpush2.msra.mxu0 0.0
        %4450 = vmatprep.subr.mxu0 0.0
        %4451 = vmatpush2.msra.mxu0 0.0
        %4452 = vmatprep.subr.mxu0 0.0
        %4453 = vmatpush2.msra.mxu0 0.0
        %4454 = vmatprep.subr.mxu0 0.0
        %4455 = vmatpush2.msra.mxu0 0.0
        %4456 = vmatprep.subr.mxu0 0.0
        %4457 = vmatpush2.msra.mxu0 0.0
        %4458 = vmatprep.subr.mxu0 0.0
        %4459 = vmatpush2.msra.mxu0 0.0
        %4460 = vmatprep.subr.mxu0 0.0
        %4461 = vmatpush2.msra.mxu0 0.0
        %4462 = vmatprep.subr.mxu0 0.0
        %4463 = vmatpush2.msra.mxu0 0.0
        %4464 = vmatprep.subr.mxu0 0.0
        %4465 = vmatpush2.msra.mxu0 0.0
        %4466 = vmatprep.subr.mxu0 0.0
        %4467 = vmatpush2.msra.mxu0 0.0
        %4468 = vmatprep.mubr.f32.mxu0 0.0
        %4469 = vmatmul.mubr.f32.gmra.mxu0 %v4393
        %v4470 = vpop.f32.mrf.mxu0
        %v4471 = vadd.f32 0.0, %v4470
        %v4472 = vpop.f32.mrf.mxu0
        %4473 = vmatprep.mubr.f32.mxu0 0.0
        %4474 = vmatmul.mubr.f32.gmra.mxu0 %v4396
        %v4475 = vpop.f32.mrf.mxu0
        %v4476 = vadd.f32 0.0, %v4475
        %v4477 = vpop.f32.mrf.mxu0
        %4478 = vmatprep.mubr.f32.mxu0 0.0
        %4479 = vmatmul.mubr.f32.gmra.mxu0 %v4399
        %v4480 = vpop.f32.mrf.mxu0
        %v4481 = vadd.f32 0.0, %v4480
        %v4482 = vpop.f32.mrf.mxu0
        %4483 = vmatprep.mubr.f32.mxu0 0.0
        %4484 = vmatmul.mubr.f32.gmra.mxu0 %v4402
        %v4485 = vpop.f32.mrf.mxu0
        %v4486 = vadd.f32 0.0, %v4485
        %v4487 = vpop.f32.mrf.mxu0
        %4488 = vdwg.mxu0
        %v4489 = vadd.f32 %v4299, %v4471
        %v4490 = vadd.f32 %v4300, %v4476
        %v4491 = vadd.f32 %v4301, %v4481
        %v4492 = vadd.f32 %v4302, %v4486
        %s4493 = scalar_lea.vmem [#allocation4], 448
        %v4494 = vld [vmem:[%s4493] sm:$0xff]
        %v4495 = vld [vmem:[%s4493 + $0x8] sm:$0xff]
        %v4496 = vld [vmem:[%s4493 + $0x10] sm:$0xff]
        %v4497 = vld [vmem:[%s4493 + $0x18] sm:$0xff]
        %v4498 = vld [vmem:[%s4493 + $0x20] sm:$0xff]
        %v4499 = vld [vmem:[%s4493 + $0x28] sm:$0xff]
        %v4500 = vld [vmem:[%s4493 + $0x30] sm:$0xff]
        %v4501 = vld [vmem:[%s4493 + $0x38] sm:$0xff]
        %4502 = vmatprep.subr.mxu0 0.0
        %4503 = vmatpush1.msra.mxu0 0.0
        %4504 = vmatprep.subr.mxu0 0.0
        %4505 = vmatpush1.msra.mxu0 0.0
        %4506 = vmatprep.subr.mxu0 0.0
        %4507 = vmatpush1.msra.mxu0 0.0
        %4508 = vmatprep.subr.mxu0 0.0
        %4509 = vmatpush1.msra.mxu0 0.0
        %4510 = vmatprep.subr.mxu0 0.0
        %4511 = vmatpush1.msra.mxu0 0.0
        %4512 = vmatprep.subr.mxu0 0.0
        %4513 = vmatpush1.msra.mxu0 0.0
        %4514 = vmatprep.subr.mxu0 0.0
        %4515 = vmatpush1.msra.mxu0 0.0
        %4516 = vmatprep.subr.mxu0 0.0
        %4517 = vmatpush1.msra.mxu0 0.0
        %4518 = vmatprep.subr.mxu0 0.0
        %4519 = vmatpush1.msra.mxu0 %v4501
        %4520 = vmatprep.subr.mxu0 0.0
        %4521 = vmatpush1.msra.mxu0 %v4500
        %4522 = vmatprep.subr.mxu0 0.0
        %4523 = vmatpush1.msra.mxu0 %v4499
        %4524 = vmatprep.subr.mxu0 0.0
        %4525 = vmatpush1.msra.mxu0 %v4498
        %4526 = vmatprep.subr.mxu0 0.0
        %4527 = vmatpush1.msra.mxu0 %v4497
        %4528 = vmatprep.subr.mxu0 0.0
        %4529 = vmatpush1.msra.mxu0 %v4496
        %4530 = vmatprep.subr.mxu0 0.0
        %4531 = vmatpush1.msra.mxu0 %v4495
        %4532 = vmatprep.subr.mxu0 0.0
        %4533 = vmatpush1.msra.mxu0 %v4494
        %4534 = vmatprep.subr.mxu0 0.0
        %4535 = vmatpush2.msra.mxu0 0.0
        %4536 = vmatprep.subr.mxu0 0.0
        %4537 = vmatpush2.msra.mxu0 0.0
        %4538 = vmatprep.subr.mxu0 0.0
        %4539 = vmatpush2.msra.mxu0 0.0
        %4540 = vmatprep.subr.mxu0 0.0
        %4541 = vmatpush2.msra.mxu0 0.0
        %4542 = vmatprep.subr.mxu0 0.0
        %4543 = vmatpush2.msra.mxu0 0.0
        %4544 = vmatprep.subr.mxu0 0.0
        %4545 = vmatpush2.msra.mxu0 0.0
        %4546 = vmatprep.subr.mxu0 0.0
        %4547 = vmatpush2.msra.mxu0 0.0
        %4548 = vmatprep.subr.mxu0 0.0
        %4549 = vmatpush2.msra.mxu0 0.0
        %4550 = vmatprep.subr.mxu0 0.0
        %4551 = vmatpush2.msra.mxu0 0.0
        %4552 = vmatprep.subr.mxu0 0.0
        %4553 = vmatpush2.msra.mxu0 0.0
        %4554 = vmatprep.subr.mxu0 0.0
        %4555 = vmatpush2.msra.mxu0 0.0
        %4556 = vmatprep.subr.mxu0 0.0
        %4557 = vmatpush2.msra.mxu0 0.0
        %4558 = vmatprep.subr.mxu0 0.0
        %4559 = vmatpush2.msra.mxu0 0.0
        %4560 = vmatprep.subr.mxu0 0.0
        %4561 = vmatpush2.msra.mxu0 0.0
        %4562 = vmatprep.subr.mxu0 0.0
        %4563 = vmatpush2.msra.mxu0 0.0
        %4564 = vmatprep.subr.mxu0 0.0
        %4565 = vmatpush2.msra.mxu0 0.0
        %4566 = vmatprep.mubr.f32.mxu0 0.0
        %4567 = vmatmul.mubr.f32.gmra.mxu0 %v3175
        %v4568 = vpop.f32.mrf.mxu0
        %v4569 = vadd.f32 0.0, %v4568
        %v4570 = vpop.f32.mrf.mxu0
        %4571 = vmatprep.mubr.f32.mxu0 0.0
        %4572 = vmatmul.mubr.f32.gmra.mxu0 %v3178
        %v4573 = vpop.f32.mrf.mxu0
        %v4574 = vadd.f32 0.0, %v4573
        %v4575 = vpop.f32.mrf.mxu0
        %4576 = vdwg.mxu0
        %s4577 = scalar_lea.vmem %s3, 224
        %v4578 = vld [vmem:[%s4577] sm:$0xff]
        %v4579 = vld [vmem:[%s4577 + $0x8] sm:$0xff]
        %v4580 = vld [vmem:[%s4577 + $0x10] sm:$0xff]
        %v4581 = vld [vmem:[%s4577 + $0x18] sm:$0xff]
        %v4583 = vsel %vm3348, %v4578, 0
        %v4586 = vsel %vm3348, %v4579, 0
        %v4589 = vsel %vm3348, %v4580, 0
        %v4592 = vsel %vm3348, %v4581, 0
        %4594 = vmatprep.subr.mxu0 0.0
        %4595 = vmatpush1.msra.mxu0 0.0
        %4596 = vmatprep.subr.mxu0 0.0
        %4597 = vmatpush1.msra.mxu0 0.0
        %4598 = vmatprep.subr.mxu0 0.0
        %4599 = vmatpush1.msra.mxu0 0.0
        %4600 = vmatprep.subr.mxu0 0.0
        %4601 = vmatpush1.msra.mxu0 0.0
        %4602 = vmatprep.subr.mxu0 0.0
        %4603 = vmatpush1.msra.mxu0 0.0
        %4604 = vmatprep.subr.mxu0 0.0
        %4605 = vmatpush1.msra.mxu0 0.0
        %4606 = vmatprep.subr.mxu0 0.0
        %4607 = vmatpush1.msra.mxu0 0.0
        %4608 = vmatprep.subr.mxu0 0.0
        %4609 = vmatpush1.msra.mxu0 0.0
        %4610 = vmatprep.subr.mxu0 0.0
        %4611 = vmatpush1.msra.mxu0 0.0
        %4612 = vmatprep.subr.mxu0 0.0
        %4613 = vmatpush1.msra.mxu0 0.0
        %4614 = vmatprep.subr.mxu0 0.0
        %4615 = vmatpush1.msra.mxu0 0.0
        %4616 = vmatprep.subr.mxu0 0.0
        %4617 = vmatpush1.msra.mxu0 0.0
        %4618 = vmatprep.subr.mxu0 0.0
        %4619 = vmatpush1.msra.mxu0 0.0
        %4620 = vmatprep.subr.mxu0 0.0
        %4621 = vmatpush1.msra.mxu0 0.0
        %4622 = vmatprep.subr.mxu0 0.0
        %4623 = vmatpush1.msra.mxu0 %v4574
        %4624 = vmatprep.subr.mxu0 0.0
        %4625 = vmatpush1.msra.mxu0 %v4569
        %4626 = vmatprep.subr.mxu0 0.0
        %4627 = vmatpush2.msra.mxu0 0.0
        %4628 = vmatprep.subr.mxu0 0.0
        %4629 = vmatpush2.msra.mxu0 0.0
        %4630 = vmatprep.subr.mxu0 0.0
        %4631 = vmatpush2.msra.mxu0 0.0
        %4632 = vmatprep.subr.mxu0 0.0
        %4633 = vmatpush2.msra.mxu0 0.0
        %4634 = vmatprep.subr.mxu0 0.0
        %4635 = vmatpush2.msra.mxu0 0.0
        %4636 = vmatprep.subr.mxu0 0.0
        %4637 = vmatpush2.msra.mxu0 0.0
        %4638 = vmatprep.subr.mxu0 0.0
        %4639 = vmatpush2.msra.mxu0 0.0
        %4640 = vmatprep.subr.mxu0 0.0
        %4641 = vmatpush2.msra.mxu0 0.0
        %4642 = vmatprep.subr.mxu0 0.0
        %4643 = vmatpush2.msra.mxu0 0.0
        %4644 = vmatprep.subr.mxu0 0.0
        %4645 = vmatpush2.msra.mxu0 0.0
        %4646 = vmatprep.subr.mxu0 0.0
        %4647 = vmatpush2.msra.mxu0 0.0
        %4648 = vmatprep.subr.mxu0 0.0
        %4649 = vmatpush2.msra.mxu0 0.0
        %4650 = vmatprep.subr.mxu0 0.0
        %4651 = vmatpush2.msra.mxu0 0.0
        %4652 = vmatprep.subr.mxu0 0.0
        %4653 = vmatpush2.msra.mxu0 0.0
        %4654 = vmatprep.subr.mxu0 0.0
        %4655 = vmatpush2.msra.mxu0 0.0
        %4656 = vmatprep.subr.mxu0 0.0
        %4657 = vmatpush2.msra.mxu0 0.0
        %4658 = vmatprep.mubr.f32.mxu0 0.0
        %4659 = vmatmul.mubr.f32.gmra.mxu0 %v4583
        %v4660 = vpop.f32.mrf.mxu0
        %v4661 = vadd.f32 0.0, %v4660
        %v4662 = vpop.f32.mrf.mxu0
        %4663 = vmatprep.mubr.f32.mxu0 0.0
        %4664 = vmatmul.mubr.f32.gmra.mxu0 %v4586
        %v4665 = vpop.f32.mrf.mxu0
        %v4666 = vadd.f32 0.0, %v4665
        %v4667 = vpop.f32.mrf.mxu0
        %4668 = vmatprep.mubr.f32.mxu0 0.0
        %4669 = vmatmul.mubr.f32.gmra.mxu0 %v4589
        %v4670 = vpop.f32.mrf.mxu0
        %v4671 = vadd.f32 0.0, %v4670
        %v4672 = vpop.f32.mrf.mxu0
        %4673 = vmatprep.mubr.f32.mxu0 0.0
        %4674 = vmatmul.mubr.f32.gmra.mxu0 %v4592
        %v4675 = vpop.f32.mrf.mxu0
        %v4676 = vadd.f32 0.0, %v4675
        %v4677 = vpop.f32.mrf.mxu0
        %4678 = vdwg.mxu0
        %v4679 = vadd.f32 %v4489, %v4661
        %v4680 = vadd.f32 %v4490, %v4666
        %v4681 = vadd.f32 %v4491, %v4671
        %v4682 = vadd.f32 %v4492, %v4676
        %s4683 = scalar_lea.vmem [#allocation4], 512
        %v4684 = vld [vmem:[%s4683] sm:$0xff]
        %v4685 = vld [vmem:[%s4683 + $0x8] sm:$0xff]
        %v4686 = vld [vmem:[%s4683 + $0x10] sm:$0xff]
        %v4687 = vld [vmem:[%s4683 + $0x18] sm:$0xff]
        %v4688 = vld [vmem:[%s4683 + $0x20] sm:$0xff]
        %v4689 = vld [vmem:[%s4683 + $0x28] sm:$0xff]
        %v4690 = vld [vmem:[%s4683 + $0x30] sm:$0xff]
        %v4691 = vld [vmem:[%s4683 + $0x38] sm:$0xff]
        %4692 = vmatprep.subr.mxu0 0.0
        %4693 = vmatpush1.msra.mxu0 0.0
        %4694 = vmatprep.subr.mxu0 0.0
        %4695 = vmatpush1.msra.mxu0 0.0
        %4696 = vmatprep.subr.mxu0 0.0
        %4697 = vmatpush1.msra.mxu0 0.0
        %4698 = vmatprep.subr.mxu0 0.0
        %4699 = vmatpush1.msra.mxu0 0.0
        %4700 = vmatprep.subr.mxu0 0.0
        %4701 = vmatpush1.msra.mxu0 0.0
        %4702 = vmatprep.subr.mxu0 0.0
        %4703 = vmatpush1.msra.mxu0 0.0
        %4704 = vmatprep.subr.mxu0 0.0
        %4705 = vmatpush1.msra.mxu0 0.0
        %4706 = vmatprep.subr.mxu0 0.0
        %4707 = vmatpush1.msra.mxu0 0.0
        %4708 = vmatprep.subr.mxu0 0.0
        %4709 = vmatpush1.msra.mxu0 %v4691
        %4710 = vmatprep.subr.mxu0 0.0
        %4711 = vmatpush1.msra.mxu0 %v4690
        %4712 = vmatprep.subr.mxu0 0.0
        %4713 = vmatpush1.msra.mxu0 %v4689
        %4714 = vmatprep.subr.mxu0 0.0
        %4715 = vmatpush1.msra.mxu0 %v4688
        %4716 = vmatprep.subr.mxu0 0.0
        %4717 = vmatpush1.msra.mxu0 %v4687
        %4718 = vmatprep.subr.mxu0 0.0
        %4719 = vmatpush1.msra.mxu0 %v4686
        %4720 = vmatprep.subr.mxu0 0.0
        %4721 = vmatpush1.msra.mxu0 %v4685
        %4722 = vmatprep.subr.mxu0 0.0
        %4723 = vmatpush1.msra.mxu0 %v4684
        %4724 = vmatprep.subr.mxu0 0.0
        %4725 = vmatpush2.msra.mxu0 0.0
        %4726 = vmatprep.subr.mxu0 0.0
        %4727 = vmatpush2.msra.mxu0 0.0
        %4728 = vmatprep.subr.mxu0 0.0
        %4729 = vmatpush2.msra.mxu0 0.0
        %4730 = vmatprep.subr.mxu0 0.0
        %4731 = vmatpush2.msra.mxu0 0.0
        %4732 = vmatprep.subr.mxu0 0.0
        %4733 = vmatpush2.msra.mxu0 0.0
        %4734 = vmatprep.subr.mxu0 0.0
        %4735 = vmatpush2.msra.mxu0 0.0
        %4736 = vmatprep.subr.mxu0 0.0
        %4737 = vmatpush2.msra.mxu0 0.0
        %4738 = vmatprep.subr.mxu0 0.0
        %4739 = vmatpush2.msra.mxu0 0.0
        %4740 = vmatprep.subr.mxu0 0.0
        %4741 = vmatpush2.msra.mxu0 0.0
        %4742 = vmatprep.subr.mxu0 0.0
        %4743 = vmatpush2.msra.mxu0 0.0
        %4744 = vmatprep.subr.mxu0 0.0
        %4745 = vmatpush2.msra.mxu0 0.0
        %4746 = vmatprep.subr.mxu0 0.0
        %4747 = vmatpush2.msra.mxu0 0.0
        %4748 = vmatprep.subr.mxu0 0.0
        %4749 = vmatpush2.msra.mxu0 0.0
        %4750 = vmatprep.subr.mxu0 0.0
        %4751 = vmatpush2.msra.mxu0 0.0
        %4752 = vmatprep.subr.mxu0 0.0
        %4753 = vmatpush2.msra.mxu0 0.0
        %4754 = vmatprep.subr.mxu0 0.0
        %4755 = vmatpush2.msra.mxu0 0.0
        %4756 = vmatprep.mubr.f32.mxu0 0.0
        %4757 = vmatmul.mubr.f32.gmra.mxu0 %v3175
        %v4758 = vpop.f32.mrf.mxu0
        %v4759 = vadd.f32 0.0, %v4758
        %v4760 = vpop.f32.mrf.mxu0
        %4761 = vmatprep.mubr.f32.mxu0 0.0
        %4762 = vmatmul.mubr.f32.gmra.mxu0 %v3178
        %v4763 = vpop.f32.mrf.mxu0
        %v4764 = vadd.f32 0.0, %v4763
        %v4765 = vpop.f32.mrf.mxu0
        %4766 = vdwg.mxu0
        %s4767 = scalar_lea.vmem %s3, 256
        %v4768 = vld [vmem:[%s4767] sm:$0xff]
        %v4769 = vld [vmem:[%s4767 + $0x8] sm:$0xff]
        %v4770 = vld [vmem:[%s4767 + $0x10] sm:$0xff]
        %v4771 = vld [vmem:[%s4767 + $0x18] sm:$0xff]
        %v4773 = vsel %vm3348, %v4768, 0
        %v4776 = vsel %vm3348, %v4769, 0
        %v4779 = vsel %vm3348, %v4770, 0
        %v4782 = vsel %vm3348, %v4771, 0
        %4784 = vmatprep.subr.mxu0 0.0
        %4785 = vmatpush1.msra.mxu0 0.0
        %4786 = vmatprep.subr.mxu0 0.0
        %4787 = vmatpush1.msra.mxu0 0.0
        %4788 = vmatprep.subr.mxu0 0.0
        %4789 = vmatpush1.msra.mxu0 0.0
        %4790 = vmatprep.subr.mxu0 0.0
        %4791 = vmatpush1.msra.mxu0 0.0
        %4792 = vmatprep.subr.mxu0 0.0
        %4793 = vmatpush1.msra.mxu0 0.0
        %4794 = vmatprep.subr.mxu0 0.0
        %4795 = vmatpush1.msra.mxu0 0.0
        %4796 = vmatprep.subr.mxu0 0.0
        %4797 = vmatpush1.msra.mxu0 0.0
        %4798 = vmatprep.subr.mxu0 0.0
        %4799 = vmatpush1.msra.mxu0 0.0
        %4800 = vmatprep.subr.mxu0 0.0
        %4801 = vmatpush1.msra.mxu0 0.0
        %4802 = vmatprep.subr.mxu0 0.0
        %4803 = vmatpush1.msra.mxu0 0.0
        %4804 = vmatprep.subr.mxu0 0.0
        %4805 = vmatpush1.msra.mxu0 0.0
        %4806 = vmatprep.subr.mxu0 0.0
        %4807 = vmatpush1.msra.mxu0 0.0
        %4808 = vmatprep.subr.mxu0 0.0
        %4809 = vmatpush1.msra.mxu0 0.0
        %4810 = vmatprep.subr.mxu0 0.0
        %4811 = vmatpush1.msra.mxu0 0.0
        %4812 = vmatprep.subr.mxu0 0.0
        %4813 = vmatpush1.msra.mxu0 %v4764
        %4814 = vmatprep.subr.mxu0 0.0
        %4815 = vmatpush1.msra.mxu0 %v4759
        %4816 = vmatprep.subr.mxu0 0.0
        %4817 = vmatpush2.msra.mxu0 0.0
        %4818 = vmatprep.subr.mxu0 0.0
        %4819 = vmatpush2.msra.mxu0 0.0
        %4820 = vmatprep.subr.mxu0 0.0
        %4821 = vmatpush2.msra.mxu0 0.0
        %4822 = vmatprep.subr.mxu0 0.0
        %4823 = vmatpush2.msra.mxu0 0.0
        %4824 = vmatprep.subr.mxu0 0.0
        %4825 = vmatpush2.msra.mxu0 0.0
        %4826 = vmatprep.subr.mxu0 0.0
        %4827 = vmatpush2.msra.mxu0 0.0
        %4828 = vmatprep.subr.mxu0 0.0
        %4829 = vmatpush2.msra.mxu0 0.0
        %4830 = vmatprep.subr.mxu0 0.0
        %4831 = vmatpush2.msra.mxu0 0.0
        %4832 = vmatprep.subr.mxu0 0.0
        %4833 = vmatpush2.msra.mxu0 0.0
        %4834 = vmatprep.subr.mxu0 0.0
        %4835 = vmatpush2.msra.mxu0 0.0
        %4836 = vmatprep.subr.mxu0 0.0
        %4837 = vmatpush2.msra.mxu0 0.0
        %4838 = vmatprep.subr.mxu0 0.0
        %4839 = vmatpush2.msra.mxu0 0.0
        %4840 = vmatprep.subr.mxu0 0.0
        %4841 = vmatpush2.msra.mxu0 0.0
        %4842 = vmatprep.subr.mxu0 0.0
        %4843 = vmatpush2.msra.mxu0 0.0
        %4844 = vmatprep.subr.mxu0 0.0
        %4845 = vmatpush2.msra.mxu0 0.0
        %4846 = vmatprep.subr.mxu0 0.0
        %4847 = vmatpush2.msra.mxu0 0.0
        %4848 = vmatprep.mubr.f32.mxu0 0.0
        %4849 = vmatmul.mubr.f32.gmra.mxu0 %v4773
        %v4850 = vpop.f32.mrf.mxu0
        %v4851 = vadd.f32 0.0, %v4850
        %v4852 = vpop.f32.mrf.mxu0
        %4853 = vmatprep.mubr.f32.mxu0 0.0
        %4854 = vmatmul.mubr.f32.gmra.mxu0 %v4776
        %v4855 = vpop.f32.mrf.mxu0
        %v4856 = vadd.f32 0.0, %v4855
        %v4857 = vpop.f32.mrf.mxu0
        %4858 = vmatprep.mubr.f32.mxu0 0.0
        %4859 = vmatmul.mubr.f32.gmra.mxu0 %v4779
        %v4860 = vpop.f32.mrf.mxu0
        %v4861 = vadd.f32 0.0, %v4860
        %v4862 = vpop.f32.mrf.mxu0
        %4863 = vmatprep.mubr.f32.mxu0 0.0
        %4864 = vmatmul.mubr.f32.gmra.mxu0 %v4782
        %v4865 = vpop.f32.mrf.mxu0
        %v4866 = vadd.f32 0.0, %v4865
        %v4867 = vpop.f32.mrf.mxu0
        %4868 = vdwg.mxu0
        %v4869 = vadd.f32 %v4679, %v4851
        %v4870 = vadd.f32 %v4680, %v4856
        %v4871 = vadd.f32 %v4681, %v4861
        %v4872 = vadd.f32 %v4682, %v4866
        %v4873 = vld [vmem:[%s4] sm:$0xff]
        %v4874 = vld [vmem:[%s4 + $0x8] sm:$0xff]
        %v4875 = vld [vmem:[%s4 + $0x10] sm:$0xff]
        %v4876 = vld [vmem:[%s4 + $0x18] sm:$0xff]
        %4878 = vset.pattern.permute.xlu0 0
        %4879 = vperm.xlu0 %4878, %v4873
        %v4880 = vpop.permute.xlu0 %4879
        %4883 = vset.pattern.permute.xlu0 0
        %4884 = vperm.xlu0 %4883, %v4874
        %v4885 = vpop.permute.xlu0 %4884
        %4888 = vset.pattern.permute.xlu0 0
        %4889 = vperm.xlu0 %4888, %v4875
        %v4890 = vpop.permute.xlu0 %4889
        %4893 = vset.pattern.permute.xlu0 0
        %4894 = vperm.xlu0 %4893, %v4876
        %v4895 = vpop.permute.xlu0 %4894
        %v4897 = vadd.f32 %v4869, %v4880
        %v4898 = vadd.f32 %v4870, %v4885
        %v4899 = vadd.f32 %v4871, %v4890
        %v4900 = vadd.f32 %v4872, %v4895
        %v4901 = vmax.f32 %v4897, 0.0
        %v4902 = vmax.f32 %v4898, 0.0
        %v4903 = vmax.f32 %v4899, 0.0
        %v4904 = vmax.f32 %v4900, 0.0
        %v4905 = vld [vmem:[#allocation9] sm:$0xff]
        %v4906 = vld [vmem:[#allocation9 + $0x8] sm:$0xff]
        %v4907 = vld [vmem:[#allocation9 + $0x10] sm:$0xff]
        %v4908 = vld [vmem:[#allocation9 + $0x18] sm:$0xff]
        %v4909 = vld [vmem:[#allocation9 + $0x20] sm:$0xff]
        %v4910 = vld [vmem:[#allocation9 + $0x28] sm:$0xff]
        %v4911 = vld [vmem:[#allocation9 + $0x30] sm:$0xff]
        %v4912 = vld [vmem:[#allocation9 + $0x38] sm:$0xff]
        %v4914 = vsel %vm3173, %v4901, 0
        %v4917 = vsel %vm3173, %v4902, 0
        %v4920 = vsel %vm3173, %v4903, 0
        %v4923 = vsel %vm3173, %v4904, 0
        %4925 = vmatprep.subr.mxu0 0.0
        %4926 = vmatpush1.msra.mxu0 0.0
        %4927 = vmatprep.subr.mxu0 0.0
        %4928 = vmatpush1.msra.mxu0 0.0
        %4929 = vmatprep.subr.mxu0 0.0
        %4930 = vmatpush1.msra.mxu0 0.0
        %4931 = vmatprep.subr.mxu0 0.0
        %4932 = vmatpush1.msra.mxu0 0.0
        %4933 = vmatprep.subr.mxu0 0.0
        %4934 = vmatpush1.msra.mxu0 0.0
        %4935 = vmatprep.subr.mxu0 0.0
        %4936 = vmatpush1.msra.mxu0 0.0
        %4937 = vmatprep.subr.mxu0 0.0
        %4938 = vmatpush1.msra.mxu0 0.0
        %4939 = vmatprep.subr.mxu0 0.0
        %4940 = vmatpush1.msra.mxu0 0.0
        %4941 = vmatprep.subr.mxu0 0.0
        %4942 = vmatpush1.msra.mxu0 %v4912
        %4943 = vmatprep.subr.mxu0 0.0
        %4944 = vmatpush1.msra.mxu0 %v4911
        %4945 = vmatprep.subr.mxu0 0.0
        %4946 = vmatpush1.msra.mxu0 %v4910
        %4947 = vmatprep.subr.mxu0 0.0
        %4948 = vmatpush1.msra.mxu0 %v4909
        %4949 = vmatprep.subr.mxu0 0.0
        %4950 = vmatpush1.msra.mxu0 %v4908
        %4951 = vmatprep.subr.mxu0 0.0
        %4952 = vmatpush1.msra.mxu0 %v4907
        %4953 = vmatprep.subr.mxu0 0.0
        %4954 = vmatpush1.msra.mxu0 %v4906
        %4955 = vmatprep.subr.mxu0 0.0
        %4956 = vmatpush1.msra.mxu0 %v4905
        %4957 = vmatprep.subr.mxu0 0.0
        %4958 = vmatpush2.msra.mxu0 0.0
        %4959 = vmatprep.subr.mxu0 0.0
        %4960 = vmatpush2.msra.mxu0 0.0
        %4961 = vmatprep.subr.mxu0 0.0
        %4962 = vmatpush2.msra.mxu0 0.0
        %4963 = vmatprep.subr.mxu0 0.0
        %4964 = vmatpush2.msra.mxu0 0.0
        %4965 = vmatprep.subr.mxu0 0.0
        %4966 = vmatpush2.msra.mxu0 0.0
        %4967 = vmatprep.subr.mxu0 0.0
        %4968 = vmatpush2.msra.mxu0 0.0
        %4969 = vmatprep.subr.mxu0 0.0
        %4970 = vmatpush2.msra.mxu0 0.0
        %4971 = vmatprep.subr.mxu0 0.0
        %4972 = vmatpush2.msra.mxu0 0.0
        %4973 = vmatprep.subr.mxu0 0.0
        %4974 = vmatpush2.msra.mxu0 0.0
        %4975 = vmatprep.subr.mxu0 0.0
        %4976 = vmatpush2.msra.mxu0 0.0
        %4977 = vmatprep.subr.mxu0 0.0
        %4978 = vmatpush2.msra.mxu0 0.0
        %4979 = vmatprep.subr.mxu0 0.0
        %4980 = vmatpush2.msra.mxu0 0.0
        %4981 = vmatprep.subr.mxu0 0.0
        %4982 = vmatpush2.msra.mxu0 0.0
        %4983 = vmatprep.subr.mxu0 0.0
        %4984 = vmatpush2.msra.mxu0 0.0
        %4985 = vmatprep.subr.mxu0 0.0
        %4986 = vmatpush2.msra.mxu0 0.0
        %4987 = vmatprep.subr.mxu0 0.0
        %4988 = vmatpush2.msra.mxu0 0.0
        %4989 = vmatprep.mubr.f32.mxu0 0.0
        %4990 = vmatmul.mubr.f32.gmra.mxu0 %v4914
        %v4991 = vpop.f32.mrf.mxu0
        %v4992 = vadd.f32 0.0, %v4991
        %v4993 = vpop.f32.mrf.mxu0
        %4994 = vmatprep.mubr.f32.mxu0 0.0
        %4995 = vmatmul.mubr.f32.gmra.mxu0 %v4917
        %v4996 = vpop.f32.mrf.mxu0
        %v4997 = vadd.f32 0.0, %v4996
        %v4998 = vpop.f32.mrf.mxu0
        %4999 = vmatprep.mubr.f32.mxu0 0.0
        %5000 = vmatmul.mubr.f32.gmra.mxu0 %v4920
        %v5001 = vpop.f32.mrf.mxu0
        %v5002 = vadd.f32 0.0, %v5001
        %v5003 = vpop.f32.mrf.mxu0
        %5004 = vmatprep.mubr.f32.mxu0 0.0
        %5005 = vmatmul.mubr.f32.gmra.mxu0 %v4923
        %v5006 = vpop.f32.mrf.mxu0
        %v5007 = vadd.f32 0.0, %v5006
        %v5008 = vpop.f32.mrf.mxu0
        %5009 = vdwg.mxu0
        %s5010 = scalar_lea.vmem [#allocation9], 64
        %v5011 = vld [vmem:[%s5010] sm:$0xff]
        %v5012 = vld [vmem:[%s5010 + $0x8] sm:$0xff]
        %v5013 = vld [vmem:[%s5010 + $0x10] sm:$0xff]
        %v5014 = vld [vmem:[%s5010 + $0x18] sm:$0xff]
        %v5015 = vld [vmem:[%s5010 + $0x20] sm:$0xff]
        %v5016 = vld [vmem:[%s5010 + $0x28] sm:$0xff]
        %v5017 = vld [vmem:[%s5010 + $0x30] sm:$0xff]
        %v5018 = vld [vmem:[%s5010 + $0x38] sm:$0xff]
        %5019 = vmatprep.subr.mxu0 0.0
        %5020 = vmatpush1.msra.mxu0 0.0
        %5021 = vmatprep.subr.mxu0 0.0
        %5022 = vmatpush1.msra.mxu0 0.0
        %5023 = vmatprep.subr.mxu0 0.0
        %5024 = vmatpush1.msra.mxu0 0.0
        %5025 = vmatprep.subr.mxu0 0.0
        %5026 = vmatpush1.msra.mxu0 0.0
        %5027 = vmatprep.subr.mxu0 0.0
        %5028 = vmatpush1.msra.mxu0 0.0
        %5029 = vmatprep.subr.mxu0 0.0
        %5030 = vmatpush1.msra.mxu0 0.0
        %5031 = vmatprep.subr.mxu0 0.0
        %5032 = vmatpush1.msra.mxu0 0.0
        %5033 = vmatprep.subr.mxu0 0.0
        %5034 = vmatpush1.msra.mxu0 0.0
        %5035 = vmatprep.subr.mxu0 0.0
        %5036 = vmatpush1.msra.mxu0 %v5018
        %5037 = vmatprep.subr.mxu0 0.0
        %5038 = vmatpush1.msra.mxu0 %v5017
        %5039 = vmatprep.subr.mxu0 0.0
        %5040 = vmatpush1.msra.mxu0 %v5016
        %5041 = vmatprep.subr.mxu0 0.0
        %5042 = vmatpush1.msra.mxu0 %v5015
        %5043 = vmatprep.subr.mxu0 0.0
        %5044 = vmatpush1.msra.mxu0 %v5014
        %5045 = vmatprep.subr.mxu0 0.0
        %5046 = vmatpush1.msra.mxu0 %v5013
        %5047 = vmatprep.subr.mxu0 0.0
        %5048 = vmatpush1.msra.mxu0 %v5012
        %5049 = vmatprep.subr.mxu0 0.0
        %5050 = vmatpush1.msra.mxu0 %v5011
        %5051 = vmatprep.subr.mxu0 0.0
        %5052 = vmatpush2.msra.mxu0 0.0
        %5053 = vmatprep.subr.mxu0 0.0
        %5054 = vmatpush2.msra.mxu0 0.0
        %5055 = vmatprep.subr.mxu0 0.0
        %5056 = vmatpush2.msra.mxu0 0.0
        %5057 = vmatprep.subr.mxu0 0.0
        %5058 = vmatpush2.msra.mxu0 0.0
        %5059 = vmatprep.subr.mxu0 0.0
        %5060 = vmatpush2.msra.mxu0 0.0
        %5061 = vmatprep.subr.mxu0 0.0
        %5062 = vmatpush2.msra.mxu0 0.0
        %5063 = vmatprep.subr.mxu0 0.0
        %5064 = vmatpush2.msra.mxu0 0.0
        %5065 = vmatprep.subr.mxu0 0.0
        %5066 = vmatpush2.msra.mxu0 0.0
        %5067 = vmatprep.subr.mxu0 0.0
        %5068 = vmatpush2.msra.mxu0 0.0
        %5069 = vmatprep.subr.mxu0 0.0
        %5070 = vmatpush2.msra.mxu0 0.0
        %5071 = vmatprep.subr.mxu0 0.0
        %5072 = vmatpush2.msra.mxu0 0.0
        %5073 = vmatprep.subr.mxu0 0.0
        %5074 = vmatpush2.msra.mxu0 0.0
        %5075 = vmatprep.subr.mxu0 0.0
        %5076 = vmatpush2.msra.mxu0 0.0
        %5077 = vmatprep.subr.mxu0 0.0
        %5078 = vmatpush2.msra.mxu0 0.0
        %5079 = vmatprep.subr.mxu0 0.0
        %5080 = vmatpush2.msra.mxu0 0.0
        %5081 = vmatprep.subr.mxu0 0.0
        %5082 = vmatpush2.msra.mxu0 0.0
        %5083 = vmatprep.mubr.f32.mxu0 0.0
        %5084 = vmatmul.mubr.f32.gmra.mxu0 %v4914
        %v5085 = vpop.f32.mrf.mxu0
        %v5086 = vadd.f32 0.0, %v5085
        %v5087 = vpop.f32.mrf.mxu0
        %5088 = vmatprep.mubr.f32.mxu0 0.0
        %5089 = vmatmul.mubr.f32.gmra.mxu0 %v4917
        %v5090 = vpop.f32.mrf.mxu0
        %v5091 = vadd.f32 0.0, %v5090
        %v5092 = vpop.f32.mrf.mxu0
        %5093 = vmatprep.mubr.f32.mxu0 0.0
        %5094 = vmatmul.mubr.f32.gmra.mxu0 %v4920
        %v5095 = vpop.f32.mrf.mxu0
        %v5096 = vadd.f32 0.0, %v5095
        %v5097 = vpop.f32.mrf.mxu0
        %5098 = vmatprep.mubr.f32.mxu0 0.0
        %5099 = vmatmul.mubr.f32.gmra.mxu0 %v4923
        %v5100 = vpop.f32.mrf.mxu0
        %v5101 = vadd.f32 0.0, %v5100
        %v5102 = vpop.f32.mrf.mxu0
        %5103 = vdwg.mxu0
        %v5104 = vmax.f32 %v4992, %v5086
        %v5105 = vmax.f32 %v4997, %v5091
        %v5106 = vmax.f32 %v5002, %v5096
        %v5107 = vmax.f32 %v5007, %v5101
        %s5108 = scalar_lea.vmem [#allocation9], 128
        %v5109 = vld [vmem:[%s5108] sm:$0xff]
        %v5110 = vld [vmem:[%s5108 + $0x8] sm:$0xff]
        %v5111 = vld [vmem:[%s5108 + $0x10] sm:$0xff]
        %v5112 = vld [vmem:[%s5108 + $0x18] sm:$0xff]
        %v5113 = vld [vmem:[%s5108 + $0x20] sm:$0xff]
        %v5114 = vld [vmem:[%s5108 + $0x28] sm:$0xff]
        %v5115 = vld [vmem:[%s5108 + $0x30] sm:$0xff]
        %v5116 = vld [vmem:[%s5108 + $0x38] sm:$0xff]
        %5117 = vmatprep.subr.mxu0 0.0
        %5118 = vmatpush1.msra.mxu0 0.0
        %5119 = vmatprep.subr.mxu0 0.0
        %5120 = vmatpush1.msra.mxu0 0.0
        %5121 = vmatprep.subr.mxu0 0.0
        %5122 = vmatpush1.msra.mxu0 0.0
        %5123 = vmatprep.subr.mxu0 0.0
        %5124 = vmatpush1.msra.mxu0 0.0
        %5125 = vmatprep.subr.mxu0 0.0
        %5126 = vmatpush1.msra.mxu0 0.0
        %5127 = vmatprep.subr.mxu0 0.0
        %5128 = vmatpush1.msra.mxu0 0.0
        %5129 = vmatprep.subr.mxu0 0.0
        %5130 = vmatpush1.msra.mxu0 0.0
        %5131 = vmatprep.subr.mxu0 0.0
        %5132 = vmatpush1.msra.mxu0 0.0
        %5133 = vmatprep.subr.mxu0 0.0
        %5134 = vmatpush1.msra.mxu0 %v5116
        %5135 = vmatprep.subr.mxu0 0.0
        %5136 = vmatpush1.msra.mxu0 %v5115
        %5137 = vmatprep.subr.mxu0 0.0
        %5138 = vmatpush1.msra.mxu0 %v5114
        %5139 = vmatprep.subr.mxu0 0.0
        %5140 = vmatpush1.msra.mxu0 %v5113
        %5141 = vmatprep.subr.mxu0 0.0
        %5142 = vmatpush1.msra.mxu0 %v5112
        %5143 = vmatprep.subr.mxu0 0.0
        %5144 = vmatpush1.msra.mxu0 %v5111
        %5145 = vmatprep.subr.mxu0 0.0
        %5146 = vmatpush1.msra.mxu0 %v5110
        %5147 = vmatprep.subr.mxu0 0.0
        %5148 = vmatpush1.msra.mxu0 %v5109
        %5149 = vmatprep.subr.mxu0 0.0
        %5150 = vmatpush2.msra.mxu0 0.0
        %5151 = vmatprep.subr.mxu0 0.0
        %5152 = vmatpush2.msra.mxu0 0.0
        %5153 = vmatprep.subr.mxu0 0.0
        %5154 = vmatpush2.msra.mxu0 0.0
        %5155 = vmatprep.subr.mxu0 0.0
        %5156 = vmatpush2.msra.mxu0 0.0
        %5157 = vmatprep.subr.mxu0 0.0
        %5158 = vmatpush2.msra.mxu0 0.0
        %5159 = vmatprep.subr.mxu0 0.0
        %5160 = vmatpush2.msra.mxu0 0.0
        %5161 = vmatprep.subr.mxu0 0.0
        %5162 = vmatpush2.msra.mxu0 0.0
        %5163 = vmatprep.subr.mxu0 0.0
        %5164 = vmatpush2.msra.mxu0 0.0
        %5165 = vmatprep.subr.mxu0 0.0
        %5166 = vmatpush2.msra.mxu0 0.0
        %5167 = vmatprep.subr.mxu0 0.0
        %5168 = vmatpush2.msra.mxu0 0.0
        %5169 = vmatprep.subr.mxu0 0.0
        %5170 = vmatpush2.msra.mxu0 0.0
        %5171 = vmatprep.subr.mxu0 0.0
        %5172 = vmatpush2.msra.mxu0 0.0
        %5173 = vmatprep.subr.mxu0 0.0
        %5174 = vmatpush2.msra.mxu0 0.0
        %5175 = vmatprep.subr.mxu0 0.0
        %5176 = vmatpush2.msra.mxu0 0.0
        %5177 = vmatprep.subr.mxu0 0.0
        %5178 = vmatpush2.msra.mxu0 0.0
        %5179 = vmatprep.subr.mxu0 0.0
        %5180 = vmatpush2.msra.mxu0 0.0
        %5181 = vmatprep.mubr.f32.mxu0 0.0
        %5182 = vmatmul.mubr.f32.gmra.mxu0 %v4914
        %v5183 = vpop.f32.mrf.mxu0
        %v5184 = vadd.f32 0.0, %v5183
        %v5185 = vpop.f32.mrf.mxu0
        %5186 = vmatprep.mubr.f32.mxu0 0.0
        %5187 = vmatmul.mubr.f32.gmra.mxu0 %v4917
        %v5188 = vpop.f32.mrf.mxu0
        %v5189 = vadd.f32 0.0, %v5188
        %v5190 = vpop.f32.mrf.mxu0
        %5191 = vmatprep.mubr.f32.mxu0 0.0
        %5192 = vmatmul.mubr.f32.gmra.mxu0 %v4920
        %v5193 = vpop.f32.mrf.mxu0
        %v5194 = vadd.f32 0.0, %v5193
        %v5195 = vpop.f32.mrf.mxu0
        %5196 = vmatprep.mubr.f32.mxu0 0.0
        %5197 = vmatmul.mubr.f32.gmra.mxu0 %v4923
        %v5198 = vpop.f32.mrf.mxu0
        %v5199 = vadd.f32 0.0, %v5198
        %v5200 = vpop.f32.mrf.mxu0
        %5201 = vdwg.mxu0
        %v5202 = vmax.f32 %v5104, %v5184
        %v5203 = vmax.f32 %v5105, %v5189
        %v5204 = vmax.f32 %v5106, %v5194
        %v5205 = vmax.f32 %v5107, %v5199
        %s5206 = scalar_lea.vmem [#allocation9], 192
        %v5207 = vld [vmem:[%s5206] sm:$0xff]
        %v5208 = vld [vmem:[%s5206 + $0x8] sm:$0xff]
        %v5209 = vld [vmem:[%s5206 + $0x10] sm:$0xff]
        %v5210 = vld [vmem:[%s5206 + $0x18] sm:$0xff]
        %v5211 = vld [vmem:[%s5206 + $0x20] sm:$0xff]
        %v5212 = vld [vmem:[%s5206 + $0x28] sm:$0xff]
        %v5213 = vld [vmem:[%s5206 + $0x30] sm:$0xff]
        %v5214 = vld [vmem:[%s5206 + $0x38] sm:$0xff]
        %5215 = vmatprep.subr.mxu0 0.0
        %5216 = vmatpush1.msra.mxu0 0.0
        %5217 = vmatprep.subr.mxu0 0.0
        %5218 = vmatpush1.msra.mxu0 0.0
        %5219 = vmatprep.subr.mxu0 0.0
        %5220 = vmatpush1.msra.mxu0 0.0
        %5221 = vmatprep.subr.mxu0 0.0
        %5222 = vmatpush1.msra.mxu0 0.0
        %5223 = vmatprep.subr.mxu0 0.0
        %5224 = vmatpush1.msra.mxu0 0.0
        %5225 = vmatprep.subr.mxu0 0.0
        %5226 = vmatpush1.msra.mxu0 0.0
        %5227 = vmatprep.subr.mxu0 0.0
        %5228 = vmatpush1.msra.mxu0 0.0
        %5229 = vmatprep.subr.mxu0 0.0
        %5230 = vmatpush1.msra.mxu0 0.0
        %5231 = vmatprep.subr.mxu0 0.0
        %5232 = vmatpush1.msra.mxu0 %v5214
        %5233 = vmatprep.subr.mxu0 0.0
        %5234 = vmatpush1.msra.mxu0 %v5213
        %5235 = vmatprep.subr.mxu0 0.0
        %5236 = vmatpush1.msra.mxu0 %v5212
        %5237 = vmatprep.subr.mxu0 0.0
        %5238 = vmatpush1.msra.mxu0 %v5211
        %5239 = vmatprep.subr.mxu0 0.0
        %5240 = vmatpush1.msra.mxu0 %v5210
        %5241 = vmatprep.subr.mxu0 0.0
        %5242 = vmatpush1.msra.mxu0 %v5209
        %5243 = vmatprep.subr.mxu0 0.0
        %5244 = vmatpush1.msra.mxu0 %v5208
        %5245 = vmatprep.subr.mxu0 0.0
        %5246 = vmatpush1.msra.mxu0 %v5207
        %5247 = vmatprep.subr.mxu0 0.0
        %5248 = vmatpush2.msra.mxu0 0.0
        %5249 = vmatprep.subr.mxu0 0.0
        %5250 = vmatpush2.msra.mxu0 0.0
        %5251 = vmatprep.subr.mxu0 0.0
        %5252 = vmatpush2.msra.mxu0 0.0
        %5253 = vmatprep.subr.mxu0 0.0
        %5254 = vmatpush2.msra.mxu0 0.0
        %5255 = vmatprep.subr.mxu0 0.0
        %5256 = vmatpush2.msra.mxu0 0.0
        %5257 = vmatprep.subr.mxu0 0.0
        %5258 = vmatpush2.msra.mxu0 0.0
        %5259 = vmatprep.subr.mxu0 0.0
        %5260 = vmatpush2.msra.mxu0 0.0
        %5261 = vmatprep.subr.mxu0 0.0
        %5262 = vmatpush2.msra.mxu0 0.0
        %5263 = vmatprep.subr.mxu0 0.0
        %5264 = vmatpush2.msra.mxu0 0.0
        %5265 = vmatprep.subr.mxu0 0.0
        %5266 = vmatpush2.msra.mxu0 0.0
        %5267 = vmatprep.subr.mxu0 0.0
        %5268 = vmatpush2.msra.mxu0 0.0
        %5269 = vmatprep.subr.mxu0 0.0
        %5270 = vmatpush2.msra.mxu0 0.0
        %5271 = vmatprep.subr.mxu0 0.0
        %5272 = vmatpush2.msra.mxu0 0.0
        %5273 = vmatprep.subr.mxu0 0.0
        %5274 = vmatpush2.msra.mxu0 0.0
        %5275 = vmatprep.subr.mxu0 0.0
        %5276 = vmatpush2.msra.mxu0 0.0
        %5277 = vmatprep.subr.mxu0 0.0
        %5278 = vmatpush2.msra.mxu0 0.0
        %5279 = vmatprep.mubr.f32.mxu0 0.0
        %5280 = vmatmul.mubr.f32.gmra.mxu0 %v4914
        %v5281 = vpop.f32.mrf.mxu0
        %v5282 = vadd.f32 0.0, %v5281
        %v5283 = vpop.f32.mrf.mxu0
        %5284 = vmatprep.mubr.f32.mxu0 0.0
        %5285 = vmatmul.mubr.f32.gmra.mxu0 %v4917
        %v5286 = vpop.f32.mrf.mxu0
        %v5287 = vadd.f32 0.0, %v5286
        %v5288 = vpop.f32.mrf.mxu0
        %5289 = vmatprep.mubr.f32.mxu0 0.0
        %5290 = vmatmul.mubr.f32.gmra.mxu0 %v4920
        %v5291 = vpop.f32.mrf.mxu0
        %v5292 = vadd.f32 0.0, %v5291
        %v5293 = vpop.f32.mrf.mxu0
        %5294 = vmatprep.mubr.f32.mxu0 0.0
        %5295 = vmatmul.mubr.f32.gmra.mxu0 %v4923
        %v5296 = vpop.f32.mrf.mxu0
        %v5297 = vadd.f32 0.0, %v5296
        %v5298 = vpop.f32.mrf.mxu0
        %5299 = vdwg.mxu0
        %v5300 = vmax.f32 %v5202, %v5282
        %v5301 = vmax.f32 %v5203, %v5287
        %v5302 = vmax.f32 %v5204, %v5292
        %v5303 = vmax.f32 %v5205, %v5297
        %v5304 = vld [vmem:[#allocation6] sm:$0xff]
        %v5305 = vld [vmem:[#allocation6 + $0x8] sm:$0xff]
        %v5307 = vsel %vm3348, %v5300, 0
        %v5310 = vsel %vm3348, %v5301, 0
        %v5313 = vsel %vm3348, %v5302, 0
        %v5316 = vsel %vm3348, %v5303, 0
        %5318 = vmatprep.subr.mxu0 0.0
        %5319 = vmatpush1.msra.mxu0 0.0
        %5320 = vmatprep.subr.mxu0 0.0
        %5321 = vmatpush1.msra.mxu0 0.0
        %5322 = vmatprep.subr.mxu0 0.0
        %5323 = vmatpush1.msra.mxu0 0.0
        %5324 = vmatprep.subr.mxu0 0.0
        %5325 = vmatpush1.msra.mxu0 0.0
        %5326 = vmatprep.subr.mxu0 0.0
        %5327 = vmatpush1.msra.mxu0 0.0
        %5328 = vmatprep.subr.mxu0 0.0
        %5329 = vmatpush1.msra.mxu0 0.0
        %5330 = vmatprep.subr.mxu0 0.0
        %5331 = vmatpush1.msra.mxu0 0.0
        %5332 = vmatprep.subr.mxu0 0.0
        %5333 = vmatpush1.msra.mxu0 0.0
        %5334 = vmatprep.subr.mxu0 0.0
        %5335 = vmatpush1.msra.mxu0 0.0
        %5336 = vmatprep.subr.mxu0 0.0
        %5337 = vmatpush1.msra.mxu0 0.0
        %5338 = vmatprep.subr.mxu0 0.0
        %5339 = vmatpush1.msra.mxu0 0.0
        %5340 = vmatprep.subr.mxu0 0.0
        %5341 = vmatpush1.msra.mxu0 0.0
        %5342 = vmatprep.subr.mxu0 0.0
        %5343 = vmatpush1.msra.mxu0 0.0
        %5344 = vmatprep.subr.mxu0 0.0
        %5345 = vmatpush1.msra.mxu0 0.0
        %5346 = vmatprep.subr.mxu0 0.0
        %5347 = vmatpush1.msra.mxu0 %v5305
        %5348 = vmatprep.subr.mxu0 0.0
        %5349 = vmatpush1.msra.mxu0 %v5304
        %5350 = vmatprep.subr.mxu0 0.0
        %5351 = vmatpush2.msra.mxu0 0.0
        %5352 = vmatprep.subr.mxu0 0.0
        %5353 = vmatpush2.msra.mxu0 0.0
        %5354 = vmatprep.subr.mxu0 0.0
        %5355 = vmatpush2.msra.mxu0 0.0
        %5356 = vmatprep.subr.mxu0 0.0
        %5357 = vmatpush2.msra.mxu0 0.0
        %5358 = vmatprep.subr.mxu0 0.0
        %5359 = vmatpush2.msra.mxu0 0.0
        %5360 = vmatprep.subr.mxu0 0.0
        %5361 = vmatpush2.msra.mxu0 0.0
        %5362 = vmatprep.subr.mxu0 0.0
        %5363 = vmatpush2.msra.mxu0 0.0
        %5364 = vmatprep.subr.mxu0 0.0
        %5365 = vmatpush2.msra.mxu0 0.0
        %5366 = vmatprep.subr.mxu0 0.0
        %5367 = vmatpush2.msra.mxu0 0.0
        %5368 = vmatprep.subr.mxu0 0.0
        %5369 = vmatpush2.msra.mxu0 0.0
        %5370 = vmatprep.subr.mxu0 0.0
        %5371 = vmatpush2.msra.mxu0 0.0
        %5372 = vmatprep.subr.mxu0 0.0
        %5373 = vmatpush2.msra.mxu0 0.0
        %5374 = vmatprep.subr.mxu0 0.0
        %5375 = vmatpush2.msra.mxu0 0.0
        %5376 = vmatprep.subr.mxu0 0.0
        %5377 = vmatpush2.msra.mxu0 0.0
        %5378 = vmatprep.subr.mxu0 0.0
        %5379 = vmatpush2.msra.mxu0 0.0
        %5380 = vmatprep.subr.mxu0 0.0
        %5381 = vmatpush2.msra.mxu0 0.0
        %5382 = vmatprep.mubr.f32.mxu0 0.0
        %5383 = vmatmul.mubr.f32.gmra.mxu0 %v5307
        %v5384 = vpop.f32.mrf.mxu0
        %v5385 = vadd.f32 0.0, %v5384
        %v5386 = vpop.f32.mrf.mxu0
        %5387 = vmatprep.mubr.f32.mxu0 0.0
        %5388 = vmatmul.mubr.f32.gmra.mxu0 %v5310
        %v5389 = vpop.f32.mrf.mxu0
        %v5390 = vadd.f32 0.0, %v5389
        %v5391 = vpop.f32.mrf.mxu0
        %5392 = vmatprep.mubr.f32.mxu0 0.0
        %5393 = vmatmul.mubr.f32.gmra.mxu0 %v5313
        %v5394 = vpop.f32.mrf.mxu0
        %v5395 = vadd.f32 0.0, %v5394
        %v5396 = vpop.f32.mrf.mxu0
        %5397 = vmatprep.mubr.f32.mxu0 0.0
        %5398 = vmatmul.mubr.f32.gmra.mxu0 %v5316
        %v5399 = vpop.f32.mrf.mxu0
        %v5400 = vadd.f32 0.0, %v5399
        %v5401 = vpop.f32.mrf.mxu0
        %5402 = vdwg.mxu0
        %v5403 = vld [vmem:[%s5] sm:$0xff]
        %v5404 = vld [vmem:[%s5 + $0x8] sm:$0xff]
        %v5405 = vld [vmem:[%s5 + $0x10] sm:$0xff]
        %v5406 = vld [vmem:[%s5 + $0x18] sm:$0xff]
        %s5407 = scalar_lea.vmem [#allocation6], 16
        %v5408 = vld [vmem:[%s5407] sm:$0xff]
        %v5409 = vld [vmem:[%s5407 + $0x8] sm:$0xff]
        %5410 = vmatprep.subr.mxu0 0.0
        %5411 = vmatpush1.msra.mxu0 0.0
        %5412 = vmatprep.subr.mxu0 0.0
        %5413 = vmatpush1.msra.mxu0 0.0
        %5414 = vmatprep.subr.mxu0 0.0
        %5415 = vmatpush1.msra.mxu0 0.0
        %5416 = vmatprep.subr.mxu0 0.0
        %5417 = vmatpush1.msra.mxu0 0.0
        %5418 = vmatprep.subr.mxu0 0.0
        %5419 = vmatpush1.msra.mxu0 0.0
        %5420 = vmatprep.subr.mxu0 0.0
        %5421 = vmatpush1.msra.mxu0 0.0
        %5422 = vmatprep.subr.mxu0 0.0
        %5423 = vmatpush1.msra.mxu0 0.0
        %5424 = vmatprep.subr.mxu0 0.0
        %5425 = vmatpush1.msra.mxu0 0.0
        %5426 = vmatprep.subr.mxu0 0.0
        %5427 = vmatpush1.msra.mxu0 0.0
        %5428 = vmatprep.subr.mxu0 0.0
        %5429 = vmatpush1.msra.mxu0 0.0
        %5430 = vmatprep.subr.mxu0 0.0
        %5431 = vmatpush1.msra.mxu0 0.0
        %5432 = vmatprep.subr.mxu0 0.0
        %5433 = vmatpush1.msra.mxu0 0.0
        %5434 = vmatprep.subr.mxu0 0.0
        %5435 = vmatpush1.msra.mxu0 0.0
        %5436 = vmatprep.subr.mxu0 0.0
        %5437 = vmatpush1.msra.mxu0 0.0
        %5438 = vmatprep.subr.mxu0 0.0
        %5439 = vmatpush1.msra.mxu0 %v5409
        %5440 = vmatprep.subr.mxu0 0.0
        %5441 = vmatpush1.msra.mxu0 %v5408
        %5442 = vmatprep.subr.mxu0 0.0
        %5443 = vmatpush2.msra.mxu0 0.0
        %5444 = vmatprep.subr.mxu0 0.0
        %5445 = vmatpush2.msra.mxu0 0.0
        %5446 = vmatprep.subr.mxu0 0.0
        %5447 = vmatpush2.msra.mxu0 0.0
        %5448 = vmatprep.subr.mxu0 0.0
        %5449 = vmatpush2.msra.mxu0 0.0
        %5450 = vmatprep.subr.mxu0 0.0
        %5451 = vmatpush2.msra.mxu0 0.0
        %5452 = vmatprep.subr.mxu0 0.0
        %5453 = vmatpush2.msra.mxu0 0.0
        %5454 = vmatprep.subr.mxu0 0.0
        %5455 = vmatpush2.msra.mxu0 0.0
        %5456 = vmatprep.subr.mxu0 0.0
        %5457 = vmatpush2.msra.mxu0 0.0
        %5458 = vmatprep.subr.mxu0 0.0
        %5459 = vmatpush2.msra.mxu0 0.0
        %5460 = vmatprep.subr.mxu0 0.0
        %5461 = vmatpush2.msra.mxu0 0.0
        %5462 = vmatprep.subr.mxu0 0.0
        %5463 = vmatpush2.msra.mxu0 0.0
        %5464 = vmatprep.subr.mxu0 0.0
        %5465 = vmatpush2.msra.mxu0 0.0
        %5466 = vmatprep.subr.mxu0 0.0
        %5467 = vmatpush2.msra.mxu0 0.0
        %5468 = vmatprep.subr.mxu0 0.0
        %5469 = vmatpush2.msra.mxu0 0.0
        %5470 = vmatprep.subr.mxu0 0.0
        %5471 = vmatpush2.msra.mxu0 0.0
        %5472 = vmatprep.subr.mxu0 0.0
        %5473 = vmatpush2.msra.mxu0 0.0
        %5474 = vmatprep.mubr.f32.mxu0 0.0
        %5475 = vmatmul.mubr.f32.gmra.mxu0 %v5307
        %v5476 = vpop.f32.mrf.mxu0
        %v5477 = vadd.f32 0.0, %v5476
        %v5478 = vpop.f32.mrf.mxu0
        %5479 = vmatprep.mubr.f32.mxu0 0.0
        %5480 = vmatmul.mubr.f32.gmra.mxu0 %v5310
        %v5481 = vpop.f32.mrf.mxu0
        %v5482 = vadd.f32 0.0, %v5481
        %v5483 = vpop.f32.mrf.mxu0
        %5484 = vmatprep.mubr.f32.mxu0 0.0
        %5485 = vmatmul.mubr.f32.gmra.mxu0 %v5313
        %v5486 = vpop.f32.mrf.mxu0
        %v5487 = vadd.f32 0.0, %v5486
        %v5488 = vpop.f32.mrf.mxu0
        %5489 = vmatprep.mubr.f32.mxu0 0.0
        %5490 = vmatmul.mubr.f32.gmra.mxu0 %v5316
        %v5491 = vpop.f32.mrf.mxu0
        %v5492 = vadd.f32 0.0, %v5491
        %v5493 = vpop.f32.mrf.mxu0
        %5494 = vdwg.mxu0
        %s5495 = scalar_lea.vmem %s5, 32
        %v5496 = vld [vmem:[%s5495] sm:$0xff]
        %v5497 = vld [vmem:[%s5495 + $0x8] sm:$0xff]
        %v5498 = vld [vmem:[%s5495 + $0x10] sm:$0xff]
        %v5499 = vld [vmem:[%s5495 + $0x18] sm:$0xff]
        %vm5500 = vcmask 261120
        %v5502 = vsel %vm5500, %v5496, 0
        %v5505 = vsel %vm5500, %v5497, 0
        %v5508 = vsel %vm5500, %v5498, 0
        %v5511 = vsel %vm5500, %v5499, 0
        %5513 = vmatprep.subr.mxu0 0.0
        %5514 = vmatpush1.msra.mxu0 0.0
        %5515 = vmatprep.subr.mxu0 0.0
        %5516 = vmatpush1.msra.mxu0 0.0
        %5517 = vmatprep.subr.mxu0 0.0
        %5518 = vmatpush1.msra.mxu0 0.0
        %5519 = vmatprep.subr.mxu0 0.0
        %5520 = vmatpush1.msra.mxu0 0.0
        %5521 = vmatprep.subr.mxu0 0.0
        %5522 = vmatpush1.msra.mxu0 0.0
        %5523 = vmatprep.subr.mxu0 0.0
        %5524 = vmatpush1.msra.mxu0 0.0
        %5525 = vmatprep.subr.mxu0 0.0
        %5526 = vmatpush1.msra.mxu0 0.0
        %5527 = vmatprep.subr.mxu0 0.0
        %5528 = vmatpush1.msra.mxu0 0.0
        %5529 = vmatprep.subr.mxu0 0.0
        %5530 = vmatpush1.msra.mxu0 0.0
        %5531 = vmatprep.subr.mxu0 0.0
        %5532 = vmatpush1.msra.mxu0 0.0
        %5533 = vmatprep.subr.mxu0 0.0
        %5534 = vmatpush1.msra.mxu0 0.0
        %5535 = vmatprep.subr.mxu0 0.0
        %5536 = vmatpush1.msra.mxu0 0.0
        %5537 = vmatprep.subr.mxu0 0.0
        %5538 = vmatpush1.msra.mxu0 %v5492
        %5539 = vmatprep.subr.mxu0 0.0
        %5540 = vmatpush1.msra.mxu0 %v5487
        %5541 = vmatprep.subr.mxu0 0.0
        %5542 = vmatpush1.msra.mxu0 %v5482
        %5543 = vmatprep.subr.mxu0 0.0
        %5544 = vmatpush1.msra.mxu0 %v5477
        %5545 = vmatprep.subr.mxu0 0.0
        %5546 = vmatpush2.msra.mxu0 0.0
        %5547 = vmatprep.subr.mxu0 0.0
        %5548 = vmatpush2.msra.mxu0 0.0
        %5549 = vmatprep.subr.mxu0 0.0
        %5550 = vmatpush2.msra.mxu0 0.0
        %5551 = vmatprep.subr.mxu0 0.0
        %5552 = vmatpush2.msra.mxu0 0.0
        %5553 = vmatprep.subr.mxu0 0.0
        %5554 = vmatpush2.msra.mxu0 0.0
        %5555 = vmatprep.subr.mxu0 0.0
        %5556 = vmatpush2.msra.mxu0 0.0
        %5557 = vmatprep.subr.mxu0 0.0
        %5558 = vmatpush2.msra.mxu0 0.0
        %5559 = vmatprep.subr.mxu0 0.0
        %5560 = vmatpush2.msra.mxu0 0.0
        %5561 = vmatprep.subr.mxu0 0.0
        %5562 = vmatpush2.msra.mxu0 0.0
        %5563 = vmatprep.subr.mxu0 0.0
        %5564 = vmatpush2.msra.mxu0 0.0
        %5565 = vmatprep.subr.mxu0 0.0
        %5566 = vmatpush2.msra.mxu0 0.0
        %5567 = vmatprep.subr.mxu0 0.0
        %5568 = vmatpush2.msra.mxu0 0.0
        %5569 = vmatprep.subr.mxu0 0.0
        %5570 = vmatpush2.msra.mxu0 0.0
        %5571 = vmatprep.subr.mxu0 0.0
        %5572 = vmatpush2.msra.mxu0 0.0
        %5573 = vmatprep.subr.mxu0 0.0
        %5574 = vmatpush2.msra.mxu0 0.0
        %5575 = vmatprep.subr.mxu0 0.0
        %5576 = vmatpush2.msra.mxu0 0.0
        %5577 = vmatprep.mubr.f32.mxu0 0.0
        %5578 = vmatmul.mubr.f32.gmra.mxu0 %v5502
        %v5579 = vpop.f32.mrf.mxu0
        %v5580 = vadd.f32 0.0, %v5579
        %v5581 = vpop.f32.mrf.mxu0
        %5582 = vmatprep.mubr.f32.mxu0 0.0
        %5583 = vmatmul.mubr.f32.gmra.mxu0 %v5505
        %v5584 = vpop.f32.mrf.mxu0
        %v5585 = vadd.f32 0.0, %v5584
        %v5586 = vpop.f32.mrf.mxu0
        %5587 = vmatprep.mubr.f32.mxu0 0.0
        %5588 = vmatmul.mubr.f32.gmra.mxu0 %v5508
        %v5589 = vpop.f32.mrf.mxu0
        %v5590 = vadd.f32 0.0, %v5589
        %v5591 = vpop.f32.mrf.mxu0
        %5592 = vmatprep.mubr.f32.mxu0 0.0
        %5593 = vmatmul.mubr.f32.gmra.mxu0 %v5511
        %v5594 = vpop.f32.mrf.mxu0
        %v5595 = vadd.f32 0.0, %v5594
        %v5596 = vpop.f32.mrf.mxu0
        %5597 = vdwg.mxu0
        %v5599 = vsel %vm5500, %v5403, 0
        %v5602 = vsel %vm5500, %v5404, 0
        %v5605 = vsel %vm5500, %v5405, 0
        %v5608 = vsel %vm5500, %v5406, 0
        %5610 = vmatprep.subr.mxu0 0.0
        %5611 = vmatpush1.msra.mxu0 0.0
        %5612 = vmatprep.subr.mxu0 0.0
        %5613 = vmatpush1.msra.mxu0 0.0
        %5614 = vmatprep.subr.mxu0 0.0
        %5615 = vmatpush1.msra.mxu0 0.0
        %5616 = vmatprep.subr.mxu0 0.0
        %5617 = vmatpush1.msra.mxu0 0.0
        %5618 = vmatprep.subr.mxu0 0.0
        %5619 = vmatpush1.msra.mxu0 0.0
        %5620 = vmatprep.subr.mxu0 0.0
        %5621 = vmatpush1.msra.mxu0 0.0
        %5622 = vmatprep.subr.mxu0 0.0
        %5623 = vmatpush1.msra.mxu0 0.0
        %5624 = vmatprep.subr.mxu0 0.0
        %5625 = vmatpush1.msra.mxu0 0.0
        %5626 = vmatprep.subr.mxu0 0.0
        %5627 = vmatpush1.msra.mxu0 0.0
        %5628 = vmatprep.subr.mxu0 0.0
        %5629 = vmatpush1.msra.mxu0 0.0
        %5630 = vmatprep.subr.mxu0 0.0
        %5631 = vmatpush1.msra.mxu0 0.0
        %5632 = vmatprep.subr.mxu0 0.0
        %5633 = vmatpush1.msra.mxu0 0.0
        %5634 = vmatprep.subr.mxu0 0.0
        %5635 = vmatpush1.msra.mxu0 %v5400
        %5636 = vmatprep.subr.mxu0 0.0
        %5637 = vmatpush1.msra.mxu0 %v5395
        %5638 = vmatprep.subr.mxu0 0.0
        %5639 = vmatpush1.msra.mxu0 %v5390
        %5640 = vmatprep.subr.mxu0 0.0
        %5641 = vmatpush1.msra.mxu0 %v5385
        %5642 = vmatprep.subr.mxu0 0.0
        %5643 = vmatpush2.msra.mxu0 0.0
        %5644 = vmatprep.subr.mxu0 0.0
        %5645 = vmatpush2.msra.mxu0 0.0
        %5646 = vmatprep.subr.mxu0 0.0
        %5647 = vmatpush2.msra.mxu0 0.0
        %5648 = vmatprep.subr.mxu0 0.0
        %5649 = vmatpush2.msra.mxu0 0.0
        %5650 = vmatprep.subr.mxu0 0.0
        %5651 = vmatpush2.msra.mxu0 0.0
        %5652 = vmatprep.subr.mxu0 0.0
        %5653 = vmatpush2.msra.mxu0 0.0
        %5654 = vmatprep.subr.mxu0 0.0
        %5655 = vmatpush2.msra.mxu0 0.0
        %5656 = vmatprep.subr.mxu0 0.0
        %5657 = vmatpush2.msra.mxu0 0.0
        %5658 = vmatprep.subr.mxu0 0.0
        %5659 = vmatpush2.msra.mxu0 0.0
        %5660 = vmatprep.subr.mxu0 0.0
        %5661 = vmatpush2.msra.mxu0 0.0
        %5662 = vmatprep.subr.mxu0 0.0
        %5663 = vmatpush2.msra.mxu0 0.0
        %5664 = vmatprep.subr.mxu0 0.0
        %5665 = vmatpush2.msra.mxu0 0.0
        %5666 = vmatprep.subr.mxu0 0.0
        %5667 = vmatpush2.msra.mxu0 0.0
        %5668 = vmatprep.subr.mxu0 0.0
        %5669 = vmatpush2.msra.mxu0 0.0
        %5670 = vmatprep.subr.mxu0 0.0
        %5671 = vmatpush2.msra.mxu0 0.0
        %5672 = vmatprep.subr.mxu0 0.0
        %5673 = vmatpush2.msra.mxu0 0.0
        %5674 = vmatprep.mubr.f32.mxu0 0.0
        %5675 = vmatmul.mubr.f32.gmra.mxu0 %v5599
        %v5676 = vpop.f32.mrf.mxu0
        %v5677 = vadd.f32 %v5580, %v5676
        %v5678 = vpop.f32.mrf.mxu0
        %5679 = vmatprep.mubr.f32.mxu0 0.0
        %5680 = vmatmul.mubr.f32.gmra.mxu0 %v5602
        %v5681 = vpop.f32.mrf.mxu0
        %v5682 = vadd.f32 %v5585, %v5681
        %v5683 = vpop.f32.mrf.mxu0
        %5684 = vmatprep.mubr.f32.mxu0 0.0
        %5685 = vmatmul.mubr.f32.gmra.mxu0 %v5605
        %v5686 = vpop.f32.mrf.mxu0
        %v5687 = vadd.f32 %v5590, %v5686
        %v5688 = vpop.f32.mrf.mxu0
        %5689 = vmatprep.mubr.f32.mxu0 0.0
        %5690 = vmatmul.mubr.f32.gmra.mxu0 %v5608
        %v5691 = vpop.f32.mrf.mxu0
        %v5692 = vadd.f32 %v5595, %v5691
        %v5693 = vpop.f32.mrf.mxu0
        %5694 = vdwg.mxu0
        %s5695 = scalar_lea.vmem [#allocation6], 32
        %v5696 = vld [vmem:[%s5695] sm:$0xff]
        %v5697 = vld [vmem:[%s5695 + $0x8] sm:$0xff]
        %5698 = vmatprep.subr.mxu0 0.0
        %5699 = vmatpush1.msra.mxu0 0.0
        %5700 = vmatprep.subr.mxu0 0.0
        %5701 = vmatpush1.msra.mxu0 0.0
        %5702 = vmatprep.subr.mxu0 0.0
        %5703 = vmatpush1.msra.mxu0 0.0
        %5704 = vmatprep.subr.mxu0 0.0
        %5705 = vmatpush1.msra.mxu0 0.0
        %5706 = vmatprep.subr.mxu0 0.0
        %5707 = vmatpush1.msra.mxu0 0.0
        %5708 = vmatprep.subr.mxu0 0.0
        %5709 = vmatpush1.msra.mxu0 0.0
        %5710 = vmatprep.subr.mxu0 0.0
        %5711 = vmatpush1.msra.mxu0 0.0
        %5712 = vmatprep.subr.mxu0 0.0
        %5713 = vmatpush1.msra.mxu0 0.0
        %5714 = vmatprep.subr.mxu0 0.0
        %5715 = vmatpush1.msra.mxu0 0.0
        %5716 = vmatprep.subr.mxu0 0.0
        %5717 = vmatpush1.msra.mxu0 0.0
        %5718 = vmatprep.subr.mxu0 0.0
        %5719 = vmatpush1.msra.mxu0 0.0
        %5720 = vmatprep.subr.mxu0 0.0
        %5721 = vmatpush1.msra.mxu0 0.0
        %5722 = vmatprep.subr.mxu0 0.0
        %5723 = vmatpush1.msra.mxu0 0.0
        %5724 = vmatprep.subr.mxu0 0.0
        %5725 = vmatpush1.msra.mxu0 0.0
        %5726 = vmatprep.subr.mxu0 0.0
        %5727 = vmatpush1.msra.mxu0 %v5697
        %5728 = vmatprep.subr.mxu0 0.0
        %5729 = vmatpush1.msra.mxu0 %v5696
        %5730 = vmatprep.subr.mxu0 0.0
        %5731 = vmatpush2.msra.mxu0 0.0
        %5732 = vmatprep.subr.mxu0 0.0
        %5733 = vmatpush2.msra.mxu0 0.0
        %5734 = vmatprep.subr.mxu0 0.0
        %5735 = vmatpush2.msra.mxu0 0.0
        %5736 = vmatprep.subr.mxu0 0.0
        %5737 = vmatpush2.msra.mxu0 0.0
        %5738 = vmatprep.subr.mxu0 0.0
        %5739 = vmatpush2.msra.mxu0 0.0
        %5740 = vmatprep.subr.mxu0 0.0
        %5741 = vmatpush2.msra.mxu0 0.0
        %5742 = vmatprep.subr.mxu0 0.0
        %5743 = vmatpush2.msra.mxu0 0.0
        %5744 = vmatprep.subr.mxu0 0.0
        %5745 = vmatpush2.msra.mxu0 0.0
        %5746 = vmatprep.subr.mxu0 0.0
        %5747 = vmatpush2.msra.mxu0 0.0
        %5748 = vmatprep.subr.mxu0 0.0
        %5749 = vmatpush2.msra.mxu0 0.0
        %5750 = vmatprep.subr.mxu0 0.0
        %5751 = vmatpush2.msra.mxu0 0.0
        %5752 = vmatprep.subr.mxu0 0.0
        %5753 = vmatpush2.msra.mxu0 0.0
        %5754 = vmatprep.subr.mxu0 0.0
        %5755 = vmatpush2.msra.mxu0 0.0
        %5756 = vmatprep.subr.mxu0 0.0
        %5757 = vmatpush2.msra.mxu0 0.0
        %5758 = vmatprep.subr.mxu0 0.0
        %5759 = vmatpush2.msra.mxu0 0.0
        %5760 = vmatprep.subr.mxu0 0.0
        %5761 = vmatpush2.msra.mxu0 0.0
        %5762 = vmatprep.mubr.f32.mxu0 0.0
        %5763 = vmatmul.mubr.f32.gmra.mxu0 %v5307
        %v5764 = vpop.f32.mrf.mxu0
        %v5765 = vadd.f32 0.0, %v5764
        %v5766 = vpop.f32.mrf.mxu0
        %5767 = vmatprep.mubr.f32.mxu0 0.0
        %5768 = vmatmul.mubr.f32.gmra.mxu0 %v5310
        %v5769 = vpop.f32.mrf.mxu0
        %v5770 = vadd.f32 0.0, %v5769
        %v5771 = vpop.f32.mrf.mxu0
        %5772 = vmatprep.mubr.f32.mxu0 0.0
        %5773 = vmatmul.mubr.f32.gmra.mxu0 %v5313
        %v5774 = vpop.f32.mrf.mxu0
        %v5775 = vadd.f32 0.0, %v5774
        %v5776 = vpop.f32.mrf.mxu0
        %5777 = vmatprep.mubr.f32.mxu0 0.0
        %5778 = vmatmul.mubr.f32.gmra.mxu0 %v5316
        %v5779 = vpop.f32.mrf.mxu0
        %v5780 = vadd.f32 0.0, %v5779
        %v5781 = vpop.f32.mrf.mxu0
        %5782 = vdwg.mxu0
        %s5783 = scalar_lea.vmem %s5, 64
        %v5784 = vld [vmem:[%s5783] sm:$0xff]
        %v5785 = vld [vmem:[%s5783 + $0x8] sm:$0xff]
        %v5786 = vld [vmem:[%s5783 + $0x10] sm:$0xff]
        %v5787 = vld [vmem:[%s5783 + $0x18] sm:$0xff]
        %v5789 = vsel %vm5500, %v5784, 0
        %v5792 = vsel %vm5500, %v5785, 0
        %v5795 = vsel %vm5500, %v5786, 0
        %v5798 = vsel %vm5500, %v5787, 0
        %5800 = vmatprep.subr.mxu0 0.0
        %5801 = vmatpush1.msra.mxu0 0.0
        %5802 = vmatprep.subr.mxu0 0.0
        %5803 = vmatpush1.msra.mxu0 0.0
        %5804 = vmatprep.subr.mxu0 0.0
        %5805 = vmatpush1.msra.mxu0 0.0
        %5806 = vmatprep.subr.mxu0 0.0
        %5807 = vmatpush1.msra.mxu0 0.0
        %5808 = vmatprep.subr.mxu0 0.0
        %5809 = vmatpush1.msra.mxu0 0.0
        %5810 = vmatprep.subr.mxu0 0.0
        %5811 = vmatpush1.msra.mxu0 0.0
        %5812 = vmatprep.subr.mxu0 0.0
        %5813 = vmatpush1.msra.mxu0 0.0
        %5814 = vmatprep.subr.mxu0 0.0
        %5815 = vmatpush1.msra.mxu0 0.0
        %5816 = vmatprep.subr.mxu0 0.0
        %5817 = vmatpush1.msra.mxu0 0.0
        %5818 = vmatprep.subr.mxu0 0.0
        %5819 = vmatpush1.msra.mxu0 0.0
        %5820 = vmatprep.subr.mxu0 0.0
        %5821 = vmatpush1.msra.mxu0 0.0
        %5822 = vmatprep.subr.mxu0 0.0
        %5823 = vmatpush1.msra.mxu0 0.0
        %5824 = vmatprep.subr.mxu0 0.0
        %5825 = vmatpush1.msra.mxu0 %v5780
        %5826 = vmatprep.subr.mxu0 0.0
        %5827 = vmatpush1.msra.mxu0 %v5775
        %5828 = vmatprep.subr.mxu0 0.0
        %5829 = vmatpush1.msra.mxu0 %v5770
        %5830 = vmatprep.subr.mxu0 0.0
        %5831 = vmatpush1.msra.mxu0 %v5765
        %5832 = vmatprep.subr.mxu0 0.0
        %5833 = vmatpush2.msra.mxu0 0.0
        %5834 = vmatprep.subr.mxu0 0.0
        %5835 = vmatpush2.msra.mxu0 0.0
        %5836 = vmatprep.subr.mxu0 0.0
        %5837 = vmatpush2.msra.mxu0 0.0
        %5838 = vmatprep.subr.mxu0 0.0
        %5839 = vmatpush2.msra.mxu0 0.0
        %5840 = vmatprep.subr.mxu0 0.0
        %5841 = vmatpush2.msra.mxu0 0.0
        %5842 = vmatprep.subr.mxu0 0.0
        %5843 = vmatpush2.msra.mxu0 0.0
        %5844 = vmatprep.subr.mxu0 0.0
        %5845 = vmatpush2.msra.mxu0 0.0
        %5846 = vmatprep.subr.mxu0 0.0
        %5847 = vmatpush2.msra.mxu0 0.0
        %5848 = vmatprep.subr.mxu0 0.0
        %5849 = vmatpush2.msra.mxu0 0.0
        %5850 = vmatprep.subr.mxu0 0.0
        %5851 = vmatpush2.msra.mxu0 0.0
        %5852 = vmatprep.subr.mxu0 0.0
        %5853 = vmatpush2.msra.mxu0 0.0
        %5854 = vmatprep.subr.mxu0 0.0
        %5855 = vmatpush2.msra.mxu0 0.0
        %5856 = vmatprep.subr.mxu0 0.0
        %5857 = vmatpush2.msra.mxu0 0.0
        %5858 = vmatprep.subr.mxu0 0.0
        %5859 = vmatpush2.msra.mxu0 0.0
        %5860 = vmatprep.subr.mxu0 0.0
        %5861 = vmatpush2.msra.mxu0 0.0
        %5862 = vmatprep.subr.mxu0 0.0
        %5863 = vmatpush2.msra.mxu0 0.0
        %5864 = vmatprep.mubr.f32.mxu0 0.0
        %5865 = vmatmul.mubr.f32.gmra.mxu0 %v5789
        %v5866 = vpop.f32.mrf.mxu0
        %v5867 = vadd.f32 0.0, %v5866
        %v5868 = vpop.f32.mrf.mxu0
        %5869 = vmatprep.mubr.f32.mxu0 0.0
        %5870 = vmatmul.mubr.f32.gmra.mxu0 %v5792
        %v5871 = vpop.f32.mrf.mxu0
        %v5872 = vadd.f32 0.0, %v5871
        %v5873 = vpop.f32.mrf.mxu0
        %5874 = vmatprep.mubr.f32.mxu0 0.0
        %5875 = vmatmul.mubr.f32.gmra.mxu0 %v5795
        %v5876 = vpop.f32.mrf.mxu0
        %v5877 = vadd.f32 0.0, %v5876
        %v5878 = vpop.f32.mrf.mxu0
        %5879 = vmatprep.mubr.f32.mxu0 0.0
        %5880 = vmatmul.mubr.f32.gmra.mxu0 %v5798
        %v5881 = vpop.f32.mrf.mxu0
        %v5882 = vadd.f32 0.0, %v5881
        %v5883 = vpop.f32.mrf.mxu0
        %5884 = vdwg.mxu0
        %v5885 = vadd.f32 %v5677, %v5867
        %v5886 = vadd.f32 %v5682, %v5872
        %v5887 = vadd.f32 %v5687, %v5877
        %v5888 = vadd.f32 %v5692, %v5882
        %s5889 = scalar_lea.vmem [#allocation6], 48
        %v5890 = vld [vmem:[%s5889] sm:$0xff]
        %v5891 = vld [vmem:[%s5889 + $0x8] sm:$0xff]
        %5892 = vmatprep.subr.mxu0 0.0
        %5893 = vmatpush1.msra.mxu0 0.0
        %5894 = vmatprep.subr.mxu0 0.0
        %5895 = vmatpush1.msra.mxu0 0.0
        %5896 = vmatprep.subr.mxu0 0.0
        %5897 = vmatpush1.msra.mxu0 0.0
        %5898 = vmatprep.subr.mxu0 0.0
        %5899 = vmatpush1.msra.mxu0 0.0
        %5900 = vmatprep.subr.mxu0 0.0
        %5901 = vmatpush1.msra.mxu0 0.0
        %5902 = vmatprep.subr.mxu0 0.0
        %5903 = vmatpush1.msra.mxu0 0.0
        %5904 = vmatprep.subr.mxu0 0.0
        %5905 = vmatpush1.msra.mxu0 0.0
        %5906 = vmatprep.subr.mxu0 0.0
        %5907 = vmatpush1.msra.mxu0 0.0
        %5908 = vmatprep.subr.mxu0 0.0
        %5909 = vmatpush1.msra.mxu0 0.0
        %5910 = vmatprep.subr.mxu0 0.0
        %5911 = vmatpush1.msra.mxu0 0.0
        %5912 = vmatprep.subr.mxu0 0.0
        %5913 = vmatpush1.msra.mxu0 0.0
        %5914 = vmatprep.subr.mxu0 0.0
        %5915 = vmatpush1.msra.mxu0 0.0
        %5916 = vmatprep.subr.mxu0 0.0
        %5917 = vmatpush1.msra.mxu0 0.0
        %5918 = vmatprep.subr.mxu0 0.0
        %5919 = vmatpush1.msra.mxu0 0.0
        %5920 = vmatprep.subr.mxu0 0.0
        %5921 = vmatpush1.msra.mxu0 %v5891
        %5922 = vmatprep.subr.mxu0 0.0
        %5923 = vmatpush1.msra.mxu0 %v5890
        %5924 = vmatprep.subr.mxu0 0.0
        %5925 = vmatpush2.msra.mxu0 0.0
        %5926 = vmatprep.subr.mxu0 0.0
        %5927 = vmatpush2.msra.mxu0 0.0
        %5928 = vmatprep.subr.mxu0 0.0
        %5929 = vmatpush2.msra.mxu0 0.0
        %5930 = vmatprep.subr.mxu0 0.0
        %5931 = vmatpush2.msra.mxu0 0.0
        %5932 = vmatprep.subr.mxu0 0.0
        %5933 = vmatpush2.msra.mxu0 0.0
        %5934 = vmatprep.subr.mxu0 0.0
        %5935 = vmatpush2.msra.mxu0 0.0
        %5936 = vmatprep.subr.mxu0 0.0
        %5937 = vmatpush2.msra.mxu0 0.0
        %5938 = vmatprep.subr.mxu0 0.0
        %5939 = vmatpush2.msra.mxu0 0.0
        %5940 = vmatprep.subr.mxu0 0.0
        %5941 = vmatpush2.msra.mxu0 0.0
        %5942 = vmatprep.subr.mxu0 0.0
        %5943 = vmatpush2.msra.mxu0 0.0
        %5944 = vmatprep.subr.mxu0 0.0
        %5945 = vmatpush2.msra.mxu0 0.0
        %5946 = vmatprep.subr.mxu0 0.0
        %5947 = vmatpush2.msra.mxu0 0.0
        %5948 = vmatprep.subr.mxu0 0.0
        %5949 = vmatpush2.msra.mxu0 0.0
        %5950 = vmatprep.subr.mxu0 0.0
        %5951 = vmatpush2.msra.mxu0 0.0
        %5952 = vmatprep.subr.mxu0 0.0
        %5953 = vmatpush2.msra.mxu0 0.0
        %5954 = vmatprep.subr.mxu0 0.0
        %5955 = vmatpush2.msra.mxu0 0.0
        %5956 = vmatprep.mubr.f32.mxu0 0.0
        %5957 = vmatmul.mubr.f32.gmra.mxu0 %v5307
        %v5958 = vpop.f32.mrf.mxu0
        %v5959 = vadd.f32 0.0, %v5958
        %v5960 = vpop.f32.mrf.mxu0
        %5961 = vmatprep.mubr.f32.mxu0 0.0
        %5962 = vmatmul.mubr.f32.gmra.mxu0 %v5310
        %v5963 = vpop.f32.mrf.mxu0
        %v5964 = vadd.f32 0.0, %v5963
        %v5965 = vpop.f32.mrf.mxu0
        %5966 = vmatprep.mubr.f32.mxu0 0.0
        %5967 = vmatmul.mubr.f32.gmra.mxu0 %v5313
        %v5968 = vpop.f32.mrf.mxu0
        %v5969 = vadd.f32 0.0, %v5968
        %v5970 = vpop.f32.mrf.mxu0
        %5971 = vmatprep.mubr.f32.mxu0 0.0
        %5972 = vmatmul.mubr.f32.gmra.mxu0 %v5316
        %v5973 = vpop.f32.mrf.mxu0
        %v5974 = vadd.f32 0.0, %v5973
        %v5975 = vpop.f32.mrf.mxu0
        %5976 = vdwg.mxu0
        %s5977 = scalar_lea.vmem %s5, 96
        %v5978 = vld [vmem:[%s5977] sm:$0xff]
        %v5979 = vld [vmem:[%s5977 + $0x8] sm:$0xff]
        %v5980 = vld [vmem:[%s5977 + $0x10] sm:$0xff]
        %v5981 = vld [vmem:[%s5977 + $0x18] sm:$0xff]
        %v5983 = vsel %vm5500, %v5978, 0
        %v5986 = vsel %vm5500, %v5979, 0
        %v5989 = vsel %vm5500, %v5980, 0
        %v5992 = vsel %vm5500, %v5981, 0
        %5994 = vmatprep.subr.mxu0 0.0
        %5995 = vmatpush1.msra.mxu0 0.0
        %5996 = vmatprep.subr.mxu0 0.0
        %5997 = vmatpush1.msra.mxu0 0.0
        %5998 = vmatprep.subr.mxu0 0.0
        %5999 = vmatpush1.msra.mxu0 0.0
        %6000 = vmatprep.subr.mxu0 0.0
        %6001 = vmatpush1.msra.mxu0 0.0
        %6002 = vmatprep.subr.mxu0 0.0
        %6003 = vmatpush1.msra.mxu0 0.0
        %6004 = vmatprep.subr.mxu0 0.0
        %6005 = vmatpush1.msra.mxu0 0.0
        %6006 = vmatprep.subr.mxu0 0.0
        %6007 = vmatpush1.msra.mxu0 0.0
        %6008 = vmatprep.subr.mxu0 0.0
        %6009 = vmatpush1.msra.mxu0 0.0
        %6010 = vmatprep.subr.mxu0 0.0
        %6011 = vmatpush1.msra.mxu0 0.0
        %6012 = vmatprep.subr.mxu0 0.0
        %6013 = vmatpush1.msra.mxu0 0.0
        %6014 = vmatprep.subr.mxu0 0.0
        %6015 = vmatpush1.msra.mxu0 0.0
        %6016 = vmatprep.subr.mxu0 0.0
        %6017 = vmatpush1.msra.mxu0 0.0
        %6018 = vmatprep.subr.mxu0 0.0
        %6019 = vmatpush1.msra.mxu0 %v5974
        %6020 = vmatprep.subr.mxu0 0.0
        %6021 = vmatpush1.msra.mxu0 %v5969
        %6022 = vmatprep.subr.mxu0 0.0
        %6023 = vmatpush1.msra.mxu0 %v5964
        %6024 = vmatprep.subr.mxu0 0.0
        %6025 = vmatpush1.msra.mxu0 %v5959
        %6026 = vmatprep.subr.mxu0 0.0
        %6027 = vmatpush2.msra.mxu0 0.0
        %6028 = vmatprep.subr.mxu0 0.0
        %6029 = vmatpush2.msra.mxu0 0.0
        %6030 = vmatprep.subr.mxu0 0.0
        %6031 = vmatpush2.msra.mxu0 0.0
        %6032 = vmatprep.subr.mxu0 0.0
        %6033 = vmatpush2.msra.mxu0 0.0
        %6034 = vmatprep.subr.mxu0 0.0
        %6035 = vmatpush2.msra.mxu0 0.0
        %6036 = vmatprep.subr.mxu0 0.0
        %6037 = vmatpush2.msra.mxu0 0.0
        %6038 = vmatprep.subr.mxu0 0.0
        %6039 = vmatpush2.msra.mxu0 0.0
        %6040 = vmatprep.subr.mxu0 0.0
        %6041 = vmatpush2.msra.mxu0 0.0
        %6042 = vmatprep.subr.mxu0 0.0
        %6043 = vmatpush2.msra.mxu0 0.0
        %6044 = vmatprep.subr.mxu0 0.0
        %6045 = vmatpush2.msra.mxu0 0.0
        %6046 = vmatprep.subr.mxu0 0.0
        %6047 = vmatpush2.msra.mxu0 0.0
        %6048 = vmatprep.subr.mxu0 0.0
        %6049 = vmatpush2.msra.mxu0 0.0
        %6050 = vmatprep.subr.mxu0 0.0
        %6051 = vmatpush2.msra.mxu0 0.0
        %6052 = vmatprep.subr.mxu0 0.0
        %6053 = vmatpush2.msra.mxu0 0.0
        %6054 = vmatprep.subr.mxu0 0.0
        %6055 = vmatpush2.msra.mxu0 0.0
        %6056 = vmatprep.subr.mxu0 0.0
        %6057 = vmatpush2.msra.mxu0 0.0
        %6058 = vmatprep.mubr.f32.mxu0 0.0
        %6059 = vmatmul.mubr.f32.gmra.mxu0 %v5983
        %v6060 = vpop.f32.mrf.mxu0
        %v6061 = vadd.f32 0.0, %v6060
        %v6062 = vpop.f32.mrf.mxu0
        %6063 = vmatprep.mubr.f32.mxu0 0.0
        %6064 = vmatmul.mubr.f32.gmra.mxu0 %v5986
        %v6065 = vpop.f32.mrf.mxu0
        %v6066 = vadd.f32 0.0, %v6065
        %v6067 = vpop.f32.mrf.mxu0
        %6068 = vmatprep.mubr.f32.mxu0 0.0
        %6069 = vmatmul.mubr.f32.gmra.mxu0 %v5989
        %v6070 = vpop.f32.mrf.mxu0
        %v6071 = vadd.f32 0.0, %v6070
        %v6072 = vpop.f32.mrf.mxu0
        %6073 = vmatprep.mubr.f32.mxu0 0.0
        %6074 = vmatmul.mubr.f32.gmra.mxu0 %v5992
        %v6075 = vpop.f32.mrf.mxu0
        %v6076 = vadd.f32 0.0, %v6075
        %v6077 = vpop.f32.mrf.mxu0
        %6078 = vdwg.mxu0
        %v6079 = vadd.f32 %v5885, %v6061
        %v6080 = vadd.f32 %v5886, %v6066
        %v6081 = vadd.f32 %v5887, %v6071
        %v6082 = vadd.f32 %v5888, %v6076
        %s6083 = scalar_lea.vmem [#allocation6], 64
        %v6084 = vld [vmem:[%s6083] sm:$0xff]
        %v6085 = vld [vmem:[%s6083 + $0x8] sm:$0xff]
        %6086 = vmatprep.subr.mxu0 0.0
        %6087 = vmatpush1.msra.mxu0 0.0
        %6088 = vmatprep.subr.mxu0 0.0
        %6089 = vmatpush1.msra.mxu0 0.0
        %6090 = vmatprep.subr.mxu0 0.0
        %6091 = vmatpush1.msra.mxu0 0.0
        %6092 = vmatprep.subr.mxu0 0.0
        %6093 = vmatpush1.msra.mxu0 0.0
        %6094 = vmatprep.subr.mxu0 0.0
        %6095 = vmatpush1.msra.mxu0 0.0
        %6096 = vmatprep.subr.mxu0 0.0
        %6097 = vmatpush1.msra.mxu0 0.0
        %6098 = vmatprep.subr.mxu0 0.0
        %6099 = vmatpush1.msra.mxu0 0.0
        %6100 = vmatprep.subr.mxu0 0.0
        %6101 = vmatpush1.msra.mxu0 0.0
        %6102 = vmatprep.subr.mxu0 0.0
        %6103 = vmatpush1.msra.mxu0 0.0
        %6104 = vmatprep.subr.mxu0 0.0
        %6105 = vmatpush1.msra.mxu0 0.0
        %6106 = vmatprep.subr.mxu0 0.0
        %6107 = vmatpush1.msra.mxu0 0.0
        %6108 = vmatprep.subr.mxu0 0.0
        %6109 = vmatpush1.msra.mxu0 0.0
        %6110 = vmatprep.subr.mxu0 0.0
        %6111 = vmatpush1.msra.mxu0 0.0
        %6112 = vmatprep.subr.mxu0 0.0
        %6113 = vmatpush1.msra.mxu0 0.0
        %6114 = vmatprep.subr.mxu0 0.0
        %6115 = vmatpush1.msra.mxu0 %v6085
        %6116 = vmatprep.subr.mxu0 0.0
        %6117 = vmatpush1.msra.mxu0 %v6084
        %6118 = vmatprep.subr.mxu0 0.0
        %6119 = vmatpush2.msra.mxu0 0.0
        %6120 = vmatprep.subr.mxu0 0.0
        %6121 = vmatpush2.msra.mxu0 0.0
        %6122 = vmatprep.subr.mxu0 0.0
        %6123 = vmatpush2.msra.mxu0 0.0
        %6124 = vmatprep.subr.mxu0 0.0
        %6125 = vmatpush2.msra.mxu0 0.0
        %6126 = vmatprep.subr.mxu0 0.0
        %6127 = vmatpush2.msra.mxu0 0.0
        %6128 = vmatprep.subr.mxu0 0.0
        %6129 = vmatpush2.msra.mxu0 0.0
        %6130 = vmatprep.subr.mxu0 0.0
        %6131 = vmatpush2.msra.mxu0 0.0
        %6132 = vmatprep.subr.mxu0 0.0
        %6133 = vmatpush2.msra.mxu0 0.0
        %6134 = vmatprep.subr.mxu0 0.0
        %6135 = vmatpush2.msra.mxu0 0.0
        %6136 = vmatprep.subr.mxu0 0.0
        %6137 = vmatpush2.msra.mxu0 0.0
        %6138 = vmatprep.subr.mxu0 0.0
        %6139 = vmatpush2.msra.mxu0 0.0
        %6140 = vmatprep.subr.mxu0 0.0
        %6141 = vmatpush2.msra.mxu0 0.0
        %6142 = vmatprep.subr.mxu0 0.0
        %6143 = vmatpush2.msra.mxu0 0.0
        %6144 = vmatprep.subr.mxu0 0.0
        %6145 = vmatpush2.msra.mxu0 0.0
        %6146 = vmatprep.subr.mxu0 0.0
        %6147 = vmatpush2.msra.mxu0 0.0
        %6148 = vmatprep.subr.mxu0 0.0
        %6149 = vmatpush2.msra.mxu0 0.0
        %6150 = vmatprep.mubr.f32.mxu0 0.0
        %6151 = vmatmul.mubr.f32.gmra.mxu0 %v5307
        %v6152 = vpop.f32.mrf.mxu0
        %v6153 = vadd.f32 0.0, %v6152
        %v6154 = vpop.f32.mrf.mxu0
        %6155 = vmatprep.mubr.f32.mxu0 0.0
        %6156 = vmatmul.mubr.f32.gmra.mxu0 %v5310
        %v6157 = vpop.f32.mrf.mxu0
        %v6158 = vadd.f32 0.0, %v6157
        %v6159 = vpop.f32.mrf.mxu0
        %6160 = vmatprep.mubr.f32.mxu0 0.0
        %6161 = vmatmul.mubr.f32.gmra.mxu0 %v5313
        %v6162 = vpop.f32.mrf.mxu0
        %v6163 = vadd.f32 0.0, %v6162
        %v6164 = vpop.f32.mrf.mxu0
        %6165 = vmatprep.mubr.f32.mxu0 0.0
        %6166 = vmatmul.mubr.f32.gmra.mxu0 %v5316
        %v6167 = vpop.f32.mrf.mxu0
        %v6168 = vadd.f32 0.0, %v6167
        %v6169 = vpop.f32.mrf.mxu0
        %6170 = vdwg.mxu0
        %s6171 = scalar_lea.vmem %s5, 128
        %v6172 = vld [vmem:[%s6171] sm:$0xff]
        %v6173 = vld [vmem:[%s6171 + $0x8] sm:$0xff]
        %v6174 = vld [vmem:[%s6171 + $0x10] sm:$0xff]
        %v6175 = vld [vmem:[%s6171 + $0x18] sm:$0xff]
        %v6177 = vsel %vm5500, %v6172, 0
        %v6180 = vsel %vm5500, %v6173, 0
        %v6183 = vsel %vm5500, %v6174, 0
        %v6186 = vsel %vm5500, %v6175, 0
        %6188 = vmatprep.subr.mxu0 0.0
        %6189 = vmatpush1.msra.mxu0 0.0
        %6190 = vmatprep.subr.mxu0 0.0
        %6191 = vmatpush1.msra.mxu0 0.0
        %6192 = vmatprep.subr.mxu0 0.0
        %6193 = vmatpush1.msra.mxu0 0.0
        %6194 = vmatprep.subr.mxu0 0.0
        %6195 = vmatpush1.msra.mxu0 0.0
        %6196 = vmatprep.subr.mxu0 0.0
        %6197 = vmatpush1.msra.mxu0 0.0
        %6198 = vmatprep.subr.mxu0 0.0
        %6199 = vmatpush1.msra.mxu0 0.0
        %6200 = vmatprep.subr.mxu0 0.0
        %6201 = vmatpush1.msra.mxu0 0.0
        %6202 = vmatprep.subr.mxu0 0.0
        %6203 = vmatpush1.msra.mxu0 0.0
        %6204 = vmatprep.subr.mxu0 0.0
        %6205 = vmatpush1.msra.mxu0 0.0
        %6206 = vmatprep.subr.mxu0 0.0
        %6207 = vmatpush1.msra.mxu0 0.0
        %6208 = vmatprep.subr.mxu0 0.0
        %6209 = vmatpush1.msra.mxu0 0.0
        %6210 = vmatprep.subr.mxu0 0.0
        %6211 = vmatpush1.msra.mxu0 0.0
        %6212 = vmatprep.subr.mxu0 0.0
        %6213 = vmatpush1.msra.mxu0 %v6168
        %6214 = vmatprep.subr.mxu0 0.0
        %6215 = vmatpush1.msra.mxu0 %v6163
        %6216 = vmatprep.subr.mxu0 0.0
        %6217 = vmatpush1.msra.mxu0 %v6158
        %6218 = vmatprep.subr.mxu0 0.0
        %6219 = vmatpush1.msra.mxu0 %v6153
        %6220 = vmatprep.subr.mxu0 0.0
        %6221 = vmatpush2.msra.mxu0 0.0
        %6222 = vmatprep.subr.mxu0 0.0
        %6223 = vmatpush2.msra.mxu0 0.0
        %6224 = vmatprep.subr.mxu0 0.0
        %6225 = vmatpush2.msra.mxu0 0.0
        %6226 = vmatprep.subr.mxu0 0.0
        %6227 = vmatpush2.msra.mxu0 0.0
        %6228 = vmatprep.subr.mxu0 0.0
        %6229 = vmatpush2.msra.mxu0 0.0
        %6230 = vmatprep.subr.mxu0 0.0
        %6231 = vmatpush2.msra.mxu0 0.0
        %6232 = vmatprep.subr.mxu0 0.0
        %6233 = vmatpush2.msra.mxu0 0.0
        %6234 = vmatprep.subr.mxu0 0.0
        %6235 = vmatpush2.msra.mxu0 0.0
        %6236 = vmatprep.subr.mxu0 0.0
        %6237 = vmatpush2.msra.mxu0 0.0
        %6238 = vmatprep.subr.mxu0 0.0
        %6239 = vmatpush2.msra.mxu0 0.0
        %6240 = vmatprep.subr.mxu0 0.0
        %6241 = vmatpush2.msra.mxu0 0.0
        %6242 = vmatprep.subr.mxu0 0.0
        %6243 = vmatpush2.msra.mxu0 0.0
        %6244 = vmatprep.subr.mxu0 0.0
        %6245 = vmatpush2.msra.mxu0 0.0
        %6246 = vmatprep.subr.mxu0 0.0
        %6247 = vmatpush2.msra.mxu0 0.0
        %6248 = vmatprep.subr.mxu0 0.0
        %6249 = vmatpush2.msra.mxu0 0.0
        %6250 = vmatprep.subr.mxu0 0.0
        %6251 = vmatpush2.msra.mxu0 0.0
        %6252 = vmatprep.mubr.f32.mxu0 0.0
        %6253 = vmatmul.mubr.f32.gmra.mxu0 %v6177
        %v6254 = vpop.f32.mrf.mxu0
        %v6255 = vadd.f32 0.0, %v6254
        %v6256 = vpop.f32.mrf.mxu0
        %6257 = vmatprep.mubr.f32.mxu0 0.0
        %6258 = vmatmul.mubr.f32.gmra.mxu0 %v6180
        %v6259 = vpop.f32.mrf.mxu0
        %v6260 = vadd.f32 0.0, %v6259
        %v6261 = vpop.f32.mrf.mxu0
        %6262 = vmatprep.mubr.f32.mxu0 0.0
        %6263 = vmatmul.mubr.f32.gmra.mxu0 %v6183
        %v6264 = vpop.f32.mrf.mxu0
        %v6265 = vadd.f32 0.0, %v6264
        %v6266 = vpop.f32.mrf.mxu0
        %6267 = vmatprep.mubr.f32.mxu0 0.0
        %6268 = vmatmul.mubr.f32.gmra.mxu0 %v6186
        %v6269 = vpop.f32.mrf.mxu0
        %v6270 = vadd.f32 0.0, %v6269
        %v6271 = vpop.f32.mrf.mxu0
        %6272 = vdwg.mxu0
        %v6273 = vadd.f32 %v6079, %v6255
        %v6274 = vadd.f32 %v6080, %v6260
        %v6275 = vadd.f32 %v6081, %v6265
        %v6276 = vadd.f32 %v6082, %v6270
        %s6277 = scalar_lea.vmem [#allocation6], 80
        %v6278 = vld [vmem:[%s6277] sm:$0xff]
        %v6279 = vld [vmem:[%s6277 + $0x8] sm:$0xff]
        %6280 = vmatprep.subr.mxu0 0.0
        %6281 = vmatpush1.msra.mxu0 0.0
        %6282 = vmatprep.subr.mxu0 0.0
        %6283 = vmatpush1.msra.mxu0 0.0
        %6284 = vmatprep.subr.mxu0 0.0
        %6285 = vmatpush1.msra.mxu0 0.0
        %6286 = vmatprep.subr.mxu0 0.0
        %6287 = vmatpush1.msra.mxu0 0.0
        %6288 = vmatprep.subr.mxu0 0.0
        %6289 = vmatpush1.msra.mxu0 0.0
        %6290 = vmatprep.subr.mxu0 0.0
        %6291 = vmatpush1.msra.mxu0 0.0
        %6292 = vmatprep.subr.mxu0 0.0
        %6293 = vmatpush1.msra.mxu0 0.0
        %6294 = vmatprep.subr.mxu0 0.0
        %6295 = vmatpush1.msra.mxu0 0.0
        %6296 = vmatprep.subr.mxu0 0.0
        %6297 = vmatpush1.msra.mxu0 0.0
        %6298 = vmatprep.subr.mxu0 0.0
        %6299 = vmatpush1.msra.mxu0 0.0
        %6300 = vmatprep.subr.mxu0 0.0
        %6301 = vmatpush1.msra.mxu0 0.0
        %6302 = vmatprep.subr.mxu0 0.0
        %6303 = vmatpush1.msra.mxu0 0.0
        %6304 = vmatprep.subr.mxu0 0.0
        %6305 = vmatpush1.msra.mxu0 0.0
        %6306 = vmatprep.subr.mxu0 0.0
        %6307 = vmatpush1.msra.mxu0 0.0
        %6308 = vmatprep.subr.mxu0 0.0
        %6309 = vmatpush1.msra.mxu0 %v6279
        %6310 = vmatprep.subr.mxu0 0.0
        %6311 = vmatpush1.msra.mxu0 %v6278
        %6312 = vmatprep.subr.mxu0 0.0
        %6313 = vmatpush2.msra.mxu0 0.0
        %6314 = vmatprep.subr.mxu0 0.0
        %6315 = vmatpush2.msra.mxu0 0.0
        %6316 = vmatprep.subr.mxu0 0.0
        %6317 = vmatpush2.msra.mxu0 0.0
        %6318 = vmatprep.subr.mxu0 0.0
        %6319 = vmatpush2.msra.mxu0 0.0
        %6320 = vmatprep.subr.mxu0 0.0
        %6321 = vmatpush2.msra.mxu0 0.0
        %6322 = vmatprep.subr.mxu0 0.0
        %6323 = vmatpush2.msra.mxu0 0.0
        %6324 = vmatprep.subr.mxu0 0.0
        %6325 = vmatpush2.msra.mxu0 0.0
        %6326 = vmatprep.subr.mxu0 0.0
        %6327 = vmatpush2.msra.mxu0 0.0
        %6328 = vmatprep.subr.mxu0 0.0
        %6329 = vmatpush2.msra.mxu0 0.0
        %6330 = vmatprep.subr.mxu0 0.0
        %6331 = vmatpush2.msra.mxu0 0.0
        %6332 = vmatprep.subr.mxu0 0.0
        %6333 = vmatpush2.msra.mxu0 0.0
        %6334 = vmatprep.subr.mxu0 0.0
        %6335 = vmatpush2.msra.mxu0 0.0
        %6336 = vmatprep.subr.mxu0 0.0
        %6337 = vmatpush2.msra.mxu0 0.0
        %6338 = vmatprep.subr.mxu0 0.0
        %6339 = vmatpush2.msra.mxu0 0.0
        %6340 = vmatprep.subr.mxu0 0.0
        %6341 = vmatpush2.msra.mxu0 0.0
        %6342 = vmatprep.subr.mxu0 0.0
        %6343 = vmatpush2.msra.mxu0 0.0
        %6344 = vmatprep.mubr.f32.mxu0 0.0
        %6345 = vmatmul.mubr.f32.gmra.mxu0 %v5307
        %v6346 = vpop.f32.mrf.mxu0
        %v6347 = vadd.f32 0.0, %v6346
        %v6348 = vpop.f32.mrf.mxu0
        %6349 = vmatprep.mubr.f32.mxu0 0.0
        %6350 = vmatmul.mubr.f32.gmra.mxu0 %v5310
        %v6351 = vpop.f32.mrf.mxu0
        %v6352 = vadd.f32 0.0, %v6351
        %v6353 = vpop.f32.mrf.mxu0
        %6354 = vmatprep.mubr.f32.mxu0 0.0
        %6355 = vmatmul.mubr.f32.gmra.mxu0 %v5313
        %v6356 = vpop.f32.mrf.mxu0
        %v6357 = vadd.f32 0.0, %v6356
        %v6358 = vpop.f32.mrf.mxu0
        %6359 = vmatprep.mubr.f32.mxu0 0.0
        %6360 = vmatmul.mubr.f32.gmra.mxu0 %v5316
        %v6361 = vpop.f32.mrf.mxu0
        %v6362 = vadd.f32 0.0, %v6361
        %v6363 = vpop.f32.mrf.mxu0
        %6364 = vdwg.mxu0
        %s6365 = scalar_lea.vmem %s5, 160
        %v6366 = vld [vmem:[%s6365] sm:$0xff]
        %v6367 = vld [vmem:[%s6365 + $0x8] sm:$0xff]
        %v6368 = vld [vmem:[%s6365 + $0x10] sm:$0xff]
        %v6369 = vld [vmem:[%s6365 + $0x18] sm:$0xff]
        %v6371 = vsel %vm5500, %v6366, 0
        %v6374 = vsel %vm5500, %v6367, 0
        %v6377 = vsel %vm5500, %v6368, 0
        %v6380 = vsel %vm5500, %v6369, 0
        %6382 = vmatprep.subr.mxu0 0.0
        %6383 = vmatpush1.msra.mxu0 0.0
        %6384 = vmatprep.subr.mxu0 0.0
        %6385 = vmatpush1.msra.mxu0 0.0
        %6386 = vmatprep.subr.mxu0 0.0
        %6387 = vmatpush1.msra.mxu0 0.0
        %6388 = vmatprep.subr.mxu0 0.0
        %6389 = vmatpush1.msra.mxu0 0.0
        %6390 = vmatprep.subr.mxu0 0.0
        %6391 = vmatpush1.msra.mxu0 0.0
        %6392 = vmatprep.subr.mxu0 0.0
        %6393 = vmatpush1.msra.mxu0 0.0
        %6394 = vmatprep.subr.mxu0 0.0
        %6395 = vmatpush1.msra.mxu0 0.0
        %6396 = vmatprep.subr.mxu0 0.0
        %6397 = vmatpush1.msra.mxu0 0.0
        %6398 = vmatprep.subr.mxu0 0.0
        %6399 = vmatpush1.msra.mxu0 0.0
        %6400 = vmatprep.subr.mxu0 0.0
        %6401 = vmatpush1.msra.mxu0 0.0
        %6402 = vmatprep.subr.mxu0 0.0
        %6403 = vmatpush1.msra.mxu0 0.0
        %6404 = vmatprep.subr.mxu0 0.0
        %6405 = vmatpush1.msra.mxu0 0.0
        %6406 = vmatprep.subr.mxu0 0.0
        %6407 = vmatpush1.msra.mxu0 %v6362
        %6408 = vmatprep.subr.mxu0 0.0
        %6409 = vmatpush1.msra.mxu0 %v6357
        %6410 = vmatprep.subr.mxu0 0.0
        %6411 = vmatpush1.msra.mxu0 %v6352
        %6412 = vmatprep.subr.mxu0 0.0
        %6413 = vmatpush1.msra.mxu0 %v6347
        %6414 = vmatprep.subr.mxu0 0.0
        %6415 = vmatpush2.msra.mxu0 0.0
        %6416 = vmatprep.subr.mxu0 0.0
        %6417 = vmatpush2.msra.mxu0 0.0
        %6418 = vmatprep.subr.mxu0 0.0
        %6419 = vmatpush2.msra.mxu0 0.0
        %6420 = vmatprep.subr.mxu0 0.0
        %6421 = vmatpush2.msra.mxu0 0.0
        %6422 = vmatprep.subr.mxu0 0.0
        %6423 = vmatpush2.msra.mxu0 0.0
        %6424 = vmatprep.subr.mxu0 0.0
        %6425 = vmatpush2.msra.mxu0 0.0
        %6426 = vmatprep.subr.mxu0 0.0
        %6427 = vmatpush2.msra.mxu0 0.0
        %6428 = vmatprep.subr.mxu0 0.0
        %6429 = vmatpush2.msra.mxu0 0.0
        %6430 = vmatprep.subr.mxu0 0.0
        %6431 = vmatpush2.msra.mxu0 0.0
        %6432 = vmatprep.subr.mxu0 0.0
        %6433 = vmatpush2.msra.mxu0 0.0
        %6434 = vmatprep.subr.mxu0 0.0
        %6435 = vmatpush2.msra.mxu0 0.0
        %6436 = vmatprep.subr.mxu0 0.0
        %6437 = vmatpush2.msra.mxu0 0.0
        %6438 = vmatprep.subr.mxu0 0.0
        %6439 = vmatpush2.msra.mxu0 0.0
        %6440 = vmatprep.subr.mxu0 0.0
        %6441 = vmatpush2.msra.mxu0 0.0
        %6442 = vmatprep.subr.mxu0 0.0
        %6443 = vmatpush2.msra.mxu0 0.0
        %6444 = vmatprep.subr.mxu0 0.0
        %6445 = vmatpush2.msra.mxu0 0.0
        %6446 = vmatprep.mubr.f32.mxu0 0.0
        %6447 = vmatmul.mubr.f32.gmra.mxu0 %v6371
        %v6448 = vpop.f32.mrf.mxu0
        %v6449 = vadd.f32 0.0, %v6448
        %v6450 = vpop.f32.mrf.mxu0
        %6451 = vmatprep.mubr.f32.mxu0 0.0
        %6452 = vmatmul.mubr.f32.gmra.mxu0 %v6374
        %v6453 = vpop.f32.mrf.mxu0
        %v6454 = vadd.f32 0.0, %v6453
        %v6455 = vpop.f32.mrf.mxu0
        %6456 = vmatprep.mubr.f32.mxu0 0.0
        %6457 = vmatmul.mubr.f32.gmra.mxu0 %v6377
        %v6458 = vpop.f32.mrf.mxu0
        %v6459 = vadd.f32 0.0, %v6458
        %v6460 = vpop.f32.mrf.mxu0
        %6461 = vmatprep.mubr.f32.mxu0 0.0
        %6462 = vmatmul.mubr.f32.gmra.mxu0 %v6380
        %v6463 = vpop.f32.mrf.mxu0
        %v6464 = vadd.f32 0.0, %v6463
        %v6465 = vpop.f32.mrf.mxu0
        %6466 = vdwg.mxu0
        %v6467 = vadd.f32 %v6273, %v6449
        %v6468 = vadd.f32 %v6274, %v6454
        %v6469 = vadd.f32 %v6275, %v6459
        %v6470 = vadd.f32 %v6276, %v6464
        %s6471 = scalar_lea.vmem [#allocation6], 96
        %v6472 = vld [vmem:[%s6471] sm:$0xff]
        %v6473 = vld [vmem:[%s6471 + $0x8] sm:$0xff]
        %6474 = vmatprep.subr.mxu0 0.0
        %6475 = vmatpush1.msra.mxu0 0.0
        %6476 = vmatprep.subr.mxu0 0.0
        %6477 = vmatpush1.msra.mxu0 0.0
        %6478 = vmatprep.subr.mxu0 0.0
        %6479 = vmatpush1.msra.mxu0 0.0
        %6480 = vmatprep.subr.mxu0 0.0
        %6481 = vmatpush1.msra.mxu0 0.0
        %6482 = vmatprep.subr.mxu0 0.0
        %6483 = vmatpush1.msra.mxu0 0.0
        %6484 = vmatprep.subr.mxu0 0.0
        %6485 = vmatpush1.msra.mxu0 0.0
        %6486 = vmatprep.subr.mxu0 0.0
        %6487 = vmatpush1.msra.mxu0 0.0
        %6488 = vmatprep.subr.mxu0 0.0
        %6489 = vmatpush1.msra.mxu0 0.0
        %6490 = vmatprep.subr.mxu0 0.0
        %6491 = vmatpush1.msra.mxu0 0.0
        %6492 = vmatprep.subr.mxu0 0.0
        %6493 = vmatpush1.msra.mxu0 0.0
        %6494 = vmatprep.subr.mxu0 0.0
        %6495 = vmatpush1.msra.mxu0 0.0
        %6496 = vmatprep.subr.mxu0 0.0
        %6497 = vmatpush1.msra.mxu0 0.0
        %6498 = vmatprep.subr.mxu0 0.0
        %6499 = vmatpush1.msra.mxu0 0.0
        %6500 = vmatprep.subr.mxu0 0.0
        %6501 = vmatpush1.msra.mxu0 0.0
        %6502 = vmatprep.subr.mxu0 0.0
        %6503 = vmatpush1.msra.mxu0 %v6473
        %6504 = vmatprep.subr.mxu0 0.0
        %6505 = vmatpush1.msra.mxu0 %v6472
        %6506 = vmatprep.subr.mxu0 0.0
        %6507 = vmatpush2.msra.mxu0 0.0
        %6508 = vmatprep.subr.mxu0 0.0
        %6509 = vmatpush2.msra.mxu0 0.0
        %6510 = vmatprep.subr.mxu0 0.0
        %6511 = vmatpush2.msra.mxu0 0.0
        %6512 = vmatprep.subr.mxu0 0.0
        %6513 = vmatpush2.msra.mxu0 0.0
        %6514 = vmatprep.subr.mxu0 0.0
        %6515 = vmatpush2.msra.mxu0 0.0
        %6516 = vmatprep.subr.mxu0 0.0
        %6517 = vmatpush2.msra.mxu0 0.0
        %6518 = vmatprep.subr.mxu0 0.0
        %6519 = vmatpush2.msra.mxu0 0.0
        %6520 = vmatprep.subr.mxu0 0.0
        %6521 = vmatpush2.msra.mxu0 0.0
        %6522 = vmatprep.subr.mxu0 0.0
        %6523 = vmatpush2.msra.mxu0 0.0
        %6524 = vmatprep.subr.mxu0 0.0
        %6525 = vmatpush2.msra.mxu0 0.0
        %6526 = vmatprep.subr.mxu0 0.0
        %6527 = vmatpush2.msra.mxu0 0.0
        %6528 = vmatprep.subr.mxu0 0.0
        %6529 = vmatpush2.msra.mxu0 0.0
        %6530 = vmatprep.subr.mxu0 0.0
        %6531 = vmatpush2.msra.mxu0 0.0
        %6532 = vmatprep.subr.mxu0 0.0
        %6533 = vmatpush2.msra.mxu0 0.0
        %6534 = vmatprep.subr.mxu0 0.0
        %6535 = vmatpush2.msra.mxu0 0.0
        %6536 = vmatprep.subr.mxu0 0.0
        %6537 = vmatpush2.msra.mxu0 0.0
        %6538 = vmatprep.mubr.f32.mxu0 0.0
        %6539 = vmatmul.mubr.f32.gmra.mxu0 %v5307
        %v6540 = vpop.f32.mrf.mxu0
        %v6541 = vadd.f32 0.0, %v6540
        %v6542 = vpop.f32.mrf.mxu0
        %6543 = vmatprep.mubr.f32.mxu0 0.0
        %6544 = vmatmul.mubr.f32.gmra.mxu0 %v5310
        %v6545 = vpop.f32.mrf.mxu0
        %v6546 = vadd.f32 0.0, %v6545
        %v6547 = vpop.f32.mrf.mxu0
        %6548 = vmatprep.mubr.f32.mxu0 0.0
        %6549 = vmatmul.mubr.f32.gmra.mxu0 %v5313
        %v6550 = vpop.f32.mrf.mxu0
        %v6551 = vadd.f32 0.0, %v6550
        %v6552 = vpop.f32.mrf.mxu0
        %6553 = vmatprep.mubr.f32.mxu0 0.0
        %6554 = vmatmul.mubr.f32.gmra.mxu0 %v5316
        %v6555 = vpop.f32.mrf.mxu0
        %v6556 = vadd.f32 0.0, %v6555
        %v6557 = vpop.f32.mrf.mxu0
        %6558 = vdwg.mxu0
        %s6559 = scalar_lea.vmem %s5, 192
        %v6560 = vld [vmem:[%s6559] sm:$0xff]
        %v6561 = vld [vmem:[%s6559 + $0x8] sm:$0xff]
        %v6562 = vld [vmem:[%s6559 + $0x10] sm:$0xff]
        %v6563 = vld [vmem:[%s6559 + $0x18] sm:$0xff]
        %v6565 = vsel %vm5500, %v6560, 0
        %v6568 = vsel %vm5500, %v6561, 0
        %v6571 = vsel %vm5500, %v6562, 0
        %v6574 = vsel %vm5500, %v6563, 0
        %6576 = vmatprep.subr.mxu0 0.0
        %6577 = vmatpush1.msra.mxu0 0.0
        %6578 = vmatprep.subr.mxu0 0.0
        %6579 = vmatpush1.msra.mxu0 0.0
        %6580 = vmatprep.subr.mxu0 0.0
        %6581 = vmatpush1.msra.mxu0 0.0
        %6582 = vmatprep.subr.mxu0 0.0
        %6583 = vmatpush1.msra.mxu0 0.0
        %6584 = vmatprep.subr.mxu0 0.0
        %6585 = vmatpush1.msra.mxu0 0.0
        %6586 = vmatprep.subr.mxu0 0.0
        %6587 = vmatpush1.msra.mxu0 0.0
        %6588 = vmatprep.subr.mxu0 0.0
        %6589 = vmatpush1.msra.mxu0 0.0
        %6590 = vmatprep.subr.mxu0 0.0
        %6591 = vmatpush1.msra.mxu0 0.0
        %6592 = vmatprep.subr.mxu0 0.0
        %6593 = vmatpush1.msra.mxu0 0.0
        %6594 = vmatprep.subr.mxu0 0.0
        %6595 = vmatpush1.msra.mxu0 0.0
        %6596 = vmatprep.subr.mxu0 0.0
        %6597 = vmatpush1.msra.mxu0 0.0
        %6598 = vmatprep.subr.mxu0 0.0
        %6599 = vmatpush1.msra.mxu0 0.0
        %6600 = vmatprep.subr.mxu0 0.0
        %6601 = vmatpush1.msra.mxu0 %v6556
        %6602 = vmatprep.subr.mxu0 0.0
        %6603 = vmatpush1.msra.mxu0 %v6551
        %6604 = vmatprep.subr.mxu0 0.0
        %6605 = vmatpush1.msra.mxu0 %v6546
        %6606 = vmatprep.subr.mxu0 0.0
        %6607 = vmatpush1.msra.mxu0 %v6541
        %6608 = vmatprep.subr.mxu0 0.0
        %6609 = vmatpush2.msra.mxu0 0.0
        %6610 = vmatprep.subr.mxu0 0.0
        %6611 = vmatpush2.msra.mxu0 0.0
        %6612 = vmatprep.subr.mxu0 0.0
        %6613 = vmatpush2.msra.mxu0 0.0
        %6614 = vmatprep.subr.mxu0 0.0
        %6615 = vmatpush2.msra.mxu0 0.0
        %6616 = vmatprep.subr.mxu0 0.0
        %6617 = vmatpush2.msra.mxu0 0.0
        %6618 = vmatprep.subr.mxu0 0.0
        %6619 = vmatpush2.msra.mxu0 0.0
        %6620 = vmatprep.subr.mxu0 0.0
        %6621 = vmatpush2.msra.mxu0 0.0
        %6622 = vmatprep.subr.mxu0 0.0
        %6623 = vmatpush2.msra.mxu0 0.0
        %6624 = vmatprep.subr.mxu0 0.0
        %6625 = vmatpush2.msra.mxu0 0.0
        %6626 = vmatprep.subr.mxu0 0.0
        %6627 = vmatpush2.msra.mxu0 0.0
        %6628 = vmatprep.subr.mxu0 0.0
        %6629 = vmatpush2.msra.mxu0 0.0
        %6630 = vmatprep.subr.mxu0 0.0
        %6631 = vmatpush2.msra.mxu0 0.0
        %6632 = vmatprep.subr.mxu0 0.0
        %6633 = vmatpush2.msra.mxu0 0.0
        %6634 = vmatprep.subr.mxu0 0.0
        %6635 = vmatpush2.msra.mxu0 0.0
        %6636 = vmatprep.subr.mxu0 0.0
        %6637 = vmatpush2.msra.mxu0 0.0
        %6638 = vmatprep.subr.mxu0 0.0
        %6639 = vmatpush2.msra.mxu0 0.0
        %6640 = vmatprep.mubr.f32.mxu0 0.0
        %6641 = vmatmul.mubr.f32.gmra.mxu0 %v6565
        %v6642 = vpop.f32.mrf.mxu0
        %v6643 = vadd.f32 0.0, %v6642
        %v6644 = vpop.f32.mrf.mxu0
        %6645 = vmatprep.mubr.f32.mxu0 0.0
        %6646 = vmatmul.mubr.f32.gmra.mxu0 %v6568
        %v6647 = vpop.f32.mrf.mxu0
        %v6648 = vadd.f32 0.0, %v6647
        %v6649 = vpop.f32.mrf.mxu0
        %6650 = vmatprep.mubr.f32.mxu0 0.0
        %6651 = vmatmul.mubr.f32.gmra.mxu0 %v6571
        %v6652 = vpop.f32.mrf.mxu0
        %v6653 = vadd.f32 0.0, %v6652
        %v6654 = vpop.f32.mrf.mxu0
        %6655 = vmatprep.mubr.f32.mxu0 0.0
        %6656 = vmatmul.mubr.f32.gmra.mxu0 %v6574
        %v6657 = vpop.f32.mrf.mxu0
        %v6658 = vadd.f32 0.0, %v6657
        %v6659 = vpop.f32.mrf.mxu0
        %6660 = vdwg.mxu0
        %v6661 = vadd.f32 %v6467, %v6643
        %v6662 = vadd.f32 %v6468, %v6648
        %v6663 = vadd.f32 %v6469, %v6653
        %v6664 = vadd.f32 %v6470, %v6658
        %s6665 = scalar_lea.vmem [#allocation6], 112
        %v6666 = vld [vmem:[%s6665] sm:$0xff]
        %v6667 = vld [vmem:[%s6665 + $0x8] sm:$0xff]
        %6668 = vmatprep.subr.mxu0 0.0
        %6669 = vmatpush1.msra.mxu0 0.0
        %6670 = vmatprep.subr.mxu0 0.0
        %6671 = vmatpush1.msra.mxu0 0.0
        %6672 = vmatprep.subr.mxu0 0.0
        %6673 = vmatpush1.msra.mxu0 0.0
        %6674 = vmatprep.subr.mxu0 0.0
        %6675 = vmatpush1.msra.mxu0 0.0
        %6676 = vmatprep.subr.mxu0 0.0
        %6677 = vmatpush1.msra.mxu0 0.0
        %6678 = vmatprep.subr.mxu0 0.0
        %6679 = vmatpush1.msra.mxu0 0.0
        %6680 = vmatprep.subr.mxu0 0.0
        %6681 = vmatpush1.msra.mxu0 0.0
        %6682 = vmatprep.subr.mxu0 0.0
        %6683 = vmatpush1.msra.mxu0 0.0
        %6684 = vmatprep.subr.mxu0 0.0
        %6685 = vmatpush1.msra.mxu0 0.0
        %6686 = vmatprep.subr.mxu0 0.0
        %6687 = vmatpush1.msra.mxu0 0.0
        %6688 = vmatprep.subr.mxu0 0.0
        %6689 = vmatpush1.msra.mxu0 0.0
        %6690 = vmatprep.subr.mxu0 0.0
        %6691 = vmatpush1.msra.mxu0 0.0
        %6692 = vmatprep.subr.mxu0 0.0
        %6693 = vmatpush1.msra.mxu0 0.0
        %6694 = vmatprep.subr.mxu0 0.0
        %6695 = vmatpush1.msra.mxu0 0.0
        %6696 = vmatprep.subr.mxu0 0.0
        %6697 = vmatpush1.msra.mxu0 %v6667
        %6698 = vmatprep.subr.mxu0 0.0
        %6699 = vmatpush1.msra.mxu0 %v6666
        %6700 = vmatprep.subr.mxu0 0.0
        %6701 = vmatpush2.msra.mxu0 0.0
        %6702 = vmatprep.subr.mxu0 0.0
        %6703 = vmatpush2.msra.mxu0 0.0
        %6704 = vmatprep.subr.mxu0 0.0
        %6705 = vmatpush2.msra.mxu0 0.0
        %6706 = vmatprep.subr.mxu0 0.0
        %6707 = vmatpush2.msra.mxu0 0.0
        %6708 = vmatprep.subr.mxu0 0.0
        %6709 = vmatpush2.msra.mxu0 0.0
        %6710 = vmatprep.subr.mxu0 0.0
        %6711 = vmatpush2.msra.mxu0 0.0
        %6712 = vmatprep.subr.mxu0 0.0
        %6713 = vmatpush2.msra.mxu0 0.0
        %6714 = vmatprep.subr.mxu0 0.0
        %6715 = vmatpush2.msra.mxu0 0.0
        %6716 = vmatprep.subr.mxu0 0.0
        %6717 = vmatpush2.msra.mxu0 0.0
        %6718 = vmatprep.subr.mxu0 0.0
        %6719 = vmatpush2.msra.mxu0 0.0
        %6720 = vmatprep.subr.mxu0 0.0
        %6721 = vmatpush2.msra.mxu0 0.0
        %6722 = vmatprep.subr.mxu0 0.0
        %6723 = vmatpush2.msra.mxu0 0.0
        %6724 = vmatprep.subr.mxu0 0.0
        %6725 = vmatpush2.msra.mxu0 0.0
        %6726 = vmatprep.subr.mxu0 0.0
        %6727 = vmatpush2.msra.mxu0 0.0
        %6728 = vmatprep.subr.mxu0 0.0
        %6729 = vmatpush2.msra.mxu0 0.0
        %6730 = vmatprep.subr.mxu0 0.0
        %6731 = vmatpush2.msra.mxu0 0.0
        %6732 = vmatprep.mubr.f32.mxu0 0.0
        %6733 = vmatmul.mubr.f32.gmra.mxu0 %v5307
        %v6734 = vpop.f32.mrf.mxu0
        %v6735 = vadd.f32 0.0, %v6734
        %v6736 = vpop.f32.mrf.mxu0
        %6737 = vmatprep.mubr.f32.mxu0 0.0
        %6738 = vmatmul.mubr.f32.gmra.mxu0 %v5310
        %v6739 = vpop.f32.mrf.mxu0
        %v6740 = vadd.f32 0.0, %v6739
        %v6741 = vpop.f32.mrf.mxu0
        %6742 = vmatprep.mubr.f32.mxu0 0.0
        %6743 = vmatmul.mubr.f32.gmra.mxu0 %v5313
        %v6744 = vpop.f32.mrf.mxu0
        %v6745 = vadd.f32 0.0, %v6744
        %v6746 = vpop.f32.mrf.mxu0
        %6747 = vmatprep.mubr.f32.mxu0 0.0
        %6748 = vmatmul.mubr.f32.gmra.mxu0 %v5316
        %v6749 = vpop.f32.mrf.mxu0
        %v6750 = vadd.f32 0.0, %v6749
        %v6751 = vpop.f32.mrf.mxu0
        %6752 = vdwg.mxu0
        %s6753 = scalar_lea.vmem %s5, 224
        %v6754 = vld [vmem:[%s6753] sm:$0xff]
        %v6755 = vld [vmem:[%s6753 + $0x8] sm:$0xff]
        %v6756 = vld [vmem:[%s6753 + $0x10] sm:$0xff]
        %v6757 = vld [vmem:[%s6753 + $0x18] sm:$0xff]
        %v6759 = vsel %vm5500, %v6754, 0
        %v6762 = vsel %vm5500, %v6755, 0
        %v6765 = vsel %vm5500, %v6756, 0
        %v6768 = vsel %vm5500, %v6757, 0
        %6770 = vmatprep.subr.mxu0 0.0
        %6771 = vmatpush1.msra.mxu0 0.0
        %6772 = vmatprep.subr.mxu0 0.0
        %6773 = vmatpush1.msra.mxu0 0.0
        %6774 = vmatprep.subr.mxu0 0.0
        %6775 = vmatpush1.msra.mxu0 0.0
        %6776 = vmatprep.subr.mxu0 0.0
        %6777 = vmatpush1.msra.mxu0 0.0
        %6778 = vmatprep.subr.mxu0 0.0
        %6779 = vmatpush1.msra.mxu0 0.0
        %6780 = vmatprep.subr.mxu0 0.0
        %6781 = vmatpush1.msra.mxu0 0.0
        %6782 = vmatprep.subr.mxu0 0.0
        %6783 = vmatpush1.msra.mxu0 0.0
        %6784 = vmatprep.subr.mxu0 0.0
        %6785 = vmatpush1.msra.mxu0 0.0
        %6786 = vmatprep.subr.mxu0 0.0
        %6787 = vmatpush1.msra.mxu0 0.0
        %6788 = vmatprep.subr.mxu0 0.0
        %6789 = vmatpush1.msra.mxu0 0.0
        %6790 = vmatprep.subr.mxu0 0.0
        %6791 = vmatpush1.msra.mxu0 0.0
        %6792 = vmatprep.subr.mxu0 0.0
        %6793 = vmatpush1.msra.mxu0 0.0
        %6794 = vmatprep.subr.mxu0 0.0
        %6795 = vmatpush1.msra.mxu0 %v6750
        %6796 = vmatprep.subr.mxu0 0.0
        %6797 = vmatpush1.msra.mxu0 %v6745
        %6798 = vmatprep.subr.mxu0 0.0
        %6799 = vmatpush1.msra.mxu0 %v6740
        %6800 = vmatprep.subr.mxu0 0.0
        %6801 = vmatpush1.msra.mxu0 %v6735
        %6802 = vmatprep.subr.mxu0 0.0
        %6803 = vmatpush2.msra.mxu0 0.0
        %6804 = vmatprep.subr.mxu0 0.0
        %6805 = vmatpush2.msra.mxu0 0.0
        %6806 = vmatprep.subr.mxu0 0.0
        %6807 = vmatpush2.msra.mxu0 0.0
        %6808 = vmatprep.subr.mxu0 0.0
        %6809 = vmatpush2.msra.mxu0 0.0
        %6810 = vmatprep.subr.mxu0 0.0
        %6811 = vmatpush2.msra.mxu0 0.0
        %6812 = vmatprep.subr.mxu0 0.0
        %6813 = vmatpush2.msra.mxu0 0.0
        %6814 = vmatprep.subr.mxu0 0.0
        %6815 = vmatpush2.msra.mxu0 0.0
        %6816 = vmatprep.subr.mxu0 0.0
        %6817 = vmatpush2.msra.mxu0 0.0
        %6818 = vmatprep.subr.mxu0 0.0
        %6819 = vmatpush2.msra.mxu0 0.0
        %6820 = vmatprep.subr.mxu0 0.0
        %6821 = vmatpush2.msra.mxu0 0.0
        %6822 = vmatprep.subr.mxu0 0.0
        %6823 = vmatpush2.msra.mxu0 0.0
        %6824 = vmatprep.subr.mxu0 0.0
        %6825 = vmatpush2.msra.mxu0 0.0
        %6826 = vmatprep.subr.mxu0 0.0
        %6827 = vmatpush2.msra.mxu0 0.0
        %6828 = vmatprep.subr.mxu0 0.0
        %6829 = vmatpush2.msra.mxu0 0.0
        %6830 = vmatprep.subr.mxu0 0.0
        %6831 = vmatpush2.msra.mxu0 0.0
        %6832 = vmatprep.subr.mxu0 0.0
        %6833 = vmatpush2.msra.mxu0 0.0
        %6834 = vmatprep.mubr.f32.mxu0 0.0
        %6835 = vmatmul.mubr.f32.gmra.mxu0 %v6759
        %v6836 = vpop.f32.mrf.mxu0
        %v6837 = vadd.f32 0.0, %v6836
        %v6838 = vpop.f32.mrf.mxu0
        %6839 = vmatprep.mubr.f32.mxu0 0.0
        %6840 = vmatmul.mubr.f32.gmra.mxu0 %v6762
        %v6841 = vpop.f32.mrf.mxu0
        %v6842 = vadd.f32 0.0, %v6841
        %v6843 = vpop.f32.mrf.mxu0
        %6844 = vmatprep.mubr.f32.mxu0 0.0
        %6845 = vmatmul.mubr.f32.gmra.mxu0 %v6765
        %v6846 = vpop.f32.mrf.mxu0
        %v6847 = vadd.f32 0.0, %v6846
        %v6848 = vpop.f32.mrf.mxu0
        %6849 = vmatprep.mubr.f32.mxu0 0.0
        %6850 = vmatmul.mubr.f32.gmra.mxu0 %v6768
        %v6851 = vpop.f32.mrf.mxu0
        %v6852 = vadd.f32 0.0, %v6851
        %v6853 = vpop.f32.mrf.mxu0
        %6854 = vdwg.mxu0
        %v6855 = vadd.f32 %v6661, %v6837
        %v6856 = vadd.f32 %v6662, %v6842
        %v6857 = vadd.f32 %v6663, %v6847
        %v6858 = vadd.f32 %v6664, %v6852
        %s6859 = scalar_lea.vmem [#allocation6], 128
        %v6860 = vld [vmem:[%s6859] sm:$0xff]
        %v6861 = vld [vmem:[%s6859 + $0x8] sm:$0xff]
        %6862 = vmatprep.subr.mxu0 0.0
        %6863 = vmatpush1.msra.mxu0 0.0
        %6864 = vmatprep.subr.mxu0 0.0
        %6865 = vmatpush1.msra.mxu0 0.0
        %6866 = vmatprep.subr.mxu0 0.0
        %6867 = vmatpush1.msra.mxu0 0.0
        %6868 = vmatprep.subr.mxu0 0.0
        %6869 = vmatpush1.msra.mxu0 0.0
        %6870 = vmatprep.subr.mxu0 0.0
        %6871 = vmatpush1.msra.mxu0 0.0
        %6872 = vmatprep.subr.mxu0 0.0
        %6873 = vmatpush1.msra.mxu0 0.0
        %6874 = vmatprep.subr.mxu0 0.0
        %6875 = vmatpush1.msra.mxu0 0.0
        %6876 = vmatprep.subr.mxu0 0.0
        %6877 = vmatpush1.msra.mxu0 0.0
        %6878 = vmatprep.subr.mxu0 0.0
        %6879 = vmatpush1.msra.mxu0 0.0
        %6880 = vmatprep.subr.mxu0 0.0
        %6881 = vmatpush1.msra.mxu0 0.0
        %6882 = vmatprep.subr.mxu0 0.0
        %6883 = vmatpush1.msra.mxu0 0.0
        %6884 = vmatprep.subr.mxu0 0.0
        %6885 = vmatpush1.msra.mxu0 0.0
        %6886 = vmatprep.subr.mxu0 0.0
        %6887 = vmatpush1.msra.mxu0 0.0
        %6888 = vmatprep.subr.mxu0 0.0
        %6889 = vmatpush1.msra.mxu0 0.0
        %6890 = vmatprep.subr.mxu0 0.0
        %6891 = vmatpush1.msra.mxu0 %v6861
        %6892 = vmatprep.subr.mxu0 0.0
        %6893 = vmatpush1.msra.mxu0 %v6860
        %6894 = vmatprep.subr.mxu0 0.0
        %6895 = vmatpush2.msra.mxu0 0.0
        %6896 = vmatprep.subr.mxu0 0.0
        %6897 = vmatpush2.msra.mxu0 0.0
        %6898 = vmatprep.subr.mxu0 0.0
        %6899 = vmatpush2.msra.mxu0 0.0
        %6900 = vmatprep.subr.mxu0 0.0
        %6901 = vmatpush2.msra.mxu0 0.0
        %6902 = vmatprep.subr.mxu0 0.0
        %6903 = vmatpush2.msra.mxu0 0.0
        %6904 = vmatprep.subr.mxu0 0.0
        %6905 = vmatpush2.msra.mxu0 0.0
        %6906 = vmatprep.subr.mxu0 0.0
        %6907 = vmatpush2.msra.mxu0 0.0
        %6908 = vmatprep.subr.mxu0 0.0
        %6909 = vmatpush2.msra.mxu0 0.0
        %6910 = vmatprep.subr.mxu0 0.0
        %6911 = vmatpush2.msra.mxu0 0.0
        %6912 = vmatprep.subr.mxu0 0.0
        %6913 = vmatpush2.msra.mxu0 0.0
        %6914 = vmatprep.subr.mxu0 0.0
        %6915 = vmatpush2.msra.mxu0 0.0
        %6916 = vmatprep.subr.mxu0 0.0
        %6917 = vmatpush2.msra.mxu0 0.0
        %6918 = vmatprep.subr.mxu0 0.0
        %6919 = vmatpush2.msra.mxu0 0.0
        %6920 = vmatprep.subr.mxu0 0.0
        %6921 = vmatpush2.msra.mxu0 0.0
        %6922 = vmatprep.subr.mxu0 0.0
        %6923 = vmatpush2.msra.mxu0 0.0
        %6924 = vmatprep.subr.mxu0 0.0
        %6925 = vmatpush2.msra.mxu0 0.0
        %6926 = vmatprep.mubr.f32.mxu0 0.0
        %6927 = vmatmul.mubr.f32.gmra.mxu0 %v5307
        %v6928 = vpop.f32.mrf.mxu0
        %v6929 = vadd.f32 0.0, %v6928
        %v6930 = vpop.f32.mrf.mxu0
        %6931 = vmatprep.mubr.f32.mxu0 0.0
        %6932 = vmatmul.mubr.f32.gmra.mxu0 %v5310
        %v6933 = vpop.f32.mrf.mxu0
        %v6934 = vadd.f32 0.0, %v6933
        %v6935 = vpop.f32.mrf.mxu0
        %6936 = vmatprep.mubr.f32.mxu0 0.0
        %6937 = vmatmul.mubr.f32.gmra.mxu0 %v5313
        %v6938 = vpop.f32.mrf.mxu0
        %v6939 = vadd.f32 0.0, %v6938
        %v6940 = vpop.f32.mrf.mxu0
        %6941 = vmatprep.mubr.f32.mxu0 0.0
        %6942 = vmatmul.mubr.f32.gmra.mxu0 %v5316
        %v6943 = vpop.f32.mrf.mxu0
        %v6944 = vadd.f32 0.0, %v6943
        %v6945 = vpop.f32.mrf.mxu0
        %6946 = vdwg.mxu0
        %s6947 = scalar_lea.vmem %s5, 256
        %v6948 = vld [vmem:[%s6947] sm:$0xff]
        %v6949 = vld [vmem:[%s6947 + $0x8] sm:$0xff]
        %v6950 = vld [vmem:[%s6947 + $0x10] sm:$0xff]
        %v6951 = vld [vmem:[%s6947 + $0x18] sm:$0xff]
        %v6953 = vsel %vm5500, %v6948, 0
        %v6956 = vsel %vm5500, %v6949, 0
        %v6959 = vsel %vm5500, %v6950, 0
        %v6962 = vsel %vm5500, %v6951, 0
        %6964 = vmatprep.subr.mxu0 0.0
        %6965 = vmatpush1.msra.mxu0 0.0
        %6966 = vmatprep.subr.mxu0 0.0
        %6967 = vmatpush1.msra.mxu0 0.0
        %6968 = vmatprep.subr.mxu0 0.0
        %6969 = vmatpush1.msra.mxu0 0.0
        %6970 = vmatprep.subr.mxu0 0.0
        %6971 = vmatpush1.msra.mxu0 0.0
        %6972 = vmatprep.subr.mxu0 0.0
        %6973 = vmatpush1.msra.mxu0 0.0
        %6974 = vmatprep.subr.mxu0 0.0
        %6975 = vmatpush1.msra.mxu0 0.0
        %6976 = vmatprep.subr.mxu0 0.0
        %6977 = vmatpush1.msra.mxu0 0.0
        %6978 = vmatprep.subr.mxu0 0.0
        %6979 = vmatpush1.msra.mxu0 0.0
        %6980 = vmatprep.subr.mxu0 0.0
        %6981 = vmatpush1.msra.mxu0 0.0
        %6982 = vmatprep.subr.mxu0 0.0
        %6983 = vmatpush1.msra.mxu0 0.0
        %6984 = vmatprep.subr.mxu0 0.0
        %6985 = vmatpush1.msra.mxu0 0.0
        %6986 = vmatprep.subr.mxu0 0.0
        %6987 = vmatpush1.msra.mxu0 0.0
        %6988 = vmatprep.subr.mxu0 0.0
        %6989 = vmatpush1.msra.mxu0 %v6944
        %6990 = vmatprep.subr.mxu0 0.0
        %6991 = vmatpush1.msra.mxu0 %v6939
        %6992 = vmatprep.subr.mxu0 0.0
        %6993 = vmatpush1.msra.mxu0 %v6934
        %6994 = vmatprep.subr.mxu0 0.0
        %6995 = vmatpush1.msra.mxu0 %v6929
        %6996 = vmatprep.subr.mxu0 0.0
        %6997 = vmatpush2.msra.mxu0 0.0
        %6998 = vmatprep.subr.mxu0 0.0
        %6999 = vmatpush2.msra.mxu0 0.0
        %7000 = vmatprep.subr.mxu0 0.0
        %7001 = vmatpush2.msra.mxu0 0.0
        %7002 = vmatprep.subr.mxu0 0.0
        %7003 = vmatpush2.msra.mxu0 0.0
        %7004 = vmatprep.subr.mxu0 0.0
        %7005 = vmatpush2.msra.mxu0 0.0
        %7006 = vmatprep.subr.mxu0 0.0
        %7007 = vmatpush2.msra.mxu0 0.0
        %7008 = vmatprep.subr.mxu0 0.0
        %7009 = vmatpush2.msra.mxu0 0.0
        %7010 = vmatprep.subr.mxu0 0.0
        %7011 = vmatpush2.msra.mxu0 0.0
        %7012 = vmatprep.subr.mxu0 0.0
        %7013 = vmatpush2.msra.mxu0 0.0
        %7014 = vmatprep.subr.mxu0 0.0
        %7015 = vmatpush2.msra.mxu0 0.0
        %7016 = vmatprep.subr.mxu0 0.0
        %7017 = vmatpush2.msra.mxu0 0.0
        %7018 = vmatprep.subr.mxu0 0.0
        %7019 = vmatpush2.msra.mxu0 0.0
        %7020 = vmatprep.subr.mxu0 0.0
        %7021 = vmatpush2.msra.mxu0 0.0
        %7022 = vmatprep.subr.mxu0 0.0
        %7023 = vmatpush2.msra.mxu0 0.0
        %7024 = vmatprep.subr.mxu0 0.0
        %7025 = vmatpush2.msra.mxu0 0.0
        %7026 = vmatprep.subr.mxu0 0.0
        %7027 = vmatpush2.msra.mxu0 0.0
        %7028 = vmatprep.mubr.f32.mxu0 0.0
        %7029 = vmatmul.mubr.f32.gmra.mxu0 %v6953
        %v7030 = vpop.f32.mrf.mxu0
        %v7031 = vadd.f32 0.0, %v7030
        %v7032 = vpop.f32.mrf.mxu0
        %7033 = vmatprep.mubr.f32.mxu0 0.0
        %7034 = vmatmul.mubr.f32.gmra.mxu0 %v6956
        %v7035 = vpop.f32.mrf.mxu0
        %v7036 = vadd.f32 0.0, %v7035
        %v7037 = vpop.f32.mrf.mxu0
        %7038 = vmatprep.mubr.f32.mxu0 0.0
        %7039 = vmatmul.mubr.f32.gmra.mxu0 %v6959
        %v7040 = vpop.f32.mrf.mxu0
        %v7041 = vadd.f32 0.0, %v7040
        %v7042 = vpop.f32.mrf.mxu0
        %7043 = vmatprep.mubr.f32.mxu0 0.0
        %7044 = vmatmul.mubr.f32.gmra.mxu0 %v6962
        %v7045 = vpop.f32.mrf.mxu0
        %v7046 = vadd.f32 0.0, %v7045
        %v7047 = vpop.f32.mrf.mxu0
        %7048 = vdwg.mxu0
        %v7049 = vadd.f32 %v6855, %v7031
        %v7050 = vadd.f32 %v6856, %v7036
        %v7051 = vadd.f32 %v6857, %v7041
        %v7052 = vadd.f32 %v6858, %v7046
        %v7053 = vld [vmem:[%s6] sm:$0xff]
        %v7054 = vld [vmem:[%s6 + $0x8] sm:$0xff]
        %v7055 = vld [vmem:[%s6 + $0x10] sm:$0xff]
        %v7056 = vld [vmem:[%s6 + $0x18] sm:$0xff]
        %7058 = vset.pattern.permute.xlu0 0
        %7059 = vperm.xlu0 %7058, %v7053
        %v7060 = vpop.permute.xlu0 %7059
        %7063 = vset.pattern.permute.xlu0 0
        %7064 = vperm.xlu0 %7063, %v7054
        %v7065 = vpop.permute.xlu0 %7064
        %7068 = vset.pattern.permute.xlu0 0
        %7069 = vperm.xlu0 %7068, %v7055
        %v7070 = vpop.permute.xlu0 %7069
        %7073 = vset.pattern.permute.xlu0 0
        %7074 = vperm.xlu0 %7073, %v7056
        %v7075 = vpop.permute.xlu0 %7074
        %v7077 = vadd.f32 %v7049, %v7060
        %v7078 = vadd.f32 %v7050, %v7065
        %v7079 = vadd.f32 %v7051, %v7070
        %v7080 = vadd.f32 %v7052, %v7075
        %v7081 = vmax.f32 %v7077, 0.0
        %v7082 = vmax.f32 %v7078, 0.0
        %v7083 = vmax.f32 %v7079, 0.0
        %v7084 = vmax.f32 %v7080, 0.0
        %v7085 = vld [vmem:[#allocation10] sm:$0xff]
        %v7086 = vld [vmem:[#allocation10 + $0x8] sm:$0xff]
        %v7088 = vsel %vm3348, %v7081, 0
        %v7091 = vsel %vm3348, %v7082, 0
        %v7094 = vsel %vm3348, %v7083, 0
        %v7097 = vsel %vm3348, %v7084, 0
        %7099 = vmatprep.subr.mxu0 0.0
        %7100 = vmatpush1.msra.mxu0 0.0
        %7101 = vmatprep.subr.mxu0 0.0
        %7102 = vmatpush1.msra.mxu0 0.0
        %7103 = vmatprep.subr.mxu0 0.0
        %7104 = vmatpush1.msra.mxu0 0.0
        %7105 = vmatprep.subr.mxu0 0.0
        %7106 = vmatpush1.msra.mxu0 0.0
        %7107 = vmatprep.subr.mxu0 0.0
        %7108 = vmatpush1.msra.mxu0 0.0
        %7109 = vmatprep.subr.mxu0 0.0
        %7110 = vmatpush1.msra.mxu0 0.0
        %7111 = vmatprep.subr.mxu0 0.0
        %7112 = vmatpush1.msra.mxu0 0.0
        %7113 = vmatprep.subr.mxu0 0.0
        %7114 = vmatpush1.msra.mxu0 0.0
        %7115 = vmatprep.subr.mxu0 0.0
        %7116 = vmatpush1.msra.mxu0 0.0
        %7117 = vmatprep.subr.mxu0 0.0
        %7118 = vmatpush1.msra.mxu0 0.0
        %7119 = vmatprep.subr.mxu0 0.0
        %7120 = vmatpush1.msra.mxu0 0.0
        %7121 = vmatprep.subr.mxu0 0.0
        %7122 = vmatpush1.msra.mxu0 0.0
        %7123 = vmatprep.subr.mxu0 0.0
        %7124 = vmatpush1.msra.mxu0 0.0
        %7125 = vmatprep.subr.mxu0 0.0
        %7126 = vmatpush1.msra.mxu0 0.0
        %7127 = vmatprep.subr.mxu0 0.0
        %7128 = vmatpush1.msra.mxu0 %v7086
        %7129 = vmatprep.subr.mxu0 0.0
        %7130 = vmatpush1.msra.mxu0 %v7085
        %7131 = vmatprep.subr.mxu0 0.0
        %7132 = vmatpush2.msra.mxu0 0.0
        %7133 = vmatprep.subr.mxu0 0.0
        %7134 = vmatpush2.msra.mxu0 0.0
        %7135 = vmatprep.subr.mxu0 0.0
        %7136 = vmatpush2.msra.mxu0 0.0
        %7137 = vmatprep.subr.mxu0 0.0
        %7138 = vmatpush2.msra.mxu0 0.0
        %7139 = vmatprep.subr.mxu0 0.0
        %7140 = vmatpush2.msra.mxu0 0.0
        %7141 = vmatprep.subr.mxu0 0.0
        %7142 = vmatpush2.msra.mxu0 0.0
        %7143 = vmatprep.subr.mxu0 0.0
        %7144 = vmatpush2.msra.mxu0 0.0
        %7145 = vmatprep.subr.mxu0 0.0
        %7146 = vmatpush2.msra.mxu0 0.0
        %7147 = vmatprep.subr.mxu0 0.0
        %7148 = vmatpush2.msra.mxu0 0.0
        %7149 = vmatprep.subr.mxu0 0.0
        %7150 = vmatpush2.msra.mxu0 0.0
        %7151 = vmatprep.subr.mxu0 0.0
        %7152 = vmatpush2.msra.mxu0 0.0
        %7153 = vmatprep.subr.mxu0 0.0
        %7154 = vmatpush2.msra.mxu0 0.0
        %7155 = vmatprep.subr.mxu0 0.0
        %7156 = vmatpush2.msra.mxu0 0.0
        %7157 = vmatprep.subr.mxu0 0.0
        %7158 = vmatpush2.msra.mxu0 0.0
        %7159 = vmatprep.subr.mxu0 0.0
        %7160 = vmatpush2.msra.mxu0 0.0
        %7161 = vmatprep.subr.mxu0 0.0
        %7162 = vmatpush2.msra.mxu0 0.0
        %7163 = vmatprep.mubr.f32.mxu0 0.0
        %7164 = vmatmul.mubr.f32.gmra.mxu0 %v7088
        %v7165 = vpop.f32.mrf.mxu0
        %v7166 = vadd.f32 0.0, %v7165
        %v7167 = vpop.f32.mrf.mxu0
        %7168 = vmatprep.mubr.f32.mxu0 0.0
        %7169 = vmatmul.mubr.f32.gmra.mxu0 %v7091
        %v7170 = vpop.f32.mrf.mxu0
        %v7171 = vadd.f32 0.0, %v7170
        %v7172 = vpop.f32.mrf.mxu0
        %7173 = vmatprep.mubr.f32.mxu0 0.0
        %7174 = vmatmul.mubr.f32.gmra.mxu0 %v7094
        %v7175 = vpop.f32.mrf.mxu0
        %v7176 = vadd.f32 0.0, %v7175
        %v7177 = vpop.f32.mrf.mxu0
        %7178 = vmatprep.mubr.f32.mxu0 0.0
        %7179 = vmatmul.mubr.f32.gmra.mxu0 %v7097
        %v7180 = vpop.f32.mrf.mxu0
        %v7181 = vadd.f32 0.0, %v7180
        %v7182 = vpop.f32.mrf.mxu0
        %7183 = vdwg.mxu0
        %v7185 = vsel %vm3173, %v7166, 0
        %v7188 = vsel %vm3173, %v7171, 0
        %v7191 = vsel %vm3173, %v7176, 0
        %v7194 = vsel %vm3173, %v7181, 0
        %7196 = vmatprep.subr.mxu0 0.0
        %7197 = vmatpush1.msra.mxu0 0.0
        %7198 = vmatprep.subr.mxu0 0.0
        %7199 = vmatpush1.msra.mxu0 0.0
        %7200 = vmatprep.subr.mxu0 0.0
        %7201 = vmatpush1.msra.mxu0 0.0
        %7202 = vmatprep.subr.mxu0 0.0
        %7203 = vmatpush1.msra.mxu0 0.0
        %7204 = vmatprep.subr.mxu0 0.0
        %7205 = vmatpush1.msra.mxu0 0.0
        %7206 = vmatprep.subr.mxu0 0.0
        %7207 = vmatpush1.msra.mxu0 0.0
        %7208 = vmatprep.subr.mxu0 0.0
        %7209 = vmatpush1.msra.mxu0 0.0
        %7210 = vmatprep.subr.mxu0 0.0
        %7211 = vmatpush1.msra.mxu0 0.0
        %7212 = vmatprep.subr.mxu0 0.0
        %7213 = vmatpush1.msra.mxu0 %v3172
        %7214 = vmatprep.subr.mxu0 0.0
        %7215 = vmatpush1.msra.mxu0 %v3171
        %7216 = vmatprep.subr.mxu0 0.0
        %7217 = vmatpush1.msra.mxu0 %v3170
        %7218 = vmatprep.subr.mxu0 0.0
        %7219 = vmatpush1.msra.mxu0 %v3169
        %7220 = vmatprep.subr.mxu0 0.0
        %7221 = vmatpush1.msra.mxu0 %v3168
        %7222 = vmatprep.subr.mxu0 0.0
        %7223 = vmatpush1.msra.mxu0 %v3167
        %7224 = vmatprep.subr.mxu0 0.0
        %7225 = vmatpush1.msra.mxu0 %v3166
        %7226 = vmatprep.subr.mxu0 0.0
        %7227 = vmatpush1.msra.mxu0 %v3165
        %7228 = vmatprep.subr.mxu0 0.0
        %7229 = vmatpush2.msra.mxu0 0.0
        %7230 = vmatprep.subr.mxu0 0.0
        %7231 = vmatpush2.msra.mxu0 0.0
        %7232 = vmatprep.subr.mxu0 0.0
        %7233 = vmatpush2.msra.mxu0 0.0
        %7234 = vmatprep.subr.mxu0 0.0
        %7235 = vmatpush2.msra.mxu0 0.0
        %7236 = vmatprep.subr.mxu0 0.0
        %7237 = vmatpush2.msra.mxu0 0.0
        %7238 = vmatprep.subr.mxu0 0.0
        %7239 = vmatpush2.msra.mxu0 0.0
        %7240 = vmatprep.subr.mxu0 0.0
        %7241 = vmatpush2.msra.mxu0 0.0
        %7242 = vmatprep.subr.mxu0 0.0
        %7243 = vmatpush2.msra.mxu0 0.0
        %7244 = vmatprep.subr.mxu0 0.0
        %7245 = vmatpush2.msra.mxu0 0.0
        %7246 = vmatprep.subr.mxu0 0.0
        %7247 = vmatpush2.msra.mxu0 0.0
        %7248 = vmatprep.subr.mxu0 0.0
        %7249 = vmatpush2.msra.mxu0 0.0
        %7250 = vmatprep.subr.mxu0 0.0
        %7251 = vmatpush2.msra.mxu0 0.0
        %7252 = vmatprep.subr.mxu0 0.0
        %7253 = vmatpush2.msra.mxu0 0.0
        %7254 = vmatprep.subr.mxu0 0.0
        %7255 = vmatpush2.msra.mxu0 0.0
        %7256 = vmatprep.subr.mxu0 0.0
        %7257 = vmatpush2.msra.mxu0 0.0
        %7258 = vmatprep.subr.mxu0 0.0
        %7259 = vmatpush2.msra.mxu0 0.0
        %7260 = vmatprep.mubr.f32.mxu0 0.0
        %7261 = vmatmul.mubr.f32.gmra.mxu0 %v7185
        %v7262 = vpop.f32.mrf.mxu0
        %v7263 = vadd.f32 0.0, %v7262
        %v7264 = vpop.f32.mrf.mxu0
        %7265 = vmatprep.mubr.f32.mxu0 0.0
        %7266 = vmatmul.mubr.f32.gmra.mxu0 %v7188
        %v7267 = vpop.f32.mrf.mxu0
        %v7268 = vadd.f32 0.0, %v7267
        %v7269 = vpop.f32.mrf.mxu0
        %7270 = vmatprep.mubr.f32.mxu0 0.0
        %7271 = vmatmul.mubr.f32.gmra.mxu0 %v7191
        %v7272 = vpop.f32.mrf.mxu0
        %v7273 = vadd.f32 0.0, %v7272
        %v7274 = vpop.f32.mrf.mxu0
        %7275 = vmatprep.mubr.f32.mxu0 0.0
        %7276 = vmatmul.mubr.f32.gmra.mxu0 %v7194
        %v7277 = vpop.f32.mrf.mxu0
        %v7278 = vadd.f32 0.0, %v7277
        %v7279 = vpop.f32.mrf.mxu0
        %7280 = vdwg.mxu0
        %v7281 = vld [vmem:[%s7] sm:$0xf]
        %7282 = vmatprep.subr.mxu0 0.0
        %7283 = vmatpush1.msra.mxu0 0.0
        %7284 = vmatprep.subr.mxu0 0.0
        %7285 = vmatpush1.msra.mxu0 0.0
        %7286 = vmatprep.subr.mxu0 0.0
        %7287 = vmatpush1.msra.mxu0 0.0
        %7288 = vmatprep.subr.mxu0 0.0
        %7289 = vmatpush1.msra.mxu0 0.0
        %7290 = vmatprep.subr.mxu0 0.0
        %7291 = vmatpush1.msra.mxu0 0.0
        %7292 = vmatprep.subr.mxu0 0.0
        %7293 = vmatpush1.msra.mxu0 0.0
        %7294 = vmatprep.subr.mxu0 0.0
        %7295 = vmatpush1.msra.mxu0 0.0
        %7296 = vmatprep.subr.mxu0 0.0
        %7297 = vmatpush1.msra.mxu0 0.0
        %7298 = vmatprep.subr.mxu0 0.0
        %7299 = vmatpush1.msra.mxu0 %v3267
        %7300 = vmatprep.subr.mxu0 0.0
        %7301 = vmatpush1.msra.mxu0 %v3266
        %7302 = vmatprep.subr.mxu0 0.0
        %7303 = vmatpush1.msra.mxu0 %v3265
        %7304 = vmatprep.subr.mxu0 0.0
        %7305 = vmatpush1.msra.mxu0 %v3264
        %7306 = vmatprep.subr.mxu0 0.0
        %7307 = vmatpush1.msra.mxu0 %v3263
        %7308 = vmatprep.subr.mxu0 0.0
        %7309 = vmatpush1.msra.mxu0 %v3262
        %7310 = vmatprep.subr.mxu0 0.0
        %7311 = vmatpush1.msra.mxu0 %v3261
        %7312 = vmatprep.subr.mxu0 0.0
        %7313 = vmatpush1.msra.mxu0 %v3260
        %7314 = vmatprep.subr.mxu0 0.0
        %7315 = vmatpush2.msra.mxu0 0.0
        %7316 = vmatprep.subr.mxu0 0.0
        %7317 = vmatpush2.msra.mxu0 0.0
        %7318 = vmatprep.subr.mxu0 0.0
        %7319 = vmatpush2.msra.mxu0 0.0
        %7320 = vmatprep.subr.mxu0 0.0
        %7321 = vmatpush2.msra.mxu0 0.0
        %7322 = vmatprep.subr.mxu0 0.0
        %7323 = vmatpush2.msra.mxu0 0.0
        %7324 = vmatprep.subr.mxu0 0.0
        %7325 = vmatpush2.msra.mxu0 0.0
        %7326 = vmatprep.subr.mxu0 0.0
        %7327 = vmatpush2.msra.mxu0 0.0
        %7328 = vmatprep.subr.mxu0 0.0
        %7329 = vmatpush2.msra.mxu0 0.0
        %7330 = vmatprep.subr.mxu0 0.0
        %7331 = vmatpush2.msra.mxu0 0.0
        %7332 = vmatprep.subr.mxu0 0.0
        %7333 = vmatpush2.msra.mxu0 0.0
        %7334 = vmatprep.subr.mxu0 0.0
        %7335 = vmatpush2.msra.mxu0 0.0
        %7336 = vmatprep.subr.mxu0 0.0
        %7337 = vmatpush2.msra.mxu0 0.0
        %7338 = vmatprep.subr.mxu0 0.0
        %7339 = vmatpush2.msra.mxu0 0.0
        %7340 = vmatprep.subr.mxu0 0.0
        %7341 = vmatpush2.msra.mxu0 0.0
        %7342 = vmatprep.subr.mxu0 0.0
        %7343 = vmatpush2.msra.mxu0 0.0
        %7344 = vmatprep.subr.mxu0 0.0
        %7345 = vmatpush2.msra.mxu0 0.0
        %7346 = vmatprep.mubr.f32.mxu0 0.0
        %7347 = vmatmul.mubr.f32.gmra.mxu0 %v7185
        %v7348 = vpop.f32.mrf.mxu0
        %v7349 = vadd.f32 0.0, %v7348
        %v7350 = vpop.f32.mrf.mxu0
        %7351 = vmatprep.mubr.f32.mxu0 0.0
        %7352 = vmatmul.mubr.f32.gmra.mxu0 %v7188
        %v7353 = vpop.f32.mrf.mxu0
        %v7354 = vadd.f32 0.0, %v7353
        %v7355 = vpop.f32.mrf.mxu0
        %7356 = vmatprep.mubr.f32.mxu0 0.0
        %7357 = vmatmul.mubr.f32.gmra.mxu0 %v7191
        %v7358 = vpop.f32.mrf.mxu0
        %v7359 = vadd.f32 0.0, %v7358
        %v7360 = vpop.f32.mrf.mxu0
        %7361 = vmatprep.mubr.f32.mxu0 0.0
        %7362 = vmatmul.mubr.f32.gmra.mxu0 %v7194
        %v7363 = vpop.f32.mrf.mxu0
        %v7364 = vadd.f32 0.0, %v7363
        %v7365 = vpop.f32.mrf.mxu0
        %7366 = vdwg.mxu0
        %s7367 = scalar_lea.vmem %s7, 4
        %v7368 = vld [vmem:[%s7367] sm:$0xf]
        %v7370 = vsel %vm5500, %v7368, 0
        %7372 = vmatprep.subr.mxu0 0.0
        %7373 = vmatpush1.msra.mxu0 0.0
        %7374 = vmatprep.subr.mxu0 0.0
        %7375 = vmatpush1.msra.mxu0 0.0
        %7376 = vmatprep.subr.mxu0 0.0
        %7377 = vmatpush1.msra.mxu0 0.0
        %7378 = vmatprep.subr.mxu0 0.0
        %7379 = vmatpush1.msra.mxu0 0.0
        %7380 = vmatprep.subr.mxu0 0.0
        %7381 = vmatpush1.msra.mxu0 0.0
        %7382 = vmatprep.subr.mxu0 0.0
        %7383 = vmatpush1.msra.mxu0 0.0
        %7384 = vmatprep.subr.mxu0 0.0
        %7385 = vmatpush1.msra.mxu0 0.0
        %7386 = vmatprep.subr.mxu0 0.0
        %7387 = vmatpush1.msra.mxu0 0.0
        %7388 = vmatprep.subr.mxu0 0.0
        %7389 = vmatpush1.msra.mxu0 0.0
        %7390 = vmatprep.subr.mxu0 0.0
        %7391 = vmatpush1.msra.mxu0 0.0
        %7392 = vmatprep.subr.mxu0 0.0
        %7393 = vmatpush1.msra.mxu0 0.0
        %7394 = vmatprep.subr.mxu0 0.0
        %7395 = vmatpush1.msra.mxu0 0.0
        %7396 = vmatprep.subr.mxu0 0.0
        %7397 = vmatpush1.msra.mxu0 %v7364
        %7398 = vmatprep.subr.mxu0 0.0
        %7399 = vmatpush1.msra.mxu0 %v7359
        %7400 = vmatprep.subr.mxu0 0.0
        %7401 = vmatpush1.msra.mxu0 %v7354
        %7402 = vmatprep.subr.mxu0 0.0
        %7403 = vmatpush1.msra.mxu0 %v7349
        %7404 = vmatprep.subr.mxu0 0.0
        %7405 = vmatpush2.msra.mxu0 0.0
        %7406 = vmatprep.subr.mxu0 0.0
        %7407 = vmatpush2.msra.mxu0 0.0
        %7408 = vmatprep.subr.mxu0 0.0
        %7409 = vmatpush2.msra.mxu0 0.0
        %7410 = vmatprep.subr.mxu0 0.0
        %7411 = vmatpush2.msra.mxu0 0.0
        %7412 = vmatprep.subr.mxu0 0.0
        %7413 = vmatpush2.msra.mxu0 0.0
        %7414 = vmatprep.subr.mxu0 0.0
        %7415 = vmatpush2.msra.mxu0 0.0
        %7416 = vmatprep.subr.mxu0 0.0
        %7417 = vmatpush2.msra.mxu0 0.0
        %7418 = vmatprep.subr.mxu0 0.0
        %7419 = vmatpush2.msra.mxu0 0.0
        %7420 = vmatprep.subr.mxu0 0.0
        %7421 = vmatpush2.msra.mxu0 0.0
        %7422 = vmatprep.subr.mxu0 0.0
        %7423 = vmatpush2.msra.mxu0 0.0
        %7424 = vmatprep.subr.mxu0 0.0
        %7425 = vmatpush2.msra.mxu0 0.0
        %7426 = vmatprep.subr.mxu0 0.0
        %7427 = vmatpush2.msra.mxu0 0.0
        %7428 = vmatprep.subr.mxu0 0.0
        %7429 = vmatpush2.msra.mxu0 0.0
        %7430 = vmatprep.subr.mxu0 0.0
        %7431 = vmatpush2.msra.mxu0 0.0
        %7432 = vmatprep.subr.mxu0 0.0
        %7433 = vmatpush2.msra.mxu0 0.0
        %7434 = vmatprep.subr.mxu0 0.0
        %7435 = vmatpush2.msra.mxu0 0.0
        %7436 = vmatprep.mubr.f32.mxu0 0.0
        %7437 = vmatmul.mubr.f32.gmra.mxu0 %v7370
        %v7438 = vpop.f32.mrf.mxu0
        %v7439 = vadd.f32 0.0, %v7438
        %v7440 = vpop.f32.mrf.mxu0
        %7441 = vdwg.mxu0
        %v7443 = vsel %vm5500, %v7281, 0
        %7445 = vmatprep.subr.mxu0 0.0
        %7446 = vmatpush1.msra.mxu0 0.0
        %7447 = vmatprep.subr.mxu0 0.0
        %7448 = vmatpush1.msra.mxu0 0.0
        %7449 = vmatprep.subr.mxu0 0.0
        %7450 = vmatpush1.msra.mxu0 0.0
        %7451 = vmatprep.subr.mxu0 0.0
        %7452 = vmatpush1.msra.mxu0 0.0
        %7453 = vmatprep.subr.mxu0 0.0
        %7454 = vmatpush1.msra.mxu0 0.0
        %7455 = vmatprep.subr.mxu0 0.0
        %7456 = vmatpush1.msra.mxu0 0.0
        %7457 = vmatprep.subr.mxu0 0.0
        %7458 = vmatpush1.msra.mxu0 0.0
        %7459 = vmatprep.subr.mxu0 0.0
        %7460 = vmatpush1.msra.mxu0 0.0
        %7461 = vmatprep.subr.mxu0 0.0
        %7462 = vmatpush1.msra.mxu0 0.0
        %7463 = vmatprep.subr.mxu0 0.0
        %7464 = vmatpush1.msra.mxu0 0.0
        %7465 = vmatprep.subr.mxu0 0.0
        %7466 = vmatpush1.msra.mxu0 0.0
        %7467 = vmatprep.subr.mxu0 0.0
        %7468 = vmatpush1.msra.mxu0 0.0
        %7469 = vmatprep.subr.mxu0 0.0
        %7470 = vmatpush1.msra.mxu0 %v7278
        %7471 = vmatprep.subr.mxu0 0.0
        %7472 = vmatpush1.msra.mxu0 %v7273
        %7473 = vmatprep.subr.mxu0 0.0
        %7474 = vmatpush1.msra.mxu0 %v7268
        %7475 = vmatprep.subr.mxu0 0.0
        %7476 = vmatpush1.msra.mxu0 %v7263
        %7477 = vmatprep.subr.mxu0 0.0
        %7478 = vmatpush2.msra.mxu0 0.0
        %7479 = vmatprep.subr.mxu0 0.0
        %7480 = vmatpush2.msra.mxu0 0.0
        %7481 = vmatprep.subr.mxu0 0.0
        %7482 = vmatpush2.msra.mxu0 0.0
        %7483 = vmatprep.subr.mxu0 0.0
        %7484 = vmatpush2.msra.mxu0 0.0
        %7485 = vmatprep.subr.mxu0 0.0
        %7486 = vmatpush2.msra.mxu0 0.0
        %7487 = vmatprep.subr.mxu0 0.0
        %7488 = vmatpush2.msra.mxu0 0.0
        %7489 = vmatprep.subr.mxu0 0.0
        %7490 = vmatpush2.msra.mxu0 0.0
        %7491 = vmatprep.subr.mxu0 0.0
        %7492 = vmatpush2.msra.mxu0 0.0
        %7493 = vmatprep.subr.mxu0 0.0
        %7494 = vmatpush2.msra.mxu0 0.0
        %7495 = vmatprep.subr.mxu0 0.0
        %7496 = vmatpush2.msra.mxu0 0.0
        %7497 = vmatprep.subr.mxu0 0.0
        %7498 = vmatpush2.msra.mxu0 0.0
        %7499 = vmatprep.subr.mxu0 0.0
        %7500 = vmatpush2.msra.mxu0 0.0
        %7501 = vmatprep.subr.mxu0 0.0
        %7502 = vmatpush2.msra.mxu0 0.0
        %7503 = vmatprep.subr.mxu0 0.0
        %7504 = vmatpush2.msra.mxu0 0.0
        %7505 = vmatprep.subr.mxu0 0.0
        %7506 = vmatpush2.msra.mxu0 0.0
        %7507 = vmatprep.subr.mxu0 0.0
        %7508 = vmatpush2.msra.mxu0 0.0
        %7509 = vmatprep.mubr.f32.mxu0 0.0
        %7510 = vmatmul.mubr.f32.gmra.mxu0 %v7443
        %v7511 = vpop.f32.mrf.mxu0
        %v7512 = vadd.f32 %v7439, %v7511
        %v7513 = vpop.f32.mrf.mxu0
        %7514 = vdwg.mxu0
        %7515 = vmatprep.subr.mxu0 0.0
        %7516 = vmatpush1.msra.mxu0 0.0
        %7517 = vmatprep.subr.mxu0 0.0
        %7518 = vmatpush1.msra.mxu0 0.0
        %7519 = vmatprep.subr.mxu0 0.0
        %7520 = vmatpush1.msra.mxu0 0.0
        %7521 = vmatprep.subr.mxu0 0.0
        %7522 = vmatpush1.msra.mxu0 0.0
        %7523 = vmatprep.subr.mxu0 0.0
        %7524 = vmatpush1.msra.mxu0 0.0
        %7525 = vmatprep.subr.mxu0 0.0
        %7526 = vmatpush1.msra.mxu0 0.0
        %7527 = vmatprep.subr.mxu0 0.0
        %7528 = vmatpush1.msra.mxu0 0.0
        %7529 = vmatprep.subr.mxu0 0.0
        %7530 = vmatpush1.msra.mxu0 0.0
        %7531 = vmatprep.subr.mxu0 0.0
        %7532 = vmatpush1.msra.mxu0 %v3551
        %7533 = vmatprep.subr.mxu0 0.0
        %7534 = vmatpush1.msra.mxu0 %v3550
        %7535 = vmatprep.subr.mxu0 0.0
        %7536 = vmatpush1.msra.mxu0 %v3549
        %7537 = vmatprep.subr.mxu0 0.0
        %7538 = vmatpush1.msra.mxu0 %v3548
        %7539 = vmatprep.subr.mxu0 0.0
        %7540 = vmatpush1.msra.mxu0 %v3547
        %7541 = vmatprep.subr.mxu0 0.0
        %7542 = vmatpush1.msra.mxu0 %v3546
        %7543 = vmatprep.subr.mxu0 0.0
        %7544 = vmatpush1.msra.mxu0 %v3545
        %7545 = vmatprep.subr.mxu0 0.0
        %7546 = vmatpush1.msra.mxu0 %v3544
        %7547 = vmatprep.subr.mxu0 0.0
        %7548 = vmatpush2.msra.mxu0 0.0
        %7549 = vmatprep.subr.mxu0 0.0
        %7550 = vmatpush2.msra.mxu0 0.0
        %7551 = vmatprep.subr.mxu0 0.0
        %7552 = vmatpush2.msra.mxu0 0.0
        %7553 = vmatprep.subr.mxu0 0.0
        %7554 = vmatpush2.msra.mxu0 0.0
        %7555 = vmatprep.subr.mxu0 0.0
        %7556 = vmatpush2.msra.mxu0 0.0
        %7557 = vmatprep.subr.mxu0 0.0
        %7558 = vmatpush2.msra.mxu0 0.0
        %7559 = vmatprep.subr.mxu0 0.0
        %7560 = vmatpush2.msra.mxu0 0.0
        %7561 = vmatprep.subr.mxu0 0.0
        %7562 = vmatpush2.msra.mxu0 0.0
        %7563 = vmatprep.subr.mxu0 0.0
        %7564 = vmatpush2.msra.mxu0 0.0
        %7565 = vmatprep.subr.mxu0 0.0
        %7566 = vmatpush2.msra.mxu0 0.0
        %7567 = vmatprep.subr.mxu0 0.0
        %7568 = vmatpush2.msra.mxu0 0.0
        %7569 = vmatprep.subr.mxu0 0.0
        %7570 = vmatpush2.msra.mxu0 0.0
        %7571 = vmatprep.subr.mxu0 0.0
        %7572 = vmatpush2.msra.mxu0 0.0
        %7573 = vmatprep.subr.mxu0 0.0
        %7574 = vmatpush2.msra.mxu0 0.0
        %7575 = vmatprep.subr.mxu0 0.0
        %7576 = vmatpush2.msra.mxu0 0.0
        %7577 = vmatprep.subr.mxu0 0.0
        %7578 = vmatpush2.msra.mxu0 0.0
        %7579 = vmatprep.mubr.f32.mxu0 0.0
        %7580 = vmatmul.mubr.f32.gmra.mxu0 %v7185
        %v7581 = vpop.f32.mrf.mxu0
        %v7582 = vadd.f32 0.0, %v7581
        %v7583 = vpop.f32.mrf.mxu0
        %7584 = vmatprep.mubr.f32.mxu0 0.0
        %7585 = vmatmul.mubr.f32.gmra.mxu0 %v7188
        %v7586 = vpop.f32.mrf.mxu0
        %v7587 = vadd.f32 0.0, %v7586
        %v7588 = vpop.f32.mrf.mxu0
        %7589 = vmatprep.mubr.f32.mxu0 0.0
        %7590 = vmatmul.mubr.f32.gmra.mxu0 %v7191
        %v7591 = vpop.f32.mrf.mxu0
        %v7592 = vadd.f32 0.0, %v7591
        %v7593 = vpop.f32.mrf.mxu0
        %7594 = vmatprep.mubr.f32.mxu0 0.0
        %7595 = vmatmul.mubr.f32.gmra.mxu0 %v7194
        %v7596 = vpop.f32.mrf.mxu0
        %v7597 = vadd.f32 0.0, %v7596
        %v7598 = vpop.f32.mrf.mxu0
        %7599 = vdwg.mxu0
        %s7600 = scalar_lea.vmem %s7, 8
        %v7601 = vld [vmem:[%s7600] sm:$0xf]
        %v7603 = vsel %vm5500, %v7601, 0
        %7605 = vmatprep.subr.mxu0 0.0
        %7606 = vmatpush1.msra.mxu0 0.0
        %7607 = vmatprep.subr.mxu0 0.0
        %7608 = vmatpush1.msra.mxu0 0.0
        %7609 = vmatprep.subr.mxu0 0.0
        %7610 = vmatpush1.msra.mxu0 0.0
        %7611 = vmatprep.subr.mxu0 0.0
        %7612 = vmatpush1.msra.mxu0 0.0
        %7613 = vmatprep.subr.mxu0 0.0
        %7614 = vmatpush1.msra.mxu0 0.0
        %7615 = vmatprep.subr.mxu0 0.0
        %7616 = vmatpush1.msra.mxu0 0.0
        %7617 = vmatprep.subr.mxu0 0.0
        %7618 = vmatpush1.msra.mxu0 0.0
        %7619 = vmatprep.subr.mxu0 0.0
        %7620 = vmatpush1.msra.mxu0 0.0
        %7621 = vmatprep.subr.mxu0 0.0
        %7622 = vmatpush1.msra.mxu0 0.0
        %7623 = vmatprep.subr.mxu0 0.0
        %7624 = vmatpush1.msra.mxu0 0.0
        %7625 = vmatprep.subr.mxu0 0.0
        %7626 = vmatpush1.msra.mxu0 0.0
        %7627 = vmatprep.subr.mxu0 0.0
        %7628 = vmatpush1.msra.mxu0 0.0
        %7629 = vmatprep.subr.mxu0 0.0
        %7630 = vmatpush1.msra.mxu0 %v7597
        %7631 = vmatprep.subr.mxu0 0.0
        %7632 = vmatpush1.msra.mxu0 %v7592
        %7633 = vmatprep.subr.mxu0 0.0
        %7634 = vmatpush1.msra.mxu0 %v7587
        %7635 = vmatprep.subr.mxu0 0.0
        %7636 = vmatpush1.msra.mxu0 %v7582
        %7637 = vmatprep.subr.mxu0 0.0
        %7638 = vmatpush2.msra.mxu0 0.0
        %7639 = vmatprep.subr.mxu0 0.0
        %7640 = vmatpush2.msra.mxu0 0.0
        %7641 = vmatprep.subr.mxu0 0.0
        %7642 = vmatpush2.msra.mxu0 0.0
        %7643 = vmatprep.subr.mxu0 0.0
        %7644 = vmatpush2.msra.mxu0 0.0
        %7645 = vmatprep.subr.mxu0 0.0
        %7646 = vmatpush2.msra.mxu0 0.0
        %7647 = vmatprep.subr.mxu0 0.0
        %7648 = vmatpush2.msra.mxu0 0.0
        %7649 = vmatprep.subr.mxu0 0.0
        %7650 = vmatpush2.msra.mxu0 0.0
        %7651 = vmatprep.subr.mxu0 0.0
        %7652 = vmatpush2.msra.mxu0 0.0
        %7653 = vmatprep.subr.mxu0 0.0
        %7654 = vmatpush2.msra.mxu0 0.0
        %7655 = vmatprep.subr.mxu0 0.0
        %7656 = vmatpush2.msra.mxu0 0.0
        %7657 = vmatprep.subr.mxu0 0.0
        %7658 = vmatpush2.msra.mxu0 0.0
        %7659 = vmatprep.subr.mxu0 0.0
        %7660 = vmatpush2.msra.mxu0 0.0
        %7661 = vmatprep.subr.mxu0 0.0
        %7662 = vmatpush2.msra.mxu0 0.0
        %7663 = vmatprep.subr.mxu0 0.0
        %7664 = vmatpush2.msra.mxu0 0.0
        %7665 = vmatprep.subr.mxu0 0.0
        %7666 = vmatpush2.msra.mxu0 0.0
        %7667 = vmatprep.subr.mxu0 0.0
        %7668 = vmatpush2.msra.mxu0 0.0
        %7669 = vmatprep.mubr.f32.mxu0 0.0
        %7670 = vmatmul.mubr.f32.gmra.mxu0 %v7603
        %v7671 = vpop.f32.mrf.mxu0
        %v7672 = vadd.f32 0.0, %v7671
        %v7673 = vpop.f32.mrf.mxu0
        %7674 = vdwg.mxu0
        %v7675 = vadd.f32 %v7512, %v7672
        %7676 = vmatprep.subr.mxu0 0.0
        %7677 = vmatpush1.msra.mxu0 0.0
        %7678 = vmatprep.subr.mxu0 0.0
        %7679 = vmatpush1.msra.mxu0 0.0
        %7680 = vmatprep.subr.mxu0 0.0
        %7681 = vmatpush1.msra.mxu0 0.0
        %7682 = vmatprep.subr.mxu0 0.0
        %7683 = vmatpush1.msra.mxu0 0.0
        %7684 = vmatprep.subr.mxu0 0.0
        %7685 = vmatpush1.msra.mxu0 0.0
        %7686 = vmatprep.subr.mxu0 0.0
        %7687 = vmatpush1.msra.mxu0 0.0
        %7688 = vmatprep.subr.mxu0 0.0
        %7689 = vmatpush1.msra.mxu0 0.0
        %7690 = vmatprep.subr.mxu0 0.0
        %7691 = vmatpush1.msra.mxu0 0.0
        %7692 = vmatprep.subr.mxu0 0.0
        %7693 = vmatpush1.msra.mxu0 %v3741
        %7694 = vmatprep.subr.mxu0 0.0
        %7695 = vmatpush1.msra.mxu0 %v3740
        %7696 = vmatprep.subr.mxu0 0.0
        %7697 = vmatpush1.msra.mxu0 %v3739
        %7698 = vmatprep.subr.mxu0 0.0
        %7699 = vmatpush1.msra.mxu0 %v3738
        %7700 = vmatprep.subr.mxu0 0.0
        %7701 = vmatpush1.msra.mxu0 %v3737
        %7702 = vmatprep.subr.mxu0 0.0
        %7703 = vmatpush1.msra.mxu0 %v3736
        %7704 = vmatprep.subr.mxu0 0.0
        %7705 = vmatpush1.msra.mxu0 %v3735
        %7706 = vmatprep.subr.mxu0 0.0
        %7707 = vmatpush1.msra.mxu0 %v3734
        %7708 = vmatprep.subr.mxu0 0.0
        %7709 = vmatpush2.msra.mxu0 0.0
        %7710 = vmatprep.subr.mxu0 0.0
        %7711 = vmatpush2.msra.mxu0 0.0
        %7712 = vmatprep.subr.mxu0 0.0
        %7713 = vmatpush2.msra.mxu0 0.0
        %7714 = vmatprep.subr.mxu0 0.0
        %7715 = vmatpush2.msra.mxu0 0.0
        %7716 = vmatprep.subr.mxu0 0.0
        %7717 = vmatpush2.msra.mxu0 0.0
        %7718 = vmatprep.subr.mxu0 0.0
        %7719 = vmatpush2.msra.mxu0 0.0
        %7720 = vmatprep.subr.mxu0 0.0
        %7721 = vmatpush2.msra.mxu0 0.0
        %7722 = vmatprep.subr.mxu0 0.0
        %7723 = vmatpush2.msra.mxu0 0.0
        %7724 = vmatprep.subr.mxu0 0.0
        %7725 = vmatpush2.msra.mxu0 0.0
        %7726 = vmatprep.subr.mxu0 0.0
        %7727 = vmatpush2.msra.mxu0 0.0
        %7728 = vmatprep.subr.mxu0 0.0
        %7729 = vmatpush2.msra.mxu0 0.0
        %7730 = vmatprep.subr.mxu0 0.0
        %7731 = vmatpush2.msra.mxu0 0.0
        %7732 = vmatprep.subr.mxu0 0.0
        %7733 = vmatpush2.msra.mxu0 0.0
        %7734 = vmatprep.subr.mxu0 0.0
        %7735 = vmatpush2.msra.mxu0 0.0
        %7736 = vmatprep.subr.mxu0 0.0
        %7737 = vmatpush2.msra.mxu0 0.0
        %7738 = vmatprep.subr.mxu0 0.0
        %7739 = vmatpush2.msra.mxu0 0.0
        %7740 = vmatprep.mubr.f32.mxu0 0.0
        %7741 = vmatmul.mubr.f32.gmra.mxu0 %v7185
        %v7742 = vpop.f32.mrf.mxu0
        %v7743 = vadd.f32 0.0, %v7742
        %v7744 = vpop.f32.mrf.mxu0
        %7745 = vmatprep.mubr.f32.mxu0 0.0
        %7746 = vmatmul.mubr.f32.gmra.mxu0 %v7188
        %v7747 = vpop.f32.mrf.mxu0
        %v7748 = vadd.f32 0.0, %v7747
        %v7749 = vpop.f32.mrf.mxu0
        %7750 = vmatprep.mubr.f32.mxu0 0.0
        %7751 = vmatmul.mubr.f32.gmra.mxu0 %v7191
        %v7752 = vpop.f32.mrf.mxu0
        %v7753 = vadd.f32 0.0, %v7752
        %v7754 = vpop.f32.mrf.mxu0
        %7755 = vmatprep.mubr.f32.mxu0 0.0
        %7756 = vmatmul.mubr.f32.gmra.mxu0 %v7194
        %v7757 = vpop.f32.mrf.mxu0
        %v7758 = vadd.f32 0.0, %v7757
        %v7759 = vpop.f32.mrf.mxu0
        %7760 = vdwg.mxu0
        %s7761 = scalar_lea.vmem %s7, 12
        %v7762 = vld [vmem:[%s7761] sm:$0xf]
        %v7764 = vsel %vm5500, %v7762, 0
        %7766 = vmatprep.subr.mxu0 0.0
        %7767 = vmatpush1.msra.mxu0 0.0
        %7768 = vmatprep.subr.mxu0 0.0
        %7769 = vmatpush1.msra.mxu0 0.0
        %7770 = vmatprep.subr.mxu0 0.0
        %7771 = vmatpush1.msra.mxu0 0.0
        %7772 = vmatprep.subr.mxu0 0.0
        %7773 = vmatpush1.msra.mxu0 0.0
        %7774 = vmatprep.subr.mxu0 0.0
        %7775 = vmatpush1.msra.mxu0 0.0
        %7776 = vmatprep.subr.mxu0 0.0
        %7777 = vmatpush1.msra.mxu0 0.0
        %7778 = vmatprep.subr.mxu0 0.0
        %7779 = vmatpush1.msra.mxu0 0.0
        %7780 = vmatprep.subr.mxu0 0.0
        %7781 = vmatpush1.msra.mxu0 0.0
        %7782 = vmatprep.subr.mxu0 0.0
        %7783 = vmatpush1.msra.mxu0 0.0
        %7784 = vmatprep.subr.mxu0 0.0
        %7785 = vmatpush1.msra.mxu0 0.0
        %7786 = vmatprep.subr.mxu0 0.0
        %7787 = vmatpush1.msra.mxu0 0.0
        %7788 = vmatprep.subr.mxu0 0.0
        %7789 = vmatpush1.msra.mxu0 0.0
        %7790 = vmatprep.subr.mxu0 0.0
        %7791 = vmatpush1.msra.mxu0 %v7758
        %7792 = vmatprep.subr.mxu0 0.0
        %7793 = vmatpush1.msra.mxu0 %v7753
        %7794 = vmatprep.subr.mxu0 0.0
        %7795 = vmatpush1.msra.mxu0 %v7748
        %7796 = vmatprep.subr.mxu0 0.0
        %7797 = vmatpush1.msra.mxu0 %v7743
        %7798 = vmatprep.subr.mxu0 0.0
        %7799 = vmatpush2.msra.mxu0 0.0
        %7800 = vmatprep.subr.mxu0 0.0
        %7801 = vmatpush2.msra.mxu0 0.0
        %7802 = vmatprep.subr.mxu0 0.0
        %7803 = vmatpush2.msra.mxu0 0.0
        %7804 = vmatprep.subr.mxu0 0.0
        %7805 = vmatpush2.msra.mxu0 0.0
        %7806 = vmatprep.subr.mxu0 0.0
        %7807 = vmatpush2.msra.mxu0 0.0
        %7808 = vmatprep.subr.mxu0 0.0
        %7809 = vmatpush2.msra.mxu0 0.0
        %7810 = vmatprep.subr.mxu0 0.0
        %7811 = vmatpush2.msra.mxu0 0.0
        %7812 = vmatprep.subr.mxu0 0.0
        %7813 = vmatpush2.msra.mxu0 0.0
        %7814 = vmatprep.subr.mxu0 0.0
        %7815 = vmatpush2.msra.mxu0 0.0
        %7816 = vmatprep.subr.mxu0 0.0
        %7817 = vmatpush2.msra.mxu0 0.0
        %7818 = vmatprep.subr.mxu0 0.0
        %7819 = vmatpush2.msra.mxu0 0.0
        %7820 = vmatprep.subr.mxu0 0.0
        %7821 = vmatpush2.msra.mxu0 0.0
        %7822 = vmatprep.subr.mxu0 0.0
        %7823 = vmatpush2.msra.mxu0 0.0
        %7824 = vmatprep.subr.mxu0 0.0
        %7825 = vmatpush2.msra.mxu0 0.0
        %7826 = vmatprep.subr.mxu0 0.0
        %7827 = vmatpush2.msra.mxu0 0.0
        %7828 = vmatprep.subr.mxu0 0.0
        %7829 = vmatpush2.msra.mxu0 0.0
        %7830 = vmatprep.mubr.f32.mxu0 0.0
        %7831 = vmatmul.mubr.f32.gmra.mxu0 %v7764
        %v7832 = vpop.f32.mrf.mxu0
        %v7833 = vadd.f32 0.0, %v7832
        %v7834 = vpop.f32.mrf.mxu0
        %7835 = vdwg.mxu0
        %v7836 = vadd.f32 %v7675, %v7833
        %7837 = vmatprep.subr.mxu0 0.0
        %7838 = vmatpush1.msra.mxu0 0.0
        %7839 = vmatprep.subr.mxu0 0.0
        %7840 = vmatpush1.msra.mxu0 0.0
        %7841 = vmatprep.subr.mxu0 0.0
        %7842 = vmatpush1.msra.mxu0 0.0
        %7843 = vmatprep.subr.mxu0 0.0
        %7844 = vmatpush1.msra.mxu0 0.0
        %7845 = vmatprep.subr.mxu0 0.0
        %7846 = vmatpush1.msra.mxu0 0.0
        %7847 = vmatprep.subr.mxu0 0.0
        %7848 = vmatpush1.msra.mxu0 0.0
        %7849 = vmatprep.subr.mxu0 0.0
        %7850 = vmatpush1.msra.mxu0 0.0
        %7851 = vmatprep.subr.mxu0 0.0
        %7852 = vmatpush1.msra.mxu0 0.0
        %7853 = vmatprep.subr.mxu0 0.0
        %7854 = vmatpush1.msra.mxu0 %v3931
        %7855 = vmatprep.subr.mxu0 0.0
        %7856 = vmatpush1.msra.mxu0 %v3930
        %7857 = vmatprep.subr.mxu0 0.0
        %7858 = vmatpush1.msra.mxu0 %v3929
        %7859 = vmatprep.subr.mxu0 0.0
        %7860 = vmatpush1.msra.mxu0 %v3928
        %7861 = vmatprep.subr.mxu0 0.0
        %7862 = vmatpush1.msra.mxu0 %v3927
        %7863 = vmatprep.subr.mxu0 0.0
        %7864 = vmatpush1.msra.mxu0 %v3926
        %7865 = vmatprep.subr.mxu0 0.0
        %7866 = vmatpush1.msra.mxu0 %v3925
        %7867 = vmatprep.subr.mxu0 0.0
        %7868 = vmatpush1.msra.mxu0 %v3924
        %7869 = vmatprep.subr.mxu0 0.0
        %7870 = vmatpush2.msra.mxu0 0.0
        %7871 = vmatprep.subr.mxu0 0.0
        %7872 = vmatpush2.msra.mxu0 0.0
        %7873 = vmatprep.subr.mxu0 0.0
        %7874 = vmatpush2.msra.mxu0 0.0
        %7875 = vmatprep.subr.mxu0 0.0
        %7876 = vmatpush2.msra.mxu0 0.0
        %7877 = vmatprep.subr.mxu0 0.0
        %7878 = vmatpush2.msra.mxu0 0.0
        %7879 = vmatprep.subr.mxu0 0.0
        %7880 = vmatpush2.msra.mxu0 0.0
        %7881 = vmatprep.subr.mxu0 0.0
        %7882 = vmatpush2.msra.mxu0 0.0
        %7883 = vmatprep.subr.mxu0 0.0
        %7884 = vmatpush2.msra.mxu0 0.0
        %7885 = vmatprep.subr.mxu0 0.0
        %7886 = vmatpush2.msra.mxu0 0.0
        %7887 = vmatprep.subr.mxu0 0.0
        %7888 = vmatpush2.msra.mxu0 0.0
        %7889 = vmatprep.subr.mxu0 0.0
        %7890 = vmatpush2.msra.mxu0 0.0
        %7891 = vmatprep.subr.mxu0 0.0
        %7892 = vmatpush2.msra.mxu0 0.0
        %7893 = vmatprep.subr.mxu0 0.0
        %7894 = vmatpush2.msra.mxu0 0.0
        %7895 = vmatprep.subr.mxu0 0.0
        %7896 = vmatpush2.msra.mxu0 0.0
        %7897 = vmatprep.subr.mxu0 0.0
        %7898 = vmatpush2.msra.mxu0 0.0
        %7899 = vmatprep.subr.mxu0 0.0
        %7900 = vmatpush2.msra.mxu0 0.0
        %7901 = vmatprep.mubr.f32.mxu0 0.0
        %7902 = vmatmul.mubr.f32.gmra.mxu0 %v7185
        %v7903 = vpop.f32.mrf.mxu0
        %v7904 = vadd.f32 0.0, %v7903
        %v7905 = vpop.f32.mrf.mxu0
        %7906 = vmatprep.mubr.f32.mxu0 0.0
        %7907 = vmatmul.mubr.f32.gmra.mxu0 %v7188
        %v7908 = vpop.f32.mrf.mxu0
        %v7909 = vadd.f32 0.0, %v7908
        %v7910 = vpop.f32.mrf.mxu0
        %7911 = vmatprep.mubr.f32.mxu0 0.0
        %7912 = vmatmul.mubr.f32.gmra.mxu0 %v7191
        %v7913 = vpop.f32.mrf.mxu0
        %v7914 = vadd.f32 0.0, %v7913
        %v7915 = vpop.f32.mrf.mxu0
        %7916 = vmatprep.mubr.f32.mxu0 0.0
        %7917 = vmatmul.mubr.f32.gmra.mxu0 %v7194
        %v7918 = vpop.f32.mrf.mxu0
        %v7919 = vadd.f32 0.0, %v7918
        %v7920 = vpop.f32.mrf.mxu0
        %7921 = vdwg.mxu0
        %s7922 = scalar_lea.vmem %s7, 16
        %v7923 = vld [vmem:[%s7922] sm:$0xf]
        %v7925 = vsel %vm5500, %v7923, 0
        %7927 = vmatprep.subr.mxu0 0.0
        %7928 = vmatpush1.msra.mxu0 0.0
        %7929 = vmatprep.subr.mxu0 0.0
        %7930 = vmatpush1.msra.mxu0 0.0
        %7931 = vmatprep.subr.mxu0 0.0
        %7932 = vmatpush1.msra.mxu0 0.0
        %7933 = vmatprep.subr.mxu0 0.0
        %7934 = vmatpush1.msra.mxu0 0.0
        %7935 = vmatprep.subr.mxu0 0.0
        %7936 = vmatpush1.msra.mxu0 0.0
        %7937 = vmatprep.subr.mxu0 0.0
        %7938 = vmatpush1.msra.mxu0 0.0
        %7939 = vmatprep.subr.mxu0 0.0
        %7940 = vmatpush1.msra.mxu0 0.0
        %7941 = vmatprep.subr.mxu0 0.0
        %7942 = vmatpush1.msra.mxu0 0.0
        %7943 = vmatprep.subr.mxu0 0.0
        %7944 = vmatpush1.msra.mxu0 0.0
        %7945 = vmatprep.subr.mxu0 0.0
        %7946 = vmatpush1.msra.mxu0 0.0
        %7947 = vmatprep.subr.mxu0 0.0
        %7948 = vmatpush1.msra.mxu0 0.0
        %7949 = vmatprep.subr.mxu0 0.0
        %7950 = vmatpush1.msra.mxu0 0.0
        %7951 = vmatprep.subr.mxu0 0.0
        %7952 = vmatpush1.msra.mxu0 %v7919
        %7953 = vmatprep.subr.mxu0 0.0
        %7954 = vmatpush1.msra.mxu0 %v7914
        %7955 = vmatprep.subr.mxu0 0.0
        %7956 = vmatpush1.msra.mxu0 %v7909
        %7957 = vmatprep.subr.mxu0 0.0
        %7958 = vmatpush1.msra.mxu0 %v7904
        %7959 = vmatprep.subr.mxu0 0.0
        %7960 = vmatpush2.msra.mxu0 0.0
        %7961 = vmatprep.subr.mxu0 0.0
        %7962 = vmatpush2.msra.mxu0 0.0
        %7963 = vmatprep.subr.mxu0 0.0
        %7964 = vmatpush2.msra.mxu0 0.0
        %7965 = vmatprep.subr.mxu0 0.0
        %7966 = vmatpush2.msra.mxu0 0.0
        %7967 = vmatprep.subr.mxu0 0.0
        %7968 = vmatpush2.msra.mxu0 0.0
        %7969 = vmatprep.subr.mxu0 0.0
        %7970 = vmatpush2.msra.mxu0 0.0
        %7971 = vmatprep.subr.mxu0 0.0
        %7972 = vmatpush2.msra.mxu0 0.0
        %7973 = vmatprep.subr.mxu0 0.0
        %7974 = vmatpush2.msra.mxu0 0.0
        %7975 = vmatprep.subr.mxu0 0.0
        %7976 = vmatpush2.msra.mxu0 0.0
        %7977 = vmatprep.subr.mxu0 0.0
        %7978 = vmatpush2.msra.mxu0 0.0
        %7979 = vmatprep.subr.mxu0 0.0
        %7980 = vmatpush2.msra.mxu0 0.0
        %7981 = vmatprep.subr.mxu0 0.0
        %7982 = vmatpush2.msra.mxu0 0.0
        %7983 = vmatprep.subr.mxu0 0.0
        %7984 = vmatpush2.msra.mxu0 0.0
        %7985 = vmatprep.subr.mxu0 0.0
        %7986 = vmatpush2.msra.mxu0 0.0
        %7987 = vmatprep.subr.mxu0 0.0
        %7988 = vmatpush2.msra.mxu0 0.0
        %7989 = vmatprep.subr.mxu0 0.0
        %7990 = vmatpush2.msra.mxu0 0.0
        %7991 = vmatprep.mubr.f32.mxu0 0.0
        %7992 = vmatmul.mubr.f32.gmra.mxu0 %v7925
        %v7993 = vpop.f32.mrf.mxu0
        %v7994 = vadd.f32 0.0, %v7993
        %v7995 = vpop.f32.mrf.mxu0
        %7996 = vdwg.mxu0
        %v7997 = vadd.f32 %v7836, %v7994
        %7998 = vmatprep.subr.mxu0 0.0
        %7999 = vmatpush1.msra.mxu0 0.0
        %8000 = vmatprep.subr.mxu0 0.0
        %8001 = vmatpush1.msra.mxu0 0.0
        %8002 = vmatprep.subr.mxu0 0.0
        %8003 = vmatpush1.msra.mxu0 0.0
        %8004 = vmatprep.subr.mxu0 0.0
        %8005 = vmatpush1.msra.mxu0 0.0
        %8006 = vmatprep.subr.mxu0 0.0
        %8007 = vmatpush1.msra.mxu0 0.0
        %8008 = vmatprep.subr.mxu0 0.0
        %8009 = vmatpush1.msra.mxu0 0.0
        %8010 = vmatprep.subr.mxu0 0.0
        %8011 = vmatpush1.msra.mxu0 0.0
        %8012 = vmatprep.subr.mxu0 0.0
        %8013 = vmatpush1.msra.mxu0 0.0
        %8014 = vmatprep.subr.mxu0 0.0
        %8015 = vmatpush1.msra.mxu0 %v4121
        %8016 = vmatprep.subr.mxu0 0.0
        %8017 = vmatpush1.msra.mxu0 %v4120
        %8018 = vmatprep.subr.mxu0 0.0
        %8019 = vmatpush1.msra.mxu0 %v4119
        %8020 = vmatprep.subr.mxu0 0.0
        %8021 = vmatpush1.msra.mxu0 %v4118
        %8022 = vmatprep.subr.mxu0 0.0
        %8023 = vmatpush1.msra.mxu0 %v4117
        %8024 = vmatprep.subr.mxu0 0.0
        %8025 = vmatpush1.msra.mxu0 %v4116
        %8026 = vmatprep.subr.mxu0 0.0
        %8027 = vmatpush1.msra.mxu0 %v4115
        %8028 = vmatprep.subr.mxu0 0.0
        %8029 = vmatpush1.msra.mxu0 %v4114
        %8030 = vmatprep.subr.mxu0 0.0
        %8031 = vmatpush2.msra.mxu0 0.0
        %8032 = vmatprep.subr.mxu0 0.0
        %8033 = vmatpush2.msra.mxu0 0.0
        %8034 = vmatprep.subr.mxu0 0.0
        %8035 = vmatpush2.msra.mxu0 0.0
        %8036 = vmatprep.subr.mxu0 0.0
        %8037 = vmatpush2.msra.mxu0 0.0
        %8038 = vmatprep.subr.mxu0 0.0
        %8039 = vmatpush2.msra.mxu0 0.0
        %8040 = vmatprep.subr.mxu0 0.0
        %8041 = vmatpush2.msra.mxu0 0.0
        %8042 = vmatprep.subr.mxu0 0.0
        %8043 = vmatpush2.msra.mxu0 0.0
        %8044 = vmatprep.subr.mxu0 0.0
        %8045 = vmatpush2.msra.mxu0 0.0
        %8046 = vmatprep.subr.mxu0 0.0
        %8047 = vmatpush2.msra.mxu0 0.0
        %8048 = vmatprep.subr.mxu0 0.0
        %8049 = vmatpush2.msra.mxu0 0.0
        %8050 = vmatprep.subr.mxu0 0.0
        %8051 = vmatpush2.msra.mxu0 0.0
        %8052 = vmatprep.subr.mxu0 0.0
        %8053 = vmatpush2.msra.mxu0 0.0
        %8054 = vmatprep.subr.mxu0 0.0
        %8055 = vmatpush2.msra.mxu0 0.0
        %8056 = vmatprep.subr.mxu0 0.0
        %8057 = vmatpush2.msra.mxu0 0.0
        %8058 = vmatprep.subr.mxu0 0.0
        %8059 = vmatpush2.msra.mxu0 0.0
        %8060 = vmatprep.subr.mxu0 0.0
        %8061 = vmatpush2.msra.mxu0 0.0
        %8062 = vmatprep.mubr.f32.mxu0 0.0
        %8063 = vmatmul.mubr.f32.gmra.mxu0 %v7185
        %v8064 = vpop.f32.mrf.mxu0
        %v8065 = vadd.f32 0.0, %v8064
        %v8066 = vpop.f32.mrf.mxu0
        %8067 = vmatprep.mubr.f32.mxu0 0.0
        %8068 = vmatmul.mubr.f32.gmra.mxu0 %v7188
        %v8069 = vpop.f32.mrf.mxu0
        %v8070 = vadd.f32 0.0, %v8069
        %v8071 = vpop.f32.mrf.mxu0
        %8072 = vmatprep.mubr.f32.mxu0 0.0
        %8073 = vmatmul.mubr.f32.gmra.mxu0 %v7191
        %v8074 = vpop.f32.mrf.mxu0
        %v8075 = vadd.f32 0.0, %v8074
        %v8076 = vpop.f32.mrf.mxu0
        %8077 = vmatprep.mubr.f32.mxu0 0.0
        %8078 = vmatmul.mubr.f32.gmra.mxu0 %v7194
        %v8079 = vpop.f32.mrf.mxu0
        %v8080 = vadd.f32 0.0, %v8079
        %v8081 = vpop.f32.mrf.mxu0
        %8082 = vdwg.mxu0
        %s8083 = scalar_lea.vmem %s7, 20
        %v8084 = vld [vmem:[%s8083] sm:$0xf]
        %v8086 = vsel %vm5500, %v8084, 0
        %8088 = vmatprep.subr.mxu0 0.0
        %8089 = vmatpush1.msra.mxu0 0.0
        %8090 = vmatprep.subr.mxu0 0.0
        %8091 = vmatpush1.msra.mxu0 0.0
        %8092 = vmatprep.subr.mxu0 0.0
        %8093 = vmatpush1.msra.mxu0 0.0
        %8094 = vmatprep.subr.mxu0 0.0
        %8095 = vmatpush1.msra.mxu0 0.0
        %8096 = vmatprep.subr.mxu0 0.0
        %8097 = vmatpush1.msra.mxu0 0.0
        %8098 = vmatprep.subr.mxu0 0.0
        %8099 = vmatpush1.msra.mxu0 0.0
        %8100 = vmatprep.subr.mxu0 0.0
        %8101 = vmatpush1.msra.mxu0 0.0
        %8102 = vmatprep.subr.mxu0 0.0
        %8103 = vmatpush1.msra.mxu0 0.0
        %8104 = vmatprep.subr.mxu0 0.0
        %8105 = vmatpush1.msra.mxu0 0.0
        %8106 = vmatprep.subr.mxu0 0.0
        %8107 = vmatpush1.msra.mxu0 0.0
        %8108 = vmatprep.subr.mxu0 0.0
        %8109 = vmatpush1.msra.mxu0 0.0
        %8110 = vmatprep.subr.mxu0 0.0
        %8111 = vmatpush1.msra.mxu0 0.0
        %8112 = vmatprep.subr.mxu0 0.0
        %8113 = vmatpush1.msra.mxu0 %v8080
        %8114 = vmatprep.subr.mxu0 0.0
        %8115 = vmatpush1.msra.mxu0 %v8075
        %8116 = vmatprep.subr.mxu0 0.0
        %8117 = vmatpush1.msra.mxu0 %v8070
        %8118 = vmatprep.subr.mxu0 0.0
        %8119 = vmatpush1.msra.mxu0 %v8065
        %8120 = vmatprep.subr.mxu0 0.0
        %8121 = vmatpush2.msra.mxu0 0.0
        %8122 = vmatprep.subr.mxu0 0.0
        %8123 = vmatpush2.msra.mxu0 0.0
        %8124 = vmatprep.subr.mxu0 0.0
        %8125 = vmatpush2.msra.mxu0 0.0
        %8126 = vmatprep.subr.mxu0 0.0
        %8127 = vmatpush2.msra.mxu0 0.0
        %8128 = vmatprep.subr.mxu0 0.0
        %8129 = vmatpush2.msra.mxu0 0.0
        %8130 = vmatprep.subr.mxu0 0.0
        %8131 = vmatpush2.msra.mxu0 0.0
        %8132 = vmatprep.subr.mxu0 0.0
        %8133 = vmatpush2.msra.mxu0 0.0
        %8134 = vmatprep.subr.mxu0 0.0
        %8135 = vmatpush2.msra.mxu0 0.0
        %8136 = vmatprep.subr.mxu0 0.0
        %8137 = vmatpush2.msra.mxu0 0.0
        %8138 = vmatprep.subr.mxu0 0.0
        %8139 = vmatpush2.msra.mxu0 0.0
        %8140 = vmatprep.subr.mxu0 0.0
        %8141 = vmatpush2.msra.mxu0 0.0
        %8142 = vmatprep.subr.mxu0 0.0
        %8143 = vmatpush2.msra.mxu0 0.0
        %8144 = vmatprep.subr.mxu0 0.0
        %8145 = vmatpush2.msra.mxu0 0.0
        %8146 = vmatprep.subr.mxu0 0.0
        %8147 = vmatpush2.msra.mxu0 0.0
        %8148 = vmatprep.subr.mxu0 0.0
        %8149 = vmatpush2.msra.mxu0 0.0
        %8150 = vmatprep.subr.mxu0 0.0
        %8151 = vmatpush2.msra.mxu0 0.0
        %8152 = vmatprep.mubr.f32.mxu0 0.0
        %8153 = vmatmul.mubr.f32.gmra.mxu0 %v8086
        %v8154 = vpop.f32.mrf.mxu0
        %v8155 = vadd.f32 0.0, %v8154
        %v8156 = vpop.f32.mrf.mxu0
        %8157 = vdwg.mxu0
        %v8158 = vadd.f32 %v7997, %v8155
        %8159 = vmatprep.subr.mxu0 0.0
        %8160 = vmatpush1.msra.mxu0 0.0
        %8161 = vmatprep.subr.mxu0 0.0
        %8162 = vmatpush1.msra.mxu0 0.0
        %8163 = vmatprep.subr.mxu0 0.0
        %8164 = vmatpush1.msra.mxu0 0.0
        %8165 = vmatprep.subr.mxu0 0.0
        %8166 = vmatpush1.msra.mxu0 0.0
        %8167 = vmatprep.subr.mxu0 0.0
        %8168 = vmatpush1.msra.mxu0 0.0
        %8169 = vmatprep.subr.mxu0 0.0
        %8170 = vmatpush1.msra.mxu0 0.0
        %8171 = vmatprep.subr.mxu0 0.0
        %8172 = vmatpush1.msra.mxu0 0.0
        %8173 = vmatprep.subr.mxu0 0.0
        %8174 = vmatpush1.msra.mxu0 0.0
        %8175 = vmatprep.subr.mxu0 0.0
        %8176 = vmatpush1.msra.mxu0 %v4311
        %8177 = vmatprep.subr.mxu0 0.0
        %8178 = vmatpush1.msra.mxu0 %v4310
        %8179 = vmatprep.subr.mxu0 0.0
        %8180 = vmatpush1.msra.mxu0 %v4309
        %8181 = vmatprep.subr.mxu0 0.0
        %8182 = vmatpush1.msra.mxu0 %v4308
        %8183 = vmatprep.subr.mxu0 0.0
        %8184 = vmatpush1.msra.mxu0 %v4307
        %8185 = vmatprep.subr.mxu0 0.0
        %8186 = vmatpush1.msra.mxu0 %v4306
        %8187 = vmatprep.subr.mxu0 0.0
        %8188 = vmatpush1.msra.mxu0 %v4305
        %8189 = vmatprep.subr.mxu0 0.0
        %8190 = vmatpush1.msra.mxu0 %v4304
        %8191 = vmatprep.subr.mxu0 0.0
        %8192 = vmatpush2.msra.mxu0 0.0
        %8193 = vmatprep.subr.mxu0 0.0
        %8194 = vmatpush2.msra.mxu0 0.0
        %8195 = vmatprep.subr.mxu0 0.0
        %8196 = vmatpush2.msra.mxu0 0.0
        %8197 = vmatprep.subr.mxu0 0.0
        %8198 = vmatpush2.msra.mxu0 0.0
        %8199 = vmatprep.subr.mxu0 0.0
        %8200 = vmatpush2.msra.mxu0 0.0
        %8201 = vmatprep.subr.mxu0 0.0
        %8202 = vmatpush2.msra.mxu0 0.0
        %8203 = vmatprep.subr.mxu0 0.0
        %8204 = vmatpush2.msra.mxu0 0.0
        %8205 = vmatprep.subr.mxu0 0.0
        %8206 = vmatpush2.msra.mxu0 0.0
        %8207 = vmatprep.subr.mxu0 0.0
        %8208 = vmatpush2.msra.mxu0 0.0
        %8209 = vmatprep.subr.mxu0 0.0
        %8210 = vmatpush2.msra.mxu0 0.0
        %8211 = vmatprep.subr.mxu0 0.0
        %8212 = vmatpush2.msra.mxu0 0.0
        %8213 = vmatprep.subr.mxu0 0.0
        %8214 = vmatpush2.msra.mxu0 0.0
        %8215 = vmatprep.subr.mxu0 0.0
        %8216 = vmatpush2.msra.mxu0 0.0
        %8217 = vmatprep.subr.mxu0 0.0
        %8218 = vmatpush2.msra.mxu0 0.0
        %8219 = vmatprep.subr.mxu0 0.0
        %8220 = vmatpush2.msra.mxu0 0.0
        %8221 = vmatprep.subr.mxu0 0.0
        %8222 = vmatpush2.msra.mxu0 0.0
        %8223 = vmatprep.mubr.f32.mxu0 0.0
        %8224 = vmatmul.mubr.f32.gmra.mxu0 %v7185
        %v8225 = vpop.f32.mrf.mxu0
        %v8226 = vadd.f32 0.0, %v8225
        %v8227 = vpop.f32.mrf.mxu0
        %8228 = vmatprep.mubr.f32.mxu0 0.0
        %8229 = vmatmul.mubr.f32.gmra.mxu0 %v7188
        %v8230 = vpop.f32.mrf.mxu0
        %v8231 = vadd.f32 0.0, %v8230
        %v8232 = vpop.f32.mrf.mxu0
        %8233 = vmatprep.mubr.f32.mxu0 0.0
        %8234 = vmatmul.mubr.f32.gmra.mxu0 %v7191
        %v8235 = vpop.f32.mrf.mxu0
        %v8236 = vadd.f32 0.0, %v8235
        %v8237 = vpop.f32.mrf.mxu0
        %8238 = vmatprep.mubr.f32.mxu0 0.0
        %8239 = vmatmul.mubr.f32.gmra.mxu0 %v7194
        %v8240 = vpop.f32.mrf.mxu0
        %v8241 = vadd.f32 0.0, %v8240
        %v8242 = vpop.f32.mrf.mxu0
        %8243 = vdwg.mxu0
        %s8244 = scalar_lea.vmem %s7, 24
        %v8245 = vld [vmem:[%s8244] sm:$0xf]
        %v8247 = vsel %vm5500, %v8245, 0
        %8249 = vmatprep.subr.mxu0 0.0
        %8250 = vmatpush1.msra.mxu0 0.0
        %8251 = vmatprep.subr.mxu0 0.0
        %8252 = vmatpush1.msra.mxu0 0.0
        %8253 = vmatprep.subr.mxu0 0.0
        %8254 = vmatpush1.msra.mxu0 0.0
        %8255 = vmatprep.subr.mxu0 0.0
        %8256 = vmatpush1.msra.mxu0 0.0
        %8257 = vmatprep.subr.mxu0 0.0
        %8258 = vmatpush1.msra.mxu0 0.0
        %8259 = vmatprep.subr.mxu0 0.0
        %8260 = vmatpush1.msra.mxu0 0.0
        %8261 = vmatprep.subr.mxu0 0.0
        %8262 = vmatpush1.msra.mxu0 0.0
        %8263 = vmatprep.subr.mxu0 0.0
        %8264 = vmatpush1.msra.mxu0 0.0
        %8265 = vmatprep.subr.mxu0 0.0
        %8266 = vmatpush1.msra.mxu0 0.0
        %8267 = vmatprep.subr.mxu0 0.0
        %8268 = vmatpush1.msra.mxu0 0.0
        %8269 = vmatprep.subr.mxu0 0.0
        %8270 = vmatpush1.msra.mxu0 0.0
        %8271 = vmatprep.subr.mxu0 0.0
        %8272 = vmatpush1.msra.mxu0 0.0
        %8273 = vmatprep.subr.mxu0 0.0
        %8274 = vmatpush1.msra.mxu0 %v8241
        %8275 = vmatprep.subr.mxu0 0.0
        %8276 = vmatpush1.msra.mxu0 %v8236
        %8277 = vmatprep.subr.mxu0 0.0
        %8278 = vmatpush1.msra.mxu0 %v8231
        %8279 = vmatprep.subr.mxu0 0.0
        %8280 = vmatpush1.msra.mxu0 %v8226
        %8281 = vmatprep.subr.mxu0 0.0
        %8282 = vmatpush2.msra.mxu0 0.0
        %8283 = vmatprep.subr.mxu0 0.0
        %8284 = vmatpush2.msra.mxu0 0.0
        %8285 = vmatprep.subr.mxu0 0.0
        %8286 = vmatpush2.msra.mxu0 0.0
        %8287 = vmatprep.subr.mxu0 0.0
        %8288 = vmatpush2.msra.mxu0 0.0
        %8289 = vmatprep.subr.mxu0 0.0
        %8290 = vmatpush2.msra.mxu0 0.0
        %8291 = vmatprep.subr.mxu0 0.0
        %8292 = vmatpush2.msra.mxu0 0.0
        %8293 = vmatprep.subr.mxu0 0.0
        %8294 = vmatpush2.msra.mxu0 0.0
        %8295 = vmatprep.subr.mxu0 0.0
        %8296 = vmatpush2.msra.mxu0 0.0
        %8297 = vmatprep.subr.mxu0 0.0
        %8298 = vmatpush2.msra.mxu0 0.0
        %8299 = vmatprep.subr.mxu0 0.0
        %8300 = vmatpush2.msra.mxu0 0.0
        %8301 = vmatprep.subr.mxu0 0.0
        %8302 = vmatpush2.msra.mxu0 0.0
        %8303 = vmatprep.subr.mxu0 0.0
        %8304 = vmatpush2.msra.mxu0 0.0
        %8305 = vmatprep.subr.mxu0 0.0
        %8306 = vmatpush2.msra.mxu0 0.0
        %8307 = vmatprep.subr.mxu0 0.0
        %8308 = vmatpush2.msra.mxu0 0.0
        %8309 = vmatprep.subr.mxu0 0.0
        %8310 = vmatpush2.msra.mxu0 0.0
        %8311 = vmatprep.subr.mxu0 0.0
        %8312 = vmatpush2.msra.mxu0 0.0
        %8313 = vmatprep.mubr.f32.mxu0 0.0
        %8314 = vmatmul.mubr.f32.gmra.mxu0 %v8247
        %v8315 = vpop.f32.mrf.mxu0
        %v8316 = vadd.f32 0.0, %v8315
        %v8317 = vpop.f32.mrf.mxu0
        %8318 = vdwg.mxu0
        %v8319 = vadd.f32 %v8158, %v8316
        %8320 = vmatprep.subr.mxu0 0.0
        %8321 = vmatpush1.msra.mxu0 0.0
        %8322 = vmatprep.subr.mxu0 0.0
        %8323 = vmatpush1.msra.mxu0 0.0
        %8324 = vmatprep.subr.mxu0 0.0
        %8325 = vmatpush1.msra.mxu0 0.0
        %8326 = vmatprep.subr.mxu0 0.0
        %8327 = vmatpush1.msra.mxu0 0.0
        %8328 = vmatprep.subr.mxu0 0.0
        %8329 = vmatpush1.msra.mxu0 0.0
        %8330 = vmatprep.subr.mxu0 0.0
        %8331 = vmatpush1.msra.mxu0 0.0
        %8332 = vmatprep.subr.mxu0 0.0
        %8333 = vmatpush1.msra.mxu0 0.0
        %8334 = vmatprep.subr.mxu0 0.0
        %8335 = vmatpush1.msra.mxu0 0.0
        %8336 = vmatprep.subr.mxu0 0.0
        %8337 = vmatpush1.msra.mxu0 %v4501
        %8338 = vmatprep.subr.mxu0 0.0
        %8339 = vmatpush1.msra.mxu0 %v4500
        %8340 = vmatprep.subr.mxu0 0.0
        %8341 = vmatpush1.msra.mxu0 %v4499
        %8342 = vmatprep.subr.mxu0 0.0
        %8343 = vmatpush1.msra.mxu0 %v4498
        %8344 = vmatprep.subr.mxu0 0.0
        %8345 = vmatpush1.msra.mxu0 %v4497
        %8346 = vmatprep.subr.mxu0 0.0
        %8347 = vmatpush1.msra.mxu0 %v4496
        %8348 = vmatprep.subr.mxu0 0.0
        %8349 = vmatpush1.msra.mxu0 %v4495
        %8350 = vmatprep.subr.mxu0 0.0
        %8351 = vmatpush1.msra.mxu0 %v4494
        %8352 = vmatprep.subr.mxu0 0.0
        %8353 = vmatpush2.msra.mxu0 0.0
        %8354 = vmatprep.subr.mxu0 0.0
        %8355 = vmatpush2.msra.mxu0 0.0
        %8356 = vmatprep.subr.mxu0 0.0
        %8357 = vmatpush2.msra.mxu0 0.0
        %8358 = vmatprep.subr.mxu0 0.0
        %8359 = vmatpush2.msra.mxu0 0.0
        %8360 = vmatprep.subr.mxu0 0.0
        %8361 = vmatpush2.msra.mxu0 0.0
        %8362 = vmatprep.subr.mxu0 0.0
        %8363 = vmatpush2.msra.mxu0 0.0
        %8364 = vmatprep.subr.mxu0 0.0
        %8365 = vmatpush2.msra.mxu0 0.0
        %8366 = vmatprep.subr.mxu0 0.0
        %8367 = vmatpush2.msra.mxu0 0.0
        %8368 = vmatprep.subr.mxu0 0.0
        %8369 = vmatpush2.msra.mxu0 0.0
        %8370 = vmatprep.subr.mxu0 0.0
        %8371 = vmatpush2.msra.mxu0 0.0
        %8372 = vmatprep.subr.mxu0 0.0
        %8373 = vmatpush2.msra.mxu0 0.0
        %8374 = vmatprep.subr.mxu0 0.0
        %8375 = vmatpush2.msra.mxu0 0.0
        %8376 = vmatprep.subr.mxu0 0.0
        %8377 = vmatpush2.msra.mxu0 0.0
        %8378 = vmatprep.subr.mxu0 0.0
        %8379 = vmatpush2.msra.mxu0 0.0
        %8380 = vmatprep.subr.mxu0 0.0
        %8381 = vmatpush2.msra.mxu0 0.0
        %8382 = vmatprep.subr.mxu0 0.0
        %8383 = vmatpush2.msra.mxu0 0.0
        %8384 = vmatprep.mubr.f32.mxu0 0.0
        %8385 = vmatmul.mubr.f32.gmra.mxu0 %v7185
        %v8386 = vpop.f32.mrf.mxu0
        %v8387 = vadd.f32 0.0, %v8386
        %v8388 = vpop.f32.mrf.mxu0
        %8389 = vmatprep.mubr.f32.mxu0 0.0
        %8390 = vmatmul.mubr.f32.gmra.mxu0 %v7188
        %v8391 = vpop.f32.mrf.mxu0
        %v8392 = vadd.f32 0.0, %v8391
        %v8393 = vpop.f32.mrf.mxu0
        %8394 = vmatprep.mubr.f32.mxu0 0.0
        %8395 = vmatmul.mubr.f32.gmra.mxu0 %v7191
        %v8396 = vpop.f32.mrf.mxu0
        %v8397 = vadd.f32 0.0, %v8396
        %v8398 = vpop.f32.mrf.mxu0
        %8399 = vmatprep.mubr.f32.mxu0 0.0
        %8400 = vmatmul.mubr.f32.gmra.mxu0 %v7194
        %v8401 = vpop.f32.mrf.mxu0
        %v8402 = vadd.f32 0.0, %v8401
        %v8403 = vpop.f32.mrf.mxu0
        %8404 = vdwg.mxu0
        %s8405 = scalar_lea.vmem %s7, 28
        %v8406 = vld [vmem:[%s8405] sm:$0xf]
        %v8408 = vsel %vm5500, %v8406, 0
        %8410 = vmatprep.subr.mxu0 0.0
        %8411 = vmatpush1.msra.mxu0 0.0
        %8412 = vmatprep.subr.mxu0 0.0
        %8413 = vmatpush1.msra.mxu0 0.0
        %8414 = vmatprep.subr.mxu0 0.0
        %8415 = vmatpush1.msra.mxu0 0.0
        %8416 = vmatprep.subr.mxu0 0.0
        %8417 = vmatpush1.msra.mxu0 0.0
        %8418 = vmatprep.subr.mxu0 0.0
        %8419 = vmatpush1.msra.mxu0 0.0
        %8420 = vmatprep.subr.mxu0 0.0
        %8421 = vmatpush1.msra.mxu0 0.0
        %8422 = vmatprep.subr.mxu0 0.0
        %8423 = vmatpush1.msra.mxu0 0.0
        %8424 = vmatprep.subr.mxu0 0.0
        %8425 = vmatpush1.msra.mxu0 0.0
        %8426 = vmatprep.subr.mxu0 0.0
        %8427 = vmatpush1.msra.mxu0 0.0
        %8428 = vmatprep.subr.mxu0 0.0
        %8429 = vmatpush1.msra.mxu0 0.0
        %8430 = vmatprep.subr.mxu0 0.0
        %8431 = vmatpush1.msra.mxu0 0.0
        %8432 = vmatprep.subr.mxu0 0.0
        %8433 = vmatpush1.msra.mxu0 0.0
        %8434 = vmatprep.subr.mxu0 0.0
        %8435 = vmatpush1.msra.mxu0 %v8402
        %8436 = vmatprep.subr.mxu0 0.0
        %8437 = vmatpush1.msra.mxu0 %v8397
        %8438 = vmatprep.subr.mxu0 0.0
        %8439 = vmatpush1.msra.mxu0 %v8392
        %8440 = vmatprep.subr.mxu0 0.0
        %8441 = vmatpush1.msra.mxu0 %v8387
        %8442 = vmatprep.subr.mxu0 0.0
        %8443 = vmatpush2.msra.mxu0 0.0
        %8444 = vmatprep.subr.mxu0 0.0
        %8445 = vmatpush2.msra.mxu0 0.0
        %8446 = vmatprep.subr.mxu0 0.0
        %8447 = vmatpush2.msra.mxu0 0.0
        %8448 = vmatprep.subr.mxu0 0.0
        %8449 = vmatpush2.msra.mxu0 0.0
        %8450 = vmatprep.subr.mxu0 0.0
        %8451 = vmatpush2.msra.mxu0 0.0
        %8452 = vmatprep.subr.mxu0 0.0
        %8453 = vmatpush2.msra.mxu0 0.0
        %8454 = vmatprep.subr.mxu0 0.0
        %8455 = vmatpush2.msra.mxu0 0.0
        %8456 = vmatprep.subr.mxu0 0.0
        %8457 = vmatpush2.msra.mxu0 0.0
        %8458 = vmatprep.subr.mxu0 0.0
        %8459 = vmatpush2.msra.mxu0 0.0
        %8460 = vmatprep.subr.mxu0 0.0
        %8461 = vmatpush2.msra.mxu0 0.0
        %8462 = vmatprep.subr.mxu0 0.0
        %8463 = vmatpush2.msra.mxu0 0.0
        %8464 = vmatprep.subr.mxu0 0.0
        %8465 = vmatpush2.msra.mxu0 0.0
        %8466 = vmatprep.subr.mxu0 0.0
        %8467 = vmatpush2.msra.mxu0 0.0
        %8468 = vmatprep.subr.mxu0 0.0
        %8469 = vmatpush2.msra.mxu0 0.0
        %8470 = vmatprep.subr.mxu0 0.0
        %8471 = vmatpush2.msra.mxu0 0.0
        %8472 = vmatprep.subr.mxu0 0.0
        %8473 = vmatpush2.msra.mxu0 0.0
        %8474 = vmatprep.mubr.f32.mxu0 0.0
        %8475 = vmatmul.mubr.f32.gmra.mxu0 %v8408
        %v8476 = vpop.f32.mrf.mxu0
        %v8477 = vadd.f32 0.0, %v8476
        %v8478 = vpop.f32.mrf.mxu0
        %8479 = vdwg.mxu0
        %v8480 = vadd.f32 %v8319, %v8477
        %8481 = vmatprep.subr.mxu0 0.0
        %8482 = vmatpush1.msra.mxu0 0.0
        %8483 = vmatprep.subr.mxu0 0.0
        %8484 = vmatpush1.msra.mxu0 0.0
        %8485 = vmatprep.subr.mxu0 0.0
        %8486 = vmatpush1.msra.mxu0 0.0
        %8487 = vmatprep.subr.mxu0 0.0
        %8488 = vmatpush1.msra.mxu0 0.0
        %8489 = vmatprep.subr.mxu0 0.0
        %8490 = vmatpush1.msra.mxu0 0.0
        %8491 = vmatprep.subr.mxu0 0.0
        %8492 = vmatpush1.msra.mxu0 0.0
        %8493 = vmatprep.subr.mxu0 0.0
        %8494 = vmatpush1.msra.mxu0 0.0
        %8495 = vmatprep.subr.mxu0 0.0
        %8496 = vmatpush1.msra.mxu0 0.0
        %8497 = vmatprep.subr.mxu0 0.0
        %8498 = vmatpush1.msra.mxu0 %v4691
        %8499 = vmatprep.subr.mxu0 0.0
        %8500 = vmatpush1.msra.mxu0 %v4690
        %8501 = vmatprep.subr.mxu0 0.0
        %8502 = vmatpush1.msra.mxu0 %v4689
        %8503 = vmatprep.subr.mxu0 0.0
        %8504 = vmatpush1.msra.mxu0 %v4688
        %8505 = vmatprep.subr.mxu0 0.0
        %8506 = vmatpush1.msra.mxu0 %v4687
        %8507 = vmatprep.subr.mxu0 0.0
        %8508 = vmatpush1.msra.mxu0 %v4686
        %8509 = vmatprep.subr.mxu0 0.0
        %8510 = vmatpush1.msra.mxu0 %v4685
        %8511 = vmatprep.subr.mxu0 0.0
        %8512 = vmatpush1.msra.mxu0 %v4684
        %8513 = vmatprep.subr.mxu0 0.0
        %8514 = vmatpush2.msra.mxu0 0.0
        %8515 = vmatprep.subr.mxu0 0.0
        %8516 = vmatpush2.msra.mxu0 0.0
        %8517 = vmatprep.subr.mxu0 0.0
        %8518 = vmatpush2.msra.mxu0 0.0
        %8519 = vmatprep.subr.mxu0 0.0
        %8520 = vmatpush2.msra.mxu0 0.0
        %8521 = vmatprep.subr.mxu0 0.0
        %8522 = vmatpush2.msra.mxu0 0.0
        %8523 = vmatprep.subr.mxu0 0.0
        %8524 = vmatpush2.msra.mxu0 0.0
        %8525 = vmatprep.subr.mxu0 0.0
        %8526 = vmatpush2.msra.mxu0 0.0
        %8527 = vmatprep.subr.mxu0 0.0
        %8528 = vmatpush2.msra.mxu0 0.0
        %8529 = vmatprep.subr.mxu0 0.0
        %8530 = vmatpush2.msra.mxu0 0.0
        %8531 = vmatprep.subr.mxu0 0.0
        %8532 = vmatpush2.msra.mxu0 0.0
        %8533 = vmatprep.subr.mxu0 0.0
        %8534 = vmatpush2.msra.mxu0 0.0
        %8535 = vmatprep.subr.mxu0 0.0
        %8536 = vmatpush2.msra.mxu0 0.0
        %8537 = vmatprep.subr.mxu0 0.0
        %8538 = vmatpush2.msra.mxu0 0.0
        %8539 = vmatprep.subr.mxu0 0.0
        %8540 = vmatpush2.msra.mxu0 0.0
        %8541 = vmatprep.subr.mxu0 0.0
        %8542 = vmatpush2.msra.mxu0 0.0
        %8543 = vmatprep.subr.mxu0 0.0
        %8544 = vmatpush2.msra.mxu0 0.0
        %8545 = vmatprep.mubr.f32.mxu0 0.0
        %8546 = vmatmul.mubr.f32.gmra.mxu0 %v7185
        %v8547 = vpop.f32.mrf.mxu0
        %v8548 = vadd.f32 0.0, %v8547
        %v8549 = vpop.f32.mrf.mxu0
        %8550 = vmatprep.mubr.f32.mxu0 0.0
        %8551 = vmatmul.mubr.f32.gmra.mxu0 %v7188
        %v8552 = vpop.f32.mrf.mxu0
        %v8553 = vadd.f32 0.0, %v8552
        %v8554 = vpop.f32.mrf.mxu0
        %8555 = vmatprep.mubr.f32.mxu0 0.0
        %8556 = vmatmul.mubr.f32.gmra.mxu0 %v7191
        %v8557 = vpop.f32.mrf.mxu0
        %v8558 = vadd.f32 0.0, %v8557
        %v8559 = vpop.f32.mrf.mxu0
        %8560 = vmatprep.mubr.f32.mxu0 0.0
        %8561 = vmatmul.mubr.f32.gmra.mxu0 %v7194
        %v8562 = vpop.f32.mrf.mxu0
        %v8563 = vadd.f32 0.0, %v8562
        %v8564 = vpop.f32.mrf.mxu0
        %8565 = vdwg.mxu0
        %s8566 = scalar_lea.vmem %s7, 32
        %v8567 = vld [vmem:[%s8566] sm:$0xf]
        %v8569 = vsel %vm5500, %v8567, 0
        %8571 = vmatprep.subr.mxu0 0.0
        %8572 = vmatpush1.msra.mxu0 0.0
        %8573 = vmatprep.subr.mxu0 0.0
        %8574 = vmatpush1.msra.mxu0 0.0
        %8575 = vmatprep.subr.mxu0 0.0
        %8576 = vmatpush1.msra.mxu0 0.0
        %8577 = vmatprep.subr.mxu0 0.0
        %8578 = vmatpush1.msra.mxu0 0.0
        %8579 = vmatprep.subr.mxu0 0.0
        %8580 = vmatpush1.msra.mxu0 0.0
        %8581 = vmatprep.subr.mxu0 0.0
        %8582 = vmatpush1.msra.mxu0 0.0
        %8583 = vmatprep.subr.mxu0 0.0
        %8584 = vmatpush1.msra.mxu0 0.0
        %8585 = vmatprep.subr.mxu0 0.0
        %8586 = vmatpush1.msra.mxu0 0.0
        %8587 = vmatprep.subr.mxu0 0.0
        %8588 = vmatpush1.msra.mxu0 0.0
        %8589 = vmatprep.subr.mxu0 0.0
        %8590 = vmatpush1.msra.mxu0 0.0
        %8591 = vmatprep.subr.mxu0 0.0
        %8592 = vmatpush1.msra.mxu0 0.0
        %8593 = vmatprep.subr.mxu0 0.0
        %8594 = vmatpush1.msra.mxu0 0.0
        %8595 = vmatprep.subr.mxu0 0.0
        %8596 = vmatpush1.msra.mxu0 %v8563
        %8597 = vmatprep.subr.mxu0 0.0
        %8598 = vmatpush1.msra.mxu0 %v8558
        %8599 = vmatprep.subr.mxu0 0.0
        %8600 = vmatpush1.msra.mxu0 %v8553
        %8601 = vmatprep.subr.mxu0 0.0
        %8602 = vmatpush1.msra.mxu0 %v8548
        %8603 = vmatprep.subr.mxu0 0.0
        %8604 = vmatpush2.msra.mxu0 0.0
        %8605 = vmatprep.subr.mxu0 0.0
        %8606 = vmatpush2.msra.mxu0 0.0
        %8607 = vmatprep.subr.mxu0 0.0
        %8608 = vmatpush2.msra.mxu0 0.0
        %8609 = vmatprep.subr.mxu0 0.0
        %8610 = vmatpush2.msra.mxu0 0.0
        %8611 = vmatprep.subr.mxu0 0.0
        %8612 = vmatpush2.msra.mxu0 0.0
        %8613 = vmatprep.subr.mxu0 0.0
        %8614 = vmatpush2.msra.mxu0 0.0
        %8615 = vmatprep.subr.mxu0 0.0
        %8616 = vmatpush2.msra.mxu0 0.0
        %8617 = vmatprep.subr.mxu0 0.0
        %8618 = vmatpush2.msra.mxu0 0.0
        %8619 = vmatprep.subr.mxu0 0.0
        %8620 = vmatpush2.msra.mxu0 0.0
        %8621 = vmatprep.subr.mxu0 0.0
        %8622 = vmatpush2.msra.mxu0 0.0
        %8623 = vmatprep.subr.mxu0 0.0
        %8624 = vmatpush2.msra.mxu0 0.0
        %8625 = vmatprep.subr.mxu0 0.0
        %8626 = vmatpush2.msra.mxu0 0.0
        %8627 = vmatprep.subr.mxu0 0.0
        %8628 = vmatpush2.msra.mxu0 0.0
        %8629 = vmatprep.subr.mxu0 0.0
        %8630 = vmatpush2.msra.mxu0 0.0
        %8631 = vmatprep.subr.mxu0 0.0
        %8632 = vmatpush2.msra.mxu0 0.0
        %8633 = vmatprep.subr.mxu0 0.0
        %8634 = vmatpush2.msra.mxu0 0.0
        %8635 = vmatprep.mubr.f32.mxu0 0.0
        %8636 = vmatmul.mubr.f32.gmra.mxu0 %v8569
        %v8637 = vpop.f32.mrf.mxu0
        %v8638 = vadd.f32 0.0, %v8637
        %v8639 = vpop.f32.mrf.mxu0
        %8640 = vdwg.mxu0
        %v8641 = vadd.f32 %v8480, %v8638
        %v8642 = vld [vmem:[%s8] sm:$0xf]
        %8644 = vset.pattern.permute.xlu0 0
        %8645 = vperm.xlu0 %8644, %v8642
        %v8646 = vpop.permute.xlu0 %8645
        %v8648 = vadd.f32 %v8641, %v8646
        %v8649 = vld [vmem:[#allocation12] sm:$0xff]
        %v8650 = vld [vmem:[#allocation12 + $0x8] sm:$0xff]
        %v8651 = vld [vmem:[#allocation12 + $0x10] sm:$0xff]
        %v8652 = vld [vmem:[#allocation12 + $0x18] sm:$0xff]
        %v8653 = vld [vmem:[#allocation12 + $0x20] sm:$0xff]
        %v8654 = vld [vmem:[#allocation12 + $0x28] sm:$0xff]
        %v8655 = vld [vmem:[#allocation12 + $0x30] sm:$0xff]
        %v8656 = vld [vmem:[#allocation12 + $0x38] sm:$0xff]
        %v8657 = vld [vmem:[#allocation12 + $0x40] sm:$0xff]
        %v8658 = vld [vmem:[#allocation12 + $0x48] sm:$0xff]
        %v8659 = vld [vmem:[#allocation12 + $0x50] sm:$0xff]
        %v8660 = vld [vmem:[#allocation12 + $0x58] sm:$0xff]
        %v8661 = vld [vmem:[#allocation12 + $0x60] sm:$0xff]
        %v8662 = vld [vmem:[#allocation12 + $0x68] sm:$0xff]
        %v8663 = vld [vmem:[#allocation12 + $0x70] sm:$0xff]
        %v8664 = vld [vmem:[#allocation12 + $0x78] sm:$0xff]
        %v8666 = vsel %vm3173, %v8648, 0
        %8668 = vmatprep.subr.mxu0 0.0
        %8669 = vmatpush1.msra.mxu0 0.0
        %8670 = vmatprep.subr.mxu0 0.0
        %8671 = vmatpush1.msra.mxu0 0.0
        %8672 = vmatprep.subr.mxu0 0.0
        %8673 = vmatpush1.msra.mxu0 0.0
        %8674 = vmatprep.subr.mxu0 0.0
        %8675 = vmatpush1.msra.mxu0 0.0
        %8676 = vmatprep.subr.mxu0 0.0
        %8677 = vmatpush1.msra.mxu0 0.0
        %8678 = vmatprep.subr.mxu0 0.0
        %8679 = vmatpush1.msra.mxu0 0.0
        %8680 = vmatprep.subr.mxu0 0.0
        %8681 = vmatpush1.msra.mxu0 0.0
        %8682 = vmatprep.subr.mxu0 0.0
        %8683 = vmatpush1.msra.mxu0 0.0
        %8684 = vmatprep.subr.mxu0 %v8664
        %8685 = vmatpush1.msra.mxu0 %v8663
        %8686 = vmatprep.subr.mxu0 %v8662
        %8687 = vmatpush1.msra.mxu0 %v8661
        %8688 = vmatprep.subr.mxu0 %v8660
        %8689 = vmatpush1.msra.mxu0 %v8659
        %8690 = vmatprep.subr.mxu0 %v8658
        %8691 = vmatpush1.msra.mxu0 %v8657
        %8692 = vmatprep.subr.mxu0 %v8656
        %8693 = vmatpush1.msra.mxu0 %v8655
        %8694 = vmatprep.subr.mxu0 %v8654
        %8695 = vmatpush1.msra.mxu0 %v8653
        %8696 = vmatprep.subr.mxu0 %v8652
        %8697 = vmatpush1.msra.mxu0 %v8651
        %8698 = vmatprep.subr.mxu0 %v8650
        %8699 = vmatpush1.msra.mxu0 %v8649
        %8700 = vmatprep.subr.mxu0 0.0
        %8701 = vmatpush2.msra.mxu0 0.0
        %8702 = vmatprep.subr.mxu0 0.0
        %8703 = vmatpush2.msra.mxu0 0.0
        %8704 = vmatprep.subr.mxu0 0.0
        %8705 = vmatpush2.msra.mxu0 0.0
        %8706 = vmatprep.subr.mxu0 0.0
        %8707 = vmatpush2.msra.mxu0 0.0
        %8708 = vmatprep.subr.mxu0 0.0
        %8709 = vmatpush2.msra.mxu0 0.0
        %8710 = vmatprep.subr.mxu0 0.0
        %8711 = vmatpush2.msra.mxu0 0.0
        %8712 = vmatprep.subr.mxu0 0.0
        %8713 = vmatpush2.msra.mxu0 0.0
        %8714 = vmatprep.subr.mxu0 0.0
        %8715 = vmatpush2.msra.mxu0 0.0
        %8716 = vmatprep.subr.mxu0 0.0
        %8717 = vmatpush2.msra.mxu0 0.0
        %8718 = vmatprep.subr.mxu0 0.0
        %8719 = vmatpush2.msra.mxu0 0.0
        %8720 = vmatprep.subr.mxu0 0.0
        %8721 = vmatpush2.msra.mxu0 0.0
        %8722 = vmatprep.subr.mxu0 0.0
        %8723 = vmatpush2.msra.mxu0 0.0
        %8724 = vmatprep.subr.mxu0 0.0
        %8725 = vmatpush2.msra.mxu0 0.0
        %8726 = vmatprep.subr.mxu0 0.0
        %8727 = vmatpush2.msra.mxu0 0.0
        %8728 = vmatprep.subr.mxu0 0.0
        %8729 = vmatpush2.msra.mxu0 0.0
        %8730 = vmatprep.subr.mxu0 0.0
        %8731 = vmatpush2.msra.mxu0 0.0
        %8732 = vmatprep.mubr.f32.mxu0 0.0
        %8733 = vmatmul.mubr.f32.gmra.mxu0 %v8666
        %v8734 = vpop.f32.mrf.mxu0
        %v8735 = vadd.f32 0.0, %v8734
        %v8736 = vpop.f32.mrf.mxu0
        %v8737 = vadd.f32 0.0, %v8736
        %8738 = vdwg.mxu0
        %v8741 = vcombine.low %v8735, %v8737
        %8743 = vst [vmem:[%s623] sm:$0xff] %v8741
        %p8744 = scmp.lt.s32.totalorder %s31, 1
        %s8745 = scalar_select %p8744, %s31, 1
        %s8746 = smul.addr %s8745, 2
        %s8747 = smul.addr %s8746, 4
        %s8748 = scalar_lea.vmem %s16, %s8747
        // Predicated region
        $region113: #{lanenet_forward.1} parent=83 // pred_check
          %p8749 = pneg %p390
        $region114: #{lanenet_forward.1} parent=83 // pred_check_branch
          %8751 = sbr.rel (%p8749) target = $region116
        $region115: #{lanenet_forward.1} parent=83 // pred_region
          _
        $region116: #{lanenet_forward.1} parent=83 // pred_fallthru
          _
      $region84: #{lanenet_forward.1} parent=5 // pred_fallthru
        _
      %p8752 = scmp.le.s32.totalorder 2, %s26
      // Predicated region
      $region117: #{lanenet_forward.1} parent=5 // pred_check
        %p8753 = pneg %p8752
      $region118: #{lanenet_forward.1} parent=5 // pred_check_branch
        %8755 = sbr.rel (%p8753) target = $region120
      $region119: #{lanenet_forward.1} parent=5 // pred_region
        %s8756 = ssub.s32 %s26, 2
        // Predicated region
        $region121: #{lanenet_forward.1} parent=119 // pred_check
          %p8757 = pneg %p396
        $region122: #{lanenet_forward.1} parent=119 // pred_check_branch
          %8759 = sbr.rel (%p8757) target = $region124
        $region123: #{lanenet_forward.1} parent=119 // pred_region
          %p8760 = scmp.lt.s32.totalorder %s32, 1
          %s8761 = scalar_select %p8760, %s32, 1
          %s8762 = smul.addr %s8761, 2
          %s8763 = smul.addr %s8762, 4
          %s8764 = scalar_lea.vmem %s16, %s8763
        $region124: #{lanenet_forward.1} parent=119 // pred_fallthru
          _
      $region120: #{lanenet_forward.1} parent=5 // pred_fallthru
        _
    $region6: #{lanenet_forward.1} parent=1 // loop_footer
      %s30 = sadd.s32 1, %s26
    $region7: #{lanenet_forward.1} parent=1 // loop_footer_branch
      %25 = sbr.rel target = $region3
    $region8: #{lanenet_forward.1} parent=1 // loop_exit
      _
    %8765 = vsyncpa [#allocation3], 1
    %s8766 = scalar_lea.sflag [#allocation3], 1
    %8767 = vsyncpa %s8766, 1
    %8768 = vsyncpa [#allocation5], 1
    %8769 = vsyncpa [#allocation8], 1
    %8770 = vsyncpa [#allocation11], 1

</llo_original>
